<compile_context>
chip_gen: v6e
topology: v6e:2x2x1
jax: 0.10.0
libtpu: 0.0.40
codegen_flags: <defaults>
</compile_context>

<pallas_src>
import jax
import jax.numpy as jnp
from jax import lax
from jax.experimental import pallas as pl
from jax.experimental.pallas import tpu as pltpu


# ---------------------------- Pallas kernels ----------------------------

def _conv_gemm_bias_relu_kernel(p_ref, w_ref, b_ref, o_ref):
    # p_ref: (TM, K) bf16, w_ref: (K, Cout) bf16, b_ref: (1, Cout) f32, o_ref: (TM, Cout) f32
    acc = jnp.dot(p_ref[...], w_ref[...], preferred_element_type=jnp.float32)
    o_ref[...] = jnp.maximum(acc + b_ref[...], 0.0)


def conv1_gemm_relu(patches, w_mat, bias, *, rows_per_step):
    """patches: (M, K) bf16 with M = N*H*W; w_mat: (K, Cout) bf16; bias: (1, Cout) f32.

    Gridded over row tiles (one image per step) so VMEM use is batch-independent
    and steps can shard across TensorCores on v7x."""
    M, K = patches.shape
    cout = w_mat.shape[1]
    assert M % rows_per_step == 0
    return pl.pallas_call(
        _conv_gemm_bias_relu_kernel,
        out_shape=jax.ShapeDtypeStruct((M, cout), jnp.float32),
        grid=(M // rows_per_step,),
        in_specs=[
            pl.BlockSpec((rows_per_step, K), lambda i: (i, 0)),   # stream patch tiles
            pl.BlockSpec((K, cout), lambda i: (0, 0)),            # weight stays resident
            pl.BlockSpec((1, cout), lambda i: (0, 0)),
        ],
        out_specs=pl.BlockSpec((rows_per_step, cout), lambda i: (i, 0)),
        compiler_params=pltpu.CompilerParams(dimension_semantics=("parallel",)),
    )(patches, w_mat, bias)


def conv2_shifted_gemm_relu(pw, w_taps, bias, *, h_out, w_out):
    """Conv2 without a materialized full im2col.

    pw:     (N, (h_out + kh - 1) * w_out, kw * Cin) bf16 width-only patches
            (row index = hp * w_out + w, column index = dw * Cin + c).
    w_taps: (kh, kw * Cin, Cout) bf16 — one GEMM weight per kernel-height tap.
    bias:   (1, Cout) f32.
    Returns (N, h_out * w_out, Cout) f32 (bias + ReLU applied).
    """
    N, rows, kc = pw.shape
    kh, _, cout = w_taps.shape
    hw = h_out * w_out

    def kernel(pw_ref, w_ref, b_ref, o_ref):
        # Accumulate the kh height-taps as statically-shifted GEMMs on the
        # resident VMEM activation slab; f32 bias + ReLU epilogue.
        acc = jnp.zeros((hw, cout), jnp.float32)
        for dh in range(kh):                                    # kh = 5, static unroll
            lhs = pw_ref[0, pl.ds(dh * w_out, hw), :]           # (hw, kw*Cin) bf16
            acc = acc + jnp.dot(lhs, w_ref[dh],
                                preferred_element_type=jnp.float32)
        o_ref[0] = jnp.maximum(acc + b_ref[...], 0.0)

    return pl.pallas_call(
        kernel,
        out_shape=jax.ShapeDtypeStruct((N, hw, cout), jnp.float32),
        grid=(N,),
        in_specs=[
            pl.BlockSpec((1, rows, kc), lambda b: (b, 0, 0)),    # one image per step
            pl.BlockSpec((kh, kc, cout), lambda b: (0, 0, 0)),   # taps weight resident
            pl.BlockSpec((1, cout), lambda b: (0, 0)),
        ],
        out_specs=pl.BlockSpec((1, hw, cout), lambda b: (b, 0, 0)),
        compiler_params=pltpu.CompilerParams(dimension_semantics=("parallel",)),
    )(pw, w_taps, bias)


def _fc_fused_kernel(x_ref, w1_ref, b1_ref, w2_ref, b2_ref, o_ref, acc_ref):
    j = pl.program_id(0)

    @pl.when(j == 0)
    def _():
        acc_ref[...] = jnp.zeros_like(acc_ref)

    # fc1 tile: (B, K) @ (K, TN) -> (B, TN), bias added in f32 (no activation,
    # matching the PyTorch model: fc1 -> dropout -> fc2).
    h = jnp.dot(x_ref[...], w1_ref[...],
                preferred_element_type=jnp.float32) + b1_ref[...]
    # fc2 partial product accumulated in the VMEM-resident accumulator; h never hits HBM.
    acc_ref[...] += jnp.dot(h.astype(jnp.bfloat16), w2_ref[...],
                            preferred_element_type=jnp.float32)

    @pl.when(j == pl.num_programs(0) - 1)
    def _():
        o_ref[...] = acc_ref[...] + b2_ref[...]


def fc1_fc2_fused(x, w1, b1, w2, b2, *, tn=256):
    """x: (B, K) bf16; w1: (K, Hp) bf16; b1: (1, Hp) f32; w2: (Hp, C) bf16; b2: (1, C) f32."""
    B, K = x.shape
    Hp = w1.shape[1]
    C = w2.shape[1]
    assert Hp % tn == 0
    return pl.pallas_call(
        _fc_fused_kernel,
        out_shape=jax.ShapeDtypeStruct((B, C), jnp.float32),
        grid=(Hp // tn,),
        in_specs=[
            pl.BlockSpec((B, K), lambda j: (0, 0)),    # activations stay resident
            pl.BlockSpec((K, tn), lambda j: (0, j)),   # stream/pipeline fc1 weight tiles
            pl.BlockSpec((1, tn), lambda j: (0, j)),
            pl.BlockSpec((tn, C), lambda j: (j, 0)),   # matching fc2 weight tiles
            pl.BlockSpec((1, C), lambda j: (0, 0)),
        ],
        out_specs=pl.BlockSpec((B, C), lambda j: (0, 0)),
        scratch_shapes=[pltpu.VMEM((B, C), jnp.float32)],
        # The hidden-dim axis is a reduction for the fused fc2 accumulation -> "arbitrary".
        compiler_params=pltpu.CompilerParams(
            dimension_semantics=("arbitrary",)),
    )(x, w1, b1, w2, b2)


# ------------------------------ JAX glue --------------------------------

def im2col(x_nchw, k=5, pad=2):
    """Full kxk patches (stride 1). Returns (N, H*W, C*k*k); column ordering is
    (C, kh, kw) to match PyTorch weight.reshape(Cout, -1). Only used for conv1 (C=1)."""
    N, C, H, W = x_nchw.shape
    xp = jnp.pad(x_nchw, ((0, 0), (0, 0), (pad, pad), (pad, pad)))
    taps = []
    for dh in range(k):
        for dw in range(k):
            taps.append(xp[:, :, dh:dh + H, dw:dw + W])   # (N, C, H, W)
    p = jnp.stack(taps, axis=2)                           # (N, C, k*k, H, W)
    p = p.transpose(0, 3, 4, 1, 2)                        # (N, H, W, C, k*k)
    return p.reshape(N, H * W, C * k * k)


def width_taps(a_nhwc, k=5, pad=2):
    """Width-only patches for conv2: (N, (H+2*pad)*W, k*C) with row index
    hp*W + w and column index dw*C + c. The kernel-height taps are handled in-kernel."""
    N, H, W, C = a_nhwc.shape
    ap = jnp.pad(a_nhwc, ((0, 0), (pad, pad), (pad, pad), (0, 0)))   # (N, H+2p, W+2p, C)
    hp = H + 2 * pad
    taps = [ap[:, :, dw:dw + W, :] for dw in range(k)]               # each (N, hp, W, C)
    pw = jnp.stack(taps, axis=3)                                     # (N, hp, W, k, C)
    return pw.reshape(N, hp * W, k * C)


def maxpool2x2_nhwc(x):
    # TODO(synk): 2x2 maxpool + layout reshapes kept in plain JAX (layout glue,
    # not fused into the conv kernel epilogues).
    N, H, W, C = x.shape
    return x.reshape(N, H // 2, 2, W // 2, 2, C).max(axis=(2, 4))


def init_params(num_classes, key):
    ks = jax.random.split(key, 8)

    def u(k, shape, fan_in):
        bound = 1.0 / jnp.sqrt(fan_in)
        return jax.random.uniform(k, shape, jnp.float32, -bound, bound)

    return {
        "w_conv1": u(ks[0], (32, 1, 5, 5), 1 * 25),
        "b_conv1": u(ks[1], (32,), 1 * 25),
        "w_conv2": u(ks[2], (64, 32, 5, 5), 32 * 25),
        "b_conv2": u(ks[3], (64,), 32 * 25),
        "w_fc1":   u(ks[4], (1000, 7 * 7 * 64), 7 * 7 * 64),
        "b_fc1":   u(ks[5], (1000,), 7 * 7 * 64),
        "w_fc2":   u(ks[6], (num_classes, 1000), 1000),
        "b_fc2":   u(ks[7], (num_classes,), 1000),
    }


def prepare_params(params, *, tn=256):
    """One-time conversion of PyTorch-layout f32 params into kernel-ready
    (transposed / permuted / padded / bf16) arrays; done outside the jitted forward."""
    cout1 = params["w_conv1"].shape[0]
    cout2, cin2, kh, kw = params["w_conv2"].shape
    hidden, fin = params["w_fc1"].shape                                      # 1000, 3136
    num_classes = params["w_fc2"].shape[0]
    hp = ((hidden + tn - 1) // tn) * tn                                      # 1000 -> 1024

    w1 = params["w_conv1"].reshape(cout1, -1).T.astype(jnp.bfloat16)         # (25, 32)
    b1 = params["b_conv1"].reshape(1, cout1).astype(jnp.float32)

    # Conv2 weights per kernel-height tap: (kh, kw*Cin, Cout), column dw*Cin + c.
    w2 = jnp.transpose(params["w_conv2"], (2, 3, 1, 0)).reshape(kh, kw * cin2, cout2)
    w2 = w2.astype(jnp.bfloat16)                                             # (5, 160, 64)
    b2 = params["b_conv2"].reshape(1, cout2).astype(jnp.float32)

    # Permute fc1 columns from PyTorch's flatten order (C, H, W) to the conv
    # kernels' natural NHWC flatten order (H, W, C), so the runtime activation
    # transpose before fc1 disappears.
    hw2 = fin // cout2                                                       # 49
    side = int(round(hw2 ** 0.5))                                            # 7
    wf1 = params["w_fc1"].reshape(hidden, cout2, side, side)
    wf1 = jnp.transpose(wf1, (0, 2, 3, 1)).reshape(hidden, fin)
    wf1 = jnp.pad(wf1.T, ((0, 0), (0, hp - hidden))).astype(jnp.bfloat16)    # (3136, 1024)
    bf1 = jnp.pad(params["b_fc1"], (0, hp - hidden)).reshape(1, hp).astype(jnp.float32)
    wf2 = jnp.pad(params["w_fc2"].T, ((0, hp - hidden), (0, 0))).astype(jnp.bfloat16)  # (1024, C)
    bf2 = params["b_fc2"].reshape(1, num_classes).astype(jnp.float32)

    return {"w_conv1": w1, "b_conv1": b1, "w_conv2": w2, "b_conv2": b2,
            "w_fc1": wf1, "b_fc1": bf1, "w_fc2": wf2, "b_fc2": bf2}


def cnn2l_forward(x, kp):
    """x: (N, 1, 28, 28) float32 -> (N, num_classes) float32."""
    N, _, H, W = x.shape
    c1 = kp["w_conv1"].shape[1]                    # 32
    kh = kp["w_conv2"].shape[0]                    # 5
    c2 = kp["w_conv2"].shape[2]                    # 64
    pad = (kh - 1) // 2

    # layer1: Conv2d(1,32,k=5,p=2) + ReLU (batch-gridded Pallas GEMM) + MaxPool(2,2)
    p1 = im2col(x.astype(jnp.bfloat16), k=kh, pad=pad).reshape(N * H * W, -1)
    o1 = conv1_gemm_relu(p1, kp["w_conv1"], kp["b_conv1"],
                         rows_per_step=H * W)                    # (N*784, 32) f32
    o1 = maxpool2x2_nhwc(o1.reshape(N, H, W, c1))                # (N, 14, 14, 32)

    # layer2: Conv2d(32,64,k=5,p=2) + ReLU + MaxPool(2,2)
    # Width-only taps on host (5x, not 25x); height taps accumulated in-kernel.
    h_o1, w_o1 = o1.shape[1], o1.shape[2]                        # 14, 14
    pw = width_taps(o1.astype(jnp.bfloat16), k=kh, pad=pad)      # (N, 252, 160) bf16
    o2 = conv2_shifted_gemm_relu(pw, kp["w_conv2"], kp["b_conv2"],
                                 h_out=h_o1, w_out=w_o1)         # (N, 196, 64) f32
    o2 = maxpool2x2_nhwc(o2.reshape(N, h_o1, w_o1, c2))          # (N, 7, 7, 64)

    # Flatten in NHWC order; the HWC<->CHW permutation is folded into w_fc1.
    flat = o2.reshape(N, -1).astype(jnp.bfloat16)

    # drop_out: nn.Dropout() treated as eval-mode identity.
    # TODO(synk): train-mode stochastic dropout (p=0.5) not implemented.

    # fc1 -> (dropout identity) -> fc2, fused in one Pallas kernel.
    return fc1_fc2_fused(flat, kp["w_fc1"], kp["b_fc1"], kp["w_fc2"], kp["b_fc2"])


def reference_forward(x, params):
    """Pure-JAX f32 reference (XLA conv / reduce_window) for verification."""
    def conv_relu(x, w, b):
        y = lax.conv_general_dilated(
            x, w, window_strides=(1, 1), padding=((2, 2), (2, 2)),
            dimension_numbers=("NCHW", "OIHW", "NCHW"))
        return jnp.maximum(y + b[None, :, None, None], 0.0)

    def pool(x):
        return lax.reduce_window(x, -jnp.inf, lax.max,
                                 (1, 1, 2, 2), (1, 1, 2, 2), "VALID")

    o = pool(conv_relu(x, params["w_conv1"], params["b_conv1"]))
    o = pool(conv_relu(o, params["w_conv2"], params["b_conv2"]))
    f = o.reshape(o.shape[0], -1)
    h = f @ params["w_fc1"].T + params["b_fc1"]
    return h @ params["w_fc2"].T + params["b_fc2"]


if __name__ == "__main__":
    num_classes = 10
    key = jax.random.PRNGKey(0)
    k_x, k_p = jax.random.split(key)

    # MNIST-shaped input implied by fc1 = Linear(7*7*64, 1000): 28x28, 1 channel.
    x = jax.random.normal(k_x, (2, 1, 28, 28), dtype=jnp.float32)
    params = init_params(num_classes, k_p)
    kparams = prepare_params(params)

    fwd = jax.jit(cnn2l_forward)
    out = jax.block_until_ready(fwd(x, kparams))
    assert out.shape == (2, num_classes) and out.dtype == jnp.float32

    ref = reference_forward(x, params)
    # bf16 matmul inputs (f32 accumulation) -> relaxed tolerance vs the f32 reference.
    assert jnp.allclose(out, ref, rtol=2e-2, atol=2e-2), "mismatch vs JAX reference"

    print("KERNEL_OK")
</pallas_src>

<mosaic_0001>
module attributes {stable_mosaic.version = 11 : i64} {
  func.func @_conv_gemm_bias_relu_kernel(%arg0: i32, %arg1: memref<784x25xbf16, #tpu.memory_space<vmem>>, %arg2: memref<25x32xbf16, #tpu.memory_space<vmem>>, %arg3: memref<1x32xf32, #tpu.memory_space<vmem>>, %arg4: memref<784x32xf32, #tpu.memory_space<vmem>>) attributes {dimension_semantics = [#tpu.dimension_semantics<parallel>], iteration_bounds = array<i64: 2>, scalar_prefetch = 0 : i64, scratch_operands = 0 : i64, tpu.core_type = #tpu.core_type<tc>, window_params = [{transform_indices = @transform_0, window_bounds = array<i64: 784, 25>}, {pipeline_mode = #tpu.pipeline_mode<synchronous>, transform_indices = @transform_1, window_bounds = array<i64: 25, 32>}, {pipeline_mode = #tpu.pipeline_mode<synchronous>, transform_indices = @transform_2, window_bounds = array<i64: 1, 32>}, {transform_indices = @transform_3, window_bounds = array<i64: 784, 32>}]} {
    %c0 = arith.constant 0 : index
    %c0_0 = arith.constant 0 : index
    %0 = vector.load %arg1[%c0, %c0_0] : memref<784x25xbf16, #tpu.memory_space<vmem>>, vector<784x25xbf16>
    %c0_1 = arith.constant 0 : index
    %c0_2 = arith.constant 0 : index
    %1 = vector.load %arg2[%c0_1, %c0_2] : memref<25x32xbf16, #tpu.memory_space<vmem>>, vector<25x32xbf16>
    %cst = arith.constant dense<0.000000e+00> : vector<784x32xf32>
    %2 = tpu.matmul %0, %1, %cst {dimension_numbers = #tpu.dot_dimension_numbers<[1], [0], [0], [1], [0, 0, 1, 1], [], []>} : vector<784x25xbf16>, vector<25x32xbf16>, vector<784x32xf32> -> vector<784x32xf32>
    %c0_3 = arith.constant 0 : index
    %c0_4 = arith.constant 0 : index
    %3 = vector.load %arg3[%c0_3, %c0_4] : memref<1x32xf32, #tpu.memory_space<vmem>>, vector<1x32xf32>
    %4 = vector.broadcast %3 : vector<1x32xf32> to vector<784x32xf32>
    %5 = arith.addf %2, %4 : vector<784x32xf32>
    %cst_5 = arith.constant 0.000000e+00 : f32
    %6 = vector.broadcast %cst_5 : f32 to vector<784x32xf32>
    %7 = arith.maximumf %5, %6 : vector<784x32xf32>
    %c0_6 = arith.constant 0 : index
    %c0_7 = arith.constant 0 : index
    %8 = vector.load %arg4[%c0_6, %c0_7] : memref<784x32xf32, #tpu.memory_space<vmem>>, vector<784x32xf32>
    tpu.vector_store %arg4[%c0_6, %c0_7], %7 {strides = array<i32>} : memref<784x32xf32, #tpu.memory_space<vmem>>, vector<784x32xf32>,
    return
  }
  func.func @transform_0(%arg0: i32) -> (i32, i32) {
    %c0_i32 = arith.constant 0 : i32
    %c0_i32_0 = arith.constant 0 : i32
    return %arg0, %c0_i32 : i32, i32
  }
  func.func @transform_1(%arg0: i32) -> (i32, i32) {
    %c0_i32 = arith.constant 0 : i32
    %c0_i32_0 = arith.constant 0 : i32
    %c0_i32_1 = arith.constant 0 : i32
    return %c0_i32, %c0_i32_0 : i32, i32
  }
  func.func @transform_2(%arg0: i32) -> (i32, i32) {
    %c0_i32 = arith.constant 0 : i32
    %c0_i32_0 = arith.constant 0 : i32
    %c0_i32_1 = arith.constant 0 : i32
    return %c0_i32, %c0_i32_0 : i32, i32
  }
  func.func @transform_3(%arg0: i32) -> (i32, i32) {
    %c0_i32 = arith.constant 0 : i32
    %c0_i32_0 = arith.constant 0 : i32
    return %arg0, %c0_i32 : i32, i32
  }
}

module attributes {stable_mosaic.version = 11 : i64} {
  func.func @kernel(%arg0: i32, %arg1: memref<1x252x160xbf16, #tpu.memory_space<vmem>>, %arg2: memref<5x160x64xbf16, #tpu.memory_space<vmem>>, %arg3: memref<1x64xf32, #tpu.memory_space<vmem>>, %arg4: memref<1x196x64xf32, #tpu.memory_space<vmem>>) attributes {dimension_semantics = [#tpu.dimension_semantics<parallel>], iteration_bounds = array<i64: 2>, scalar_prefetch = 0 : i64, scratch_operands = 0 : i64, tpu.core_type = #tpu.core_type<tc>, window_params = [{transform_indices = @transform_0, window_bounds = array<i64: 1, 252, 160>}, {pipeline_mode = #tpu.pipeline_mode<synchronous>, transform_indices = @transform_1, window_bounds = array<i64: 5, 160, 64>}, {pipeline_mode = #tpu.pipeline_mode<synchronous>, transform_indices = @transform_2, window_bounds = array<i64: 1, 64>}, {transform_indices = @transform_3, window_bounds = array<i64: 1, 196, 64>}]} {
    %cst = arith.constant 0.000000e+00 : f32
    %0 = vector.broadcast %cst : f32 to vector<196x64xf32>
    %c0 = arith.constant 0 : index
    %c0_0 = arith.constant 0 : index
    %c0_1 = arith.constant 0 : index
    %1 = vector.load %arg1[%c0, %c0_0, %c0_1] : memref<1x252x160xbf16, #tpu.memory_space<vmem>>, vector<1x196x160xbf16>
    %2 = vector.shape_cast %1 : vector<1x196x160xbf16> to vector<196x160xbf16>
    %c0_2 = arith.constant 0 : index
    %c0_3 = arith.constant 0 : index
    %c0_4 = arith.constant 0 : index
    %3 = vector.load %arg2[%c0_2, %c0_3, %c0_4] : memref<5x160x64xbf16, #tpu.memory_space<vmem>>, vector<1x160x64xbf16>
    %4 = vector.shape_cast %3 : vector<1x160x64xbf16> to vector<160x64xbf16>
    %cst_5 = arith.constant dense<0.000000e+00> : vector<196x64xf32>
    %5 = tpu.matmul %2, %4, %cst_5 {dimension_numbers = #tpu.dot_dimension_numbers<[1], [0], [0], [1], [0, 0, 1, 1], [], []>} : vector<196x160xbf16>, vector<160x64xbf16>, vector<196x64xf32> -> vector<196x64xf32>
    %6 = arith.addf %0, %5 : vector<196x64xf32>
    %c0_6 = arith.constant 0 : index
    %c14 = arith.constant 14 : index
    %c0_7 = arith.constant 0 : index
    %7 = vector.load %arg1[%c0_6, %c14, %c0_7] : memref<1x252x160xbf16, #tpu.memory_space<vmem>>, vector<1x196x160xbf16>
    %8 = vector.shape_cast %7 : vector<1x196x160xbf16> to vector<196x160xbf16>
    %c1 = arith.constant 1 : index
    %c0_8 = arith.constant 0 : index
    %c0_9 = arith.constant 0 : index
    %9 = vector.load %arg2[%c1, %c0_8, %c0_9] : memref<5x160x64xbf16, #tpu.memory_space<vmem>>, vector<1x160x64xbf16>
    %10 = vector.shape_cast %9 : vector<1x160x64xbf16> to vector<160x64xbf16>
    %cst_10 = arith.constant dense<0.000000e+00> : vector<196x64xf32>
    %11 = tpu.matmul %8, %10, %cst_10 {dimension_numbers = #tpu.dot_dimension_numbers<[1], [0], [0], [1], [0, 0, 1, 1], [], []>} : vector<196x160xbf16>, vector<160x64xbf16>, vector<196x64xf32> -> vector<196x64xf32>
    %12 = arith.addf %6, %11 : vector<196x64xf32>
    %c0_11 = arith.constant 0 : index
    %c28 = arith.constant 28 : index
    %c0_12 = arith.constant 0 : index
    %13 = vector.load %arg1[%c0_11, %c28, %c0_12] : memref<1x252x160xbf16, #tpu.memory_space<vmem>>, vector<1x196x160xbf16>
    %14 = vector.shape_cast %13 : vector<1x196x160xbf16> to vector<196x160xbf16>
    %c2 = arith.constant 2 : index
    %c0_13 = arith.constant 0 : index
    %c0_14 = arith.constant 0 : index
    %15 = vector.load %arg2[%c2, %c0_13, %c0_14] : memref<5x160x64xbf16, #tpu.memory_space<vmem>>, vector<1x160x64xbf16>
    %16 = vector.shape_cast %15 : vector<1x160x64xbf16> to vector<160x64xbf16>
    %cst_15 = arith.constant dense<0.000000e+00> : vector<196x64xf32>
    %17 = tpu.matmul %14, %16, %cst_15 {dimension_numbers = #tpu.dot_dimension_numbers<[1], [0], [0], [1], [0, 0, 1, 1], [], []>} : vector<196x160xbf16>, vector<160x64xbf16>, vector<196x64xf32> -> vector<196x64xf32>
    %18 = arith.addf %12, %17 : vector<196x64xf32>
    %c0_16 = arith.constant 0 : index
    %c42 = arith.constant 42 : index
    %c0_17 = arith.constant 0 : index
    %19 = vector.load %arg1[%c0_16, %c42, %c0_17] : memref<1x252x160xbf16, #tpu.memory_space<vmem>>, vector<1x196x160xbf16>
    %20 = vector.shape_cast %19 : vector<1x196x160xbf16> to vector<196x160xbf16>
    %c3 = arith.constant 3 : index
    %c0_18 = arith.constant 0 : index
    %c0_19 = arith.constant 0 : index
    %21 = vector.load %arg2[%c3, %c0_18, %c0_19] : memref<5x160x64xbf16, #tpu.memory_space<vmem>>, vector<1x160x64xbf16>
    %22 = vector.shape_cast %21 : vector<1x160x64xbf16> to vector<160x64xbf16>
    %cst_20 = arith.constant dense<0.000000e+00> : vector<196x64xf32>
    %23 = tpu.matmul %20, %22, %cst_20 {dimension_numbers = #tpu.dot_dimension_numbers<[1], [0], [0], [1], [0, 0, 1, 1], [], []>} : vector<196x160xbf16>, vector<160x64xbf16>, vector<196x64xf32> -> vector<196x64xf32>
    %24 = arith.addf %18, %23 : vector<196x64xf32>
    %c0_21 = arith.constant 0 : index
    %c56 = arith.constant 56 : index
    %c0_22 = arith.constant 0 : index
    %25 = vector.load %arg1[%c0_21, %c56, %c0_22] : memref<1x252x160xbf16, #tpu.memory_space<vmem>>, vector<1x196x160xbf16>
    %26 = vector.shape_cast %25 : vector<1x196x160xbf16> to vector<196x160xbf16>
    %c4 = arith.constant 4 : index
    %c0_23 = arith.constant 0 : index
    %c0_24 = arith.constant 0 : index
    %27 = vector.load %arg2[%c4, %c0_23, %c0_24] : memref<5x160x64xbf16, #tpu.memory_space<vmem>>, vector<1x160x64xbf16>
    %28 = vector.shape_cast %27 : vector<1x160x64xbf16> to vector<160x64xbf16>
    %cst_25 = arith.constant dense<0.000000e+00> : vector<196x64xf32>
    %29 = tpu.matmul %26, %28, %cst_25 {dimension_numbers = #tpu.dot_dimension_numbers<[1], [0], [0], [1], [0, 0, 1, 1], [], []>} : vector<196x160xbf16>, vector<160x64xbf16>, vector<196x64xf32> -> vector<196x64xf32>
    %30 = arith.addf %24, %29 : vector<196x64xf32>
    %c0_26 = arith.constant 0 : index
    %c0_27 = arith.constant 0 : index
    %31 = vector.load %arg3[%c0_26, %c0_27] : memref<1x64xf32, #tpu.memory_space<vmem>>, vector<1x64xf32>
    %32 = vector.broadcast %31 : vector<1x64xf32> to vector<196x64xf32>
    %33 = arith.addf %30, %32 : vector<196x64xf32>
    %cst_28 = arith.constant 0.000000e+00 : f32
    %34 = vector.broadcast %cst_28 : f32 to vector<196x64xf32>
    %35 = arith.maximumf %33, %34 : vector<196x64xf32>
    %c0_29 = arith.constant 0 : index
    %c0_30 = arith.constant 0 : index
    %c0_31 = arith.constant 0 : index
    %36 = vector.load %arg4[%c0_29, %c0_30, %c0_31] : memref<1x196x64xf32, #tpu.memory_space<vmem>>, vector<1x196x64xf32>
    %37 = vector.shape_cast %36 : vector<1x196x64xf32> to vector<196x64xf32>
    %38 = vector.shape_cast %35 : vector<196x64xf32> to vector<1x196x64xf32>
    tpu.vector_store %arg4[%c0_29, %c0_30, %c0_31], %38 {strides = array<i32>} : memref<1x196x64xf32, #tpu.memory_space<vmem>>, vector<1x196x64xf32>,
    return
  }
  func.func @transform_0(%arg0: i32) -> (i32, i32, i32) {
    %c0_i32 = arith.constant 0 : i32
    %c0_i32_0 = arith.constant 0 : i32
    %c0_i32_1 = arith.constant 0 : i32
    return %arg0, %c0_i32, %c0_i32_0 : i32, i32, i32
  }
  func.func @transform_1(%arg0: i32) -> (i32, i32, i32) {
    %c0_i32 = arith.constant 0 : i32
    %c0_i32_0 = arith.constant 0 : i32
    %c0_i32_1 = arith.constant 0 : i32
    %c0_i32_2 = arith.constant 0 : i32
    return %c0_i32, %c0_i32_0, %c0_i32_1 : i32, i32, i32
  }
  func.func @transform_2(%arg0: i32) -> (i32, i32) {
    %c0_i32 = arith.constant 0 : i32
    %c0_i32_0 = arith.constant 0 : i32
    %c0_i32_1 = arith.constant 0 : i32
    return %c0_i32, %c0_i32_0 : i32, i32
  }
  func.func @transform_3(%arg0: i32) -> (i32, i32, i32) {
    %c0_i32 = arith.constant 0 : i32
    %c0_i32_0 = arith.constant 0 : i32
    %c0_i32_1 = arith.constant 0 : i32
    return %arg0, %c0_i32, %c0_i32_0 : i32, i32, i32
  }
}

module attributes {stable_mosaic.version = 11 : i64} {
  func.func @_fc_fused_kernel(%arg0: i32, %arg1: memref<2x3136xbf16, #tpu.memory_space<vmem>>, %arg2: memref<3136x256xbf16, #tpu.memory_space<vmem>>, %arg3: memref<1x256xf32, #tpu.memory_space<vmem>>, %arg4: memref<256x10xbf16, #tpu.memory_space<vmem>>, %arg5: memref<1x10xf32, #tpu.memory_space<vmem>>, %arg6: memref<2x10xf32, #tpu.memory_space<vmem>>, %arg7: memref<2x10xf32, #tpu.memory_space<vmem>>) attributes {dimension_semantics = [#tpu.dimension_semantics<arbitrary>], iteration_bounds = array<i64: 4>, scalar_prefetch = 0 : i64, scratch_operands = 1 : i64, tpu.core_type = #tpu.core_type<tc>, window_params = [{pipeline_mode = #tpu.pipeline_mode<synchronous>, transform_indices = @transform_0, window_bounds = array<i64: 2, 3136>}, {transform_indices = @transform_1, window_bounds = array<i64: 3136, 256>}, {transform_indices = @transform_2, window_bounds = array<i64: 1, 256>}, {transform_indices = @transform_3, window_bounds = array<i64: 256, 10>}, {pipeline_mode = #tpu.pipeline_mode<synchronous>, transform_indices = @transform_4, window_bounds = array<i64: 1, 10>}, {pipeline_mode = #tpu.pipeline_mode<synchronous>, transform_indices = @transform_5, window_bounds = array<i64: 2, 10>}]} {
    %c0_i32 = arith.constant 0 : i32
    %0 = arith.cmpi eq, %arg0, %c0_i32 : i32
    %1 = arith.extui %0 : i1 to i32
    %c0_i32_0 = arith.constant 0 : i32
    %2 = arith.cmpi ne, %1, %c0_i32_0 : i32
    scf.if %2 {
      %cst_14 = arith.constant 0.000000e+00 : f32
      %18 = vector.broadcast %cst_14 : f32 to vector<2x10xf32>
      %c0_15 = arith.constant 0 : index
      %c0_16 = arith.constant 0 : index
      %19 = vector.load %arg7[%c0_15, %c0_16] : memref<2x10xf32, #tpu.memory_space<vmem>>, vector<2x10xf32>
      tpu.vector_store %arg7[%c0_15, %c0_16], %18 {strides = array<i32>} : memref<2x10xf32, #tpu.memory_space<vmem>>, vector<2x10xf32>,
    } else {
    }
    %c0 = arith.constant 0 : index
    %c0_1 = arith.constant 0 : index
    %3 = vector.load %arg1[%c0, %c0_1] : memref<2x3136xbf16, #tpu.memory_space<vmem>>, vector<2x3136xbf16>
    %c0_2 = arith.constant 0 : index
    %c0_3 = arith.constant 0 : index
    %4 = vector.load %arg2[%c0_2, %c0_3] : memref<3136x256xbf16, #tpu.memory_space<vmem>>, vector<3136x256xbf16>
    %cst = arith.constant dense<0.000000e+00> : vector<2x256xf32>
    %5 = tpu.matmul %3, %4, %cst {dimension_numbers = #tpu.dot_dimension_numbers<[1], [0], [0], [1], [0, 0, 1, 1], [], []>} : vector<2x3136xbf16>, vector<3136x256xbf16>, vector<2x256xf32> -> vector<2x256xf32>
    %c0_4 = arith.constant 0 : index
    %c0_5 = arith.constant 0 : index
    %6 = vector.load %arg3[%c0_4, %c0_5] : memref<1x256xf32, #tpu.memory_space<vmem>>, vector<1x256xf32>
    %7 = vector.broadcast %6 : vector<1x256xf32> to vector<2x256xf32>
    %8 = arith.addf %5, %7 : vector<2x256xf32>
    %c0_6 = arith.constant 0 : index
    %c0_7 = arith.constant 0 : index
    %9 = vector.load %arg7[%c0_6, %c0_7] : memref<2x10xf32, #tpu.memory_space<vmem>>, vector<2x10xf32>
    %10 = arith.truncf %8 : vector<2x256xf32> to vector<2x256xbf16>
    %c0_8 = arith.constant 0 : index
    %c0_9 = arith.constant 0 : index
    %11 = vector.load %arg4[%c0_8, %c0_9] : memref<256x10xbf16, #tpu.memory_space<vmem>>, vector<256x10xbf16>
    %cst_10 = arith.constant dense<0.000000e+00> : vector<2x10xf32>
    %12 = tpu.matmul %10, %11, %cst_10 {dimension_numbers = #tpu.dot_dimension_numbers<[1], [0], [0], [1], [0, 0, 1, 1], [], []>} : vector<2x256xbf16>, vector<256x10xbf16>, vector<2x10xf32> -> vector<2x10xf32>
    %13 = arith.addf %9, %12 : vector<2x10xf32>
    %c0_11 = arith.constant 0 : index
    %c0_12 = arith.constant 0 : index
    %14 = vector.load %arg7[%c0_11, %c0_12] : memref<2x10xf32, #tpu.memory_space<vmem>>, vector<2x10xf32>
    tpu.vector_store %arg7[%c0_11, %c0_12], %13 {strides = array<i32>} : memref<2x10xf32, #tpu.memory_space<vmem>>, vector<2x10xf32>,
    %c3_i32 = arith.constant 3 : i32
    %15 = arith.cmpi eq, %arg0, %c3_i32 : i32
    %16 = arith.extui %15 : i1 to i32
    %c0_i32_13 = arith.constant 0 : i32
    %17 = arith.cmpi ne, %16, %c0_i32_13 : i32
    scf.if %17 {
      %c0_14 = arith.constant 0 : index
      %c0_15 = arith.constant 0 : index
      %18 = vector.load %arg7[%c0_14, %c0_15] : memref<2x10xf32, #tpu.memory_space<vmem>>, vector<2x10xf32>
      %c0_16 = arith.constant 0 : index
      %c0_17 = arith.constant 0 : index
      %19 = vector.load %arg5[%c0_16, %c0_17] : memref<1x10xf32, #tpu.memory_space<vmem>>, vector<1x10xf32>
      %20 = vector.broadcast %19 : vector<1x10xf32> to vector<2x10xf32>
      %21 = arith.addf %18, %20 : vector<2x10xf32>
      %c0_18 = arith.constant 0 : index
      %c0_19 = arith.constant 0 : index
      %22 = vector.load %arg6[%c0_18, %c0_19] : memref<2x10xf32, #tpu.memory_space<vmem>>, vector<2x10xf32>
      tpu.vector_store %arg6[%c0_18, %c0_19], %21 {strides = array<i32>} : memref<2x10xf32, #tpu.memory_space<vmem>>, vector<2x10xf32>,
    } else {
    }
    return
  }
  func.func @transform_0(%arg0: i32) -> (i32, i32) {
    %c0_i32 = arith.constant 0 : i32
    %c0_i32_0 = arith.constant 0 : i32
    %c0_i32_1 = arith.constant 0 : i32
    return %c0_i32, %c0_i32_0 : i32, i32
  }
  func.func @transform_1(%arg0: i32) -> (i32, i32) {
    %c0_i32 = arith.constant 0 : i32
    %c0_i32_0 = arith.constant 0 : i32
    return %c0_i32, %arg0 : i32, i32
  }
  func.func @transform_2(%arg0: i32) -> (i32, i32) {
    %c0_i32 = arith.constant 0 : i32
    %c0_i32_0 = arith.constant 0 : i32
    return %c0_i32, %arg0 : i32, i32
  }
  func.func @transform_3(%arg0: i32) -> (i32, i32) {
    %c0_i32 = arith.constant 0 : i32
    %c0_i32_0 = arith.constant 0 : i32
    return %arg0, %c0_i32 : i32, i32
  }
  func.func @transform_4(%arg0: i32) -> (i32, i32) {
    %c0_i32 = arith.constant 0 : i32
    %c0_i32_0 = arith.constant 0 : i32
    %c0_i32_1 = arith.constant 0 : i32
    return %c0_i32, %c0_i32_0 : i32, i32
  }
  func.func @transform_5(%arg0: i32) -> (i32, i32) {
    %c0_i32 = arith.constant 0 : i32
    %c0_i32_0 = arith.constant 0 : i32
    %c0_i32_1 = arith.constant 0 : i32
    return %c0_i32, %c0_i32_0 : i32, i32
  }
}

</mosaic_0001>

<llo_original>
// kernel: cnn2l_forward.3
$region0: #{cnn2l_forward.3}
  #allocation0 [shape = 'u32[]', space=smem, size = 0x4, offset = 0x4, fixed_abs, tag = 'smem constant byte address 0x4 - core index']
  #allocation1 [shape = 'u32[144,128]{1,0:T(1,128)}', space=vmem, size = 0x12000, scoped, tag = 'internal scratch']
  %s0 = inlined_call_operand.vmem [shape: bf16[1568,25], index: 0, kind: input, shape index: {}]
  %s1 = inlined_call_operand.hbm [shape: bf16[25,32], index: 1, kind: input, shape index: {}]
  %s2 = inlined_call_operand.hbm [shape: f32[1,32], index: 2, kind: input, shape index: {}]
  %s3 = inlined_call_operand.vmem [shape: f32[1568,32], index: 3, kind: output, shape index: {}]
  %s4 = sld [smem:[#allocation0]]
  $region53: #{cnn2l_forward.3} parent=0
    _
  %s6 = ssub.s32 1, %s4
  %s7 = scalar_select 0, %s6, %s4
  $region1: #{cnn2l_forward.3} parent=0
    #allocation2 [shape = 'u8[8192]{0}', space=vmem, size = 0x2000, scoped, tag = 'input window, operand 1, single buffered']
    #allocation3 [shape = 's32[2]{0}', space=sflag, size = 0x8, scoped, tag = 'scoped memory for cnn2l_forward.3']
    #allocation4 [shape = 'u8[512]{0}', space=vmem, size = 0x400, scoped, tag = 'input window, operand 2, single buffered']
    #allocation5 [shape = 's32[1]{0}', space=sflag, size = 0x4, scoped, tag = 'scoped memory for cnn2l_forward.3']
    %8 = vsyncpa [#allocation3], 0
    %9 = vsyncpa [#allocation5], 0
    loop: start=0, step=1, limit=4
    $region2: #{cnn2l_forward.3} parent=1 // loop_pre_header
      _
    $region3: #{cnn2l_forward.3} parent=1 // loop_header
      %s11 = sphi 0, %s15
      %p12 = scmp.ge.s32.totalorder %s11, 4
      %s21 = sphi 0, %s23
      %s24 = sphi 0, %s21
      %s25 = sphi 0, %s24
      %s41 = sphi 0, %s25
      %s45 = sphi 0, %s45
      %s47 = sphi 0, %s45
      %s48 = sphi 0, %s47
      %s62 = sphi 0, %s48
      %s66 = sphi 0, %s66
      %s68 = sphi 0, %s66
      %s69 = sphi 0, %s68
      %s83 = sphi 0, %s69
      %s89 = sphi 0, %s91
      %s92 = sphi 0, %s89
      %s93 = sphi 0, %s92
      %s109 = sphi 0, %s93
    $region4: #{cnn2l_forward.3} parent=1 // loop_header_branch
      %14 = sbr.rel (%p12) target = $region8
    $region5: #{cnn2l_forward.3} parent=1 // loop_body
      %s16 = ssub.s32 %s11, 1
      %s17 = ssub.s32 %s11, 2
      %s18 = sadd.s32 %s11, 1
      %s19 = ssub.s32 %s11, %s18
      %p20 = scmp.eq.s32.totalorder %s19, 0
      %s22 = sadd.s32 %s21, 1
      %s23 = scalar_select %p20, %s21, %s22
      %p26 = pneg %p20
      %p27 = scmp.eq.s32.totalorder %s11, 1
      %p28 = por %p26, %p27
      %p29 = scmp.ne.s32.totalorder %s21, %s24
      %p30 = scmp.eq.s32.totalorder %s11, 0
      %p31 = por %p29, %p30
      %p32 = scmp.ne.s32.totalorder %s21, %s24
      %p33 = scmp.eq.s32.totalorder %s16, 1
      %p34 = por %p32, %p33
      %p35 = scmp.ne.s32.totalorder %s24, %s25
      %p36 = scmp.eq.s32.totalorder %s16, 0
      %p37 = por %p35, %p36
      %p38 = scmp.ne.s32.totalorder %s24, %s25
      %p39 = scmp.eq.s32.totalorder %s17, 1
      %p40 = por %p38, %p39
      %p42 = scmp.ne.s32.totalorder %s25, %s41
      %p43 = scmp.eq.s32.totalorder %s17, 0
      %p44 = por %p42, %p43
      %s46 = sadd.s32 %s45, 1
      %p49 = scmp.eq.s32.totalorder %s11, 1
      %p50 = scmp.ne.s32.totalorder %s45, %s47
      %p51 = scmp.eq.s32.totalorder %s11, 0
      %p52 = por %p50, %p51
      %p53 = scmp.ne.s32.totalorder %s45, %s47
      %p54 = scmp.eq.s32.totalorder %s16, 1
      %p55 = por %p53, %p54
      %p56 = scmp.ne.s32.totalorder %s47, %s48
      %p57 = scmp.eq.s32.totalorder %s16, 0
      %p58 = por %p56, %p57
      %p59 = scmp.ne.s32.totalorder %s47, %s48
      %p60 = scmp.eq.s32.totalorder %s17, 1
      %p61 = por %p59, %p60
      %p63 = scmp.ne.s32.totalorder %s48, %s62
      %p64 = scmp.eq.s32.totalorder %s17, 0
      %p65 = por %p63, %p64
      %s67 = sadd.s32 %s66, 1
      %p70 = scmp.eq.s32.totalorder %s11, 1
      %p71 = scmp.ne.s32.totalorder %s66, %s68
      %p72 = scmp.eq.s32.totalorder %s11, 0
      %p73 = por %p71, %p72
      %p74 = scmp.ne.s32.totalorder %s66, %s68
      %p75 = scmp.eq.s32.totalorder %s16, 1
      %p76 = por %p74, %p75
      %p77 = scmp.ne.s32.totalorder %s68, %s69
      %p78 = scmp.eq.s32.totalorder %s16, 0
      %p79 = por %p77, %p78
      %p80 = scmp.ne.s32.totalorder %s68, %s69
      %p81 = scmp.eq.s32.totalorder %s17, 1
      %p82 = por %p80, %p81
      %p84 = scmp.ne.s32.totalorder %s69, %s83
      %p85 = scmp.eq.s32.totalorder %s17, 0
      %p86 = por %p84, %p85
      %s87 = ssub.s32 %s11, %s18
      %p88 = scmp.eq.s32.totalorder %s87, 0
      %s90 = sadd.s32 %s89, 1
      %s91 = scalar_select %p88, %s89, %s90
      %p94 = pneg %p88
      %p95 = scmp.eq.s32.totalorder %s11, 1
      %p96 = por %p94, %p95
      %p97 = scmp.ne.s32.totalorder %s89, %s92
      %p98 = scmp.eq.s32.totalorder %s11, 0
      %p99 = por %p97, %p98
      %p100 = scmp.ne.s32.totalorder %s89, %s92
      %p101 = scmp.eq.s32.totalorder %s16, 1
      %p102 = por %p100, %p101
      %p103 = scmp.ne.s32.totalorder %s92, %s93
      %p104 = scmp.eq.s32.totalorder %s16, 0
      %p105 = por %p103, %p104
      %p106 = scmp.ne.s32.totalorder %s92, %s93
      %p107 = scmp.eq.s32.totalorder %s17, 1
      %p108 = por %p106, %p107
      %p110 = scmp.ne.s32.totalorder %s93, %s109
      %p111 = scmp.eq.s32.totalorder %s17, 0
      %p112 = por %p110, %p111
      %p113 = scmp.le.s32.totalorder 1, %s11
      %p114 = scmp.lt.s32.totalorder %s11, 3
      %p115 = pnand %p113, %p114
      %p116 = pneg %p115
      // Predicated region
      $region9: #{cnn2l_forward.3} parent=5 // pred_check
        _
      $region10: #{cnn2l_forward.3} parent=5 // pred_check_branch
        %118 = sbr.rel (%p115) target = $region12
      $region11: #{cnn2l_forward.3} parent=5 // pred_region
        %s119 = ssub.s32 %s11, 1
        // Predicated region
        $region13: #{cnn2l_forward.3} parent=11 // pred_check
          %p120 = pneg %p58
        $region14: #{cnn2l_forward.3} parent=11 // pred_check_branch
          %122 = sbr.rel (%p120) target = $region16
        $region15: #{cnn2l_forward.3} parent=11 // pred_region
          %s124 = ssub.s32 256, 256
          %125 = vsyncadd [#allocation3], %s124
          %s126 = sshll.u32 [#allocation2], 4
          %s127 = int_to_ptr.vmem [resolvable:$true] %s126
          %132 = dma.hbm_to_vmem [thread:$0]  %s1, 256, %s127, [#allocation3], 64, 64, 4
        $region16: #{cnn2l_forward.3} parent=11 // pred_fallthru
          _
        // Predicated region
        $region17: #{cnn2l_forward.3} parent=11 // pred_check
          %p133 = pneg %p79
        $region18: #{cnn2l_forward.3} parent=11 // pred_check_branch
          %135 = sbr.rel (%p133) target = $region20
        $region19: #{cnn2l_forward.3} parent=11 // pred_region
          %s137 = ssub.s32 16, 16
          %138 = vsyncadd [#allocation5], %s137
          %s140 = sshll.u32 [#allocation4], 4
          %s141 = int_to_ptr.vmem [resolvable:$true] %s140
          %143 = dma.hbm_to_vmem [thread:$0]  %s2, 16, %s141, [#allocation5]
        $region20: #{cnn2l_forward.3} parent=11 // pred_fallthru
          _
      $region12: #{cnn2l_forward.3} parent=5 // pred_fallthru
        _
      %p144 = scmp.lt.s32.totalorder %s11, 2
      // Predicated region
      $region21: #{cnn2l_forward.3} parent=5 // pred_check
        %p145 = pneg %p144
      $region22: #{cnn2l_forward.3} parent=5 // pred_check_branch
        %147 = sbr.rel (%p145) target = $region24
      $region23: #{cnn2l_forward.3} parent=5 // pred_region
        // Predicated region
        $region25: #{cnn2l_forward.3} parent=23 // pred_check
          %p148 = pneg %p31
        $region26: #{cnn2l_forward.3} parent=23 // pred_check_branch
          %150 = sbr.rel (%p148) target = $region28
        $region27: #{cnn2l_forward.3} parent=23 // pred_region
          %s151 = smul.u32 98, %s11
          %p152 = scmp.lt.s32.totalorder %s151, 195
          %s153 = scalar_select %p152, %s151, 195
          %s154 = smul.addr %s153, 4
          %s155 = scalar_lea.vmem %s0, %s154
          %s156 = smul.u32 98, %s11
        $region28: #{cnn2l_forward.3} parent=23 // pred_fallthru
          _
      $region24: #{cnn2l_forward.3} parent=5 // pred_fallthru
        _
      %p157 = scmp.le.s32.totalorder 1, %s11
      %p158 = scmp.lt.s32.totalorder %s11, 3
      %p159 = pnand %p157, %p158
      %p160 = pneg %p159
      // Predicated region
      $region29: #{cnn2l_forward.3} parent=5 // pred_check
        _
      $region30: #{cnn2l_forward.3} parent=5 // pred_check_branch
        %162 = sbr.rel (%p159) target = $region32
      $region31: #{cnn2l_forward.3} parent=5 // pred_region
        %s163 = ssub.s32 %s11, 1
        // Predicated region
        $region33: #{cnn2l_forward.3} parent=31 // pred_check
          %p164 = pneg %p58
        $region34: #{cnn2l_forward.3} parent=31 // pred_check_branch
          %166 = sbr.rel (%p164) target = $region36
        $region35: #{cnn2l_forward.3} parent=31 // pred_region
          %167 = dma.done [#allocation3], 256
        $region36: #{cnn2l_forward.3} parent=31 // pred_fallthru
          _
        // Predicated region
        $region37: #{cnn2l_forward.3} parent=31 // pred_check
          %p168 = pneg %p79
        $region38: #{cnn2l_forward.3} parent=31 // pred_check_branch
          %170 = sbr.rel (%p168) target = $region40
        $region39: #{cnn2l_forward.3} parent=31 // pred_region
          %171 = dma.done [#allocation5], 16
        $region40: #{cnn2l_forward.3} parent=31 // pred_fallthru
          _
        %s172 = smul.u32 98, %s16
        %p173 = scmp.lt.s32.totalorder %s172, 195
        %s174 = scalar_select %p173, %s172, 195
        %s175 = smul.addr %s174, 4
        %s176 = scalar_lea.vmem %s0, %s175
        %p177 = pneg %p37
        %p178 = pneg %p34
        %p179 = pneg %p58
        %p180 = pneg %p55
        %p181 = pneg %p79
        %p182 = pneg %p76
        %p183 = pneg %p105
        %p184 = pneg %p102
        %s185 = smul.u32 98, %s16
        %p186 = scmp.lt.s32.totalorder %s185, 195
        %s187 = scalar_select %p186, %s185, 195
        %s188 = smul.addr %s187, 8
        %s189 = scalar_lea.vmem %s3, %s188
        %s190 = smul.u32 98, %s16
        %p191 = scmp.lt.s32.totalorder %s190, 195
        %s192 = scalar_select %p191, %s190, 195
        %s193 = smul.addr %s192, 4
        %s194 = scalar_lea.vmem %s0, %s193
        %s195 = smul.u32 98, %s16
        %s196 = smul.u32 98, %s16
        %p197 = scmp.lt.s32.totalorder %s196, 195
        %s198 = scalar_select %p197, %s196, 195
        %s199 = smul.addr %s198, 8
        %s200 = scalar_lea.vmem %s3, %s199
        %s201 = smul.u32 98, %s16
        %v203 = vld [vmem:[%s194] sm:$0xf]
        %v204 = vld [vmem:[%s194 + $0x4] sm:$0xf]
        %v205 = vld [vmem:[%s194 + $0x8] sm:$0xf]
        %v206 = vld [vmem:[%s194 + $0xc] sm:$0xf]
        %v207 = vld [vmem:[%s194 + $0x10] sm:$0xf]
        %v208 = vld [vmem:[%s194 + $0x14] sm:$0xf]
        %v209 = vld [vmem:[%s194 + $0x18] sm:$0xf]
        %v210 = vld [vmem:[%s194 + $0x1c] sm:$0xf]
        %v211 = vld [vmem:[%s194 + $0x20] sm:$0xf]
        %v212 = vld [vmem:[%s194 + $0x24] sm:$0xf]
        %v213 = vld [vmem:[%s194 + $0x28] sm:$0xf]
        %v214 = vld [vmem:[%s194 + $0x2c] sm:$0xf]
        %v215 = vld [vmem:[%s194 + $0x30] sm:$0xf]
        %v216 = vld [vmem:[%s194 + $0x34] sm:$0xf]
        %v217 = vld [vmem:[%s194 + $0x38] sm:$0xf]
        %v218 = vld [vmem:[%s194 + $0x3c] sm:$0xf]
        %v219 = vld [vmem:[%s194 + $0x40] sm:$0xf]
        %v220 = vld [vmem:[%s194 + $0x44] sm:$0xf]
        %v221 = vld [vmem:[%s194 + $0x48] sm:$0xf]
        %v222 = vld [vmem:[%s194 + $0x4c] sm:$0xf]
        %v223 = vld [vmem:[%s194 + $0x50] sm:$0xf]
        %v224 = vld [vmem:[%s194 + $0x54] sm:$0xf]
        %v225 = vld [vmem:[%s194 + $0x58] sm:$0xf]
        %v226 = vld [vmem:[%s194 + $0x5c] sm:$0xf]
        %v227 = vld [vmem:[%s194 + $0x60] sm:$0xf]
        %v228 = vld [vmem:[%s194 + $0x64] sm:$0xf]
        %v229 = vld [vmem:[%s194 + $0x68] sm:$0xf]
        %v230 = vld [vmem:[%s194 + $0x6c] sm:$0xf]
        %v231 = vld [vmem:[%s194 + $0x70] sm:$0xf]
        %v232 = vld [vmem:[%s194 + $0x74] sm:$0xf]
        %v233 = vld [vmem:[%s194 + $0x78] sm:$0xf]
        %v234 = vld [vmem:[%s194 + $0x7c] sm:$0xf]
        %v235 = vld [vmem:[%s194 + $0x80] sm:$0xf]
        %v236 = vld [vmem:[%s194 + $0x84] sm:$0xf]
        %v237 = vld [vmem:[%s194 + $0x88] sm:$0xf]
        %v238 = vld [vmem:[%s194 + $0x8c] sm:$0xf]
        %v239 = vld [vmem:[%s194 + $0x90] sm:$0xf]
        %v240 = vld [vmem:[%s194 + $0x94] sm:$0xf]
        %v241 = vld [vmem:[%s194 + $0x98] sm:$0xf]
        %v242 = vld [vmem:[%s194 + $0x9c] sm:$0xf]
        %v243 = vld [vmem:[%s194 + $0xa0] sm:$0xf]
        %v244 = vld [vmem:[%s194 + $0xa4] sm:$0xf]
        %v245 = vld [vmem:[%s194 + $0xa8] sm:$0xf]
        %v246 = vld [vmem:[%s194 + $0xac] sm:$0xf]
        %v247 = vld [vmem:[%s194 + $0xb0] sm:$0xf]
        %v248 = vld [vmem:[%s194 + $0xb4] sm:$0xf]
        %v249 = vld [vmem:[%s194 + $0xb8] sm:$0xf]
        %v250 = vld [vmem:[%s194 + $0xbc] sm:$0xf]
        %v251 = vld [vmem:[%s194 + $0xc0] sm:$0xf]
        %v252 = vld [vmem:[%s194 + $0xc4] sm:$0xf]
        %v253 = vld [vmem:[%s194 + $0xc8] sm:$0xf]
        %v254 = vld [vmem:[%s194 + $0xcc] sm:$0xf]
        %v255 = vld [vmem:[%s194 + $0xd0] sm:$0xf]
        %v256 = vld [vmem:[%s194 + $0xd4] sm:$0xf]
        %v257 = vld [vmem:[%s194 + $0xd8] sm:$0xf]
        %v258 = vld [vmem:[%s194 + $0xdc] sm:$0xf]
        %v259 = vld [vmem:[%s194 + $0xe0] sm:$0xf]
        %v260 = vld [vmem:[%s194 + $0xe4] sm:$0xf]
        %v261 = vld [vmem:[%s194 + $0xe8] sm:$0xf]
        %v262 = vld [vmem:[%s194 + $0xec] sm:$0xf]
        %v263 = vld [vmem:[%s194 + $0xf0] sm:$0xf]
        %v264 = vld [vmem:[%s194 + $0xf4] sm:$0xf]
        %v265 = vld [vmem:[%s194 + $0xf8] sm:$0xf]
        %v266 = vld [vmem:[%s194 + $0xfc] sm:$0xf]
        %v267 = vld [vmem:[%s194 + $0x100] sm:$0xf]
        %v268 = vld [vmem:[%s194 + $0x104] sm:$0xf]
        %v269 = vld [vmem:[%s194 + $0x108] sm:$0xf]
        %v270 = vld [vmem:[%s194 + $0x10c] sm:$0xf]
        %v271 = vld [vmem:[%s194 + $0x110] sm:$0xf]
        %v272 = vld [vmem:[%s194 + $0x114] sm:$0xf]
        %v273 = vld [vmem:[%s194 + $0x118] sm:$0xf]
        %v274 = vld [vmem:[%s194 + $0x11c] sm:$0xf]
        %v275 = vld [vmem:[%s194 + $0x120] sm:$0xf]
        %v276 = vld [vmem:[%s194 + $0x124] sm:$0xf]
        %v277 = vld [vmem:[%s194 + $0x128] sm:$0xf]
        %v278 = vld [vmem:[%s194 + $0x12c] sm:$0xf]
        %v279 = vld [vmem:[%s194 + $0x130] sm:$0xf]
        %v280 = vld [vmem:[%s194 + $0x134] sm:$0xf]
        %v281 = vld [vmem:[%s194 + $0x138] sm:$0xf]
        %v282 = vld [vmem:[%s194 + $0x13c] sm:$0xf]
        %v283 = vld [vmem:[%s194 + $0x140] sm:$0xf]
        %v284 = vld [vmem:[%s194 + $0x144] sm:$0xf]
        %v285 = vld [vmem:[%s194 + $0x148] sm:$0xf]
        %v286 = vld [vmem:[%s194 + $0x14c] sm:$0xf]
        %v287 = vld [vmem:[%s194 + $0x150] sm:$0xf]
        %v288 = vld [vmem:[%s194 + $0x154] sm:$0xf]
        %v289 = vld [vmem:[%s194 + $0x158] sm:$0xf]
        %v290 = vld [vmem:[%s194 + $0x15c] sm:$0xf]
        %v291 = vld [vmem:[%s194 + $0x160] sm:$0xf]
        %v292 = vld [vmem:[%s194 + $0x164] sm:$0xf]
        %v293 = vld [vmem:[%s194 + $0x168] sm:$0xf]
        %v294 = vld [vmem:[%s194 + $0x16c] sm:$0xf]
        %v295 = vld [vmem:[%s194 + $0x170] sm:$0xf]
        %v296 = vld [vmem:[%s194 + $0x174] sm:$0xf]
        %v297 = vld [vmem:[%s194 + $0x178] sm:$0xf]
        %v298 = vld [vmem:[%s194 + $0x17c] sm:$0xf]
        %v299 = vld [vmem:[%s194 + $0x180] sm:$0xf]
        %v300 = vld [vmem:[%s194 + $0x184] sm:$0xf]
        %v301 = vld [vmem:[#allocation2] sm:$0xf]
        %v302 = vld [vmem:[#allocation2 + $0x4] sm:$0xf]
        %v303 = vld [vmem:[#allocation2 + $0x8] sm:$0xf]
        %v304 = vld [vmem:[#allocation2 + $0xc] sm:$0x1]
        %v305 = vld [vmem:[#allocation4] sm:$0x1]
        %v307 = vlaneseq
        %v308 = vshrl.u32 %v307, 7
        %v309 = vsub.s32 0, %v308
        %v310 = vrot.slane %v305, %v309
        %v410 = vunpack.c.l.b16 %v203
        %v411 = vunpack.c.l.b16 %v204
        %v412 = vunpack.c.l.b16 %v205
        %v413 = vunpack.c.l.b16 %v206
        %v414 = vunpack.c.l.b16 %v207
        %v415 = vunpack.c.l.b16 %v208
        %v416 = vunpack.c.l.b16 %v209
        %v417 = vunpack.c.l.b16 %v210
        %v418 = vunpack.c.l.b16 %v211
        %v419 = vunpack.c.l.b16 %v212
        %v420 = vunpack.c.l.b16 %v213
        %v421 = vunpack.c.l.b16 %v214
        %v422 = vunpack.c.l.b16 %v215
        %v423 = vunpack.c.l.b16 %v216
        %v424 = vunpack.c.l.b16 %v217
        %v425 = vunpack.c.l.b16 %v218
        %v426 = vunpack.c.l.b16 %v219
        %v427 = vunpack.c.l.b16 %v220
        %v428 = vunpack.c.l.b16 %v221
        %v429 = vunpack.c.l.b16 %v222
        %v430 = vunpack.c.l.b16 %v223
        %v431 = vunpack.c.l.b16 %v224
        %v432 = vunpack.c.l.b16 %v225
        %v433 = vunpack.c.l.b16 %v226
        %v434 = vunpack.c.l.b16 %v227
        %v435 = vunpack.c.l.b16 %v228
        %v436 = vunpack.c.l.b16 %v229
        %v437 = vunpack.c.l.b16 %v230
        %v438 = vunpack.c.l.b16 %v231
        %v439 = vunpack.c.l.b16 %v232
        %v440 = vunpack.c.l.b16 %v233
        %v441 = vunpack.c.l.b16 %v234
        %v442 = vunpack.c.l.b16 %v235
        %v443 = vunpack.c.l.b16 %v236
        %v444 = vunpack.c.l.b16 %v237
        %v445 = vunpack.c.l.b16 %v238
        %v446 = vunpack.c.l.b16 %v239
        %v447 = vunpack.c.l.b16 %v240
        %v448 = vunpack.c.l.b16 %v241
        %v449 = vunpack.c.l.b16 %v242
        %v450 = vunpack.c.l.b16 %v243
        %v451 = vunpack.c.l.b16 %v244
        %v452 = vunpack.c.l.b16 %v245
        %v453 = vunpack.c.l.b16 %v246
        %v454 = vunpack.c.l.b16 %v247
        %v455 = vunpack.c.l.b16 %v248
        %v456 = vunpack.c.l.b16 %v249
        %v457 = vunpack.c.l.b16 %v250
        %v458 = vunpack.c.l.b16 %v251
        %v459 = vunpack.c.l.b16 %v252
        %v460 = vunpack.c.l.b16 %v253
        %v461 = vunpack.c.l.b16 %v254
        %v462 = vunpack.c.l.b16 %v255
        %v463 = vunpack.c.l.b16 %v256
        %v464 = vunpack.c.l.b16 %v257
        %v465 = vunpack.c.l.b16 %v258
        %v466 = vunpack.c.l.b16 %v259
        %v467 = vunpack.c.l.b16 %v260
        %v468 = vunpack.c.l.b16 %v261
        %v469 = vunpack.c.l.b16 %v262
        %v470 = vunpack.c.l.b16 %v263
        %v471 = vunpack.c.l.b16 %v264
        %v472 = vunpack.c.l.b16 %v265
        %v473 = vunpack.c.l.b16 %v266
        %v474 = vunpack.c.l.b16 %v267
        %v475 = vunpack.c.l.b16 %v268
        %v476 = vunpack.c.l.b16 %v269
        %v477 = vunpack.c.l.b16 %v270
        %v478 = vunpack.c.l.b16 %v271
        %v479 = vunpack.c.l.b16 %v272
        %v480 = vunpack.c.l.b16 %v273
        %v481 = vunpack.c.l.b16 %v274
        %v482 = vunpack.c.l.b16 %v275
        %v483 = vunpack.c.l.b16 %v276
        %v484 = vunpack.c.l.b16 %v277
        %v485 = vunpack.c.l.b16 %v278
        %v486 = vunpack.c.l.b16 %v279
        %v487 = vunpack.c.l.b16 %v280
        %v488 = vunpack.c.l.b16 %v281
        %v489 = vunpack.c.l.b16 %v282
        %v490 = vunpack.c.l.b16 %v283
        %v491 = vunpack.c.l.b16 %v284
        %v492 = vunpack.c.l.b16 %v285
        %v493 = vunpack.c.l.b16 %v286
        %v494 = vunpack.c.l.b16 %v287
        %v495 = vunpack.c.l.b16 %v288
        %v496 = vunpack.c.l.b16 %v289
        %v497 = vunpack.c.l.b16 %v290
        %v498 = vunpack.c.l.b16 %v291
        %v499 = vunpack.c.l.b16 %v292
        %v500 = vunpack.c.l.b16 %v293
        %v501 = vunpack.c.l.b16 %v294
        %v502 = vunpack.c.l.b16 %v295
        %v503 = vunpack.c.l.b16 %v296
        %v504 = vunpack.c.l.b16 %v297
        %v505 = vunpack.c.l.b16 %v298
        %v506 = vunpack.c.l.b16 %v299
        %v507 = vunpack.c.l.b16 %v300
        %v508 = vpack.c.b16 %v411, %v410
        %v509 = vpack.c.b16 %v413, %v412
        %v510 = vpack.c.b16 %v415, %v414
        %v511 = vpack.c.b16 %v417, %v416
        %v512 = vpack.c.b16 %v419, %v418
        %v513 = vpack.c.b16 %v421, %v420
        %v514 = vpack.c.b16 %v423, %v422
        %v515 = vpack.c.b16 %v425, %v424
        %v516 = vpack.c.b16 %v427, %v426
        %v517 = vpack.c.b16 %v429, %v428
        %v518 = vpack.c.b16 %v431, %v430
        %v519 = vpack.c.b16 %v433, %v432
        %v520 = vpack.c.b16 %v435, %v434
        %v521 = vpack.c.b16 %v437, %v436
        %v522 = vpack.c.b16 %v439, %v438
        %v523 = vpack.c.b16 %v441, %v440
        %v524 = vpack.c.b16 %v443, %v442
        %v525 = vpack.c.b16 %v445, %v444
        %v526 = vpack.c.b16 %v447, %v446
        %v527 = vpack.c.b16 %v449, %v448
        %v528 = vpack.c.b16 %v451, %v450
        %v529 = vpack.c.b16 %v453, %v452
        %v530 = vpack.c.b16 %v455, %v454
        %v531 = vpack.c.b16 %v457, %v456
        %v532 = vpack.c.b16 %v459, %v458
        %v533 = vpack.c.b16 %v461, %v460
        %v534 = vpack.c.b16 %v463, %v462
        %v535 = vpack.c.b16 %v465, %v464
        %v536 = vpack.c.b16 %v467, %v466
        %v537 = vpack.c.b16 %v469, %v468
        %v538 = vpack.c.b16 %v471, %v470
        %v539 = vpack.c.b16 %v473, %v472
        %v540 = vpack.c.b16 %v475, %v474
        %v541 = vpack.c.b16 %v477, %v476
        %v542 = vpack.c.b16 %v479, %v478
        %v543 = vpack.c.b16 %v481, %v480
        %v544 = vpack.c.b16 %v483, %v482
        %v545 = vpack.c.b16 %v485, %v484
        %v546 = vpack.c.b16 %v487, %v486
        %v547 = vpack.c.b16 %v489, %v488
        %v548 = vpack.c.b16 %v491, %v490
        %v549 = vpack.c.b16 %v493, %v492
        %v550 = vpack.c.b16 %v495, %v494
        %v551 = vpack.c.b16 %v497, %v496
        %v552 = vpack.c.b16 %v499, %v498
        %v553 = vpack.c.b16 %v501, %v500
        %v554 = vpack.c.b16 %v503, %v502
        %v555 = vpack.c.b16 %v505, %v504
        %v556 = vpack.c.b16 %v507, %v506
        %v561 = vunpack.c.l.b16 %v301
        %v562 = vunpack.c.l.b16 %v302
        %v563 = vunpack.c.l.b16 %v303
        %v564 = vunpack.c.l.b16 %v304
        %v565 = vpack.c.b16 %v562, %v561
        %v566 = vpack.c.b16 %v564, %v563
        %vm568 = vcmask 203776
        %v570 = vsel %vm568, %v508, 0
        %v573 = vsel %vm568, %v509, 0
        %v576 = vsel %vm568, %v510, 0
        %v579 = vsel %vm568, %v511, 0
        %v582 = vsel %vm568, %v512, 0
        %v585 = vsel %vm568, %v513, 0
        %v588 = vsel %vm568, %v514, 0
        %v591 = vsel %vm568, %v515, 0
        %v594 = vsel %vm568, %v516, 0
        %v597 = vsel %vm568, %v517, 0
        %v600 = vsel %vm568, %v518, 0
        %v603 = vsel %vm568, %v519, 0
        %v606 = vsel %vm568, %v520, 0
        %v609 = vsel %vm568, %v521, 0
        %v612 = vsel %vm568, %v522, 0
        %v615 = vsel %vm568, %v523, 0
        %v618 = vsel %vm568, %v524, 0
        %v621 = vsel %vm568, %v525, 0
        %v624 = vsel %vm568, %v526, 0
        %v627 = vsel %vm568, %v527, 0
        %v630 = vsel %vm568, %v528, 0
        %v633 = vsel %vm568, %v529, 0
        %v636 = vsel %vm568, %v530, 0
        %v639 = vsel %vm568, %v531, 0
        %v642 = vsel %vm568, %v532, 0
        %v645 = vsel %vm568, %v533, 0
        %v648 = vsel %vm568, %v534, 0
        %v651 = vsel %vm568, %v535, 0
        %v654 = vsel %vm568, %v536, 0
        %v657 = vsel %vm568, %v537, 0
        %v660 = vsel %vm568, %v538, 0
        %v663 = vsel %vm568, %v539, 0
        %v666 = vsel %vm568, %v540, 0
        %v669 = vsel %vm568, %v541, 0
        %v672 = vsel %vm568, %v542, 0
        %v675 = vsel %vm568, %v543, 0
        %v678 = vsel %vm568, %v544, 0
        %v681 = vsel %vm568, %v545, 0
        %v684 = vsel %vm568, %v546, 0
        %v687 = vsel %vm568, %v547, 0
        %v690 = vsel %vm568, %v548, 0
        %v693 = vsel %vm568, %v549, 0
        %v696 = vsel %vm568, %v550, 0
        %v699 = vsel %vm568, %v551, 0
        %v702 = vsel %vm568, %v552, 0
        %v705 = vsel %vm568, %v553, 0
        %v708 = vsel %vm568, %v554, 0
        %v711 = vsel %vm568, %v555, 0
        %v714 = vsel %vm568, %v556, 0
        %vm716 = vcmask 1043456
        %vm717 = vcmask 1044480
        %v718 = vsel %vm716, 4294967295, 65535
        %v719 = vsel %vm717, %v718, 0
        %v721 = vand.u32 %v566, %v719
        %723 = vmatprep.subr.bf16.mxu0 0
        %724 = vmatpush1.bf16.msra.mxu0 0
        %725 = vmatprep.subr.bf16.mxu0 0
        %726 = vmatpush1.bf16.msra.mxu0 0
        %727 = vmatprep.subr.bf16.mxu0 0
        %728 = vmatpush1.bf16.msra.mxu0 0
        %729 = vmatprep.subr.bf16.mxu0 0
        %730 = vmatpush1.bf16.msra.mxu0 0
        %731 = vmatprep.subr.bf16.mxu0 0
        %732 = vmatpush1.bf16.msra.mxu0 0
        %733 = vmatprep.subr.bf16.mxu0 0
        %734 = vmatpush1.bf16.msra.mxu0 0
        %735 = vmatprep.subr.bf16.mxu0 0
        %736 = vmatpush1.bf16.msra.mxu0 %v721
        %737 = vmatprep.subr.bf16.mxu0 0
        %738 = vmatpush1.bf16.msra.mxu0 %v565
        %739 = vmatprep.subr.bf16.mxu0 0
        %740 = vmatpush2.bf16.msra.mxu0 0
        %741 = vmatprep.subr.bf16.mxu0 0
        %742 = vmatpush2.bf16.msra.mxu0 0
        %743 = vmatprep.subr.bf16.mxu0 0
        %744 = vmatpush2.bf16.msra.mxu0 0
        %745 = vmatprep.subr.bf16.mxu0 0
        %746 = vmatpush2.bf16.msra.mxu0 0
        %747 = vmatprep.subr.bf16.mxu0 0
        %748 = vmatpush2.bf16.msra.mxu0 0
        %749 = vmatprep.subr.bf16.mxu0 0
        %750 = vmatpush2.bf16.msra.mxu0 0
        %751 = vmatprep.subr.bf16.mxu0 0
        %752 = vmatpush2.bf16.msra.mxu0 0
        %753 = vmatprep.subr.bf16.mxu0 0
        %754 = vmatpush2.bf16.msra.mxu0 0
        %755 = vmatprep.mubr.bf16.mxu0 0
        %756 = vmatmul.mubr.bf16.gmra.mxu0 %v570
        %v757 = vpop.f32.mrf.mxu0
        %v758 = vadd.f32 %v310, %v757
        %v759 = vpop.f32.mrf.mxu0
        %v760 = vpop.f32.mrf.mxu0
        %v761 = vadd.f32 %v310, %v760
        %v762 = vpop.f32.mrf.mxu0
        %763 = vmatprep.mubr.bf16.mxu0 0
        %764 = vmatmul.mubr.bf16.gmra.mxu0 %v573
        %v765 = vpop.f32.mrf.mxu0
        %v766 = vadd.f32 %v310, %v765
        %v767 = vpop.f32.mrf.mxu0
        %v768 = vpop.f32.mrf.mxu0
        %v769 = vadd.f32 %v310, %v768
        %v770 = vpop.f32.mrf.mxu0
        %771 = vmatprep.mubr.bf16.mxu0 0
        %772 = vmatmul.mubr.bf16.gmra.mxu0 %v576
        %v773 = vpop.f32.mrf.mxu0
        %v774 = vadd.f32 %v310, %v773
        %v775 = vpop.f32.mrf.mxu0
        %v776 = vpop.f32.mrf.mxu0
        %v777 = vadd.f32 %v310, %v776
        %v778 = vpop.f32.mrf.mxu0
        %779 = vmatprep.mubr.bf16.mxu0 0
        %780 = vmatmul.mubr.bf16.gmra.mxu0 %v579
        %v781 = vpop.f32.mrf.mxu0
        %v782 = vadd.f32 %v310, %v781
        %v783 = vpop.f32.mrf.mxu0
        %v784 = vpop.f32.mrf.mxu0
        %v785 = vadd.f32 %v310, %v784
        %v786 = vpop.f32.mrf.mxu0
        %787 = vmatprep.mubr.bf16.mxu0 0
        %788 = vmatmul.mubr.bf16.gmra.mxu0 %v582
        %v789 = vpop.f32.mrf.mxu0
        %v790 = vadd.f32 %v310, %v789
        %v791 = vpop.f32.mrf.mxu0
        %v792 = vpop.f32.mrf.mxu0
        %v793 = vadd.f32 %v310, %v792
        %v794 = vpop.f32.mrf.mxu0
        %795 = vmatprep.mubr.bf16.mxu0 0
        %796 = vmatmul.mubr.bf16.gmra.mxu0 %v585
        %v797 = vpop.f32.mrf.mxu0
        %v798 = vadd.f32 %v310, %v797
        %v799 = vpop.f32.mrf.mxu0
        %v800 = vpop.f32.mrf.mxu0
        %v801 = vadd.f32 %v310, %v800
        %v802 = vpop.f32.mrf.mxu0
        %803 = vmatprep.mubr.bf16.mxu0 0
        %804 = vmatmul.mubr.bf16.gmra.mxu0 %v588
        %v805 = vpop.f32.mrf.mxu0
        %v806 = vadd.f32 %v310, %v805
        %v807 = vpop.f32.mrf.mxu0
        %v808 = vpop.f32.mrf.mxu0
        %v809 = vadd.f32 %v310, %v808
        %v810 = vpop.f32.mrf.mxu0
        %811 = vmatprep.mubr.bf16.mxu0 0
        %812 = vmatmul.mubr.bf16.gmra.mxu0 %v591
        %v813 = vpop.f32.mrf.mxu0
        %v814 = vadd.f32 %v310, %v813
        %v815 = vpop.f32.mrf.mxu0
        %v816 = vpop.f32.mrf.mxu0
        %v817 = vadd.f32 %v310, %v816
        %v818 = vpop.f32.mrf.mxu0
        %819 = vmatprep.mubr.bf16.mxu0 0
        %820 = vmatmul.mubr.bf16.gmra.mxu0 %v594
        %v821 = vpop.f32.mrf.mxu0
        %v822 = vadd.f32 %v310, %v821
        %v823 = vpop.f32.mrf.mxu0
        %v824 = vpop.f32.mrf.mxu0
        %v825 = vadd.f32 %v310, %v824
        %v826 = vpop.f32.mrf.mxu0
        %827 = vmatprep.mubr.bf16.mxu0 0
        %828 = vmatmul.mubr.bf16.gmra.mxu0 %v597
        %v829 = vpop.f32.mrf.mxu0
        %v830 = vadd.f32 %v310, %v829
        %v831 = vpop.f32.mrf.mxu0
        %v832 = vpop.f32.mrf.mxu0
        %v833 = vadd.f32 %v310, %v832
        %v834 = vpop.f32.mrf.mxu0
        %835 = vmatprep.mubr.bf16.mxu0 0
        %836 = vmatmul.mubr.bf16.gmra.mxu0 %v600
        %v837 = vpop.f32.mrf.mxu0
        %v838 = vadd.f32 %v310, %v837
        %v839 = vpop.f32.mrf.mxu0
        %v840 = vpop.f32.mrf.mxu0
        %v841 = vadd.f32 %v310, %v840
        %v842 = vpop.f32.mrf.mxu0
        %843 = vmatprep.mubr.bf16.mxu0 0
        %844 = vmatmul.mubr.bf16.gmra.mxu0 %v603
        %v845 = vpop.f32.mrf.mxu0
        %v846 = vadd.f32 %v310, %v845
        %v847 = vpop.f32.mrf.mxu0
        %v848 = vpop.f32.mrf.mxu0
        %v849 = vadd.f32 %v310, %v848
        %v850 = vpop.f32.mrf.mxu0
        %851 = vmatprep.mubr.bf16.mxu0 0
        %852 = vmatmul.mubr.bf16.gmra.mxu0 %v606
        %v853 = vpop.f32.mrf.mxu0
        %v854 = vadd.f32 %v310, %v853
        %v855 = vpop.f32.mrf.mxu0
        %v856 = vpop.f32.mrf.mxu0
        %v857 = vadd.f32 %v310, %v856
        %v858 = vpop.f32.mrf.mxu0
        %859 = vmatprep.mubr.bf16.mxu0 0
        %860 = vmatmul.mubr.bf16.gmra.mxu0 %v609
        %v861 = vpop.f32.mrf.mxu0
        %v862 = vadd.f32 %v310, %v861
        %v863 = vpop.f32.mrf.mxu0
        %v864 = vpop.f32.mrf.mxu0
        %v865 = vadd.f32 %v310, %v864
        %v866 = vpop.f32.mrf.mxu0
        %867 = vmatprep.mubr.bf16.mxu0 0
        %868 = vmatmul.mubr.bf16.gmra.mxu0 %v612
        %v869 = vpop.f32.mrf.mxu0
        %v870 = vadd.f32 %v310, %v869
        %v871 = vpop.f32.mrf.mxu0
        %v872 = vpop.f32.mrf.mxu0
        %v873 = vadd.f32 %v310, %v872
        %v874 = vpop.f32.mrf.mxu0
        %875 = vmatprep.mubr.bf16.mxu0 0
        %876 = vmatmul.mubr.bf16.gmra.mxu0 %v615
        %v877 = vpop.f32.mrf.mxu0
        %v878 = vadd.f32 %v310, %v877
        %v879 = vpop.f32.mrf.mxu0
        %v880 = vpop.f32.mrf.mxu0
        %v881 = vadd.f32 %v310, %v880
        %v882 = vpop.f32.mrf.mxu0
        %883 = vmatprep.mubr.bf16.mxu0 0
        %884 = vmatmul.mubr.bf16.gmra.mxu0 %v618
        %v885 = vpop.f32.mrf.mxu0
        %v886 = vadd.f32 %v310, %v885
        %v887 = vpop.f32.mrf.mxu0
        %v888 = vpop.f32.mrf.mxu0
        %v889 = vadd.f32 %v310, %v888
        %v890 = vpop.f32.mrf.mxu0
        %891 = vmatprep.mubr.bf16.mxu0 0
        %892 = vmatmul.mubr.bf16.gmra.mxu0 %v621
        %v893 = vpop.f32.mrf.mxu0
        %v894 = vadd.f32 %v310, %v893
        %v895 = vpop.f32.mrf.mxu0
        %v896 = vpop.f32.mrf.mxu0
        %v897 = vadd.f32 %v310, %v896
        %v898 = vpop.f32.mrf.mxu0
        %899 = vmatprep.mubr.bf16.mxu0 0
        %900 = vmatmul.mubr.bf16.gmra.mxu0 %v624
        %v901 = vpop.f32.mrf.mxu0
        %v902 = vadd.f32 %v310, %v901
        %v903 = vpop.f32.mrf.mxu0
        %v904 = vpop.f32.mrf.mxu0
        %v905 = vadd.f32 %v310, %v904
        %v906 = vpop.f32.mrf.mxu0
        %907 = vmatprep.mubr.bf16.mxu0 0
        %908 = vmatmul.mubr.bf16.gmra.mxu0 %v627
        %v909 = vpop.f32.mrf.mxu0
        %v910 = vadd.f32 %v310, %v909
        %v911 = vpop.f32.mrf.mxu0
        %v912 = vpop.f32.mrf.mxu0
        %v913 = vadd.f32 %v310, %v912
        %v914 = vpop.f32.mrf.mxu0
        %915 = vmatprep.mubr.bf16.mxu0 0
        %916 = vmatmul.mubr.bf16.gmra.mxu0 %v630
        %v917 = vpop.f32.mrf.mxu0
        %v918 = vadd.f32 %v310, %v917
        %v919 = vpop.f32.mrf.mxu0
        %v920 = vpop.f32.mrf.mxu0
        %v921 = vadd.f32 %v310, %v920
        %v922 = vpop.f32.mrf.mxu0
        %923 = vmatprep.mubr.bf16.mxu0 0
        %924 = vmatmul.mubr.bf16.gmra.mxu0 %v633
        %v925 = vpop.f32.mrf.mxu0
        %v926 = vadd.f32 %v310, %v925
        %v927 = vpop.f32.mrf.mxu0
        %v928 = vpop.f32.mrf.mxu0
        %v929 = vadd.f32 %v310, %v928
        %v930 = vpop.f32.mrf.mxu0
        %931 = vmatprep.mubr.bf16.mxu0 0
        %932 = vmatmul.mubr.bf16.gmra.mxu0 %v636
        %v933 = vpop.f32.mrf.mxu0
        %v934 = vadd.f32 %v310, %v933
        %v935 = vpop.f32.mrf.mxu0
        %v936 = vpop.f32.mrf.mxu0
        %v937 = vadd.f32 %v310, %v936
        %v938 = vpop.f32.mrf.mxu0
        %939 = vmatprep.mubr.bf16.mxu0 0
        %940 = vmatmul.mubr.bf16.gmra.mxu0 %v639
        %v941 = vpop.f32.mrf.mxu0
        %v942 = vadd.f32 %v310, %v941
        %v943 = vpop.f32.mrf.mxu0
        %v944 = vpop.f32.mrf.mxu0
        %v945 = vadd.f32 %v310, %v944
        %v946 = vpop.f32.mrf.mxu0
        %947 = vmatprep.mubr.bf16.mxu0 0
        %948 = vmatmul.mubr.bf16.gmra.mxu0 %v642
        %v949 = vpop.f32.mrf.mxu0
        %v950 = vadd.f32 %v310, %v949
        %v951 = vpop.f32.mrf.mxu0
        %v952 = vpop.f32.mrf.mxu0
        %v953 = vadd.f32 %v310, %v952
        %v954 = vpop.f32.mrf.mxu0
        %955 = vmatprep.mubr.bf16.mxu0 0
        %956 = vmatmul.mubr.bf16.gmra.mxu0 %v645
        %v957 = vpop.f32.mrf.mxu0
        %v958 = vadd.f32 %v310, %v957
        %v959 = vpop.f32.mrf.mxu0
        %v960 = vpop.f32.mrf.mxu0
        %v961 = vadd.f32 %v310, %v960
        %v962 = vpop.f32.mrf.mxu0
        %963 = vmatprep.mubr.bf16.mxu0 0
        %964 = vmatmul.mubr.bf16.gmra.mxu0 %v648
        %v965 = vpop.f32.mrf.mxu0
        %v966 = vadd.f32 %v310, %v965
        %v967 = vpop.f32.mrf.mxu0
        %v968 = vpop.f32.mrf.mxu0
        %v969 = vadd.f32 %v310, %v968
        %v970 = vpop.f32.mrf.mxu0
        %971 = vmatprep.mubr.bf16.mxu0 0
        %972 = vmatmul.mubr.bf16.gmra.mxu0 %v651
        %v973 = vpop.f32.mrf.mxu0
        %v974 = vadd.f32 %v310, %v973
        %v975 = vpop.f32.mrf.mxu0
        %v976 = vpop.f32.mrf.mxu0
        %v977 = vadd.f32 %v310, %v976
        %v978 = vpop.f32.mrf.mxu0
        %979 = vmatprep.mubr.bf16.mxu0 0
        %980 = vmatmul.mubr.bf16.gmra.mxu0 %v654
        %v981 = vpop.f32.mrf.mxu0
        %v982 = vadd.f32 %v310, %v981
        %v983 = vpop.f32.mrf.mxu0
        %v984 = vpop.f32.mrf.mxu0
        %v985 = vadd.f32 %v310, %v984
        %v986 = vpop.f32.mrf.mxu0
        %987 = vmatprep.mubr.bf16.mxu0 0
        %988 = vmatmul.mubr.bf16.gmra.mxu0 %v657
        %v989 = vpop.f32.mrf.mxu0
        %v990 = vadd.f32 %v310, %v989
        %v991 = vpop.f32.mrf.mxu0
        %v992 = vpop.f32.mrf.mxu0
        %v993 = vadd.f32 %v310, %v992
        %v994 = vpop.f32.mrf.mxu0
        %995 = vmatprep.mubr.bf16.mxu0 0
        %996 = vmatmul.mubr.bf16.gmra.mxu0 %v660
        %v997 = vpop.f32.mrf.mxu0
        %v998 = vadd.f32 %v310, %v997
        %v999 = vpop.f32.mrf.mxu0
        %v1000 = vpop.f32.mrf.mxu0
        %v1001 = vadd.f32 %v310, %v1000
        %v1002 = vpop.f32.mrf.mxu0
        %1003 = vmatprep.mubr.bf16.mxu0 0
        %1004 = vmatmul.mubr.bf16.gmra.mxu0 %v663
        %v1005 = vpop.f32.mrf.mxu0
        %v1006 = vadd.f32 %v310, %v1005
        %v1007 = vpop.f32.mrf.mxu0
        %v1008 = vpop.f32.mrf.mxu0
        %v1009 = vadd.f32 %v310, %v1008
        %v1010 = vpop.f32.mrf.mxu0
        %1011 = vmatprep.mubr.bf16.mxu0 0
        %1012 = vmatmul.mubr.bf16.gmra.mxu0 %v666
        %v1013 = vpop.f32.mrf.mxu0
        %v1014 = vadd.f32 %v310, %v1013
        %v1015 = vpop.f32.mrf.mxu0
        %v1016 = vpop.f32.mrf.mxu0
        %v1017 = vadd.f32 %v310, %v1016
        %v1018 = vpop.f32.mrf.mxu0
        %1019 = vmatprep.mubr.bf16.mxu0 0
        %1020 = vmatmul.mubr.bf16.gmra.mxu0 %v669
        %v1021 = vpop.f32.mrf.mxu0
        %v1022 = vadd.f32 %v310, %v1021
        %v1023 = vpop.f32.mrf.mxu0
        %v1024 = vpop.f32.mrf.mxu0
        %v1025 = vadd.f32 %v310, %v1024
        %v1026 = vpop.f32.mrf.mxu0
        %1027 = vmatprep.mubr.bf16.mxu0 0
        %1028 = vmatmul.mubr.bf16.gmra.mxu0 %v672
        %v1029 = vpop.f32.mrf.mxu0
        %v1030 = vadd.f32 %v310, %v1029
        %v1031 = vpop.f32.mrf.mxu0
        %v1032 = vpop.f32.mrf.mxu0
        %v1033 = vadd.f32 %v310, %v1032
        %v1034 = vpop.f32.mrf.mxu0
        %1035 = vmatprep.mubr.bf16.mxu0 0
        %1036 = vmatmul.mubr.bf16.gmra.mxu0 %v675
        %v1037 = vpop.f32.mrf.mxu0
        %v1038 = vadd.f32 %v310, %v1037
        %v1039 = vpop.f32.mrf.mxu0
        %v1040 = vpop.f32.mrf.mxu0
        %v1041 = vadd.f32 %v310, %v1040
        %v1042 = vpop.f32.mrf.mxu0
        %1043 = vmatprep.mubr.bf16.mxu0 0
        %1044 = vmatmul.mubr.bf16.gmra.mxu0 %v678
        %v1045 = vpop.f32.mrf.mxu0
        %v1046 = vadd.f32 %v310, %v1045
        %v1047 = vpop.f32.mrf.mxu0
        %v1048 = vpop.f32.mrf.mxu0
        %v1049 = vadd.f32 %v310, %v1048
        %v1050 = vpop.f32.mrf.mxu0
        %1051 = vmatprep.mubr.bf16.mxu0 0
        %1052 = vmatmul.mubr.bf16.gmra.mxu0 %v681
        %v1053 = vpop.f32.mrf.mxu0
        %v1054 = vadd.f32 %v310, %v1053
        %v1055 = vpop.f32.mrf.mxu0
        %v1056 = vpop.f32.mrf.mxu0
        %v1057 = vadd.f32 %v310, %v1056
        %v1058 = vpop.f32.mrf.mxu0
        %1059 = vmatprep.mubr.bf16.mxu0 0
        %1060 = vmatmul.mubr.bf16.gmra.mxu0 %v684
        %v1061 = vpop.f32.mrf.mxu0
        %v1062 = vadd.f32 %v310, %v1061
        %v1063 = vpop.f32.mrf.mxu0
        %v1064 = vpop.f32.mrf.mxu0
        %v1065 = vadd.f32 %v310, %v1064
        %v1066 = vpop.f32.mrf.mxu0
        %1067 = vmatprep.mubr.bf16.mxu0 0
        %1068 = vmatmul.mubr.bf16.gmra.mxu0 %v687
        %v1069 = vpop.f32.mrf.mxu0
        %v1070 = vadd.f32 %v310, %v1069
        %v1071 = vpop.f32.mrf.mxu0
        %v1072 = vpop.f32.mrf.mxu0
        %v1073 = vadd.f32 %v310, %v1072
        %v1074 = vpop.f32.mrf.mxu0
        %1075 = vmatprep.mubr.bf16.mxu0 0
        %1076 = vmatmul.mubr.bf16.gmra.mxu0 %v690
        %v1077 = vpop.f32.mrf.mxu0
        %v1078 = vadd.f32 %v310, %v1077
        %v1079 = vpop.f32.mrf.mxu0
        %v1080 = vpop.f32.mrf.mxu0
        %v1081 = vadd.f32 %v310, %v1080
        %v1082 = vpop.f32.mrf.mxu0
        %1083 = vmatprep.mubr.bf16.mxu0 0
        %1084 = vmatmul.mubr.bf16.gmra.mxu0 %v693
        %v1085 = vpop.f32.mrf.mxu0
        %v1086 = vadd.f32 %v310, %v1085
        %v1087 = vpop.f32.mrf.mxu0
        %v1088 = vpop.f32.mrf.mxu0
        %v1089 = vadd.f32 %v310, %v1088
        %v1090 = vpop.f32.mrf.mxu0
        %1091 = vmatprep.mubr.bf16.mxu0 0
        %1092 = vmatmul.mubr.bf16.gmra.mxu0 %v696
        %v1093 = vpop.f32.mrf.mxu0
        %v1094 = vadd.f32 %v310, %v1093
        %v1095 = vpop.f32.mrf.mxu0
        %v1096 = vpop.f32.mrf.mxu0
        %v1097 = vadd.f32 %v310, %v1096
        %v1098 = vpop.f32.mrf.mxu0
        %1099 = vmatprep.mubr.bf16.mxu0 0
        %1100 = vmatmul.mubr.bf16.gmra.mxu0 %v699
        %v1101 = vpop.f32.mrf.mxu0
        %v1102 = vadd.f32 %v310, %v1101
        %v1103 = vpop.f32.mrf.mxu0
        %v1104 = vpop.f32.mrf.mxu0
        %v1105 = vadd.f32 %v310, %v1104
        %v1106 = vpop.f32.mrf.mxu0
        %1107 = vmatprep.mubr.bf16.mxu0 0
        %1108 = vmatmul.mubr.bf16.gmra.mxu0 %v702
        %v1109 = vpop.f32.mrf.mxu0
        %v1110 = vadd.f32 %v310, %v1109
        %v1111 = vpop.f32.mrf.mxu0
        %v1112 = vpop.f32.mrf.mxu0
        %v1113 = vadd.f32 %v310, %v1112
        %v1114 = vpop.f32.mrf.mxu0
        %1115 = vmatprep.mubr.bf16.mxu0 0
        %1116 = vmatmul.mubr.bf16.gmra.mxu0 %v705
        %v1117 = vpop.f32.mrf.mxu0
        %v1118 = vadd.f32 %v310, %v1117
        %v1119 = vpop.f32.mrf.mxu0
        %v1120 = vpop.f32.mrf.mxu0
        %v1121 = vadd.f32 %v310, %v1120
        %v1122 = vpop.f32.mrf.mxu0
        %1123 = vmatprep.mubr.bf16.mxu0 0
        %1124 = vmatmul.mubr.bf16.gmra.mxu0 %v708
        %v1125 = vpop.f32.mrf.mxu0
        %v1126 = vadd.f32 %v310, %v1125
        %v1127 = vpop.f32.mrf.mxu0
        %v1128 = vpop.f32.mrf.mxu0
        %v1129 = vadd.f32 %v310, %v1128
        %v1130 = vpop.f32.mrf.mxu0
        %1131 = vmatprep.mubr.bf16.mxu0 0
        %1132 = vmatmul.mubr.bf16.gmra.mxu0 %v711
        %v1133 = vpop.f32.mrf.mxu0
        %v1134 = vadd.f32 %v310, %v1133
        %v1135 = vpop.f32.mrf.mxu0
        %v1136 = vpop.f32.mrf.mxu0
        %v1137 = vadd.f32 %v310, %v1136
        %v1138 = vpop.f32.mrf.mxu0
        %1139 = vmatprep.mubr.bf16.mxu0 0
        %1140 = vmatmul.mubr.bf16.gmra.mxu0 %v714
        %v1141 = vpop.f32.mrf.mxu0
        %v1142 = vadd.f32 %v310, %v1141
        %v1143 = vpop.f32.mrf.mxu0
        %v1144 = vpop.f32.mrf.mxu0
        %v1145 = vadd.f32 %v310, %v1144
        %v1146 = vpop.f32.mrf.mxu0
        %1147 = vdwg.mxu0
        %v1148 = vmax.f32 %v758, 0.0
        %v1149 = vmax.f32 %v761, 0.0
        %v1150 = vmax.f32 %v766, 0.0
        %v1151 = vmax.f32 %v769, 0.0
        %v1152 = vmax.f32 %v774, 0.0
        %v1153 = vmax.f32 %v777, 0.0
        %v1154 = vmax.f32 %v782, 0.0
        %v1155 = vmax.f32 %v785, 0.0
        %v1156 = vmax.f32 %v790, 0.0
        %v1157 = vmax.f32 %v793, 0.0
        %v1158 = vmax.f32 %v798, 0.0
        %v1159 = vmax.f32 %v801, 0.0
        %v1160 = vmax.f32 %v806, 0.0
        %v1161 = vmax.f32 %v809, 0.0
        %v1162 = vmax.f32 %v814, 0.0
        %v1163 = vmax.f32 %v817, 0.0
        %v1164 = vmax.f32 %v822, 0.0
        %v1165 = vmax.f32 %v825, 0.0
        %v1166 = vmax.f32 %v830, 0.0
        %v1167 = vmax.f32 %v833, 0.0
        %v1168 = vmax.f32 %v838, 0.0
        %v1169 = vmax.f32 %v841, 0.0
        %v1170 = vmax.f32 %v846, 0.0
        %v1171 = vmax.f32 %v849, 0.0
        %v1172 = vmax.f32 %v854, 0.0
        %v1173 = vmax.f32 %v857, 0.0
        %v1174 = vmax.f32 %v862, 0.0
        %v1175 = vmax.f32 %v865, 0.0
        %v1176 = vmax.f32 %v870, 0.0
        %v1177 = vmax.f32 %v873, 0.0
        %v1178 = vmax.f32 %v878, 0.0
        %v1179 = vmax.f32 %v881, 0.0
        %v1180 = vmax.f32 %v886, 0.0
        %v1181 = vmax.f32 %v889, 0.0
        %v1182 = vmax.f32 %v894, 0.0
        %v1183 = vmax.f32 %v897, 0.0
        %v1184 = vmax.f32 %v902, 0.0
        %v1185 = vmax.f32 %v905, 0.0
        %v1186 = vmax.f32 %v910, 0.0
        %v1187 = vmax.f32 %v913, 0.0
        %v1188 = vmax.f32 %v918, 0.0
        %v1189 = vmax.f32 %v921, 0.0
        %v1190 = vmax.f32 %v926, 0.0
        %v1191 = vmax.f32 %v929, 0.0
        %v1192 = vmax.f32 %v934, 0.0
        %v1193 = vmax.f32 %v937, 0.0
        %v1194 = vmax.f32 %v942, 0.0
        %v1195 = vmax.f32 %v945, 0.0
        %v1196 = vmax.f32 %v950, 0.0
        %v1197 = vmax.f32 %v953, 0.0
        %v1198 = vmax.f32 %v958, 0.0
        %v1199 = vmax.f32 %v961, 0.0
        %v1200 = vmax.f32 %v966, 0.0
        %v1201 = vmax.f32 %v969, 0.0
        %v1202 = vmax.f32 %v974, 0.0
        %v1203 = vmax.f32 %v977, 0.0
        %v1204 = vmax.f32 %v982, 0.0
        %v1205 = vmax.f32 %v985, 0.0
        %v1206 = vmax.f32 %v990, 0.0
        %v1207 = vmax.f32 %v993, 0.0
        %v1208 = vmax.f32 %v998, 0.0
        %v1209 = vmax.f32 %v1001, 0.0
        %v1210 = vmax.f32 %v1006, 0.0
        %v1211 = vmax.f32 %v1009, 0.0
        %v1212 = vmax.f32 %v1014, 0.0
        %v1213 = vmax.f32 %v1017, 0.0
        %v1214 = vmax.f32 %v1022, 0.0
        %v1215 = vmax.f32 %v1025, 0.0
        %v1216 = vmax.f32 %v1030, 0.0
        %v1217 = vmax.f32 %v1033, 0.0
        %v1218 = vmax.f32 %v1038, 0.0
        %v1219 = vmax.f32 %v1041, 0.0
        %v1220 = vmax.f32 %v1046, 0.0
        %v1221 = vmax.f32 %v1049, 0.0
        %v1222 = vmax.f32 %v1054, 0.0
        %v1223 = vmax.f32 %v1057, 0.0
        %v1224 = vmax.f32 %v1062, 0.0
        %v1225 = vmax.f32 %v1065, 0.0
        %v1226 = vmax.f32 %v1070, 0.0
        %v1227 = vmax.f32 %v1073, 0.0
        %v1228 = vmax.f32 %v1078, 0.0
        %v1229 = vmax.f32 %v1081, 0.0
        %v1230 = vmax.f32 %v1086, 0.0
        %v1231 = vmax.f32 %v1089, 0.0
        %v1232 = vmax.f32 %v1094, 0.0
        %v1233 = vmax.f32 %v1097, 0.0
        %v1234 = vmax.f32 %v1102, 0.0
        %v1235 = vmax.f32 %v1105, 0.0
        %v1236 = vmax.f32 %v1110, 0.0
        %v1237 = vmax.f32 %v1113, 0.0
        %v1238 = vmax.f32 %v1118, 0.0
        %v1239 = vmax.f32 %v1121, 0.0
        %v1240 = vmax.f32 %v1126, 0.0
        %v1241 = vmax.f32 %v1129, 0.0
        %v1242 = vmax.f32 %v1134, 0.0
        %v1243 = vmax.f32 %v1137, 0.0
        %v1244 = vmax.f32 %v1142, 0.0
        %v1245 = vmax.f32 %v1145, 0.0
        %vm1246 = vcmask 261120
        %1247 = vst.msk [vmem:[%s200] sm:$0xff] %vm1246, %v1148
        %1248 = vst.msk [vmem:[%s200 + $0x8] sm:$0xff] %vm1246, %v1149
        %1249 = vst.msk [vmem:[%s200 + $0x10] sm:$0xff] %vm1246, %v1150
        %1250 = vst.msk [vmem:[%s200 + $0x18] sm:$0xff] %vm1246, %v1151
        %1251 = vst.msk [vmem:[%s200 + $0x20] sm:$0xff] %vm1246, %v1152
        %1252 = vst.msk [vmem:[%s200 + $0x28] sm:$0xff] %vm1246, %v1153
        %1253 = vst.msk [vmem:[%s200 + $0x30] sm:$0xff] %vm1246, %v1154
        %1254 = vst.msk [vmem:[%s200 + $0x38] sm:$0xff] %vm1246, %v1155
        %1255 = vst.msk [vmem:[%s200 + $0x40] sm:$0xff] %vm1246, %v1156
        %1256 = vst.msk [vmem:[%s200 + $0x48] sm:$0xff] %vm1246, %v1157
        %1257 = vst.msk [vmem:[%s200 + $0x50] sm:$0xff] %vm1246, %v1158
        %1258 = vst.msk [vmem:[%s200 + $0x58] sm:$0xff] %vm1246, %v1159
        %1259 = vst.msk [vmem:[%s200 + $0x60] sm:$0xff] %vm1246, %v1160
        %1260 = vst.msk [vmem:[%s200 + $0x68] sm:$0xff] %vm1246, %v1161
        %1261 = vst.msk [vmem:[%s200 + $0x70] sm:$0xff] %vm1246, %v1162
        %1262 = vst.msk [vmem:[%s200 + $0x78] sm:$0xff] %vm1246, %v1163
        %1263 = vst.msk [vmem:[%s200 + $0x80] sm:$0xff] %vm1246, %v1164
        %1264 = vst.msk [vmem:[%s200 + $0x88] sm:$0xff] %vm1246, %v1165
        %1265 = vst.msk [vmem:[%s200 + $0x90] sm:$0xff] %vm1246, %v1166
        %1266 = vst.msk [vmem:[%s200 + $0x98] sm:$0xff] %vm1246, %v1167
        %1267 = vst.msk [vmem:[%s200 + $0xa0] sm:$0xff] %vm1246, %v1168
        %1268 = vst.msk [vmem:[%s200 + $0xa8] sm:$0xff] %vm1246, %v1169
        %1269 = vst.msk [vmem:[%s200 + $0xb0] sm:$0xff] %vm1246, %v1170
        %1270 = vst.msk [vmem:[%s200 + $0xb8] sm:$0xff] %vm1246, %v1171
        %1271 = vst.msk [vmem:[%s200 + $0xc0] sm:$0xff] %vm1246, %v1172
        %1272 = vst.msk [vmem:[%s200 + $0xc8] sm:$0xff] %vm1246, %v1173
        %1273 = vst.msk [vmem:[%s200 + $0xd0] sm:$0xff] %vm1246, %v1174
        %1274 = vst.msk [vmem:[%s200 + $0xd8] sm:$0xff] %vm1246, %v1175
        %1275 = vst.msk [vmem:[%s200 + $0xe0] sm:$0xff] %vm1246, %v1176
        %1276 = vst.msk [vmem:[%s200 + $0xe8] sm:$0xff] %vm1246, %v1177
        %1277 = vst.msk [vmem:[%s200 + $0xf0] sm:$0xff] %vm1246, %v1178
        %1278 = vst.msk [vmem:[%s200 + $0xf8] sm:$0xff] %vm1246, %v1179
        %1279 = vst.msk [vmem:[%s200 + $0x100] sm:$0xff] %vm1246, %v1180
        %1280 = vst.msk [vmem:[%s200 + $0x108] sm:$0xff] %vm1246, %v1181
        %1281 = vst.msk [vmem:[%s200 + $0x110] sm:$0xff] %vm1246, %v1182
        %1282 = vst.msk [vmem:[%s200 + $0x118] sm:$0xff] %vm1246, %v1183
        %1283 = vst.msk [vmem:[%s200 + $0x120] sm:$0xff] %vm1246, %v1184
        %1284 = vst.msk [vmem:[%s200 + $0x128] sm:$0xff] %vm1246, %v1185
        %1285 = vst.msk [vmem:[%s200 + $0x130] sm:$0xff] %vm1246, %v1186
        %1286 = vst.msk [vmem:[%s200 + $0x138] sm:$0xff] %vm1246, %v1187
        %1287 = vst.msk [vmem:[%s200 + $0x140] sm:$0xff] %vm1246, %v1188
        %1288 = vst.msk [vmem:[%s200 + $0x148] sm:$0xff] %vm1246, %v1189
        %1289 = vst.msk [vmem:[%s200 + $0x150] sm:$0xff] %vm1246, %v1190
        %1290 = vst.msk [vmem:[%s200 + $0x158] sm:$0xff] %vm1246, %v1191
        %1291 = vst.msk [vmem:[%s200 + $0x160] sm:$0xff] %vm1246, %v1192
        %1292 = vst.msk [vmem:[%s200 + $0x168] sm:$0xff] %vm1246, %v1193
        %1293 = vst.msk [vmem:[%s200 + $0x170] sm:$0xff] %vm1246, %v1194
        %1294 = vst.msk [vmem:[%s200 + $0x178] sm:$0xff] %vm1246, %v1195
        %1295 = vst.msk [vmem:[%s200 + $0x180] sm:$0xff] %vm1246, %v1196
        %1296 = vst.msk [vmem:[%s200 + $0x188] sm:$0xff] %vm1246, %v1197
        %1297 = vst.msk [vmem:[%s200 + $0x190] sm:$0xff] %vm1246, %v1198
        %1298 = vst.msk [vmem:[%s200 + $0x198] sm:$0xff] %vm1246, %v1199
        %1299 = vst.msk [vmem:[%s200 + $0x1a0] sm:$0xff] %vm1246, %v1200
        %1300 = vst.msk [vmem:[%s200 + $0x1a8] sm:$0xff] %vm1246, %v1201
        %1301 = vst.msk [vmem:[%s200 + $0x1b0] sm:$0xff] %vm1246, %v1202
        %1302 = vst.msk [vmem:[%s200 + $0x1b8] sm:$0xff] %vm1246, %v1203
        %1303 = vst.msk [vmem:[%s200 + $0x1c0] sm:$0xff] %vm1246, %v1204
        %1304 = vst.msk [vmem:[%s200 + $0x1c8] sm:$0xff] %vm1246, %v1205
        %1305 = vst.msk [vmem:[%s200 + $0x1d0] sm:$0xff] %vm1246, %v1206
        %1306 = vst.msk [vmem:[%s200 + $0x1d8] sm:$0xff] %vm1246, %v1207
        %1307 = vst.msk [vmem:[%s200 + $0x1e0] sm:$0xff] %vm1246, %v1208
        %1308 = vst.msk [vmem:[%s200 + $0x1e8] sm:$0xff] %vm1246, %v1209
        %1309 = vst.msk [vmem:[%s200 + $0x1f0] sm:$0xff] %vm1246, %v1210
        %1310 = vst.msk [vmem:[%s200 + $0x1f8] sm:$0xff] %vm1246, %v1211
        %1311 = vst.msk [vmem:[%s200 + $0x200] sm:$0xff] %vm1246, %v1212
        %1312 = vst.msk [vmem:[%s200 + $0x208] sm:$0xff] %vm1246, %v1213
        %1313 = vst.msk [vmem:[%s200 + $0x210] sm:$0xff] %vm1246, %v1214
        %1314 = vst.msk [vmem:[%s200 + $0x218] sm:$0xff] %vm1246, %v1215
        %1315 = vst.msk [vmem:[%s200 + $0x220] sm:$0xff] %vm1246, %v1216
        %1316 = vst.msk [vmem:[%s200 + $0x228] sm:$0xff] %vm1246, %v1217
        %1317 = vst.msk [vmem:[%s200 + $0x230] sm:$0xff] %vm1246, %v1218
        %1318 = vst.msk [vmem:[%s200 + $0x238] sm:$0xff] %vm1246, %v1219
        %1319 = vst.msk [vmem:[%s200 + $0x240] sm:$0xff] %vm1246, %v1220
        %1320 = vst.msk [vmem:[%s200 + $0x248] sm:$0xff] %vm1246, %v1221
        %1321 = vst.msk [vmem:[%s200 + $0x250] sm:$0xff] %vm1246, %v1222
        %1322 = vst.msk [vmem:[%s200 + $0x258] sm:$0xff] %vm1246, %v1223
        %1323 = vst.msk [vmem:[%s200 + $0x260] sm:$0xff] %vm1246, %v1224
        %1324 = vst.msk [vmem:[%s200 + $0x268] sm:$0xff] %vm1246, %v1225
        %1325 = vst.msk [vmem:[%s200 + $0x270] sm:$0xff] %vm1246, %v1226
        %1326 = vst.msk [vmem:[%s200 + $0x278] sm:$0xff] %vm1246, %v1227
        %1327 = vst.msk [vmem:[%s200 + $0x280] sm:$0xff] %vm1246, %v1228
        %1328 = vst.msk [vmem:[%s200 + $0x288] sm:$0xff] %vm1246, %v1229
        %1329 = vst.msk [vmem:[%s200 + $0x290] sm:$0xff] %vm1246, %v1230
        %1330 = vst.msk [vmem:[%s200 + $0x298] sm:$0xff] %vm1246, %v1231
        %1331 = vst.msk [vmem:[%s200 + $0x2a0] sm:$0xff] %vm1246, %v1232
        %1332 = vst.msk [vmem:[%s200 + $0x2a8] sm:$0xff] %vm1246, %v1233
        %1333 = vst.msk [vmem:[%s200 + $0x2b0] sm:$0xff] %vm1246, %v1234
        %1334 = vst.msk [vmem:[%s200 + $0x2b8] sm:$0xff] %vm1246, %v1235
        %1335 = vst.msk [vmem:[%s200 + $0x2c0] sm:$0xff] %vm1246, %v1236
        %1336 = vst.msk [vmem:[%s200 + $0x2c8] sm:$0xff] %vm1246, %v1237
        %1337 = vst.msk [vmem:[%s200 + $0x2d0] sm:$0xff] %vm1246, %v1238
        %1338 = vst.msk [vmem:[%s200 + $0x2d8] sm:$0xff] %vm1246, %v1239
        %1339 = vst.msk [vmem:[%s200 + $0x2e0] sm:$0xff] %vm1246, %v1240
        %1340 = vst.msk [vmem:[%s200 + $0x2e8] sm:$0xff] %vm1246, %v1241
        %1341 = vst.msk [vmem:[%s200 + $0x2f0] sm:$0xff] %vm1246, %v1242
        %1342 = vst.msk [vmem:[%s200 + $0x2f8] sm:$0xff] %vm1246, %v1243
        %1343 = vst.msk [vmem:[%s200 + $0x300] sm:$0xff] %vm1246, %v1244
        %1344 = vst.msk [vmem:[%s200 + $0x308] sm:$0xff] %vm1246, %v1245
        %s1345 = smul.u32 98, %s16
        %p1346 = scmp.lt.s32.totalorder %s1345, 195
        %s1347 = scalar_select %p1346, %s1345, 195
        %s1348 = smul.addr %s1347, 8
        %s1349 = scalar_lea.vmem %s3, %s1348
        // Predicated region
        $region41: #{cnn2l_forward.3} parent=31 // pred_check
          %p1350 = pneg %p102
        $region42: #{cnn2l_forward.3} parent=31 // pred_check_branch
          %1352 = sbr.rel (%p1350) target = $region44
        $region43: #{cnn2l_forward.3} parent=31 // pred_region
          %s1353 = smul.u32 98, %s16
        $region44: #{cnn2l_forward.3} parent=31 // pred_fallthru
          _
      $region32: #{cnn2l_forward.3} parent=5 // pred_fallthru
        _
      %p1354 = scmp.le.s32.totalorder 2, %s11
      // Predicated region
      $region45: #{cnn2l_forward.3} parent=5 // pred_check
        %p1355 = pneg %p1354
      $region46: #{cnn2l_forward.3} parent=5 // pred_check_branch
        %1357 = sbr.rel (%p1355) target = $region48
      $region47: #{cnn2l_forward.3} parent=5 // pred_region
        %s1358 = ssub.s32 %s11, 2
        // Predicated region
        $region49: #{cnn2l_forward.3} parent=47 // pred_check
          %p1359 = pneg %p108
        $region50: #{cnn2l_forward.3} parent=47 // pred_check_branch
          %1361 = sbr.rel (%p1359) target = $region52
        $region51: #{cnn2l_forward.3} parent=47 // pred_region
          %s1362 = smul.u32 98, %s17
          %p1363 = scmp.lt.s32.totalorder %s1362, 195
          %s1364 = scalar_select %p1363, %s1362, 195
          %s1365 = smul.addr %s1364, 8
          %s1366 = scalar_lea.vmem %s3, %s1365
        $region52: #{cnn2l_forward.3} parent=47 // pred_fallthru
          _
      $region48: #{cnn2l_forward.3} parent=5 // pred_fallthru
        _
    $region6: #{cnn2l_forward.3} parent=1 // loop_footer
      %s15 = sadd.s32 1, %s11
    $region7: #{cnn2l_forward.3} parent=1 // loop_footer_branch
      %10 = sbr.rel target = $region3
    $region8: #{cnn2l_forward.3} parent=1 // loop_exit
      _
    %1367 = vsyncpa [#allocation3], 1
    %s1368 = scalar_lea.sflag [#allocation3], 1
    %1369 = vsyncpa %s1368, 1
    %1370 = vsyncpa [#allocation5], 1

// kernel: cnn2l_forward.4
$region0: #{cnn2l_forward.4}
  #allocation0 [shape = 'u32[]', space=smem, size = 0x4, offset = 0x4, fixed_abs, tag = 'smem constant byte address 0x4 - core index']
  #allocation1 [shape = 'u32[144,128]{1,0:T(1,128)}', space=vmem, size = 0x12000, scoped, tag = 'internal scratch']
  %s0 = inlined_call_operand.vmem [shape: bf16[2,252,160], index: 0, kind: input, shape index: {}]
  %s1 = inlined_call_operand.vmem [shape: bf16[5,160,64], index: 1, kind: input, shape index: {}]
  %s2 = inlined_call_operand.vmem [shape: f32[1,64], index: 2, kind: input, shape index: {}]
  %s3 = inlined_call_operand.vmem [shape: f32[2,196,64], index: 3, kind: output, shape index: {}]
  %s4 = sld [smem:[#allocation0]]
  $region45: #{cnn2l_forward.4} parent=0
    _
  %s6 = ssub.s32 1, %s4
  %s7 = scalar_select 0, %s6, %s4
  loop: start=0, step=1, limit=4
  $region2: #{cnn2l_forward.4} parent=0 // loop_pre_header
    _
  $region3: #{cnn2l_forward.4} parent=0 // loop_header
    %s9 = sphi 0, %s13
    %p10 = scmp.ge.s32.totalorder %s9, 4
    %s19 = sphi 0, %s21
    %s22 = sphi 0, %s19
    %s23 = sphi 0, %s22
    %s39 = sphi 0, %s23
    %s43 = sphi 0, %s43
    %s45 = sphi 0, %s43
    %s46 = sphi 0, %s45
    %s60 = sphi 0, %s46
    %s64 = sphi 0, %s64
    %s66 = sphi 0, %s64
    %s67 = sphi 0, %s66
    %s81 = sphi 0, %s67
    %s87 = sphi 0, %s89
    %s90 = sphi 0, %s87
    %s91 = sphi 0, %s90
    %s107 = sphi 0, %s91
  $region4: #{cnn2l_forward.4} parent=0 // loop_header_branch
    %12 = sbr.rel (%p10) target = $region8
  $region5: #{cnn2l_forward.4} parent=0 // loop_body
    %s14 = ssub.s32 %s9, 1
    %s15 = ssub.s32 %s9, 2
    %s16 = sadd.s32 %s9, 1
    %s17 = ssub.s32 %s9, %s16
    %p18 = scmp.eq.s32.totalorder %s17, 0
    %s20 = sadd.s32 %s19, 1
    %s21 = scalar_select %p18, %s19, %s20
    %p24 = pneg %p18
    %p25 = scmp.eq.s32.totalorder %s9, 1
    %p26 = por %p24, %p25
    %p27 = scmp.ne.s32.totalorder %s19, %s22
    %p28 = scmp.eq.s32.totalorder %s9, 0
    %p29 = por %p27, %p28
    %p30 = scmp.ne.s32.totalorder %s19, %s22
    %p31 = scmp.eq.s32.totalorder %s14, 1
    %p32 = por %p30, %p31
    %p33 = scmp.ne.s32.totalorder %s22, %s23
    %p34 = scmp.eq.s32.totalorder %s14, 0
    %p35 = por %p33, %p34
    %p36 = scmp.ne.s32.totalorder %s22, %s23
    %p37 = scmp.eq.s32.totalorder %s15, 1
    %p38 = por %p36, %p37
    %p40 = scmp.ne.s32.totalorder %s23, %s39
    %p41 = scmp.eq.s32.totalorder %s15, 0
    %p42 = por %p40, %p41
    %s44 = sadd.s32 %s43, 1
    %p47 = scmp.eq.s32.totalorder %s9, 1
    %p48 = scmp.ne.s32.totalorder %s43, %s45
    %p49 = scmp.eq.s32.totalorder %s9, 0
    %p50 = por %p48, %p49
    %p51 = scmp.ne.s32.totalorder %s43, %s45
    %p52 = scmp.eq.s32.totalorder %s14, 1
    %p53 = por %p51, %p52
    %p54 = scmp.ne.s32.totalorder %s45, %s46
    %p55 = scmp.eq.s32.totalorder %s14, 0
    %p56 = por %p54, %p55
    %p57 = scmp.ne.s32.totalorder %s45, %s46
    %p58 = scmp.eq.s32.totalorder %s15, 1
    %p59 = por %p57, %p58
    %p61 = scmp.ne.s32.totalorder %s46, %s60
    %p62 = scmp.eq.s32.totalorder %s15, 0
    %p63 = por %p61, %p62
    %s65 = sadd.s32 %s64, 1
    %p68 = scmp.eq.s32.totalorder %s9, 1
    %p69 = scmp.ne.s32.totalorder %s64, %s66
    %p70 = scmp.eq.s32.totalorder %s9, 0
    %p71 = por %p69, %p70
    %p72 = scmp.ne.s32.totalorder %s64, %s66
    %p73 = scmp.eq.s32.totalorder %s14, 1
    %p74 = por %p72, %p73
    %p75 = scmp.ne.s32.totalorder %s66, %s67
    %p76 = scmp.eq.s32.totalorder %s14, 0
    %p77 = por %p75, %p76
    %p78 = scmp.ne.s32.totalorder %s66, %s67
    %p79 = scmp.eq.s32.totalorder %s15, 1
    %p80 = por %p78, %p79
    %p82 = scmp.ne.s32.totalorder %s67, %s81
    %p83 = scmp.eq.s32.totalorder %s15, 0
    %p84 = por %p82, %p83
    %s85 = ssub.s32 %s9, %s16
    %p86 = scmp.eq.s32.totalorder %s85, 0
    %s88 = sadd.s32 %s87, 1
    %s89 = scalar_select %p86, %s87, %s88
    %p92 = pneg %p86
    %p93 = scmp.eq.s32.totalorder %s9, 1
    %p94 = por %p92, %p93
    %p95 = scmp.ne.s32.totalorder %s87, %s90
    %p96 = scmp.eq.s32.totalorder %s9, 0
    %p97 = por %p95, %p96
    %p98 = scmp.ne.s32.totalorder %s87, %s90
    %p99 = scmp.eq.s32.totalorder %s14, 1
    %p100 = por %p98, %p99
    %p101 = scmp.ne.s32.totalorder %s90, %s91
    %p102 = scmp.eq.s32.totalorder %s14, 0
    %p103 = por %p101, %p102
    %p104 = scmp.ne.s32.totalorder %s90, %s91
    %p105 = scmp.eq.s32.totalorder %s15, 1
    %p106 = por %p104, %p105
    %p108 = scmp.ne.s32.totalorder %s91, %s107
    %p109 = scmp.eq.s32.totalorder %s15, 0
    %p110 = por %p108, %p109
    %p111 = scmp.le.s32.totalorder 1, %s9
    %p112 = scmp.lt.s32.totalorder %s9, 3
    %p113 = pnand %p111, %p112
    %p114 = pneg %p113
    // Predicated region
    $region9: #{cnn2l_forward.4} parent=5 // pred_check
      _
    $region10: #{cnn2l_forward.4} parent=5 // pred_check_branch
      %116 = sbr.rel (%p113) target = $region12
    $region11: #{cnn2l_forward.4} parent=5 // pred_region
      %s117 = ssub.s32 %s9, 1
      // Predicated region
      $region13: #{cnn2l_forward.4} parent=11 // pred_check
        %p118 = pneg %p56
      $region14: #{cnn2l_forward.4} parent=11 // pred_check_branch
        %120 = sbr.rel (%p118) target = $region16
      $region15: #{cnn2l_forward.4} parent=11 // pred_region
        _
      $region16: #{cnn2l_forward.4} parent=11 // pred_fallthru
        _
      // Predicated region
      $region17: #{cnn2l_forward.4} parent=11 // pred_check
        %p121 = pneg %p77
      $region18: #{cnn2l_forward.4} parent=11 // pred_check_branch
        %123 = sbr.rel (%p121) target = $region20
      $region19: #{cnn2l_forward.4} parent=11 // pred_region
        _
      $region20: #{cnn2l_forward.4} parent=11 // pred_fallthru
        _
    $region12: #{cnn2l_forward.4} parent=5 // pred_fallthru
      _
    %p124 = scmp.lt.s32.totalorder %s9, 2
    // Predicated region
    $region21: #{cnn2l_forward.4} parent=5 // pred_check
      %p125 = pneg %p124
    $region22: #{cnn2l_forward.4} parent=5 // pred_check_branch
      %127 = sbr.rel (%p125) target = $region24
    $region23: #{cnn2l_forward.4} parent=5 // pred_region
      // Predicated region
      $region25: #{cnn2l_forward.4} parent=23 // pred_check
        %p128 = pneg %p29
      $region26: #{cnn2l_forward.4} parent=23 // pred_check_branch
        %130 = sbr.rel (%p128) target = $region28
      $region27: #{cnn2l_forward.4} parent=23 // pred_region
        %p131 = scmp.lt.s32.totalorder %s9, 1
        %s132 = scalar_select %p131, %s9, 1
        %s133 = smul.addr %s132, 64
        %s134 = smul.addr %s133, 4
        %s135 = scalar_lea.vmem %s0, %s134
      $region28: #{cnn2l_forward.4} parent=23 // pred_fallthru
        _
    $region24: #{cnn2l_forward.4} parent=5 // pred_fallthru
      _
    %p136 = scmp.le.s32.totalorder 1, %s9
    %p137 = scmp.lt.s32.totalorder %s9, 3
    %p138 = pnand %p136, %p137
    %p139 = pneg %p138
    // Predicated region
    $region29: #{cnn2l_forward.4} parent=5 // pred_check
      _
    $region30: #{cnn2l_forward.4} parent=5 // pred_check_branch
      %141 = sbr.rel (%p138) target = $region32
    $region31: #{cnn2l_forward.4} parent=5 // pred_region
      %s142 = ssub.s32 %s9, 1
      %p143 = scmp.lt.s32.totalorder %s14, 1
      %s144 = scalar_select %p143, %s14, 1
      %s145 = smul.addr %s144, 64
      %s146 = smul.addr %s145, 4
      %s147 = scalar_lea.vmem %s0, %s146
      %p148 = pneg %p35
      %p149 = pneg %p32
      %p150 = pneg %p56
      %p151 = pneg %p53
      %p152 = pneg %p77
      %p153 = pneg %p74
      %p154 = pneg %p103
      %p155 = pneg %p100
      %p156 = scmp.lt.s32.totalorder %s14, 1
      %s157 = scalar_select %p156, %s14, 1
      %s158 = smul.addr %s157, 25
      %s159 = smul.addr %s158, 8
      %s160 = scalar_lea.vmem %s3, %s159
      %p161 = scmp.lt.s32.totalorder %s14, 1
      %s162 = scalar_select %p161, %s14, 1
      %s163 = smul.addr %s162, 64
      %s164 = smul.addr %s163, 4
      %s165 = scalar_lea.vmem %s0, %s164
      %p166 = scmp.lt.s32.totalorder %s14, 1
      %s167 = scalar_select %p166, %s14, 1
      %s168 = smul.addr %s167, 25
      %s169 = smul.addr %s168, 8
      %s170 = scalar_lea.vmem %s3, %s169
      %v172 = vld [vmem:[%s165] sm:$0xff]
      %v173 = vld [vmem:[%s165 + $0x8] sm:$0xff]
      %v174 = vld [vmem:[%s165 + $0x10] sm:$0xff]
      %v175 = vld [vmem:[%s165 + $0x18] sm:$0xff]
      %v176 = vld [vmem:[%s165 + $0x20] sm:$0xff]
      %v177 = vld [vmem:[%s165 + $0x28] sm:$0xff]
      %v178 = vld [vmem:[%s165 + $0x30] sm:$0xff]
      %v179 = vld [vmem:[%s165 + $0x38] sm:$0xff]
      %v180 = vld [vmem:[%s165 + $0x40] sm:$0xff]
      %v181 = vld [vmem:[%s165 + $0x48] sm:$0xff]
      %v182 = vld [vmem:[%s165 + $0x50] sm:$0xff]
      %v183 = vld [vmem:[%s165 + $0x58] sm:$0xff]
      %v184 = vld [vmem:[%s165 + $0x60] sm:$0xff]
      %v185 = vld [vmem:[%s165 + $0x68] sm:$0xff]
      %v186 = vld [vmem:[%s165 + $0x70] sm:$0xff]
      %v187 = vld [vmem:[%s165 + $0x78] sm:$0xff]
      %v188 = vld [vmem:[%s165 + $0x80] sm:$0xff]
      %v189 = vld [vmem:[%s165 + $0x88] sm:$0xff]
      %v190 = vld [vmem:[%s165 + $0x90] sm:$0xff]
      %v191 = vld [vmem:[%s165 + $0x98] sm:$0xff]
      %v192 = vld [vmem:[%s165 + $0xa0] sm:$0xff]
      %v193 = vld [vmem:[%s165 + $0xa8] sm:$0xff]
      %v194 = vld [vmem:[%s165 + $0xb0] sm:$0xff]
      %v195 = vld [vmem:[%s165 + $0xb8] sm:$0xff]
      %v196 = vld [vmem:[%s165 + $0xc0] sm:$0x33]
      %v197 = vld [vmem:[%s1] sm:$0xf]
      %v198 = vld [vmem:[%s1 + $0x4] sm:$0xf]
      %v199 = vld [vmem:[%s1 + $0x8] sm:$0xf]
      %v200 = vld [vmem:[%s1 + $0xc] sm:$0xf]
      %v201 = vld [vmem:[%s1 + $0x10] sm:$0xf]
      %v202 = vld [vmem:[%s1 + $0x14] sm:$0xf]
      %v203 = vld [vmem:[%s1 + $0x18] sm:$0xf]
      %v204 = vld [vmem:[%s1 + $0x1c] sm:$0xf]
      %v205 = vld [vmem:[%s1 + $0x20] sm:$0xf]
      %v206 = vld [vmem:[%s1 + $0x24] sm:$0xf]
      %v207 = vld [vmem:[%s1 + $0x28] sm:$0xf]
      %v208 = vld [vmem:[%s1 + $0x2c] sm:$0xf]
      %v209 = vld [vmem:[%s1 + $0x30] sm:$0xf]
      %v210 = vld [vmem:[%s1 + $0x34] sm:$0xf]
      %v211 = vld [vmem:[%s1 + $0x38] sm:$0xf]
      %v212 = vld [vmem:[%s1 + $0x3c] sm:$0xf]
      %v213 = vld [vmem:[%s1 + $0x40] sm:$0xf]
      %v214 = vld [vmem:[%s1 + $0x44] sm:$0xf]
      %v215 = vld [vmem:[%s1 + $0x48] sm:$0xf]
      %v216 = vld [vmem:[%s1 + $0x4c] sm:$0xf]
      %v217 = vld [vmem:[%s165 + $0x8] sm:$0x88]
      %v218 = vld [vmem:[%s165 + $0xc0] sm:$0xff]
      %v219 = vld [vmem:[%s165 + $0xc8] sm:$0xff]
      %v220 = vld [vmem:[%s165 + $0xd0] sm:$0x11]
      %s221 = scalar_lea.vmem %s1, 80
      %v222 = vld [vmem:[%s221] sm:$0xf]
      %v223 = vld [vmem:[%s221 + $0x4] sm:$0xf]
      %v224 = vld [vmem:[%s221 + $0x8] sm:$0xf]
      %v225 = vld [vmem:[%s221 + $0xc] sm:$0xf]
      %v226 = vld [vmem:[%s221 + $0x10] sm:$0xf]
      %v227 = vld [vmem:[%s221 + $0x14] sm:$0xf]
      %v228 = vld [vmem:[%s221 + $0x18] sm:$0xf]
      %v229 = vld [vmem:[%s221 + $0x1c] sm:$0xf]
      %v230 = vld [vmem:[%s221 + $0x20] sm:$0xf]
      %v231 = vld [vmem:[%s221 + $0x24] sm:$0xf]
      %v232 = vld [vmem:[%s221 + $0x28] sm:$0xf]
      %v233 = vld [vmem:[%s221 + $0x2c] sm:$0xf]
      %v234 = vld [vmem:[%s221 + $0x30] sm:$0xf]
      %v235 = vld [vmem:[%s221 + $0x34] sm:$0xf]
      %v236 = vld [vmem:[%s221 + $0x38] sm:$0xf]
      %v237 = vld [vmem:[%s221 + $0x3c] sm:$0xf]
      %v238 = vld [vmem:[%s221 + $0x40] sm:$0xf]
      %v239 = vld [vmem:[%s221 + $0x44] sm:$0xf]
      %v240 = vld [vmem:[%s221 + $0x48] sm:$0xf]
      %v241 = vld [vmem:[%s221 + $0x4c] sm:$0xf]
      %v268 = vunpack.c.l.b16 %v217
      %v269 = vunpack.c.h.b16 %v217
      %v270 = vunpack.c.l.b16 %v174
      %v271 = vunpack.c.h.b16 %v174
      %v272 = vunpack.c.l.b16 %v175
      %v273 = vunpack.c.h.b16 %v175
      %v274 = vunpack.c.l.b16 %v176
      %v275 = vunpack.c.h.b16 %v176
      %v276 = vunpack.c.l.b16 %v177
      %v277 = vunpack.c.h.b16 %v177
      %v278 = vunpack.c.l.b16 %v178
      %v279 = vunpack.c.h.b16 %v178
      %v280 = vunpack.c.l.b16 %v179
      %v281 = vunpack.c.h.b16 %v179
      %v282 = vunpack.c.l.b16 %v180
      %v283 = vunpack.c.h.b16 %v180
      %v284 = vunpack.c.l.b16 %v181
      %v285 = vunpack.c.h.b16 %v181
      %v286 = vunpack.c.l.b16 %v182
      %v287 = vunpack.c.h.b16 %v182
      %v288 = vunpack.c.l.b16 %v183
      %v289 = vunpack.c.h.b16 %v183
      %v290 = vunpack.c.l.b16 %v184
      %v291 = vunpack.c.h.b16 %v184
      %v292 = vunpack.c.l.b16 %v185
      %v293 = vunpack.c.h.b16 %v185
      %v294 = vunpack.c.l.b16 %v186
      %v295 = vunpack.c.h.b16 %v186
      %v296 = vunpack.c.l.b16 %v187
      %v297 = vunpack.c.h.b16 %v187
      %v298 = vunpack.c.l.b16 %v188
      %v299 = vunpack.c.h.b16 %v188
      %v300 = vunpack.c.l.b16 %v189
      %v301 = vunpack.c.h.b16 %v189
      %v302 = vunpack.c.l.b16 %v190
      %v303 = vunpack.c.h.b16 %v190
      %v304 = vunpack.c.l.b16 %v191
      %v305 = vunpack.c.h.b16 %v191
      %v306 = vunpack.c.l.b16 %v192
      %v307 = vunpack.c.h.b16 %v192
      %v308 = vunpack.c.l.b16 %v193
      %v309 = vunpack.c.h.b16 %v193
      %v310 = vunpack.c.l.b16 %v194
      %v311 = vunpack.c.h.b16 %v194
      %v312 = vunpack.c.l.b16 %v195
      %v313 = vunpack.c.h.b16 %v195
      %v314 = vunpack.c.l.b16 %v218
      %v315 = vunpack.c.h.b16 %v218
      %v316 = vunpack.c.l.b16 %v219
      %v317 = vunpack.c.h.b16 %v219
      %v318 = vunpack.c.l.b16 %v220
      %v319 = vunpack.c.h.b16 %v220
      %v320 = vpack.c.b16 %v270, %v268
      %v321 = vpack.c.b16 %v271, %v269
      %v322 = vpack.c.b16 %v274, %v272
      %v323 = vpack.c.b16 %v275, %v273
      %v324 = vpack.c.b16 %v278, %v276
      %v325 = vpack.c.b16 %v279, %v277
      %v326 = vpack.c.b16 %v282, %v280
      %v327 = vpack.c.b16 %v283, %v281
      %v328 = vpack.c.b16 %v286, %v284
      %v329 = vpack.c.b16 %v287, %v285
      %v330 = vpack.c.b16 %v290, %v288
      %v331 = vpack.c.b16 %v291, %v289
      %v332 = vpack.c.b16 %v294, %v292
      %v333 = vpack.c.b16 %v295, %v293
      %v334 = vpack.c.b16 %v298, %v296
      %v335 = vpack.c.b16 %v299, %v297
      %v336 = vpack.c.b16 %v302, %v300
      %v337 = vpack.c.b16 %v303, %v301
      %v338 = vpack.c.b16 %v306, %v304
      %v339 = vpack.c.b16 %v307, %v305
      %v340 = vpack.c.b16 %v310, %v308
      %v341 = vpack.c.b16 %v311, %v309
      %v342 = vpack.c.b16 %v314, %v312
      %v343 = vpack.c.b16 %v315, %v313
      %v344 = vpack.c.b16 %v318, %v316
      %v345 = vpack.c.b16 %v319, %v317
      %vm346 = vcmask 1044480
      %v347 = vrot.slane %v320, 3
      %v348 = vrot.slane %v322, 3
      %v349 = vsel %vm346, %v347, %v348
      %v350 = vrot.slane %v321, 3
      %v351 = vrot.slane %v323, 3
      %v352 = vsel %vm346, %v350, %v351
      %v353 = vrot.slane %v324, 3
      %v354 = vsel %vm346, %v348, %v353
      %v355 = vrot.slane %v325, 3
      %v356 = vsel %vm346, %v351, %v355
      %v357 = vrot.slane %v326, 3
      %v358 = vsel %vm346, %v353, %v357
      %v359 = vrot.slane %v327, 3
      %v360 = vsel %vm346, %v355, %v359
      %v361 = vrot.slane %v328, 3
      %v362 = vsel %vm346, %v357, %v361
      %v363 = vrot.slane %v329, 3
      %v364 = vsel %vm346, %v359, %v363
      %v365 = vrot.slane %v330, 3
      %v366 = vsel %vm346, %v361, %v365
      %v367 = vrot.slane %v331, 3
      %v368 = vsel %vm346, %v363, %v367
      %v369 = vrot.slane %v332, 3
      %v370 = vsel %vm346, %v365, %v369
      %v371 = vrot.slane %v333, 3
      %v372 = vsel %vm346, %v367, %v371
      %v373 = vrot.slane %v334, 3
      %v374 = vsel %vm346, %v369, %v373
      %v375 = vrot.slane %v335, 3
      %v376 = vsel %vm346, %v371, %v375
      %v377 = vrot.slane %v336, 3
      %v378 = vsel %vm346, %v373, %v377
      %v379 = vrot.slane %v337, 3
      %v380 = vsel %vm346, %v375, %v379
      %v381 = vrot.slane %v338, 3
      %v382 = vsel %vm346, %v377, %v381
      %v383 = vrot.slane %v339, 3
      %v384 = vsel %vm346, %v379, %v383
      %v385 = vrot.slane %v340, 3
      %v386 = vsel %vm346, %v381, %v385
      %v387 = vrot.slane %v341, 3
      %v388 = vsel %vm346, %v383, %v387
      %v389 = vrot.slane %v342, 3
      %v390 = vsel %vm346, %v385, %v389
      %v391 = vrot.slane %v343, 3
      %v392 = vsel %vm346, %v387, %v391
      %v393 = vrot.slane %v344, 3
      %v394 = vsel %vm346, %v389, %v393
      %v395 = vrot.slane %v345, 3
      %v396 = vsel %vm346, %v391, %v395
      %v430 = vunpack.c.l.b16 %v222
      %v431 = vunpack.c.l.b16 %v223
      %v432 = vunpack.c.l.b16 %v224
      %v433 = vunpack.c.l.b16 %v225
      %v434 = vunpack.c.l.b16 %v226
      %v435 = vunpack.c.l.b16 %v227
      %v436 = vunpack.c.l.b16 %v228
      %v437 = vunpack.c.l.b16 %v229
      %v438 = vunpack.c.l.b16 %v230
      %v439 = vunpack.c.l.b16 %v231
      %v440 = vunpack.c.l.b16 %v232
      %v441 = vunpack.c.l.b16 %v233
      %v442 = vunpack.c.l.b16 %v234
      %v443 = vunpack.c.l.b16 %v235
      %v444 = vunpack.c.l.b16 %v236
      %v445 = vunpack.c.l.b16 %v237
      %v446 = vunpack.c.l.b16 %v238
      %v447 = vunpack.c.l.b16 %v239
      %v448 = vunpack.c.l.b16 %v240
      %v449 = vunpack.c.l.b16 %v241
      %v450 = vpack.c.b16 %v431, %v430
      %v451 = vpack.c.b16 %v433, %v432
      %v452 = vpack.c.b16 %v435, %v434
      %v453 = vpack.c.b16 %v437, %v436
      %v454 = vpack.c.b16 %v439, %v438
      %v455 = vpack.c.b16 %v441, %v440
      %v456 = vpack.c.b16 %v443, %v442
      %v457 = vpack.c.b16 %v445, %v444
      %v458 = vpack.c.b16 %v447, %v446
      %v459 = vpack.c.b16 %v449, %v448
      %vm470 = vcmask 261120
      %v472 = vsel %vm470, %v352, 0
      %v475 = vsel %vm470, %v356, 0
      %v478 = vsel %vm470, %v360, 0
      %v481 = vsel %vm470, %v364, 0
      %v484 = vsel %vm470, %v368, 0
      %v487 = vsel %vm470, %v372, 0
      %v490 = vsel %vm470, %v376, 0
      %v493 = vsel %vm470, %v380, 0
      %v496 = vsel %vm470, %v384, 0
      %v499 = vsel %vm470, %v388, 0
      %v502 = vsel %vm470, %v392, 0
      %v505 = vsel %vm470, %v396, 0
      %v508 = vsel %vm470, %v395, 0
      %510 = vmatprep.subr.bf16.mxu0 0
      %511 = vmatpush1.bf16.msra.mxu0 %v457
      %512 = vmatprep.subr.bf16.mxu0 0
      %513 = vmatpush1.bf16.msra.mxu0 %v456
      %514 = vmatprep.subr.bf16.mxu0 0
      %515 = vmatpush1.bf16.msra.mxu0 %v455
      %516 = vmatprep.subr.bf16.mxu0 0
      %517 = vmatpush1.bf16.msra.mxu0 %v454
      %518 = vmatprep.subr.bf16.mxu0 0
      %519 = vmatpush1.bf16.msra.mxu0 %v453
      %520 = vmatprep.subr.bf16.mxu0 0
      %521 = vmatpush1.bf16.msra.mxu0 %v452
      %522 = vmatprep.subr.bf16.mxu0 0
      %523 = vmatpush1.bf16.msra.mxu0 %v451
      %524 = vmatprep.subr.bf16.mxu0 0
      %525 = vmatpush1.bf16.msra.mxu0 %v450
      %526 = vmatprep.subr.bf16.mxu0 0
      %527 = vmatpush2.bf16.msra.mxu0 0
      %528 = vmatprep.subr.bf16.mxu0 0
      %529 = vmatpush2.bf16.msra.mxu0 0
      %530 = vmatprep.subr.bf16.mxu0 0
      %531 = vmatpush2.bf16.msra.mxu0 0
      %532 = vmatprep.subr.bf16.mxu0 0
      %533 = vmatpush2.bf16.msra.mxu0 0
      %534 = vmatprep.subr.bf16.mxu0 0
      %535 = vmatpush2.bf16.msra.mxu0 0
      %536 = vmatprep.subr.bf16.mxu0 0
      %537 = vmatpush2.bf16.msra.mxu0 0
      %538 = vmatprep.subr.bf16.mxu0 0
      %539 = vmatpush2.bf16.msra.mxu0 %v459
      %540 = vmatprep.subr.bf16.mxu0 0
      %541 = vmatpush2.bf16.msra.mxu0 %v458
      %542 = vmatprep.mubr.bf16.mxu0 %v472
      %543 = vmatmul.mubr.bf16.gmra.mxu0 %v349
      %v544 = vpop.f32.mrf.mxu0
      %v545 = vadd.f32 0.0, %v544
      %v546 = vpop.f32.mrf.mxu0
      %v547 = vpop.f32.mrf.mxu0
      %v548 = vadd.f32 0.0, %v547
      %v549 = vpop.f32.mrf.mxu0
      %550 = vmatprep.mubr.bf16.mxu0 %v475
      %551 = vmatmul.mubr.bf16.gmra.mxu0 %v354
      %v552 = vpop.f32.mrf.mxu0
      %v553 = vadd.f32 0.0, %v552
      %v554 = vpop.f32.mrf.mxu0
      %v555 = vpop.f32.mrf.mxu0
      %v556 = vadd.f32 0.0, %v555
      %v557 = vpop.f32.mrf.mxu0
      %558 = vmatprep.mubr.bf16.mxu0 %v478
      %559 = vmatmul.mubr.bf16.gmra.mxu0 %v358
      %v560 = vpop.f32.mrf.mxu0
      %v561 = vadd.f32 0.0, %v560
      %v562 = vpop.f32.mrf.mxu0
      %v563 = vpop.f32.mrf.mxu0
      %v564 = vadd.f32 0.0, %v563
      %v565 = vpop.f32.mrf.mxu0
      %566 = vmatprep.mubr.bf16.mxu0 %v481
      %567 = vmatmul.mubr.bf16.gmra.mxu0 %v362
      %v568 = vpop.f32.mrf.mxu0
      %v569 = vadd.f32 0.0, %v568
      %v570 = vpop.f32.mrf.mxu0
      %v571 = vpop.f32.mrf.mxu0
      %v572 = vadd.f32 0.0, %v571
      %v573 = vpop.f32.mrf.mxu0
      %574 = vmatprep.mubr.bf16.mxu0 %v484
      %575 = vmatmul.mubr.bf16.gmra.mxu0 %v366
      %v576 = vpop.f32.mrf.mxu0
      %v577 = vadd.f32 0.0, %v576
      %v578 = vpop.f32.mrf.mxu0
      %v579 = vpop.f32.mrf.mxu0
      %v580 = vadd.f32 0.0, %v579
      %v581 = vpop.f32.mrf.mxu0
      %582 = vmatprep.mubr.bf16.mxu0 %v487
      %583 = vmatmul.mubr.bf16.gmra.mxu0 %v370
      %v584 = vpop.f32.mrf.mxu0
      %v585 = vadd.f32 0.0, %v584
      %v586 = vpop.f32.mrf.mxu0
      %v587 = vpop.f32.mrf.mxu0
      %v588 = vadd.f32 0.0, %v587
      %v589 = vpop.f32.mrf.mxu0
      %590 = vmatprep.mubr.bf16.mxu0 %v490
      %591 = vmatmul.mubr.bf16.gmra.mxu0 %v374
      %v592 = vpop.f32.mrf.mxu0
      %v593 = vadd.f32 0.0, %v592
      %v594 = vpop.f32.mrf.mxu0
      %v595 = vpop.f32.mrf.mxu0
      %v596 = vadd.f32 0.0, %v595
      %v597 = vpop.f32.mrf.mxu0
      %598 = vmatprep.mubr.bf16.mxu0 %v493
      %599 = vmatmul.mubr.bf16.gmra.mxu0 %v378
      %v600 = vpop.f32.mrf.mxu0
      %v601 = vadd.f32 0.0, %v600
      %v602 = vpop.f32.mrf.mxu0
      %v603 = vpop.f32.mrf.mxu0
      %v604 = vadd.f32 0.0, %v603
      %v605 = vpop.f32.mrf.mxu0
      %606 = vmatprep.mubr.bf16.mxu0 %v496
      %607 = vmatmul.mubr.bf16.gmra.mxu0 %v382
      %v608 = vpop.f32.mrf.mxu0
      %v609 = vadd.f32 0.0, %v608
      %v610 = vpop.f32.mrf.mxu0
      %v611 = vpop.f32.mrf.mxu0
      %v612 = vadd.f32 0.0, %v611
      %v613 = vpop.f32.mrf.mxu0
      %614 = vmatprep.mubr.bf16.mxu0 %v499
      %615 = vmatmul.mubr.bf16.gmra.mxu0 %v386
      %v616 = vpop.f32.mrf.mxu0
      %v617 = vadd.f32 0.0, %v616
      %v618 = vpop.f32.mrf.mxu0
      %v619 = vpop.f32.mrf.mxu0
      %v620 = vadd.f32 0.0, %v619
      %v621 = vpop.f32.mrf.mxu0
      %622 = vmatprep.mubr.bf16.mxu0 %v502
      %623 = vmatmul.mubr.bf16.gmra.mxu0 %v390
      %v624 = vpop.f32.mrf.mxu0
      %v625 = vadd.f32 0.0, %v624
      %v626 = vpop.f32.mrf.mxu0
      %v627 = vpop.f32.mrf.mxu0
      %v628 = vadd.f32 0.0, %v627
      %v629 = vpop.f32.mrf.mxu0
      %630 = vmatprep.mubr.bf16.mxu0 %v505
      %631 = vmatmul.mubr.bf16.gmra.mxu0 %v394
      %v632 = vpop.f32.mrf.mxu0
      %v633 = vadd.f32 0.0, %v632
      %v634 = vpop.f32.mrf.mxu0
      %v635 = vpop.f32.mrf.mxu0
      %v636 = vadd.f32 0.0, %v635
      %v637 = vpop.f32.mrf.mxu0
      %638 = vmatprep.mubr.bf16.mxu0 %v508
      %639 = vmatmul.mubr.bf16.gmra.mxu0 %v393
      %v640 = vpop.f32.mrf.mxu0
      %v641 = vadd.f32 0.0, %v640
      %v642 = vpop.f32.mrf.mxu0
      %v643 = vpop.f32.mrf.mxu0
      %v644 = vpop.f32.mrf.mxu0
      %645 = vdwg.mxu0
      %v649 = vunpack.c.l.b16 %v172
      %v650 = vunpack.c.h.b16 %v172
      %v651 = vunpack.c.l.b16 %v173
      %v652 = vunpack.c.h.b16 %v173
      %v653 = vunpack.c.l.b16 %v196
      %v654 = vunpack.c.h.b16 %v196
      %v655 = vpack.c.b16 %v651, %v649
      %v656 = vpack.c.b16 %v652, %v650
      %v657 = vpack.c.b16 %v272, %v270
      %v658 = vpack.c.b16 %v273, %v271
      %v659 = vpack.c.b16 %v276, %v274
      %v660 = vpack.c.b16 %v277, %v275
      %v661 = vpack.c.b16 %v280, %v278
      %v662 = vpack.c.b16 %v281, %v279
      %v663 = vpack.c.b16 %v284, %v282
      %v664 = vpack.c.b16 %v285, %v283
      %v665 = vpack.c.b16 %v288, %v286
      %v666 = vpack.c.b16 %v289, %v287
      %v667 = vpack.c.b16 %v292, %v290
      %v668 = vpack.c.b16 %v293, %v291
      %v669 = vpack.c.b16 %v296, %v294
      %v670 = vpack.c.b16 %v297, %v295
      %v671 = vpack.c.b16 %v300, %v298
      %v672 = vpack.c.b16 %v301, %v299
      %v673 = vpack.c.b16 %v304, %v302
      %v674 = vpack.c.b16 %v305, %v303
      %v675 = vpack.c.b16 %v308, %v306
      %v676 = vpack.c.b16 %v309, %v307
      %v677 = vpack.c.b16 %v312, %v310
      %v678 = vpack.c.b16 %v313, %v311
      %v679 = vpack.c.b16 %v653, %v653
      %v680 = vpack.c.b16 %v654, %v654
      %v714 = vunpack.c.l.b16 %v197
      %v715 = vunpack.c.l.b16 %v198
      %v716 = vunpack.c.l.b16 %v199
      %v717 = vunpack.c.l.b16 %v200
      %v718 = vunpack.c.l.b16 %v201
      %v719 = vunpack.c.l.b16 %v202
      %v720 = vunpack.c.l.b16 %v203
      %v721 = vunpack.c.l.b16 %v204
      %v722 = vunpack.c.l.b16 %v205
      %v723 = vunpack.c.l.b16 %v206
      %v724 = vunpack.c.l.b16 %v207
      %v725 = vunpack.c.l.b16 %v208
      %v726 = vunpack.c.l.b16 %v209
      %v727 = vunpack.c.l.b16 %v210
      %v728 = vunpack.c.l.b16 %v211
      %v729 = vunpack.c.l.b16 %v212
      %v730 = vunpack.c.l.b16 %v213
      %v731 = vunpack.c.l.b16 %v214
      %v732 = vunpack.c.l.b16 %v215
      %v733 = vunpack.c.l.b16 %v216
      %v734 = vpack.c.b16 %v715, %v714
      %v735 = vpack.c.b16 %v717, %v716
      %v736 = vpack.c.b16 %v719, %v718
      %v737 = vpack.c.b16 %v721, %v720
      %v738 = vpack.c.b16 %v723, %v722
      %v739 = vpack.c.b16 %v725, %v724
      %v740 = vpack.c.b16 %v727, %v726
      %v741 = vpack.c.b16 %v729, %v728
      %v742 = vpack.c.b16 %v731, %v730
      %v743 = vpack.c.b16 %v733, %v732
      %v755 = vsel %vm470, %v656, 0
      %v758 = vsel %vm470, %v658, 0
      %v761 = vsel %vm470, %v660, 0
      %v764 = vsel %vm470, %v662, 0
      %v767 = vsel %vm470, %v664, 0
      %v770 = vsel %vm470, %v666, 0
      %v773 = vsel %vm470, %v668, 0
      %v776 = vsel %vm470, %v670, 0
      %v779 = vsel %vm470, %v672, 0
      %v782 = vsel %vm470, %v674, 0
      %v785 = vsel %vm470, %v676, 0
      %v788 = vsel %vm470, %v678, 0
      %v791 = vsel %vm470, %v680, 0
      %793 = vmatprep.subr.bf16.mxu0 0
      %794 = vmatpush1.bf16.msra.mxu0 %v741
      %795 = vmatprep.subr.bf16.mxu0 0
      %796 = vmatpush1.bf16.msra.mxu0 %v740
      %797 = vmatprep.subr.bf16.mxu0 0
      %798 = vmatpush1.bf16.msra.mxu0 %v739
      %799 = vmatprep.subr.bf16.mxu0 0
      %800 = vmatpush1.bf16.msra.mxu0 %v738
      %801 = vmatprep.subr.bf16.mxu0 0
      %802 = vmatpush1.bf16.msra.mxu0 %v737
      %803 = vmatprep.subr.bf16.mxu0 0
      %804 = vmatpush1.bf16.msra.mxu0 %v736
      %805 = vmatprep.subr.bf16.mxu0 0
      %806 = vmatpush1.bf16.msra.mxu0 %v735
      %807 = vmatprep.subr.bf16.mxu0 0
      %808 = vmatpush1.bf16.msra.mxu0 %v734
      %809 = vmatprep.subr.bf16.mxu0 0
      %810 = vmatpush2.bf16.msra.mxu0 0
      %811 = vmatprep.subr.bf16.mxu0 0
      %812 = vmatpush2.bf16.msra.mxu0 0
      %813 = vmatprep.subr.bf16.mxu0 0
      %814 = vmatpush2.bf16.msra.mxu0 0
      %815 = vmatprep.subr.bf16.mxu0 0
      %816 = vmatpush2.bf16.msra.mxu0 0
      %817 = vmatprep.subr.bf16.mxu0 0
      %818 = vmatpush2.bf16.msra.mxu0 0
      %819 = vmatprep.subr.bf16.mxu0 0
      %820 = vmatpush2.bf16.msra.mxu0 0
      %821 = vmatprep.subr.bf16.mxu0 0
      %822 = vmatpush2.bf16.msra.mxu0 %v743
      %823 = vmatprep.subr.bf16.mxu0 0
      %824 = vmatpush2.bf16.msra.mxu0 %v742
      %825 = vmatprep.mubr.bf16.mxu0 %v755
      %826 = vmatmul.mubr.bf16.gmra.mxu0 %v655
      %v827 = vpop.f32.mrf.mxu0
      %v828 = vadd.f32 %v545, %v827
      %v829 = vpop.f32.mrf.mxu0
      %v830 = vpop.f32.mrf.mxu0
      %v831 = vadd.f32 %v548, %v830
      %v832 = vpop.f32.mrf.mxu0
      %833 = vmatprep.mubr.bf16.mxu0 %v758
      %834 = vmatmul.mubr.bf16.gmra.mxu0 %v657
      %v835 = vpop.f32.mrf.mxu0
      %v836 = vadd.f32 %v553, %v835
      %v837 = vpop.f32.mrf.mxu0
      %v838 = vpop.f32.mrf.mxu0
      %v839 = vadd.f32 %v556, %v838
      %v840 = vpop.f32.mrf.mxu0
      %841 = vmatprep.mubr.bf16.mxu0 %v761
      %842 = vmatmul.mubr.bf16.gmra.mxu0 %v659
      %v843 = vpop.f32.mrf.mxu0
      %v844 = vadd.f32 %v561, %v843
      %v845 = vpop.f32.mrf.mxu0
      %v846 = vpop.f32.mrf.mxu0
      %v847 = vadd.f32 %v564, %v846
      %v848 = vpop.f32.mrf.mxu0
      %849 = vmatprep.mubr.bf16.mxu0 %v764
      %850 = vmatmul.mubr.bf16.gmra.mxu0 %v661
      %v851 = vpop.f32.mrf.mxu0
      %v852 = vadd.f32 %v569, %v851
      %v853 = vpop.f32.mrf.mxu0
      %v854 = vpop.f32.mrf.mxu0
      %v855 = vadd.f32 %v572, %v854
      %v856 = vpop.f32.mrf.mxu0
      %857 = vmatprep.mubr.bf16.mxu0 %v767
      %858 = vmatmul.mubr.bf16.gmra.mxu0 %v663
      %v859 = vpop.f32.mrf.mxu0
      %v860 = vadd.f32 %v577, %v859
      %v861 = vpop.f32.mrf.mxu0
      %v862 = vpop.f32.mrf.mxu0
      %v863 = vadd.f32 %v580, %v862
      %v864 = vpop.f32.mrf.mxu0
      %865 = vmatprep.mubr.bf16.mxu0 %v770
      %866 = vmatmul.mubr.bf16.gmra.mxu0 %v665
      %v867 = vpop.f32.mrf.mxu0
      %v868 = vadd.f32 %v585, %v867
      %v869 = vpop.f32.mrf.mxu0
      %v870 = vpop.f32.mrf.mxu0
      %v871 = vadd.f32 %v588, %v870
      %v872 = vpop.f32.mrf.mxu0
      %873 = vmatprep.mubr.bf16.mxu0 %v773
      %874 = vmatmul.mubr.bf16.gmra.mxu0 %v667
      %v875 = vpop.f32.mrf.mxu0
      %v876 = vadd.f32 %v593, %v875
      %v877 = vpop.f32.mrf.mxu0
      %v878 = vpop.f32.mrf.mxu0
      %v879 = vadd.f32 %v596, %v878
      %v880 = vpop.f32.mrf.mxu0
      %881 = vmatprep.mubr.bf16.mxu0 %v776
      %882 = vmatmul.mubr.bf16.gmra.mxu0 %v669
      %v883 = vpop.f32.mrf.mxu0
      %v884 = vadd.f32 %v601, %v883
      %v885 = vpop.f32.mrf.mxu0
      %v886 = vpop.f32.mrf.mxu0
      %v887 = vadd.f32 %v604, %v886
      %v888 = vpop.f32.mrf.mxu0
      %889 = vmatprep.mubr.bf16.mxu0 %v779
      %890 = vmatmul.mubr.bf16.gmra.mxu0 %v671
      %v891 = vpop.f32.mrf.mxu0
      %v892 = vadd.f32 %v609, %v891
      %v893 = vpop.f32.mrf.mxu0
      %v894 = vpop.f32.mrf.mxu0
      %v895 = vadd.f32 %v612, %v894
      %v896 = vpop.f32.mrf.mxu0
      %897 = vmatprep.mubr.bf16.mxu0 %v782
      %898 = vmatmul.mubr.bf16.gmra.mxu0 %v673
      %v899 = vpop.f32.mrf.mxu0
      %v900 = vadd.f32 %v617, %v899
      %v901 = vpop.f32.mrf.mxu0
      %v902 = vpop.f32.mrf.mxu0
      %v903 = vadd.f32 %v620, %v902
      %v904 = vpop.f32.mrf.mxu0
      %905 = vmatprep.mubr.bf16.mxu0 %v785
      %906 = vmatmul.mubr.bf16.gmra.mxu0 %v675
      %v907 = vpop.f32.mrf.mxu0
      %v908 = vadd.f32 %v625, %v907
      %v909 = vpop.f32.mrf.mxu0
      %v910 = vpop.f32.mrf.mxu0
      %v911 = vadd.f32 %v628, %v910
      %v912 = vpop.f32.mrf.mxu0
      %913 = vmatprep.mubr.bf16.mxu0 %v788
      %914 = vmatmul.mubr.bf16.gmra.mxu0 %v677
      %v915 = vpop.f32.mrf.mxu0
      %v916 = vadd.f32 %v633, %v915
      %v917 = vpop.f32.mrf.mxu0
      %v918 = vpop.f32.mrf.mxu0
      %v919 = vadd.f32 %v636, %v918
      %v920 = vpop.f32.mrf.mxu0
      %921 = vmatprep.mubr.bf16.mxu0 %v791
      %922 = vmatmul.mubr.bf16.gmra.mxu0 %v679
      %v923 = vpop.f32.mrf.mxu0
      %v924 = vadd.f32 %v641, %v923
      %v925 = vpop.f32.mrf.mxu0
      %v926 = vpop.f32.mrf.mxu0
      %v927 = vpop.f32.mrf.mxu0
      %928 = vdwg.mxu0
      %v929 = vld [vmem:[%s165 + $0x18] sm:$0xcc]
      %v930 = vld [vmem:[%s165 + $0x20] sm:$0xff]
      %v931 = vld [vmem:[%s165 + $0x28] sm:$0xff]
      %v932 = vld [vmem:[%s165 + $0x30] sm:$0xff]
      %v933 = vld [vmem:[%s165 + $0x38] sm:$0xff]
      %v934 = vld [vmem:[%s165 + $0x40] sm:$0xff]
      %v935 = vld [vmem:[%s165 + $0x48] sm:$0xff]
      %v936 = vld [vmem:[%s165 + $0x50] sm:$0xff]
      %v937 = vld [vmem:[%s165 + $0x58] sm:$0xff]
      %v938 = vld [vmem:[%s165 + $0x60] sm:$0xff]
      %v939 = vld [vmem:[%s165 + $0x68] sm:$0xff]
      %v940 = vld [vmem:[%s165 + $0x70] sm:$0xff]
      %v941 = vld [vmem:[%s165 + $0x78] sm:$0xff]
      %v942 = vld [vmem:[%s165 + $0x80] sm:$0xff]
      %v943 = vld [vmem:[%s165 + $0x88] sm:$0xff]
      %v944 = vld [vmem:[%s165 + $0x90] sm:$0xff]
      %v945 = vld [vmem:[%s165 + $0x98] sm:$0xff]
      %v946 = vld [vmem:[%s165 + $0xa0] sm:$0xff]
      %v947 = vld [vmem:[%s165 + $0xa8] sm:$0xff]
      %v948 = vld [vmem:[%s165 + $0xb0] sm:$0xff]
      %v949 = vld [vmem:[%s165 + $0xb8] sm:$0xff]
      %v950 = vld [vmem:[%s165 + $0xc0] sm:$0xff]
      %v951 = vld [vmem:[%s165 + $0xc8] sm:$0xff]
      %v952 = vld [vmem:[%s165 + $0xd0] sm:$0xff]
      %v953 = vld [vmem:[%s165 + $0xd8] sm:$0xff]
      %s954 = scalar_lea.vmem %s1, 160
      %v955 = vld [vmem:[%s954] sm:$0xf]
      %v956 = vld [vmem:[%s954 + $0x4] sm:$0xf]
      %v957 = vld [vmem:[%s954 + $0x8] sm:$0xf]
      %v958 = vld [vmem:[%s954 + $0xc] sm:$0xf]
      %v959 = vld [vmem:[%s954 + $0x10] sm:$0xf]
      %v960 = vld [vmem:[%s954 + $0x14] sm:$0xf]
      %v961 = vld [vmem:[%s954 + $0x18] sm:$0xf]
      %v962 = vld [vmem:[%s954 + $0x1c] sm:$0xf]
      %v963 = vld [vmem:[%s954 + $0x20] sm:$0xf]
      %v964 = vld [vmem:[%s954 + $0x24] sm:$0xf]
      %v965 = vld [vmem:[%s954 + $0x28] sm:$0xf]
      %v966 = vld [vmem:[%s954 + $0x2c] sm:$0xf]
      %v967 = vld [vmem:[%s954 + $0x30] sm:$0xf]
      %v968 = vld [vmem:[%s954 + $0x34] sm:$0xf]
      %v969 = vld [vmem:[%s954 + $0x38] sm:$0xf]
      %v970 = vld [vmem:[%s954 + $0x3c] sm:$0xf]
      %v971 = vld [vmem:[%s954 + $0x40] sm:$0xf]
      %v972 = vld [vmem:[%s954 + $0x44] sm:$0xf]
      %v973 = vld [vmem:[%s954 + $0x48] sm:$0xf]
      %v974 = vld [vmem:[%s954 + $0x4c] sm:$0xf]
      %v1000 = vunpack.c.l.b16 %v929
      %v1001 = vunpack.c.h.b16 %v929
      %v1002 = vunpack.c.l.b16 %v930
      %v1003 = vunpack.c.h.b16 %v930
      %v1004 = vunpack.c.l.b16 %v931
      %v1005 = vunpack.c.h.b16 %v931
      %v1006 = vunpack.c.l.b16 %v932
      %v1007 = vunpack.c.h.b16 %v932
      %v1008 = vunpack.c.l.b16 %v933
      %v1009 = vunpack.c.h.b16 %v933
      %v1010 = vunpack.c.l.b16 %v934
      %v1011 = vunpack.c.h.b16 %v934
      %v1012 = vunpack.c.l.b16 %v935
      %v1013 = vunpack.c.h.b16 %v935
      %v1014 = vunpack.c.l.b16 %v936
      %v1015 = vunpack.c.h.b16 %v936
      %v1016 = vunpack.c.l.b16 %v937
      %v1017 = vunpack.c.h.b16 %v937
      %v1018 = vunpack.c.l.b16 %v938
      %v1019 = vunpack.c.h.b16 %v938
      %v1020 = vunpack.c.l.b16 %v939
      %v1021 = vunpack.c.h.b16 %v939
      %v1022 = vunpack.c.l.b16 %v940
      %v1023 = vunpack.c.h.b16 %v940
      %v1024 = vunpack.c.l.b16 %v941
      %v1025 = vunpack.c.h.b16 %v941
      %v1026 = vunpack.c.l.b16 %v942
      %v1027 = vunpack.c.h.b16 %v942
      %v1028 = vunpack.c.l.b16 %v943
      %v1029 = vunpack.c.h.b16 %v943
      %v1030 = vunpack.c.l.b16 %v944
      %v1031 = vunpack.c.h.b16 %v944
      %v1032 = vunpack.c.l.b16 %v945
      %v1033 = vunpack.c.h.b16 %v945
      %v1034 = vunpack.c.l.b16 %v946
      %v1035 = vunpack.c.h.b16 %v946
      %v1036 = vunpack.c.l.b16 %v947
      %v1037 = vunpack.c.h.b16 %v947
      %v1038 = vunpack.c.l.b16 %v948
      %v1039 = vunpack.c.h.b16 %v948
      %v1040 = vunpack.c.l.b16 %v949
      %v1041 = vunpack.c.h.b16 %v949
      %v1042 = vunpack.c.l.b16 %v950
      %v1043 = vunpack.c.h.b16 %v950
      %v1044 = vunpack.c.l.b16 %v951
      %v1045 = vunpack.c.h.b16 %v951
      %v1046 = vunpack.c.l.b16 %v952
      %v1047 = vunpack.c.h.b16 %v952
      %v1048 = vunpack.c.l.b16 %v953
      %v1049 = vunpack.c.h.b16 %v953
      %v1050 = vpack.c.b16 %v1002, %v1000
      %v1051 = vpack.c.b16 %v1003, %v1001
      %v1052 = vpack.c.b16 %v1006, %v1004
      %v1053 = vpack.c.b16 %v1007, %v1005
      %v1054 = vpack.c.b16 %v1010, %v1008
      %v1055 = vpack.c.b16 %v1011, %v1009
      %v1056 = vpack.c.b16 %v1014, %v1012
      %v1057 = vpack.c.b16 %v1015, %v1013
      %v1058 = vpack.c.b16 %v1018, %v1016
      %v1059 = vpack.c.b16 %v1019, %v1017
      %v1060 = vpack.c.b16 %v1022, %v1020
      %v1061 = vpack.c.b16 %v1023, %v1021
      %v1062 = vpack.c.b16 %v1026, %v1024
      %v1063 = vpack.c.b16 %v1027, %v1025
      %v1064 = vpack.c.b16 %v1030, %v1028
      %v1065 = vpack.c.b16 %v1031, %v1029
      %v1066 = vpack.c.b16 %v1034, %v1032
      %v1067 = vpack.c.b16 %v1035, %v1033
      %v1068 = vpack.c.b16 %v1038, %v1036
      %v1069 = vpack.c.b16 %v1039, %v1037
      %v1070 = vpack.c.b16 %v1042, %v1040
      %v1071 = vpack.c.b16 %v1043, %v1041
      %v1072 = vpack.c.b16 %v1046, %v1044
      %v1073 = vpack.c.b16 %v1047, %v1045
      %v1074 = vpack.c.b16 %v1048, %v1048
      %v1075 = vpack.c.b16 %v1049, %v1049
      %vm1076 = vcmask 1045504
      %v1077 = vrot.slane %v1050, 2
      %v1078 = vrot.slane %v1052, 2
      %v1079 = vsel %vm1076, %v1077, %v1078
      %v1080 = vrot.slane %v1051, 2
      %v1081 = vrot.slane %v1053, 2
      %v1082 = vsel %vm1076, %v1080, %v1081
      %v1083 = vrot.slane %v1054, 2
      %v1084 = vsel %vm1076, %v1078, %v1083
      %v1085 = vrot.slane %v1055, 2
      %v1086 = vsel %vm1076, %v1081, %v1085
      %v1087 = vrot.slane %v1056, 2
      %v1088 = vsel %vm1076, %v1083, %v1087
      %v1089 = vrot.slane %v1057, 2
      %v1090 = vsel %vm1076, %v1085, %v1089
      %v1091 = vrot.slane %v1058, 2
      %v1092 = vsel %vm1076, %v1087, %v1091
      %v1093 = vrot.slane %v1059, 2
      %v1094 = vsel %vm1076, %v1089, %v1093
      %v1095 = vrot.slane %v1060, 2
      %v1096 = vsel %vm1076, %v1091, %v1095
      %v1097 = vrot.slane %v1061, 2
      %v1098 = vsel %vm1076, %v1093, %v1097
      %v1099 = vrot.slane %v1062, 2
      %v1100 = vsel %vm1076, %v1095, %v1099
      %v1101 = vrot.slane %v1063, 2
      %v1102 = vsel %vm1076, %v1097, %v1101
      %v1103 = vrot.slane %v1064, 2
      %v1104 = vsel %vm1076, %v1099, %v1103
      %v1105 = vrot.slane %v1065, 2
      %v1106 = vsel %vm1076, %v1101, %v1105
      %v1107 = vrot.slane %v1066, 2
      %v1108 = vsel %vm1076, %v1103, %v1107
      %v1109 = vrot.slane %v1067, 2
      %v1110 = vsel %vm1076, %v1105, %v1109
      %v1111 = vrot.slane %v1068, 2
      %v1112 = vsel %vm1076, %v1107, %v1111
      %v1113 = vrot.slane %v1069, 2
      %v1114 = vsel %vm1076, %v1109, %v1113
      %v1115 = vrot.slane %v1070, 2
      %v1116 = vsel %vm1076, %v1111, %v1115
      %v1117 = vrot.slane %v1071, 2
      %v1118 = vsel %vm1076, %v1113, %v1117
      %v1119 = vrot.slane %v1072, 2
      %v1120 = vsel %vm1076, %v1115, %v1119
      %v1121 = vrot.slane %v1073, 2
      %v1122 = vsel %vm1076, %v1117, %v1121
      %v1123 = vrot.slane %v1074, 2
      %v1124 = vsel %vm1076, %v1119, %v1123
      %v1125 = vrot.slane %v1075, 2
      %v1126 = vsel %vm1076, %v1121, %v1125
      %v1160 = vunpack.c.l.b16 %v955
      %v1161 = vunpack.c.l.b16 %v956
      %v1162 = vunpack.c.l.b16 %v957
      %v1163 = vunpack.c.l.b16 %v958
      %v1164 = vunpack.c.l.b16 %v959
      %v1165 = vunpack.c.l.b16 %v960
      %v1166 = vunpack.c.l.b16 %v961
      %v1167 = vunpack.c.l.b16 %v962
      %v1168 = vunpack.c.l.b16 %v963
      %v1169 = vunpack.c.l.b16 %v964
      %v1170 = vunpack.c.l.b16 %v965
      %v1171 = vunpack.c.l.b16 %v966
      %v1172 = vunpack.c.l.b16 %v967
      %v1173 = vunpack.c.l.b16 %v968
      %v1174 = vunpack.c.l.b16 %v969
      %v1175 = vunpack.c.l.b16 %v970
      %v1176 = vunpack.c.l.b16 %v971
      %v1177 = vunpack.c.l.b16 %v972
      %v1178 = vunpack.c.l.b16 %v973
      %v1179 = vunpack.c.l.b16 %v974
      %v1180 = vpack.c.b16 %v1161, %v1160
      %v1181 = vpack.c.b16 %v1163, %v1162
      %v1182 = vpack.c.b16 %v1165, %v1164
      %v1183 = vpack.c.b16 %v1167, %v1166
      %v1184 = vpack.c.b16 %v1169, %v1168
      %v1185 = vpack.c.b16 %v1171, %v1170
      %v1186 = vpack.c.b16 %v1173, %v1172
      %v1187 = vpack.c.b16 %v1175, %v1174
      %v1188 = vpack.c.b16 %v1177, %v1176
      %v1189 = vpack.c.b16 %v1179, %v1178
      %v1201 = vsel %vm470, %v1082, 0
      %v1204 = vsel %vm470, %v1086, 0
      %v1207 = vsel %vm470, %v1090, 0
      %v1210 = vsel %vm470, %v1094, 0
      %v1213 = vsel %vm470, %v1098, 0
      %v1216 = vsel %vm470, %v1102, 0
      %v1219 = vsel %vm470, %v1106, 0
      %v1222 = vsel %vm470, %v1110, 0
      %v1225 = vsel %vm470, %v1114, 0
      %v1228 = vsel %vm470, %v1118, 0
      %v1231 = vsel %vm470, %v1122, 0
      %v1234 = vsel %vm470, %v1126, 0
      %v1237 = vsel %vm470, %v1125, 0
      %1239 = vmatprep.subr.bf16.mxu0 0
      %1240 = vmatpush1.bf16.msra.mxu0 %v1187
      %1241 = vmatprep.subr.bf16.mxu0 0
      %1242 = vmatpush1.bf16.msra.mxu0 %v1186
      %1243 = vmatprep.subr.bf16.mxu0 0
      %1244 = vmatpush1.bf16.msra.mxu0 %v1185
      %1245 = vmatprep.subr.bf16.mxu0 0
      %1246 = vmatpush1.bf16.msra.mxu0 %v1184
      %1247 = vmatprep.subr.bf16.mxu0 0
      %1248 = vmatpush1.bf16.msra.mxu0 %v1183
      %1249 = vmatprep.subr.bf16.mxu0 0
      %1250 = vmatpush1.bf16.msra.mxu0 %v1182
      %1251 = vmatprep.subr.bf16.mxu0 0
      %1252 = vmatpush1.bf16.msra.mxu0 %v1181
      %1253 = vmatprep.subr.bf16.mxu0 0
      %1254 = vmatpush1.bf16.msra.mxu0 %v1180
      %1255 = vmatprep.subr.bf16.mxu0 0
      %1256 = vmatpush2.bf16.msra.mxu0 0
      %1257 = vmatprep.subr.bf16.mxu0 0
      %1258 = vmatpush2.bf16.msra.mxu0 0
      %1259 = vmatprep.subr.bf16.mxu0 0
      %1260 = vmatpush2.bf16.msra.mxu0 0
      %1261 = vmatprep.subr.bf16.mxu0 0
      %1262 = vmatpush2.bf16.msra.mxu0 0
      %1263 = vmatprep.subr.bf16.mxu0 0
      %1264 = vmatpush2.bf16.msra.mxu0 0
      %1265 = vmatprep.subr.bf16.mxu0 0
      %1266 = vmatpush2.bf16.msra.mxu0 0
      %1267 = vmatprep.subr.bf16.mxu0 0
      %1268 = vmatpush2.bf16.msra.mxu0 %v1189
      %1269 = vmatprep.subr.bf16.mxu0 0
      %1270 = vmatpush2.bf16.msra.mxu0 %v1188
      %1271 = vmatprep.mubr.bf16.mxu0 %v1201
      %1272 = vmatmul.mubr.bf16.gmra.mxu0 %v1079
      %v1273 = vpop.f32.mrf.mxu0
      %v1274 = vadd.f32 0.0, %v1273
      %v1275 = vpop.f32.mrf.mxu0
      %v1276 = vpop.f32.mrf.mxu0
      %v1277 = vadd.f32 0.0, %v1276
      %v1278 = vpop.f32.mrf.mxu0
      %1279 = vmatprep.mubr.bf16.mxu0 %v1204
      %1280 = vmatmul.mubr.bf16.gmra.mxu0 %v1084
      %v1281 = vpop.f32.mrf.mxu0
      %v1282 = vadd.f32 0.0, %v1281
      %v1283 = vpop.f32.mrf.mxu0
      %v1284 = vpop.f32.mrf.mxu0
      %v1285 = vadd.f32 0.0, %v1284
      %v1286 = vpop.f32.mrf.mxu0
      %1287 = vmatprep.mubr.bf16.mxu0 %v1207
      %1288 = vmatmul.mubr.bf16.gmra.mxu0 %v1088
      %v1289 = vpop.f32.mrf.mxu0
      %v1290 = vadd.f32 0.0, %v1289
      %v1291 = vpop.f32.mrf.mxu0
      %v1292 = vpop.f32.mrf.mxu0
      %v1293 = vadd.f32 0.0, %v1292
      %v1294 = vpop.f32.mrf.mxu0
      %1295 = vmatprep.mubr.bf16.mxu0 %v1210
      %1296 = vmatmul.mubr.bf16.gmra.mxu0 %v1092
      %v1297 = vpop.f32.mrf.mxu0
      %v1298 = vadd.f32 0.0, %v1297
      %v1299 = vpop.f32.mrf.mxu0
      %v1300 = vpop.f32.mrf.mxu0
      %v1301 = vadd.f32 0.0, %v1300
      %v1302 = vpop.f32.mrf.mxu0
      %1303 = vmatprep.mubr.bf16.mxu0 %v1213
      %1304 = vmatmul.mubr.bf16.gmra.mxu0 %v1096
      %v1305 = vpop.f32.mrf.mxu0
      %v1306 = vadd.f32 0.0, %v1305
      %v1307 = vpop.f32.mrf.mxu0
      %v1308 = vpop.f32.mrf.mxu0
      %v1309 = vadd.f32 0.0, %v1308
      %v1310 = vpop.f32.mrf.mxu0
      %1311 = vmatprep.mubr.bf16.mxu0 %v1216
      %1312 = vmatmul.mubr.bf16.gmra.mxu0 %v1100
      %v1313 = vpop.f32.mrf.mxu0
      %v1314 = vadd.f32 0.0, %v1313
      %v1315 = vpop.f32.mrf.mxu0
      %v1316 = vpop.f32.mrf.mxu0
      %v1317 = vadd.f32 0.0, %v1316
      %v1318 = vpop.f32.mrf.mxu0
      %1319 = vmatprep.mubr.bf16.mxu0 %v1219
      %1320 = vmatmul.mubr.bf16.gmra.mxu0 %v1104
      %v1321 = vpop.f32.mrf.mxu0
      %v1322 = vadd.f32 0.0, %v1321
      %v1323 = vpop.f32.mrf.mxu0
      %v1324 = vpop.f32.mrf.mxu0
      %v1325 = vadd.f32 0.0, %v1324
      %v1326 = vpop.f32.mrf.mxu0
      %1327 = vmatprep.mubr.bf16.mxu0 %v1222
      %1328 = vmatmul.mubr.bf16.gmra.mxu0 %v1108
      %v1329 = vpop.f32.mrf.mxu0
      %v1330 = vadd.f32 0.0, %v1329
      %v1331 = vpop.f32.mrf.mxu0
      %v1332 = vpop.f32.mrf.mxu0
      %v1333 = vadd.f32 0.0, %v1332
      %v1334 = vpop.f32.mrf.mxu0
      %1335 = vmatprep.mubr.bf16.mxu0 %v1225
      %1336 = vmatmul.mubr.bf16.gmra.mxu0 %v1112
      %v1337 = vpop.f32.mrf.mxu0
      %v1338 = vadd.f32 0.0, %v1337
      %v1339 = vpop.f32.mrf.mxu0
      %v1340 = vpop.f32.mrf.mxu0
      %v1341 = vadd.f32 0.0, %v1340
      %v1342 = vpop.f32.mrf.mxu0
      %1343 = vmatprep.mubr.bf16.mxu0 %v1228
      %1344 = vmatmul.mubr.bf16.gmra.mxu0 %v1116
      %v1345 = vpop.f32.mrf.mxu0
      %v1346 = vadd.f32 0.0, %v1345
      %v1347 = vpop.f32.mrf.mxu0
      %v1348 = vpop.f32.mrf.mxu0
      %v1349 = vadd.f32 0.0, %v1348
      %v1350 = vpop.f32.mrf.mxu0
      %1351 = vmatprep.mubr.bf16.mxu0 %v1231
      %1352 = vmatmul.mubr.bf16.gmra.mxu0 %v1120
      %v1353 = vpop.f32.mrf.mxu0
      %v1354 = vadd.f32 0.0, %v1353
      %v1355 = vpop.f32.mrf.mxu0
      %v1356 = vpop.f32.mrf.mxu0
      %v1357 = vadd.f32 0.0, %v1356
      %v1358 = vpop.f32.mrf.mxu0
      %1359 = vmatprep.mubr.bf16.mxu0 %v1234
      %1360 = vmatmul.mubr.bf16.gmra.mxu0 %v1124
      %v1361 = vpop.f32.mrf.mxu0
      %v1362 = vadd.f32 0.0, %v1361
      %v1363 = vpop.f32.mrf.mxu0
      %v1364 = vpop.f32.mrf.mxu0
      %v1365 = vadd.f32 0.0, %v1364
      %v1366 = vpop.f32.mrf.mxu0
      %1367 = vmatprep.mubr.bf16.mxu0 %v1237
      %1368 = vmatmul.mubr.bf16.gmra.mxu0 %v1123
      %v1369 = vpop.f32.mrf.mxu0
      %v1370 = vadd.f32 0.0, %v1369
      %v1371 = vpop.f32.mrf.mxu0
      %v1372 = vpop.f32.mrf.mxu0
      %v1373 = vpop.f32.mrf.mxu0
      %1374 = vdwg.mxu0
      %v1375 = vadd.f32 %v828, %v1274
      %v1376 = vadd.f32 %v831, %v1277
      %v1377 = vadd.f32 %v836, %v1282
      %v1378 = vadd.f32 %v839, %v1285
      %v1379 = vadd.f32 %v844, %v1290
      %v1380 = vadd.f32 %v847, %v1293
      %v1381 = vadd.f32 %v852, %v1298
      %v1382 = vadd.f32 %v855, %v1301
      %v1383 = vadd.f32 %v860, %v1306
      %v1384 = vadd.f32 %v863, %v1309
      %v1385 = vadd.f32 %v868, %v1314
      %v1386 = vadd.f32 %v871, %v1317
      %v1387 = vadd.f32 %v876, %v1322
      %v1388 = vadd.f32 %v879, %v1325
      %v1389 = vadd.f32 %v884, %v1330
      %v1390 = vadd.f32 %v887, %v1333
      %v1391 = vadd.f32 %v892, %v1338
      %v1392 = vadd.f32 %v895, %v1341
      %v1393 = vadd.f32 %v900, %v1346
      %v1394 = vadd.f32 %v903, %v1349
      %v1395 = vadd.f32 %v908, %v1354
      %v1396 = vadd.f32 %v911, %v1357
      %v1397 = vadd.f32 %v916, %v1362
      %v1398 = vadd.f32 %v919, %v1365
      %v1399 = vadd.f32 %v924, %v1370
      %v1400 = vld [vmem:[%s165 + $0x28] sm:$0xee]
      %v1401 = vld [vmem:[%s165 + $0x30] sm:$0xff]
      %v1402 = vld [vmem:[%s165 + $0x38] sm:$0xff]
      %v1403 = vld [vmem:[%s165 + $0x40] sm:$0xff]
      %v1404 = vld [vmem:[%s165 + $0x48] sm:$0xff]
      %v1405 = vld [vmem:[%s165 + $0x50] sm:$0xff]
      %v1406 = vld [vmem:[%s165 + $0x58] sm:$0xff]
      %v1407 = vld [vmem:[%s165 + $0x60] sm:$0xff]
      %v1408 = vld [vmem:[%s165 + $0x68] sm:$0xff]
      %v1409 = vld [vmem:[%s165 + $0x70] sm:$0xff]
      %v1410 = vld [vmem:[%s165 + $0x78] sm:$0xff]
      %v1411 = vld [vmem:[%s165 + $0x80] sm:$0xff]
      %v1412 = vld [vmem:[%s165 + $0x88] sm:$0xff]
      %v1413 = vld [vmem:[%s165 + $0x90] sm:$0xff]
      %v1414 = vld [vmem:[%s165 + $0x98] sm:$0xff]
      %v1415 = vld [vmem:[%s165 + $0xa0] sm:$0xff]
      %v1416 = vld [vmem:[%s165 + $0xa8] sm:$0xff]
      %v1417 = vld [vmem:[%s165 + $0xb0] sm:$0xff]
      %v1418 = vld [vmem:[%s165 + $0xb8] sm:$0xff]
      %v1419 = vld [vmem:[%s165 + $0xc0] sm:$0xff]
      %v1420 = vld [vmem:[%s165 + $0xc8] sm:$0xff]
      %v1421 = vld [vmem:[%s165 + $0xd0] sm:$0xff]
      %v1422 = vld [vmem:[%s165 + $0xd8] sm:$0xff]
      %v1423 = vld [vmem:[%s165 + $0xe0] sm:$0xff]
      %v1424 = vld [vmem:[%s165 + $0xe8] sm:$0x77]
      %s1425 = scalar_lea.vmem %s1, 240
      %v1426 = vld [vmem:[%s1425] sm:$0xf]
      %v1427 = vld [vmem:[%s1425 + $0x4] sm:$0xf]
      %v1428 = vld [vmem:[%s1425 + $0x8] sm:$0xf]
      %v1429 = vld [vmem:[%s1425 + $0xc] sm:$0xf]
      %v1430 = vld [vmem:[%s1425 + $0x10] sm:$0xf]
      %v1431 = vld [vmem:[%s1425 + $0x14] sm:$0xf]
      %v1432 = vld [vmem:[%s1425 + $0x18] sm:$0xf]
      %v1433 = vld [vmem:[%s1425 + $0x1c] sm:$0xf]
      %v1434 = vld [vmem:[%s1425 + $0x20] sm:$0xf]
      %v1435 = vld [vmem:[%s1425 + $0x24] sm:$0xf]
      %v1436 = vld [vmem:[%s1425 + $0x28] sm:$0xf]
      %v1437 = vld [vmem:[%s1425 + $0x2c] sm:$0xf]
      %v1438 = vld [vmem:[%s1425 + $0x30] sm:$0xf]
      %v1439 = vld [vmem:[%s1425 + $0x34] sm:$0xf]
      %v1440 = vld [vmem:[%s1425 + $0x38] sm:$0xf]
      %v1441 = vld [vmem:[%s1425 + $0x3c] sm:$0xf]
      %v1442 = vld [vmem:[%s1425 + $0x40] sm:$0xf]
      %v1443 = vld [vmem:[%s1425 + $0x44] sm:$0xf]
      %v1444 = vld [vmem:[%s1425 + $0x48] sm:$0xf]
      %v1445 = vld [vmem:[%s1425 + $0x4c] sm:$0xf]
      %v1471 = vunpack.c.l.b16 %v1400
      %v1472 = vunpack.c.h.b16 %v1400
      %v1473 = vunpack.c.l.b16 %v1401
      %v1474 = vunpack.c.h.b16 %v1401
      %v1475 = vunpack.c.l.b16 %v1402
      %v1476 = vunpack.c.h.b16 %v1402
      %v1477 = vunpack.c.l.b16 %v1403
      %v1478 = vunpack.c.h.b16 %v1403
      %v1479 = vunpack.c.l.b16 %v1404
      %v1480 = vunpack.c.h.b16 %v1404
      %v1481 = vunpack.c.l.b16 %v1405
      %v1482 = vunpack.c.h.b16 %v1405
      %v1483 = vunpack.c.l.b16 %v1406
      %v1484 = vunpack.c.h.b16 %v1406
      %v1485 = vunpack.c.l.b16 %v1407
      %v1486 = vunpack.c.h.b16 %v1407
      %v1487 = vunpack.c.l.b16 %v1408
      %v1488 = vunpack.c.h.b16 %v1408
      %v1489 = vunpack.c.l.b16 %v1409
      %v1490 = vunpack.c.h.b16 %v1409
      %v1491 = vunpack.c.l.b16 %v1410
      %v1492 = vunpack.c.h.b16 %v1410
      %v1493 = vunpack.c.l.b16 %v1411
      %v1494 = vunpack.c.h.b16 %v1411
      %v1495 = vunpack.c.l.b16 %v1412
      %v1496 = vunpack.c.h.b16 %v1412
      %v1497 = vunpack.c.l.b16 %v1413
      %v1498 = vunpack.c.h.b16 %v1413
      %v1499 = vunpack.c.l.b16 %v1414
      %v1500 = vunpack.c.h.b16 %v1414
      %v1501 = vunpack.c.l.b16 %v1415
      %v1502 = vunpack.c.h.b16 %v1415
      %v1503 = vunpack.c.l.b16 %v1416
      %v1504 = vunpack.c.h.b16 %v1416
      %v1505 = vunpack.c.l.b16 %v1417
      %v1506 = vunpack.c.h.b16 %v1417
      %v1507 = vunpack.c.l.b16 %v1418
      %v1508 = vunpack.c.h.b16 %v1418
      %v1509 = vunpack.c.l.b16 %v1419
      %v1510 = vunpack.c.h.b16 %v1419
      %v1511 = vunpack.c.l.b16 %v1420
      %v1512 = vunpack.c.h.b16 %v1420
      %v1513 = vunpack.c.l.b16 %v1421
      %v1514 = vunpack.c.h.b16 %v1421
      %v1515 = vunpack.c.l.b16 %v1422
      %v1516 = vunpack.c.h.b16 %v1422
      %v1517 = vunpack.c.l.b16 %v1423
      %v1518 = vunpack.c.h.b16 %v1423
      %v1519 = vunpack.c.l.b16 %v1424
      %v1520 = vunpack.c.h.b16 %v1424
      %v1521 = vpack.c.b16 %v1473, %v1471
      %v1522 = vpack.c.b16 %v1474, %v1472
      %v1523 = vpack.c.b16 %v1477, %v1475
      %v1524 = vpack.c.b16 %v1478, %v1476
      %v1525 = vpack.c.b16 %v1481, %v1479
      %v1526 = vpack.c.b16 %v1482, %v1480
      %v1527 = vpack.c.b16 %v1485, %v1483
      %v1528 = vpack.c.b16 %v1486, %v1484
      %v1529 = vpack.c.b16 %v1489, %v1487
      %v1530 = vpack.c.b16 %v1490, %v1488
      %v1531 = vpack.c.b16 %v1493, %v1491
      %v1532 = vpack.c.b16 %v1494, %v1492
      %v1533 = vpack.c.b16 %v1497, %v1495
      %v1534 = vpack.c.b16 %v1498, %v1496
      %v1535 = vpack.c.b16 %v1501, %v1499
      %v1536 = vpack.c.b16 %v1502, %v1500
      %v1537 = vpack.c.b16 %v1505, %v1503
      %v1538 = vpack.c.b16 %v1506, %v1504
      %v1539 = vpack.c.b16 %v1509, %v1507
      %v1540 = vpack.c.b16 %v1510, %v1508
      %v1541 = vpack.c.b16 %v1513, %v1511
      %v1542 = vpack.c.b16 %v1514, %v1512
      %v1543 = vpack.c.b16 %v1517, %v1515
      %v1544 = vpack.c.b16 %v1518, %v1516
      %v1545 = vpack.c.b16 %v1519, %v1519
      %v1546 = vpack.c.b16 %v1520, %v1520
      %vm1547 = vcmask 1046528
      %v1548 = vrot.slane %v1521, 1
      %v1549 = vrot.slane %v1523, 1
      %v1550 = vsel %vm1547, %v1548, %v1549
      %v1551 = vrot.slane %v1522, 1
      %v1552 = vrot.slane %v1524, 1
      %v1553 = vsel %vm1547, %v1551, %v1552
      %v1554 = vrot.slane %v1525, 1
      %v1555 = vsel %vm1547, %v1549, %v1554
      %v1556 = vrot.slane %v1526, 1
      %v1557 = vsel %vm1547, %v1552, %v1556
      %v1558 = vrot.slane %v1527, 1
      %v1559 = vsel %vm1547, %v1554, %v1558
      %v1560 = vrot.slane %v1528, 1
      %v1561 = vsel %vm1547, %v1556, %v1560
      %v1562 = vrot.slane %v1529, 1
      %v1563 = vsel %vm1547, %v1558, %v1562
      %v1564 = vrot.slane %v1530, 1
      %v1565 = vsel %vm1547, %v1560, %v1564
      %v1566 = vrot.slane %v1531, 1
      %v1567 = vsel %vm1547, %v1562, %v1566
      %v1568 = vrot.slane %v1532, 1
      %v1569 = vsel %vm1547, %v1564, %v1568
      %v1570 = vrot.slane %v1533, 1
      %v1571 = vsel %vm1547, %v1566, %v1570
      %v1572 = vrot.slane %v1534, 1
      %v1573 = vsel %vm1547, %v1568, %v1572
      %v1574 = vrot.slane %v1535, 1
      %v1575 = vsel %vm1547, %v1570, %v1574
      %v1576 = vrot.slane %v1536, 1
      %v1577 = vsel %vm1547, %v1572, %v1576
      %v1578 = vrot.slane %v1537, 1
      %v1579 = vsel %vm1547, %v1574, %v1578
      %v1580 = vrot.slane %v1538, 1
      %v1581 = vsel %vm1547, %v1576, %v1580
      %v1582 = vrot.slane %v1539, 1
      %v1583 = vsel %vm1547, %v1578, %v1582
      %v1584 = vrot.slane %v1540, 1
      %v1585 = vsel %vm1547, %v1580, %v1584
      %v1586 = vrot.slane %v1541, 1
      %v1587 = vsel %vm1547, %v1582, %v1586
      %v1588 = vrot.slane %v1542, 1
      %v1589 = vsel %vm1547, %v1584, %v1588
      %v1590 = vrot.slane %v1543, 1
      %v1591 = vsel %vm1547, %v1586, %v1590
      %v1592 = vrot.slane %v1544, 1
      %v1593 = vsel %vm1547, %v1588, %v1592
      %v1594 = vrot.slane %v1545, 1
      %v1595 = vsel %vm1547, %v1590, %v1594
      %v1596 = vrot.slane %v1546, 1
      %v1597 = vsel %vm1547, %v1592, %v1596
      %v1631 = vunpack.c.l.b16 %v1426
      %v1632 = vunpack.c.l.b16 %v1427
      %v1633 = vunpack.c.l.b16 %v1428
      %v1634 = vunpack.c.l.b16 %v1429
      %v1635 = vunpack.c.l.b16 %v1430
      %v1636 = vunpack.c.l.b16 %v1431
      %v1637 = vunpack.c.l.b16 %v1432
      %v1638 = vunpack.c.l.b16 %v1433
      %v1639 = vunpack.c.l.b16 %v1434
      %v1640 = vunpack.c.l.b16 %v1435
      %v1641 = vunpack.c.l.b16 %v1436
      %v1642 = vunpack.c.l.b16 %v1437
      %v1643 = vunpack.c.l.b16 %v1438
      %v1644 = vunpack.c.l.b16 %v1439
      %v1645 = vunpack.c.l.b16 %v1440
      %v1646 = vunpack.c.l.b16 %v1441
      %v1647 = vunpack.c.l.b16 %v1442
      %v1648 = vunpack.c.l.b16 %v1443
      %v1649 = vunpack.c.l.b16 %v1444
      %v1650 = vunpack.c.l.b16 %v1445
      %v1651 = vpack.c.b16 %v1632, %v1631
      %v1652 = vpack.c.b16 %v1634, %v1633
      %v1653 = vpack.c.b16 %v1636, %v1635
      %v1654 = vpack.c.b16 %v1638, %v1637
      %v1655 = vpack.c.b16 %v1640, %v1639
      %v1656 = vpack.c.b16 %v1642, %v1641
      %v1657 = vpack.c.b16 %v1644, %v1643
      %v1658 = vpack.c.b16 %v1646, %v1645
      %v1659 = vpack.c.b16 %v1648, %v1647
      %v1660 = vpack.c.b16 %v1650, %v1649
      %v1672 = vsel %vm470, %v1553, 0
      %v1675 = vsel %vm470, %v1557, 0
      %v1678 = vsel %vm470, %v1561, 0
      %v1681 = vsel %vm470, %v1565, 0
      %v1684 = vsel %vm470, %v1569, 0
      %v1687 = vsel %vm470, %v1573, 0
      %v1690 = vsel %vm470, %v1577, 0
      %v1693 = vsel %vm470, %v1581, 0
      %v1696 = vsel %vm470, %v1585, 0
      %v1699 = vsel %vm470, %v1589, 0
      %v1702 = vsel %vm470, %v1593, 0
      %v1705 = vsel %vm470, %v1597, 0
      %v1708 = vsel %vm470, %v1596, 0
      %1710 = vmatprep.subr.bf16.mxu0 0
      %1711 = vmatpush1.bf16.msra.mxu0 %v1658
      %1712 = vmatprep.subr.bf16.mxu0 0
      %1713 = vmatpush1.bf16.msra.mxu0 %v1657
      %1714 = vmatprep.subr.bf16.mxu0 0
      %1715 = vmatpush1.bf16.msra.mxu0 %v1656
      %1716 = vmatprep.subr.bf16.mxu0 0
      %1717 = vmatpush1.bf16.msra.mxu0 %v1655
      %1718 = vmatprep.subr.bf16.mxu0 0
      %1719 = vmatpush1.bf16.msra.mxu0 %v1654
      %1720 = vmatprep.subr.bf16.mxu0 0
      %1721 = vmatpush1.bf16.msra.mxu0 %v1653
      %1722 = vmatprep.subr.bf16.mxu0 0
      %1723 = vmatpush1.bf16.msra.mxu0 %v1652
      %1724 = vmatprep.subr.bf16.mxu0 0
      %1725 = vmatpush1.bf16.msra.mxu0 %v1651
      %1726 = vmatprep.subr.bf16.mxu0 0
      %1727 = vmatpush2.bf16.msra.mxu0 0
      %1728 = vmatprep.subr.bf16.mxu0 0
      %1729 = vmatpush2.bf16.msra.mxu0 0
      %1730 = vmatprep.subr.bf16.mxu0 0
      %1731 = vmatpush2.bf16.msra.mxu0 0
      %1732 = vmatprep.subr.bf16.mxu0 0
      %1733 = vmatpush2.bf16.msra.mxu0 0
      %1734 = vmatprep.subr.bf16.mxu0 0
      %1735 = vmatpush2.bf16.msra.mxu0 0
      %1736 = vmatprep.subr.bf16.mxu0 0
      %1737 = vmatpush2.bf16.msra.mxu0 0
      %1738 = vmatprep.subr.bf16.mxu0 0
      %1739 = vmatpush2.bf16.msra.mxu0 %v1660
      %1740 = vmatprep.subr.bf16.mxu0 0
      %1741 = vmatpush2.bf16.msra.mxu0 %v1659
      %1742 = vmatprep.mubr.bf16.mxu0 %v1672
      %1743 = vmatmul.mubr.bf16.gmra.mxu0 %v1550
      %v1744 = vpop.f32.mrf.mxu0
      %v1745 = vadd.f32 0.0, %v1744
      %v1746 = vpop.f32.mrf.mxu0
      %v1747 = vpop.f32.mrf.mxu0
      %v1748 = vadd.f32 0.0, %v1747
      %v1749 = vpop.f32.mrf.mxu0
      %1750 = vmatprep.mubr.bf16.mxu0 %v1675
      %1751 = vmatmul.mubr.bf16.gmra.mxu0 %v1555
      %v1752 = vpop.f32.mrf.mxu0
      %v1753 = vadd.f32 0.0, %v1752
      %v1754 = vpop.f32.mrf.mxu0
      %v1755 = vpop.f32.mrf.mxu0
      %v1756 = vadd.f32 0.0, %v1755
      %v1757 = vpop.f32.mrf.mxu0
      %1758 = vmatprep.mubr.bf16.mxu0 %v1678
      %1759 = vmatmul.mubr.bf16.gmra.mxu0 %v1559
      %v1760 = vpop.f32.mrf.mxu0
      %v1761 = vadd.f32 0.0, %v1760
      %v1762 = vpop.f32.mrf.mxu0
      %v1763 = vpop.f32.mrf.mxu0
      %v1764 = vadd.f32 0.0, %v1763
      %v1765 = vpop.f32.mrf.mxu0
      %1766 = vmatprep.mubr.bf16.mxu0 %v1681
      %1767 = vmatmul.mubr.bf16.gmra.mxu0 %v1563
      %v1768 = vpop.f32.mrf.mxu0
      %v1769 = vadd.f32 0.0, %v1768
      %v1770 = vpop.f32.mrf.mxu0
      %v1771 = vpop.f32.mrf.mxu0
      %v1772 = vadd.f32 0.0, %v1771
      %v1773 = vpop.f32.mrf.mxu0
      %1774 = vmatprep.mubr.bf16.mxu0 %v1684
      %1775 = vmatmul.mubr.bf16.gmra.mxu0 %v1567
      %v1776 = vpop.f32.mrf.mxu0
      %v1777 = vadd.f32 0.0, %v1776
      %v1778 = vpop.f32.mrf.mxu0
      %v1779 = vpop.f32.mrf.mxu0
      %v1780 = vadd.f32 0.0, %v1779
      %v1781 = vpop.f32.mrf.mxu0
      %1782 = vmatprep.mubr.bf16.mxu0 %v1687
      %1783 = vmatmul.mubr.bf16.gmra.mxu0 %v1571
      %v1784 = vpop.f32.mrf.mxu0
      %v1785 = vadd.f32 0.0, %v1784
      %v1786 = vpop.f32.mrf.mxu0
      %v1787 = vpop.f32.mrf.mxu0
      %v1788 = vadd.f32 0.0, %v1787
      %v1789 = vpop.f32.mrf.mxu0
      %1790 = vmatprep.mubr.bf16.mxu0 %v1690
      %1791 = vmatmul.mubr.bf16.gmra.mxu0 %v1575
      %v1792 = vpop.f32.mrf.mxu0
      %v1793 = vadd.f32 0.0, %v1792
      %v1794 = vpop.f32.mrf.mxu0
      %v1795 = vpop.f32.mrf.mxu0
      %v1796 = vadd.f32 0.0, %v1795
      %v1797 = vpop.f32.mrf.mxu0
      %1798 = vmatprep.mubr.bf16.mxu0 %v1693
      %1799 = vmatmul.mubr.bf16.gmra.mxu0 %v1579
      %v1800 = vpop.f32.mrf.mxu0
      %v1801 = vadd.f32 0.0, %v1800
      %v1802 = vpop.f32.mrf.mxu0
      %v1803 = vpop.f32.mrf.mxu0
      %v1804 = vadd.f32 0.0, %v1803
      %v1805 = vpop.f32.mrf.mxu0
      %1806 = vmatprep.mubr.bf16.mxu0 %v1696
      %1807 = vmatmul.mubr.bf16.gmra.mxu0 %v1583
      %v1808 = vpop.f32.mrf.mxu0
      %v1809 = vadd.f32 0.0, %v1808
      %v1810 = vpop.f32.mrf.mxu0
      %v1811 = vpop.f32.mrf.mxu0
      %v1812 = vadd.f32 0.0, %v1811
      %v1813 = vpop.f32.mrf.mxu0
      %1814 = vmatprep.mubr.bf16.mxu0 %v1699
      %1815 = vmatmul.mubr.bf16.gmra.mxu0 %v1587
      %v1816 = vpop.f32.mrf.mxu0
      %v1817 = vadd.f32 0.0, %v1816
      %v1818 = vpop.f32.mrf.mxu0
      %v1819 = vpop.f32.mrf.mxu0
      %v1820 = vadd.f32 0.0, %v1819
      %v1821 = vpop.f32.mrf.mxu0
      %1822 = vmatprep.mubr.bf16.mxu0 %v1702
      %1823 = vmatmul.mubr.bf16.gmra.mxu0 %v1591
      %v1824 = vpop.f32.mrf.mxu0
      %v1825 = vadd.f32 0.0, %v1824
      %v1826 = vpop.f32.mrf.mxu0
      %v1827 = vpop.f32.mrf.mxu0
      %v1828 = vadd.f32 0.0, %v1827
      %v1829 = vpop.f32.mrf.mxu0
      %1830 = vmatprep.mubr.bf16.mxu0 %v1705
      %1831 = vmatmul.mubr.bf16.gmra.mxu0 %v1595
      %v1832 = vpop.f32.mrf.mxu0
      %v1833 = vadd.f32 0.0, %v1832
      %v1834 = vpop.f32.mrf.mxu0
      %v1835 = vpop.f32.mrf.mxu0
      %v1836 = vadd.f32 0.0, %v1835
      %v1837 = vpop.f32.mrf.mxu0
      %1838 = vmatprep.mubr.bf16.mxu0 %v1708
      %1839 = vmatmul.mubr.bf16.gmra.mxu0 %v1594
      %v1840 = vpop.f32.mrf.mxu0
      %v1841 = vadd.f32 0.0, %v1840
      %v1842 = vpop.f32.mrf.mxu0
      %v1843 = vpop.f32.mrf.mxu0
      %v1844 = vpop.f32.mrf.mxu0
      %1845 = vdwg.mxu0
      %v1846 = vadd.f32 %v1375, %v1745
      %v1847 = vadd.f32 %v1376, %v1748
      %v1848 = vadd.f32 %v1377, %v1753
      %v1849 = vadd.f32 %v1378, %v1756
      %v1850 = vadd.f32 %v1379, %v1761
      %v1851 = vadd.f32 %v1380, %v1764
      %v1852 = vadd.f32 %v1381, %v1769
      %v1853 = vadd.f32 %v1382, %v1772
      %v1854 = vadd.f32 %v1383, %v1777
      %v1855 = vadd.f32 %v1384, %v1780
      %v1856 = vadd.f32 %v1385, %v1785
      %v1857 = vadd.f32 %v1386, %v1788
      %v1858 = vadd.f32 %v1387, %v1793
      %v1859 = vadd.f32 %v1388, %v1796
      %v1860 = vadd.f32 %v1389, %v1801
      %v1861 = vadd.f32 %v1390, %v1804
      %v1862 = vadd.f32 %v1391, %v1809
      %v1863 = vadd.f32 %v1392, %v1812
      %v1864 = vadd.f32 %v1393, %v1817
      %v1865 = vadd.f32 %v1394, %v1820
      %v1866 = vadd.f32 %v1395, %v1825
      %v1867 = vadd.f32 %v1396, %v1828
      %v1868 = vadd.f32 %v1397, %v1833
      %v1869 = vadd.f32 %v1398, %v1836
      %v1870 = vadd.f32 %v1399, %v1841
      %v1871 = vld [vmem:[%s165 + $0x38] sm:$0xff]
      %v1872 = vld [vmem:[%s165 + $0x40] sm:$0xff]
      %v1873 = vld [vmem:[%s165 + $0x48] sm:$0xff]
      %v1874 = vld [vmem:[%s165 + $0x50] sm:$0xff]
      %v1875 = vld [vmem:[%s165 + $0x58] sm:$0xff]
      %v1876 = vld [vmem:[%s165 + $0x60] sm:$0xff]
      %v1877 = vld [vmem:[%s165 + $0x68] sm:$0xff]
      %v1878 = vld [vmem:[%s165 + $0x70] sm:$0xff]
      %v1879 = vld [vmem:[%s165 + $0x78] sm:$0xff]
      %v1880 = vld [vmem:[%s165 + $0x80] sm:$0xff]
      %v1881 = vld [vmem:[%s165 + $0x88] sm:$0xff]
      %v1882 = vld [vmem:[%s165 + $0x90] sm:$0xff]
      %v1883 = vld [vmem:[%s165 + $0x98] sm:$0xff]
      %v1884 = vld [vmem:[%s165 + $0xa0] sm:$0xff]
      %v1885 = vld [vmem:[%s165 + $0xa8] sm:$0xff]
      %v1886 = vld [vmem:[%s165 + $0xb0] sm:$0xff]
      %v1887 = vld [vmem:[%s165 + $0xb8] sm:$0xff]
      %v1888 = vld [vmem:[%s165 + $0xc0] sm:$0xff]
      %v1889 = vld [vmem:[%s165 + $0xc8] sm:$0xff]
      %v1890 = vld [vmem:[%s165 + $0xd0] sm:$0xff]
      %v1891 = vld [vmem:[%s165 + $0xd8] sm:$0xff]
      %v1892 = vld [vmem:[%s165 + $0xe0] sm:$0xff]
      %v1893 = vld [vmem:[%s165 + $0xe8] sm:$0xff]
      %v1894 = vld [vmem:[%s165 + $0xf0] sm:$0xff]
      %v1895 = vld [vmem:[%s165 + $0xf8] sm:$0x33]
      %s1896 = scalar_lea.vmem %s1, 320
      %v1897 = vld [vmem:[%s1896] sm:$0xf]
      %v1898 = vld [vmem:[%s1896 + $0x4] sm:$0xf]
      %v1899 = vld [vmem:[%s1896 + $0x8] sm:$0xf]
      %v1900 = vld [vmem:[%s1896 + $0xc] sm:$0xf]
      %v1901 = vld [vmem:[%s1896 + $0x10] sm:$0xf]
      %v1902 = vld [vmem:[%s1896 + $0x14] sm:$0xf]
      %v1903 = vld [vmem:[%s1896 + $0x18] sm:$0xf]
      %v1904 = vld [vmem:[%s1896 + $0x1c] sm:$0xf]
      %v1905 = vld [vmem:[%s1896 + $0x20] sm:$0xf]
      %v1906 = vld [vmem:[%s1896 + $0x24] sm:$0xf]
      %v1907 = vld [vmem:[%s1896 + $0x28] sm:$0xf]
      %v1908 = vld [vmem:[%s1896 + $0x2c] sm:$0xf]
      %v1909 = vld [vmem:[%s1896 + $0x30] sm:$0xf]
      %v1910 = vld [vmem:[%s1896 + $0x34] sm:$0xf]
      %v1911 = vld [vmem:[%s1896 + $0x38] sm:$0xf]
      %v1912 = vld [vmem:[%s1896 + $0x3c] sm:$0xf]
      %v1913 = vld [vmem:[%s1896 + $0x40] sm:$0xf]
      %v1914 = vld [vmem:[%s1896 + $0x44] sm:$0xf]
      %v1915 = vld [vmem:[%s1896 + $0x48] sm:$0xf]
      %v1916 = vld [vmem:[%s1896 + $0x4c] sm:$0xf]
      %v1942 = vunpack.c.l.b16 %v1871
      %v1943 = vunpack.c.h.b16 %v1871
      %v1944 = vunpack.c.l.b16 %v1872
      %v1945 = vunpack.c.h.b16 %v1872
      %v1946 = vunpack.c.l.b16 %v1873
      %v1947 = vunpack.c.h.b16 %v1873
      %v1948 = vunpack.c.l.b16 %v1874
      %v1949 = vunpack.c.h.b16 %v1874
      %v1950 = vunpack.c.l.b16 %v1875
      %v1951 = vunpack.c.h.b16 %v1875
      %v1952 = vunpack.c.l.b16 %v1876
      %v1953 = vunpack.c.h.b16 %v1876
      %v1954 = vunpack.c.l.b16 %v1877
      %v1955 = vunpack.c.h.b16 %v1877
      %v1956 = vunpack.c.l.b16 %v1878
      %v1957 = vunpack.c.h.b16 %v1878
      %v1958 = vunpack.c.l.b16 %v1879
      %v1959 = vunpack.c.h.b16 %v1879
      %v1960 = vunpack.c.l.b16 %v1880
      %v1961 = vunpack.c.h.b16 %v1880
      %v1962 = vunpack.c.l.b16 %v1881
      %v1963 = vunpack.c.h.b16 %v1881
      %v1964 = vunpack.c.l.b16 %v1882
      %v1965 = vunpack.c.h.b16 %v1882
      %v1966 = vunpack.c.l.b16 %v1883
      %v1967 = vunpack.c.h.b16 %v1883
      %v1968 = vunpack.c.l.b16 %v1884
      %v1969 = vunpack.c.h.b16 %v1884
      %v1970 = vunpack.c.l.b16 %v1885
      %v1971 = vunpack.c.h.b16 %v1885
      %v1972 = vunpack.c.l.b16 %v1886
      %v1973 = vunpack.c.h.b16 %v1886
      %v1974 = vunpack.c.l.b16 %v1887
      %v1975 = vunpack.c.h.b16 %v1887
      %v1976 = vunpack.c.l.b16 %v1888
      %v1977 = vunpack.c.h.b16 %v1888
      %v1978 = vunpack.c.l.b16 %v1889
      %v1979 = vunpack.c.h.b16 %v1889
      %v1980 = vunpack.c.l.b16 %v1890
      %v1981 = vunpack.c.h.b16 %v1890
      %v1982 = vunpack.c.l.b16 %v1891
      %v1983 = vunpack.c.h.b16 %v1891
      %v1984 = vunpack.c.l.b16 %v1892
      %v1985 = vunpack.c.h.b16 %v1892
      %v1986 = vunpack.c.l.b16 %v1893
      %v1987 = vunpack.c.h.b16 %v1893
      %v1988 = vunpack.c.l.b16 %v1894
      %v1989 = vunpack.c.h.b16 %v1894
      %v1990 = vunpack.c.l.b16 %v1895
      %v1991 = vunpack.c.h.b16 %v1895
      %v1992 = vpack.c.b16 %v1944, %v1942
      %v1993 = vpack.c.b16 %v1945, %v1943
      %v1994 = vpack.c.b16 %v1948, %v1946
      %v1995 = vpack.c.b16 %v1949, %v1947
      %v1996 = vpack.c.b16 %v1952, %v1950
      %v1997 = vpack.c.b16 %v1953, %v1951
      %v1998 = vpack.c.b16 %v1956, %v1954
      %v1999 = vpack.c.b16 %v1957, %v1955
      %v2000 = vpack.c.b16 %v1960, %v1958
      %v2001 = vpack.c.b16 %v1961, %v1959
      %v2002 = vpack.c.b16 %v1964, %v1962
      %v2003 = vpack.c.b16 %v1965, %v1963
      %v2004 = vpack.c.b16 %v1968, %v1966
      %v2005 = vpack.c.b16 %v1969, %v1967
      %v2006 = vpack.c.b16 %v1972, %v1970
      %v2007 = vpack.c.b16 %v1973, %v1971
      %v2008 = vpack.c.b16 %v1976, %v1974
      %v2009 = vpack.c.b16 %v1977, %v1975
      %v2010 = vpack.c.b16 %v1980, %v1978
      %v2011 = vpack.c.b16 %v1981, %v1979
      %v2012 = vpack.c.b16 %v1984, %v1982
      %v2013 = vpack.c.b16 %v1985, %v1983
      %v2014 = vpack.c.b16 %v1988, %v1986
      %v2015 = vpack.c.b16 %v1989, %v1987
      %v2016 = vpack.c.b16 %v1990, %v1990
      %v2017 = vpack.c.b16 %v1991, %v1991
      %v2051 = vunpack.c.l.b16 %v1897
      %v2052 = vunpack.c.l.b16 %v1898
      %v2053 = vunpack.c.l.b16 %v1899
      %v2054 = vunpack.c.l.b16 %v1900
      %v2055 = vunpack.c.l.b16 %v1901
      %v2056 = vunpack.c.l.b16 %v1902
      %v2057 = vunpack.c.l.b16 %v1903
      %v2058 = vunpack.c.l.b16 %v1904
      %v2059 = vunpack.c.l.b16 %v1905
      %v2060 = vunpack.c.l.b16 %v1906
      %v2061 = vunpack.c.l.b16 %v1907
      %v2062 = vunpack.c.l.b16 %v1908
      %v2063 = vunpack.c.l.b16 %v1909
      %v2064 = vunpack.c.l.b16 %v1910
      %v2065 = vunpack.c.l.b16 %v1911
      %v2066 = vunpack.c.l.b16 %v1912
      %v2067 = vunpack.c.l.b16 %v1913
      %v2068 = vunpack.c.l.b16 %v1914
      %v2069 = vunpack.c.l.b16 %v1915
      %v2070 = vunpack.c.l.b16 %v1916
      %v2071 = vpack.c.b16 %v2052, %v2051
      %v2072 = vpack.c.b16 %v2054, %v2053
      %v2073 = vpack.c.b16 %v2056, %v2055
      %v2074 = vpack.c.b16 %v2058, %v2057
      %v2075 = vpack.c.b16 %v2060, %v2059
      %v2076 = vpack.c.b16 %v2062, %v2061
      %v2077 = vpack.c.b16 %v2064, %v2063
      %v2078 = vpack.c.b16 %v2066, %v2065
      %v2079 = vpack.c.b16 %v2068, %v2067
      %v2080 = vpack.c.b16 %v2070, %v2069
      %v2092 = vsel %vm470, %v1993, 0
      %v2095 = vsel %vm470, %v1995, 0
      %v2098 = vsel %vm470, %v1997, 0
      %v2101 = vsel %vm470, %v1999, 0
      %v2104 = vsel %vm470, %v2001, 0
      %v2107 = vsel %vm470, %v2003, 0
      %v2110 = vsel %vm470, %v2005, 0
      %v2113 = vsel %vm470, %v2007, 0
      %v2116 = vsel %vm470, %v2009, 0
      %v2119 = vsel %vm470, %v2011, 0
      %v2122 = vsel %vm470, %v2013, 0
      %v2125 = vsel %vm470, %v2015, 0
      %v2128 = vsel %vm470, %v2017, 0
      %2130 = vmatprep.subr.bf16.mxu0 0
      %2131 = vmatpush1.bf16.msra.mxu0 %v2078
      %2132 = vmatprep.subr.bf16.mxu0 0
      %2133 = vmatpush1.bf16.msra.mxu0 %v2077
      %2134 = vmatprep.subr.bf16.mxu0 0
      %2135 = vmatpush1.bf16.msra.mxu0 %v2076
      %2136 = vmatprep.subr.bf16.mxu0 0
      %2137 = vmatpush1.bf16.msra.mxu0 %v2075
      %2138 = vmatprep.subr.bf16.mxu0 0
      %2139 = vmatpush1.bf16.msra.mxu0 %v2074
      %2140 = vmatprep.subr.bf16.mxu0 0
      %2141 = vmatpush1.bf16.msra.mxu0 %v2073
      %2142 = vmatprep.subr.bf16.mxu0 0
      %2143 = vmatpush1.bf16.msra.mxu0 %v2072
      %2144 = vmatprep.subr.bf16.mxu0 0
      %2145 = vmatpush1.bf16.msra.mxu0 %v2071
      %2146 = vmatprep.subr.bf16.mxu0 0
      %2147 = vmatpush2.bf16.msra.mxu0 0
      %2148 = vmatprep.subr.bf16.mxu0 0
      %2149 = vmatpush2.bf16.msra.mxu0 0
      %2150 = vmatprep.subr.bf16.mxu0 0
      %2151 = vmatpush2.bf16.msra.mxu0 0
      %2152 = vmatprep.subr.bf16.mxu0 0
      %2153 = vmatpush2.bf16.msra.mxu0 0
      %2154 = vmatprep.subr.bf16.mxu0 0
      %2155 = vmatpush2.bf16.msra.mxu0 0
      %2156 = vmatprep.subr.bf16.mxu0 0
      %2157 = vmatpush2.bf16.msra.mxu0 0
      %2158 = vmatprep.subr.bf16.mxu0 0
      %2159 = vmatpush2.bf16.msra.mxu0 %v2080
      %2160 = vmatprep.subr.bf16.mxu0 0
      %2161 = vmatpush2.bf16.msra.mxu0 %v2079
      %2162 = vmatprep.mubr.bf16.mxu0 %v2092
      %2163 = vmatmul.mubr.bf16.gmra.mxu0 %v1992
      %v2164 = vpop.f32.mrf.mxu0
      %v2165 = vadd.f32 0.0, %v2164
      %v2166 = vpop.f32.mrf.mxu0
      %v2167 = vpop.f32.mrf.mxu0
      %v2168 = vadd.f32 0.0, %v2167
      %v2169 = vpop.f32.mrf.mxu0
      %2170 = vmatprep.mubr.bf16.mxu0 %v2095
      %2171 = vmatmul.mubr.bf16.gmra.mxu0 %v1994
      %v2172 = vpop.f32.mrf.mxu0
      %v2173 = vadd.f32 0.0, %v2172
      %v2174 = vpop.f32.mrf.mxu0
      %v2175 = vpop.f32.mrf.mxu0
      %v2176 = vadd.f32 0.0, %v2175
      %v2177 = vpop.f32.mrf.mxu0
      %2178 = vmatprep.mubr.bf16.mxu0 %v2098
      %2179 = vmatmul.mubr.bf16.gmra.mxu0 %v1996
      %v2180 = vpop.f32.mrf.mxu0
      %v2181 = vadd.f32 0.0, %v2180
      %v2182 = vpop.f32.mrf.mxu0
      %v2183 = vpop.f32.mrf.mxu0
      %v2184 = vadd.f32 0.0, %v2183
      %v2185 = vpop.f32.mrf.mxu0
      %2186 = vmatprep.mubr.bf16.mxu0 %v2101
      %2187 = vmatmul.mubr.bf16.gmra.mxu0 %v1998
      %v2188 = vpop.f32.mrf.mxu0
      %v2189 = vadd.f32 0.0, %v2188
      %v2190 = vpop.f32.mrf.mxu0
      %v2191 = vpop.f32.mrf.mxu0
      %v2192 = vadd.f32 0.0, %v2191
      %v2193 = vpop.f32.mrf.mxu0
      %2194 = vmatprep.mubr.bf16.mxu0 %v2104
      %2195 = vmatmul.mubr.bf16.gmra.mxu0 %v2000
      %v2196 = vpop.f32.mrf.mxu0
      %v2197 = vadd.f32 0.0, %v2196
      %v2198 = vpop.f32.mrf.mxu0
      %v2199 = vpop.f32.mrf.mxu0
      %v2200 = vadd.f32 0.0, %v2199
      %v2201 = vpop.f32.mrf.mxu0
      %2202 = vmatprep.mubr.bf16.mxu0 %v2107
      %2203 = vmatmul.mubr.bf16.gmra.mxu0 %v2002
      %v2204 = vpop.f32.mrf.mxu0
      %v2205 = vadd.f32 0.0, %v2204
      %v2206 = vpop.f32.mrf.mxu0
      %v2207 = vpop.f32.mrf.mxu0
      %v2208 = vadd.f32 0.0, %v2207
      %v2209 = vpop.f32.mrf.mxu0
      %2210 = vmatprep.mubr.bf16.mxu0 %v2110
      %2211 = vmatmul.mubr.bf16.gmra.mxu0 %v2004
      %v2212 = vpop.f32.mrf.mxu0
      %v2213 = vadd.f32 0.0, %v2212
      %v2214 = vpop.f32.mrf.mxu0
      %v2215 = vpop.f32.mrf.mxu0
      %v2216 = vadd.f32 0.0, %v2215
      %v2217 = vpop.f32.mrf.mxu0
      %2218 = vmatprep.mubr.bf16.mxu0 %v2113
      %2219 = vmatmul.mubr.bf16.gmra.mxu0 %v2006
      %v2220 = vpop.f32.mrf.mxu0
      %v2221 = vadd.f32 0.0, %v2220
      %v2222 = vpop.f32.mrf.mxu0
      %v2223 = vpop.f32.mrf.mxu0
      %v2224 = vadd.f32 0.0, %v2223
      %v2225 = vpop.f32.mrf.mxu0
      %2226 = vmatprep.mubr.bf16.mxu0 %v2116
      %2227 = vmatmul.mubr.bf16.gmra.mxu0 %v2008
      %v2228 = vpop.f32.mrf.mxu0
      %v2229 = vadd.f32 0.0, %v2228
      %v2230 = vpop.f32.mrf.mxu0
      %v2231 = vpop.f32.mrf.mxu0
      %v2232 = vadd.f32 0.0, %v2231
      %v2233 = vpop.f32.mrf.mxu0
      %2234 = vmatprep.mubr.bf16.mxu0 %v2119
      %2235 = vmatmul.mubr.bf16.gmra.mxu0 %v2010
      %v2236 = vpop.f32.mrf.mxu0
      %v2237 = vadd.f32 0.0, %v2236
      %v2238 = vpop.f32.mrf.mxu0
      %v2239 = vpop.f32.mrf.mxu0
      %v2240 = vadd.f32 0.0, %v2239
      %v2241 = vpop.f32.mrf.mxu0
      %2242 = vmatprep.mubr.bf16.mxu0 %v2122
      %2243 = vmatmul.mubr.bf16.gmra.mxu0 %v2012
      %v2244 = vpop.f32.mrf.mxu0
      %v2245 = vadd.f32 0.0, %v2244
      %v2246 = vpop.f32.mrf.mxu0
      %v2247 = vpop.f32.mrf.mxu0
      %v2248 = vadd.f32 0.0, %v2247
      %v2249 = vpop.f32.mrf.mxu0
      %2250 = vmatprep.mubr.bf16.mxu0 %v2125
      %2251 = vmatmul.mubr.bf16.gmra.mxu0 %v2014
      %v2252 = vpop.f32.mrf.mxu0
      %v2253 = vadd.f32 0.0, %v2252
      %v2254 = vpop.f32.mrf.mxu0
      %v2255 = vpop.f32.mrf.mxu0
      %v2256 = vadd.f32 0.0, %v2255
      %v2257 = vpop.f32.mrf.mxu0
      %2258 = vmatprep.mubr.bf16.mxu0 %v2128
      %2259 = vmatmul.mubr.bf16.gmra.mxu0 %v2016
      %v2260 = vpop.f32.mrf.mxu0
      %v2261 = vadd.f32 0.0, %v2260
      %v2262 = vpop.f32.mrf.mxu0
      %v2263 = vpop.f32.mrf.mxu0
      %v2264 = vpop.f32.mrf.mxu0
      %2265 = vdwg.mxu0
      %v2266 = vadd.f32 %v1846, %v2165
      %v2267 = vadd.f32 %v1847, %v2168
      %v2268 = vadd.f32 %v1848, %v2173
      %v2269 = vadd.f32 %v1849, %v2176
      %v2270 = vadd.f32 %v1850, %v2181
      %v2271 = vadd.f32 %v1851, %v2184
      %v2272 = vadd.f32 %v1852, %v2189
      %v2273 = vadd.f32 %v1853, %v2192
      %v2274 = vadd.f32 %v1854, %v2197
      %v2275 = vadd.f32 %v1855, %v2200
      %v2276 = vadd.f32 %v1856, %v2205
      %v2277 = vadd.f32 %v1857, %v2208
      %v2278 = vadd.f32 %v1858, %v2213
      %v2279 = vadd.f32 %v1859, %v2216
      %v2280 = vadd.f32 %v1860, %v2221
      %v2281 = vadd.f32 %v1861, %v2224
      %v2282 = vadd.f32 %v1862, %v2229
      %v2283 = vadd.f32 %v1863, %v2232
      %v2284 = vadd.f32 %v1864, %v2237
      %v2285 = vadd.f32 %v1865, %v2240
      %v2286 = vadd.f32 %v1866, %v2245
      %v2287 = vadd.f32 %v1867, %v2248
      %v2288 = vadd.f32 %v1868, %v2253
      %v2289 = vadd.f32 %v1869, %v2256
      %v2290 = vadd.f32 %v1870, %v2261
      %v2291 = vld [vmem:[%s2] sm:$0x1]
      %v2293 = vlaneseq
      %v2294 = vshrl.u32 %v2293, 7
      %v2295 = vsub.s32 0, %v2294
      %v2296 = vrot.slane %v2291, %v2295
      %v2298 = vadd.f32 %v2266, %v2296
      %v2299 = vadd.f32 %v2267, %v2296
      %v2300 = vadd.f32 %v2268, %v2296
      %v2301 = vadd.f32 %v2269, %v2296
      %v2302 = vadd.f32 %v2270, %v2296
      %v2303 = vadd.f32 %v2271, %v2296
      %v2304 = vadd.f32 %v2272, %v2296
      %v2305 = vadd.f32 %v2273, %v2296
      %v2306 = vadd.f32 %v2274, %v2296
      %v2307 = vadd.f32 %v2275, %v2296
      %v2308 = vadd.f32 %v2276, %v2296
      %v2309 = vadd.f32 %v2277, %v2296
      %v2310 = vadd.f32 %v2278, %v2296
      %v2311 = vadd.f32 %v2279, %v2296
      %v2312 = vadd.f32 %v2280, %v2296
      %v2313 = vadd.f32 %v2281, %v2296
      %v2314 = vadd.f32 %v2282, %v2296
      %v2315 = vadd.f32 %v2283, %v2296
      %v2316 = vadd.f32 %v2284, %v2296
      %v2317 = vadd.f32 %v2285, %v2296
      %v2318 = vadd.f32 %v2286, %v2296
      %v2319 = vadd.f32 %v2287, %v2296
      %v2320 = vadd.f32 %v2288, %v2296
      %v2321 = vadd.f32 %v2289, %v2296
      %v2322 = vadd.f32 %v2290, %v2296
      %v2323 = vmax.f32 %v2298, 0.0
      %v2324 = vmax.f32 %v2299, 0.0
      %v2325 = vmax.f32 %v2300, 0.0
      %v2326 = vmax.f32 %v2301, 0.0
      %v2327 = vmax.f32 %v2302, 0.0
      %v2328 = vmax.f32 %v2303, 0.0
      %v2329 = vmax.f32 %v2304, 0.0
      %v2330 = vmax.f32 %v2305, 0.0
      %v2331 = vmax.f32 %v2306, 0.0
      %v2332 = vmax.f32 %v2307, 0.0
      %v2333 = vmax.f32 %v2308, 0.0
      %v2334 = vmax.f32 %v2309, 0.0
      %v2335 = vmax.f32 %v2310, 0.0
      %v2336 = vmax.f32 %v2311, 0.0
      %v2337 = vmax.f32 %v2312, 0.0
      %v2338 = vmax.f32 %v2313, 0.0
      %v2339 = vmax.f32 %v2314, 0.0
      %v2340 = vmax.f32 %v2315, 0.0
      %v2341 = vmax.f32 %v2316, 0.0
      %v2342 = vmax.f32 %v2317, 0.0
      %v2343 = vmax.f32 %v2318, 0.0
      %v2344 = vmax.f32 %v2319, 0.0
      %v2345 = vmax.f32 %v2320, 0.0
      %v2346 = vmax.f32 %v2321, 0.0
      %v2347 = vmax.f32 %v2322, 0.0
      %vm2348 = vcmask 523264
      %2349 = vst.msk [vmem:[%s170] sm:$0xff] %vm2348, %v2323
      %2350 = vst.msk [vmem:[%s170 + $0x8] sm:$0xff] %vm2348, %v2324
      %2351 = vst.msk [vmem:[%s170 + $0x10] sm:$0xff] %vm2348, %v2325
      %2352 = vst.msk [vmem:[%s170 + $0x18] sm:$0xff] %vm2348, %v2326
      %2353 = vst.msk [vmem:[%s170 + $0x20] sm:$0xff] %vm2348, %v2327
      %2354 = vst.msk [vmem:[%s170 + $0x28] sm:$0xff] %vm2348, %v2328
      %2355 = vst.msk [vmem:[%s170 + $0x30] sm:$0xff] %vm2348, %v2329
      %2356 = vst.msk [vmem:[%s170 + $0x38] sm:$0xff] %vm2348, %v2330
      %2357 = vst.msk [vmem:[%s170 + $0x40] sm:$0xff] %vm2348, %v2331
      %2358 = vst.msk [vmem:[%s170 + $0x48] sm:$0xff] %vm2348, %v2332
      %2359 = vst.msk [vmem:[%s170 + $0x50] sm:$0xff] %vm2348, %v2333
      %2360 = vst.msk [vmem:[%s170 + $0x58] sm:$0xff] %vm2348, %v2334
      %2361 = vst.msk [vmem:[%s170 + $0x60] sm:$0xff] %vm2348, %v2335
      %2362 = vst.msk [vmem:[%s170 + $0x68] sm:$0xff] %vm2348, %v2336
      %2363 = vst.msk [vmem:[%s170 + $0x70] sm:$0xff] %vm2348, %v2337
      %2364 = vst.msk [vmem:[%s170 + $0x78] sm:$0xff] %vm2348, %v2338
      %2365 = vst.msk [vmem:[%s170 + $0x80] sm:$0xff] %vm2348, %v2339
      %2366 = vst.msk [vmem:[%s170 + $0x88] sm:$0xff] %vm2348, %v2340
      %2367 = vst.msk [vmem:[%s170 + $0x90] sm:$0xff] %vm2348, %v2341
      %2368 = vst.msk [vmem:[%s170 + $0x98] sm:$0xff] %vm2348, %v2342
      %2369 = vst.msk [vmem:[%s170 + $0xa0] sm:$0xff] %vm2348, %v2343
      %2370 = vst.msk [vmem:[%s170 + $0xa8] sm:$0xff] %vm2348, %v2344
      %2371 = vst.msk [vmem:[%s170 + $0xb0] sm:$0xff] %vm2348, %v2345
      %2372 = vst.msk [vmem:[%s170 + $0xb8] sm:$0xff] %vm2348, %v2346
      %vm2373 = vcmask 519168
      %2374 = vst.msk [vmem:[%s170 + $0xc0] sm:$0xf] %vm2373, %v2347
      %p2375 = scmp.lt.s32.totalorder %s14, 1
      %s2376 = scalar_select %p2375, %s14, 1
      %s2377 = smul.addr %s2376, 25
      %s2378 = smul.addr %s2377, 8
      %s2379 = scalar_lea.vmem %s3, %s2378
      // Predicated region
      $region33: #{cnn2l_forward.4} parent=31 // pred_check
        %p2380 = pneg %p100
      $region34: #{cnn2l_forward.4} parent=31 // pred_check_branch
        %2382 = sbr.rel (%p2380) target = $region36
      $region35: #{cnn2l_forward.4} parent=31 // pred_region
        _
      $region36: #{cnn2l_forward.4} parent=31 // pred_fallthru
        _
    $region32: #{cnn2l_forward.4} parent=5 // pred_fallthru
      _
    %p2383 = scmp.le.s32.totalorder 2, %s9
    // Predicated region
    $region37: #{cnn2l_forward.4} parent=5 // pred_check
      %p2384 = pneg %p2383
    $region38: #{cnn2l_forward.4} parent=5 // pred_check_branch
      %2386 = sbr.rel (%p2384) target = $region40
    $region39: #{cnn2l_forward.4} parent=5 // pred_region
      %s2387 = ssub.s32 %s9, 2
      // Predicated region
      $region41: #{cnn2l_forward.4} parent=39 // pred_check
        %p2388 = pneg %p106
      $region42: #{cnn2l_forward.4} parent=39 // pred_check_branch
        %2390 = sbr.rel (%p2388) target = $region44
      $region43: #{cnn2l_forward.4} parent=39 // pred_region
        %p2391 = scmp.lt.s32.totalorder %s15, 1
        %s2392 = scalar_select %p2391, %s15, 1
        %s2393 = smul.addr %s2392, 25
        %s2394 = smul.addr %s2393, 8
        %s2395 = scalar_lea.vmem %s3, %s2394
      $region44: #{cnn2l_forward.4} parent=39 // pred_fallthru
        _
    $region40: #{cnn2l_forward.4} parent=5 // pred_fallthru
      _
  $region6: #{cnn2l_forward.4} parent=0 // loop_footer
    %s13 = sadd.s32 1, %s9
  $region7: #{cnn2l_forward.4} parent=0 // loop_footer_branch
    %8 = sbr.rel target = $region3
  $region8: #{cnn2l_forward.4} parent=0 // loop_exit
    _

// kernel: cnn2l_forward.5
$region0: #{cnn2l_forward.5}
  #allocation0 [shape = 'u32[]', space=smem, size = 0x4, offset = 0x4, fixed_abs, tag = 'smem constant byte address 0x4 - core index']
  #allocation1 [shape = 'u32[144,128]{1,0:T(1,128)}', space=vmem, size = 0x12000, scoped, tag = 'internal scratch']
  #allocation2 [shape = 'f32[2,10]{1,0:T(2,128)}', space=vmem, size = 0x400, scoped, tag = 'scratch operand']
  %s0 = inlined_call_operand.vmem [shape: bf16[2,3136], index: 0, kind: input, shape index: {}]
  %s1 = inlined_call_operand.vmem [shape: bf16[3136,1024], index: 1, kind: input, shape index: {}]
  %s2 = inlined_call_operand.vmem [shape: f32[1,1024], index: 2, kind: input, shape index: {}]
  %s3 = inlined_call_operand.vmem [shape: bf16[1024,10], index: 3, kind: input, shape index: {}]
  %s4 = inlined_call_operand.vmem [shape: f32[1,10], index: 4, kind: input, shape index: {}]
  %s5 = inlined_call_operand.hbm [shape: f32[2,10], index: 5, kind: output, shape index: {}]
  %s6 = sld [smem:[#allocation0]]
  $region99: #{cnn2l_forward.5} parent=0
    _
  %s8 = ssub.s32 1, %s6
  %s9 = scalar_select 0, %s8, %s6
  $region1: #{cnn2l_forward.5} parent=0
    #allocation3 [shape = 'u8[3211264]{0}', space=vmem, size = 0x310000, scoped, tag = 'input window, operand 1']
    #allocation4 [shape = 'u8[1024]{0}', space=vmem, size = 0x400, scoped, tag = 'output window, operand 0, single buffered']
    #allocation5 [shape = 's32[2]{0}', space=sflag, size = 0x8, scoped, tag = 'scoped memory for cnn2l_forward.5']
    %10 = vsyncpa [#allocation5], 0
    loop: start=0, step=1, limit=6
    $region2: #{cnn2l_forward.5} parent=1 // loop_pre_header
      _
    $region3: #{cnn2l_forward.5} parent=1 // loop_header
      %s12 = sphi 0, %s16
      %p13 = scmp.ge.s32.totalorder %s12, 6
      %s20 = sphi 0, %s20
      %s22 = sphi 0, %s20
      %s23 = sphi 0, %s22
      %s37 = sphi 0, %s23
      %s43 = sphi 0, %s45
      %s46 = sphi 0, %s43
      %s47 = sphi 0, %s46
      %s63 = sphi 0, %s47
      %s69 = sphi 0, %s71
      %s72 = sphi 0, %s69
      %s73 = sphi 0, %s72
      %s89 = sphi 0, %s73
      %s95 = sphi 0, %s97
      %s98 = sphi 0, %s95
      %s99 = sphi 0, %s98
      %s115 = sphi 0, %s99
      %s119 = sphi 0, %s119
      %s121 = sphi 0, %s119
      %s122 = sphi 0, %s121
      %s136 = sphi 0, %s122
      %s140 = sphi 0, %s140
      %s142 = sphi 0, %s140
      %s143 = sphi 0, %s142
      %s157 = sphi 0, %s143
    $region4: #{cnn2l_forward.5} parent=1 // loop_header_branch
      %15 = sbr.rel (%p13) target = $region8
    $region5: #{cnn2l_forward.5} parent=1 // loop_body
      %s17 = ssub.s32 %s12, 1
      %s18 = ssub.s32 %s12, 2
      %s19 = sadd.s32 %s12, 1
      %s21 = sadd.s32 %s20, 1
      %p24 = scmp.eq.s32.totalorder %s12, 3
      %p25 = scmp.ne.s32.totalorder %s20, %s22
      %p26 = scmp.eq.s32.totalorder %s12, 0
      %p27 = por %p25, %p26
      %p28 = scmp.ne.s32.totalorder %s20, %s22
      %p29 = scmp.eq.s32.totalorder %s17, 3
      %p30 = por %p28, %p29
      %p31 = scmp.ne.s32.totalorder %s22, %s23
      %p32 = scmp.eq.s32.totalorder %s17, 0
      %p33 = por %p31, %p32
      %p34 = scmp.ne.s32.totalorder %s22, %s23
      %p35 = scmp.eq.s32.totalorder %s18, 3
      %p36 = por %p34, %p35
      %p38 = scmp.ne.s32.totalorder %s23, %s37
      %p39 = scmp.eq.s32.totalorder %s18, 0
      %p40 = por %p38, %p39
      %s41 = ssub.s32 %s12, %s19
      %p42 = scmp.eq.s32.totalorder %s41, 0
      %s44 = sadd.s32 %s43, 1
      %s45 = scalar_select %p42, %s43, %s44
      %p48 = pneg %p42
      %p49 = scmp.eq.s32.totalorder %s12, 3
      %p50 = por %p48, %p49
      %p51 = scmp.ne.s32.totalorder %s43, %s46
      %p52 = scmp.eq.s32.totalorder %s12, 0
      %p53 = por %p51, %p52
      %p54 = scmp.ne.s32.totalorder %s43, %s46
      %p55 = scmp.eq.s32.totalorder %s17, 3
      %p56 = por %p54, %p55
      %p57 = scmp.ne.s32.totalorder %s46, %s47
      %p58 = scmp.eq.s32.totalorder %s17, 0
      %p59 = por %p57, %p58
      %p60 = scmp.ne.s32.totalorder %s46, %s47
      %p61 = scmp.eq.s32.totalorder %s18, 3
      %p62 = por %p60, %p61
      %p64 = scmp.ne.s32.totalorder %s47, %s63
      %p65 = scmp.eq.s32.totalorder %s18, 0
      %p66 = por %p64, %p65
      %s67 = ssub.s32 %s12, %s19
      %p68 = scmp.eq.s32.totalorder %s67, 0
      %s70 = sadd.s32 %s69, 1
      %s71 = scalar_select %p68, %s69, %s70
      %p74 = pneg %p68
      %p75 = scmp.eq.s32.totalorder %s12, 3
      %p76 = por %p74, %p75
      %p77 = scmp.ne.s32.totalorder %s69, %s72
      %p78 = scmp.eq.s32.totalorder %s12, 0
      %p79 = por %p77, %p78
      %p80 = scmp.ne.s32.totalorder %s69, %s72
      %p81 = scmp.eq.s32.totalorder %s17, 3
      %p82 = por %p80, %p81
      %p83 = scmp.ne.s32.totalorder %s72, %s73
      %p84 = scmp.eq.s32.totalorder %s17, 0
      %p85 = por %p83, %p84
      %p86 = scmp.ne.s32.totalorder %s72, %s73
      %p87 = scmp.eq.s32.totalorder %s18, 3
      %p88 = por %p86, %p87
      %p90 = scmp.ne.s32.totalorder %s73, %s89
      %p91 = scmp.eq.s32.totalorder %s18, 0
      %p92 = por %p90, %p91
      %s93 = ssub.s32 %s12, %s19
      %p94 = scmp.eq.s32.totalorder %s93, 0
      %s96 = sadd.s32 %s95, 1
      %s97 = scalar_select %p94, %s95, %s96
      %p100 = pneg %p94
      %p101 = scmp.eq.s32.totalorder %s12, 3
      %p102 = por %p100, %p101
      %p103 = scmp.ne.s32.totalorder %s95, %s98
      %p104 = scmp.eq.s32.totalorder %s12, 0
      %p105 = por %p103, %p104
      %p106 = scmp.ne.s32.totalorder %s95, %s98
      %p107 = scmp.eq.s32.totalorder %s17, 3
      %p108 = por %p106, %p107
      %p109 = scmp.ne.s32.totalorder %s98, %s99
      %p110 = scmp.eq.s32.totalorder %s17, 0
      %p111 = por %p109, %p110
      %p112 = scmp.ne.s32.totalorder %s98, %s99
      %p113 = scmp.eq.s32.totalorder %s18, 3
      %p114 = por %p112, %p113
      %p116 = scmp.ne.s32.totalorder %s99, %s115
      %p117 = scmp.eq.s32.totalorder %s18, 0
      %p118 = por %p116, %p117
      %s120 = sadd.s32 %s119, 1
      %p123 = scmp.eq.s32.totalorder %s12, 3
      %p124 = scmp.ne.s32.totalorder %s119, %s121
      %p125 = scmp.eq.s32.totalorder %s12, 0
      %p126 = por %p124, %p125
      %p127 = scmp.ne.s32.totalorder %s119, %s121
      %p128 = scmp.eq.s32.totalorder %s17, 3
      %p129 = por %p127, %p128
      %p130 = scmp.ne.s32.totalorder %s121, %s122
      %p131 = scmp.eq.s32.totalorder %s17, 0
      %p132 = por %p130, %p131
      %p133 = scmp.ne.s32.totalorder %s121, %s122
      %p134 = scmp.eq.s32.totalorder %s18, 3
      %p135 = por %p133, %p134
      %p137 = scmp.ne.s32.totalorder %s122, %s136
      %p138 = scmp.eq.s32.totalorder %s18, 0
      %p139 = por %p137, %p138
      %s141 = sadd.s32 %s140, 1
      %p144 = scmp.eq.s32.totalorder %s12, 3
      %p145 = scmp.ne.s32.totalorder %s140, %s142
      %p146 = scmp.eq.s32.totalorder %s12, 0
      %p147 = por %p145, %p146
      %p148 = scmp.ne.s32.totalorder %s140, %s142
      %p149 = scmp.eq.s32.totalorder %s17, 3
      %p150 = por %p148, %p149
      %p151 = scmp.ne.s32.totalorder %s142, %s143
      %p152 = scmp.eq.s32.totalorder %s17, 0
      %p153 = por %p151, %p152
      %p154 = scmp.ne.s32.totalorder %s142, %s143
      %p155 = scmp.eq.s32.totalorder %s18, 3
      %p156 = por %p154, %p155
      %p158 = scmp.ne.s32.totalorder %s143, %s157
      %p159 = scmp.eq.s32.totalorder %s18, 0
      %p160 = por %p158, %p159
      %p161 = scmp.le.s32.totalorder 1, %s12
      %p162 = scmp.lt.s32.totalorder %s12, 5
      %p163 = pnand %p161, %p162
      %p164 = pneg %p163
      // Predicated region
      $region9: #{cnn2l_forward.5} parent=5 // pred_check
        _
      $region10: #{cnn2l_forward.5} parent=5 // pred_check_branch
        %166 = sbr.rel (%p163) target = $region12
      $region11: #{cnn2l_forward.5} parent=5 // pred_region
        %s167 = ssub.s32 %s12, 1
        // Predicated region
        $region13: #{cnn2l_forward.5} parent=11 // pred_check
          %p168 = pneg %p33
        $region14: #{cnn2l_forward.5} parent=11 // pred_check_branch
          %170 = sbr.rel (%p168) target = $region16
        $region15: #{cnn2l_forward.5} parent=11 // pred_region
          _
        $region16: #{cnn2l_forward.5} parent=11 // pred_fallthru
          _
        // Predicated region
        $region17: #{cnn2l_forward.5} parent=11 // pred_check
          %p171 = pneg %p132
        $region18: #{cnn2l_forward.5} parent=11 // pred_check_branch
          %173 = sbr.rel (%p171) target = $region20
        $region19: #{cnn2l_forward.5} parent=11 // pred_region
          _
        $region20: #{cnn2l_forward.5} parent=11 // pred_fallthru
          _
      $region12: #{cnn2l_forward.5} parent=5 // pred_fallthru
        _
      %p174 = scmp.lt.s32.totalorder %s12, 4
      // Predicated region
      $region21: #{cnn2l_forward.5} parent=5 // pred_check
        %p175 = pneg %p174
      $region22: #{cnn2l_forward.5} parent=5 // pred_check_branch
        %177 = sbr.rel (%p175) target = $region24
      $region23: #{cnn2l_forward.5} parent=5 // pred_region
        // Predicated region
        $region25: #{cnn2l_forward.5} parent=23 // pred_check
          %p178 = pneg %p53
        $region26: #{cnn2l_forward.5} parent=23 // pred_check_branch
          %180 = sbr.rel (%p178) target = $region28
        $region27: #{cnn2l_forward.5} parent=23 // pred_region
          %s181 = sand.u32 %s43, 1
          %s182 = sand.u32 %s43, 1
          %s183 = smul.addr %s182, 3136
          %s184 = scalar_lea.vmem [#allocation3], %s183
          %s185 = smul.u32 2, %s12
          %s186 = smul.addr %s185, 4
          %s187 = scalar_lea.vmem %s1, %s186
          // Predicated region
          $region29: #{cnn2l_forward.5} parent=27 // pred_check
            _
          $region30: #{cnn2l_forward.5} parent=27 // pred_check_branch
            %189 = sbr.rel (0) target = $region32
          $region31: #{cnn2l_forward.5} parent=27 // pred_region
            // Predicated region
            $region33: #{cnn2l_forward.5} parent=31 // pred_check
              _
            $region34: #{cnn2l_forward.5} parent=31 // pred_check_branch
              %191 = sbr.rel (0) target = $region36
            $region35: #{cnn2l_forward.5} parent=31 // pred_region
              // Predicated region
              $region48: #{cnn2l_forward.5} parent=35 // pred_check
                _
              $region49: #{cnn2l_forward.5} parent=35 // pred_check_branch
                %989 = sbr.rel (0) target = $region51
              $region50: #{cnn2l_forward.5} parent=35 // pred_region
                loop: start=0, step=1, limit=1
                $region52: #{cnn2l_forward.5} parent=50 // loop_pre_header
                  _
                $region53: #{cnn2l_forward.5} parent=50 // loop_header
                  %s991 = sphi 0, %s995
                  %p992 = scmp.ge.s32.totalorder %s991, 1
                  %s996 = sphi %s187, %s187
                  %s997 = sphi %s184, %s184
                $region54: #{cnn2l_forward.5} parent=50 // loop_header_branch
                  %994 = sbr.rel (%p992) target = $region58
                $region55: #{cnn2l_forward.5} parent=50 // loop_body
                  %v998 = vld [vmem:[%s996] sm:$0xff]
                  %999 = vst [vmem:[%s997] sm:$0xff] %v998
                  %v1000 = vld [vmem:[%s996 + $0x20] sm:$0xff]
                  %1001 = vst [vmem:[%s997 + $0x8] sm:$0xff] %v1000
                  %v1002 = vld [vmem:[%s996 + $0x40] sm:$0xff]
                  %1003 = vst [vmem:[%s997 + $0x10] sm:$0xff] %v1002
                  %v1004 = vld [vmem:[%s996 + $0x60] sm:$0xff]
                  %1005 = vst [vmem:[%s997 + $0x18] sm:$0xff] %v1004
                  %v1006 = vld [vmem:[%s996 + $0x80] sm:$0xff]
                  %1007 = vst [vmem:[%s997 + $0x20] sm:$0xff] %v1006
                  %v1008 = vld [vmem:[%s996 + $0xa0] sm:$0xff]
                  %1009 = vst [vmem:[%s997 + $0x28] sm:$0xff] %v1008
                  %v1010 = vld [vmem:[%s996 + $0xc0] sm:$0xff]
                  %1011 = vst [vmem:[%s997 + $0x30] sm:$0xff] %v1010
                  %v1012 = vld [vmem:[%s996 + $0xe0] sm:$0xff]
                  %1013 = vst [vmem:[%s997 + $0x38] sm:$0xff] %v1012
                  %v1014 = vld [vmem:[%s996 + $0x100] sm:$0xff]
                  %1015 = vst [vmem:[%s997 + $0x40] sm:$0xff] %v1014
                  %v1016 = vld [vmem:[%s996 + $0x120] sm:$0xff]
                  %1017 = vst [vmem:[%s997 + $0x48] sm:$0xff] %v1016
                  %v1018 = vld [vmem:[%s996 + $0x140] sm:$0xff]
                  %1019 = vst [vmem:[%s997 + $0x50] sm:$0xff] %v1018
                  %v1020 = vld [vmem:[%s996 + $0x160] sm:$0xff]
                  %1021 = vst [vmem:[%s997 + $0x58] sm:$0xff] %v1020
                  %v1022 = vld [vmem:[%s996 + $0x180] sm:$0xff]
                  %1023 = vst [vmem:[%s997 + $0x60] sm:$0xff] %v1022
                  %v1024 = vld [vmem:[%s996 + $0x1a0] sm:$0xff]
                  %1025 = vst [vmem:[%s997 + $0x68] sm:$0xff] %v1024
                  %v1026 = vld [vmem:[%s996 + $0x1c0] sm:$0xff]
                  %1027 = vst [vmem:[%s997 + $0x70] sm:$0xff] %v1026
                  %v1028 = vld [vmem:[%s996 + $0x1e0] sm:$0xff]
                  %1029 = vst [vmem:[%s997 + $0x78] sm:$0xff] %v1028
                  %v1030 = vld [vmem:[%s996 + $0x200] sm:$0xff]
                  %1031 = vst [vmem:[%s997 + $0x80] sm:$0xff] %v1030
                  %v1032 = vld [vmem:[%s996 + $0x220] sm:$0xff]
                  %1033 = vst [vmem:[%s997 + $0x88] sm:$0xff] %v1032
                  %v1034 = vld [vmem:[%s996 + $0x240] sm:$0xff]
                  %1035 = vst [vmem:[%s997 + $0x90] sm:$0xff] %v1034
                  %v1036 = vld [vmem:[%s996 + $0x260] sm:$0xff]
                  %1037 = vst [vmem:[%s997 + $0x98] sm:$0xff] %v1036
                  %v1038 = vld [vmem:[%s996 + $0x280] sm:$0xff]
                  %1039 = vst [vmem:[%s997 + $0xa0] sm:$0xff] %v1038
                  %v1040 = vld [vmem:[%s996 + $0x2a0] sm:$0xff]
                  %1041 = vst [vmem:[%s997 + $0xa8] sm:$0xff] %v1040
                  %v1042 = vld [vmem:[%s996 + $0x2c0] sm:$0xff]
                  %1043 = vst [vmem:[%s997 + $0xb0] sm:$0xff] %v1042
                  %v1044 = vld [vmem:[%s996 + $0x2e0] sm:$0xff]
                  %1045 = vst [vmem:[%s997 + $0xb8] sm:$0xff] %v1044
                  %v1046 = vld [vmem:[%s996 + $0x300] sm:$0xff]
                  %1047 = vst [vmem:[%s997 + $0xc0] sm:$0xff] %v1046
                  %v1048 = vld [vmem:[%s996 + $0x320] sm:$0xff]
                  %1049 = vst [vmem:[%s997 + $0xc8] sm:$0xff] %v1048
                  %v1050 = vld [vmem:[%s996 + $0x340] sm:$0xff]
                  %1051 = vst [vmem:[%s997 + $0xd0] sm:$0xff] %v1050
                  %v1052 = vld [vmem:[%s996 + $0x360] sm:$0xff]
                  %1053 = vst [vmem:[%s997 + $0xd8] sm:$0xff] %v1052
                  %v1054 = vld [vmem:[%s996 + $0x380] sm:$0xff]
                  %1055 = vst [vmem:[%s997 + $0xe0] sm:$0xff] %v1054
                  %v1056 = vld [vmem:[%s996 + $0x3a0] sm:$0xff]
                  %1057 = vst [vmem:[%s997 + $0xe8] sm:$0xff] %v1056
                  %v1058 = vld [vmem:[%s996 + $0x3c0] sm:$0xff]
                  %1059 = vst [vmem:[%s997 + $0xf0] sm:$0xff] %v1058
                  %v1060 = vld [vmem:[%s996 + $0x3e0] sm:$0xff]
                  %1061 = vst [vmem:[%s997 + $0xf8] sm:$0xff] %v1060
                  %v1062 = vld [vmem:[%s996 + $0x400] sm:$0xff]
                  %1063 = vst [vmem:[%s997 + $0x100] sm:$0xff] %v1062
                  %v1064 = vld [vmem:[%s996 + $0x420] sm:$0xff]
                  %1065 = vst [vmem:[%s997 + $0x108] sm:$0xff] %v1064
                  %v1066 = vld [vmem:[%s996 + $0x440] sm:$0xff]
                  %1067 = vst [vmem:[%s997 + $0x110] sm:$0xff] %v1066
                  %v1068 = vld [vmem:[%s996 + $0x460] sm:$0xff]
                  %1069 = vst [vmem:[%s997 + $0x118] sm:$0xff] %v1068
                  %v1070 = vld [vmem:[%s996 + $0x480] sm:$0xff]
                  %1071 = vst [vmem:[%s997 + $0x120] sm:$0xff] %v1070
                  %v1072 = vld [vmem:[%s996 + $0x4a0] sm:$0xff]
                  %1073 = vst [vmem:[%s997 + $0x128] sm:$0xff] %v1072
                  %v1074 = vld [vmem:[%s996 + $0x4c0] sm:$0xff]
                  %1075 = vst [vmem:[%s997 + $0x130] sm:$0xff] %v1074
                  %v1076 = vld [vmem:[%s996 + $0x4e0] sm:$0xff]
                  %1077 = vst [vmem:[%s997 + $0x138] sm:$0xff] %v1076
                  %v1078 = vld [vmem:[%s996 + $0x500] sm:$0xff]
                  %1079 = vst [vmem:[%s997 + $0x140] sm:$0xff] %v1078
                  %v1080 = vld [vmem:[%s996 + $0x520] sm:$0xff]
                  %1081 = vst [vmem:[%s997 + $0x148] sm:$0xff] %v1080
                  %v1082 = vld [vmem:[%s996 + $0x540] sm:$0xff]
                  %1083 = vst [vmem:[%s997 + $0x150] sm:$0xff] %v1082
                  %v1084 = vld [vmem:[%s996 + $0x560] sm:$0xff]
                  %1085 = vst [vmem:[%s997 + $0x158] sm:$0xff] %v1084
                  %v1086 = vld [vmem:[%s996 + $0x580] sm:$0xff]
                  %1087 = vst [vmem:[%s997 + $0x160] sm:$0xff] %v1086
                  %v1088 = vld [vmem:[%s996 + $0x5a0] sm:$0xff]
                  %1089 = vst [vmem:[%s997 + $0x168] sm:$0xff] %v1088
                  %v1090 = vld [vmem:[%s996 + $0x5c0] sm:$0xff]
                  %1091 = vst [vmem:[%s997 + $0x170] sm:$0xff] %v1090
                  %v1092 = vld [vmem:[%s996 + $0x5e0] sm:$0xff]
                  %1093 = vst [vmem:[%s997 + $0x178] sm:$0xff] %v1092
                  %v1094 = vld [vmem:[%s996 + $0x600] sm:$0xff]
                  %1095 = vst [vmem:[%s997 + $0x180] sm:$0xff] %v1094
                  %v1096 = vld [vmem:[%s996 + $0x620] sm:$0xff]
                  %1097 = vst [vmem:[%s997 + $0x188] sm:$0xff] %v1096
                  %v1098 = vld [vmem:[%s996 + $0x640] sm:$0xff]
                  %1099 = vst [vmem:[%s997 + $0x190] sm:$0xff] %v1098
                  %v1100 = vld [vmem:[%s996 + $0x660] sm:$0xff]
                  %1101 = vst [vmem:[%s997 + $0x198] sm:$0xff] %v1100
                  %v1102 = vld [vmem:[%s996 + $0x680] sm:$0xff]
                  %1103 = vst [vmem:[%s997 + $0x1a0] sm:$0xff] %v1102
                  %v1104 = vld [vmem:[%s996 + $0x6a0] sm:$0xff]
                  %1105 = vst [vmem:[%s997 + $0x1a8] sm:$0xff] %v1104
                  %v1106 = vld [vmem:[%s996 + $0x6c0] sm:$0xff]
                  %1107 = vst [vmem:[%s997 + $0x1b0] sm:$0xff] %v1106
                  %v1108 = vld [vmem:[%s996 + $0x6e0] sm:$0xff]
                  %1109 = vst [vmem:[%s997 + $0x1b8] sm:$0xff] %v1108
                  %v1110 = vld [vmem:[%s996 + $0x700] sm:$0xff]
                  %1111 = vst [vmem:[%s997 + $0x1c0] sm:$0xff] %v1110
                  %v1112 = vld [vmem:[%s996 + $0x720] sm:$0xff]
                  %1113 = vst [vmem:[%s997 + $0x1c8] sm:$0xff] %v1112
                  %v1114 = vld [vmem:[%s996 + $0x740] sm:$0xff]
                  %1115 = vst [vmem:[%s997 + $0x1d0] sm:$0xff] %v1114
                  %v1116 = vld [vmem:[%s996 + $0x760] sm:$0xff]
                  %1117 = vst [vmem:[%s997 + $0x1d8] sm:$0xff] %v1116
                  %v1118 = vld [vmem:[%s996 + $0x780] sm:$0xff]
                  %1119 = vst [vmem:[%s997 + $0x1e0] sm:$0xff] %v1118
                  %v1120 = vld [vmem:[%s996 + $0x7a0] sm:$0xff]
                  %1121 = vst [vmem:[%s997 + $0x1e8] sm:$0xff] %v1120
                  %v1122 = vld [vmem:[%s996 + $0x7c0] sm:$0xff]
                  %1123 = vst [vmem:[%s997 + $0x1f0] sm:$0xff] %v1122
                  %v1124 = vld [vmem:[%s996 + $0x7e0] sm:$0xff]
                  %1125 = vst [vmem:[%s997 + $0x1f8] sm:$0xff] %v1124
                  %v1126 = vld [vmem:[%s996 + $0x800] sm:$0xff]
                  %1127 = vst [vmem:[%s997 + $0x200] sm:$0xff] %v1126
                  %v1128 = vld [vmem:[%s996 + $0x820] sm:$0xff]
                  %1129 = vst [vmem:[%s997 + $0x208] sm:$0xff] %v1128
                  %v1130 = vld [vmem:[%s996 + $0x840] sm:$0xff]
                  %1131 = vst [vmem:[%s997 + $0x210] sm:$0xff] %v1130
                  %v1132 = vld [vmem:[%s996 + $0x860] sm:$0xff]
                  %1133 = vst [vmem:[%s997 + $0x218] sm:$0xff] %v1132
                  %v1134 = vld [vmem:[%s996 + $0x880] sm:$0xff]
                  %1135 = vst [vmem:[%s997 + $0x220] sm:$0xff] %v1134
                  %v1136 = vld [vmem:[%s996 + $0x8a0] sm:$0xff]
                  %1137 = vst [vmem:[%s997 + $0x228] sm:$0xff] %v1136
                  %v1138 = vld [vmem:[%s996 + $0x8c0] sm:$0xff]
                  %1139 = vst [vmem:[%s997 + $0x230] sm:$0xff] %v1138
                  %v1140 = vld [vmem:[%s996 + $0x8e0] sm:$0xff]
                  %1141 = vst [vmem:[%s997 + $0x238] sm:$0xff] %v1140
                  %v1142 = vld [vmem:[%s996 + $0x900] sm:$0xff]
                  %1143 = vst [vmem:[%s997 + $0x240] sm:$0xff] %v1142
                  %v1144 = vld [vmem:[%s996 + $0x920] sm:$0xff]
                  %1145 = vst [vmem:[%s997 + $0x248] sm:$0xff] %v1144
                  %v1146 = vld [vmem:[%s996 + $0x940] sm:$0xff]
                  %1147 = vst [vmem:[%s997 + $0x250] sm:$0xff] %v1146
                  %v1148 = vld [vmem:[%s996 + $0x960] sm:$0xff]
                  %1149 = vst [vmem:[%s997 + $0x258] sm:$0xff] %v1148
                  %v1150 = vld [vmem:[%s996 + $0x980] sm:$0xff]
                  %1151 = vst [vmem:[%s997 + $0x260] sm:$0xff] %v1150
                  %v1152 = vld [vmem:[%s996 + $0x9a0] sm:$0xff]
                  %1153 = vst [vmem:[%s997 + $0x268] sm:$0xff] %v1152
                  %v1154 = vld [vmem:[%s996 + $0x9c0] sm:$0xff]
                  %1155 = vst [vmem:[%s997 + $0x270] sm:$0xff] %v1154
                  %v1156 = vld [vmem:[%s996 + $0x9e0] sm:$0xff]
                  %1157 = vst [vmem:[%s997 + $0x278] sm:$0xff] %v1156
                  %v1158 = vld [vmem:[%s996 + $0xa00] sm:$0xff]
                  %1159 = vst [vmem:[%s997 + $0x280] sm:$0xff] %v1158
                  %v1160 = vld [vmem:[%s996 + $0xa20] sm:$0xff]
                  %1161 = vst [vmem:[%s997 + $0x288] sm:$0xff] %v1160
                  %v1162 = vld [vmem:[%s996 + $0xa40] sm:$0xff]
                  %1163 = vst [vmem:[%s997 + $0x290] sm:$0xff] %v1162
                  %v1164 = vld [vmem:[%s996 + $0xa60] sm:$0xff]
                  %1165 = vst [vmem:[%s997 + $0x298] sm:$0xff] %v1164
                  %v1166 = vld [vmem:[%s996 + $0xa80] sm:$0xff]
                  %1167 = vst [vmem:[%s997 + $0x2a0] sm:$0xff] %v1166
                  %v1168 = vld [vmem:[%s996 + $0xaa0] sm:$0xff]
                  %1169 = vst [vmem:[%s997 + $0x2a8] sm:$0xff] %v1168
                  %v1170 = vld [vmem:[%s996 + $0xac0] sm:$0xff]
                  %1171 = vst [vmem:[%s997 + $0x2b0] sm:$0xff] %v1170
                  %v1172 = vld [vmem:[%s996 + $0xae0] sm:$0xff]
                  %1173 = vst [vmem:[%s997 + $0x2b8] sm:$0xff] %v1172
                  %v1174 = vld [vmem:[%s996 + $0xb00] sm:$0xff]
                  %1175 = vst [vmem:[%s997 + $0x2c0] sm:$0xff] %v1174
                  %v1176 = vld [vmem:[%s996 + $0xb20] sm:$0xff]
                  %1177 = vst [vmem:[%s997 + $0x2c8] sm:$0xff] %v1176
                  %v1178 = vld [vmem:[%s996 + $0xb40] sm:$0xff]
                  %1179 = vst [vmem:[%s997 + $0x2d0] sm:$0xff] %v1178
                  %v1180 = vld [vmem:[%s996 + $0xb60] sm:$0xff]
                  %1181 = vst [vmem:[%s997 + $0x2d8] sm:$0xff] %v1180
                  %v1182 = vld [vmem:[%s996 + $0xb80] sm:$0xff]
                  %1183 = vst [vmem:[%s997 + $0x2e0] sm:$0xff] %v1182
                  %v1184 = vld [vmem:[%s996 + $0xba0] sm:$0xff]
                  %1185 = vst [vmem:[%s997 + $0x2e8] sm:$0xff] %v1184
                  %v1186 = vld [vmem:[%s996 + $0xbc0] sm:$0xff]
                  %1187 = vst [vmem:[%s997 + $0x2f0] sm:$0xff] %v1186
                  %v1188 = vld [vmem:[%s996 + $0xbe0] sm:$0xff]
                  %1189 = vst [vmem:[%s997 + $0x2f8] sm:$0xff] %v1188
                  %v1190 = vld [vmem:[%s996 + $0xc00] sm:$0xff]
                  %1191 = vst [vmem:[%s997 + $0x300] sm:$0xff] %v1190
                  %v1192 = vld [vmem:[%s996 + $0xc20] sm:$0xff]
                  %1193 = vst [vmem:[%s997 + $0x308] sm:$0xff] %v1192
                  %v1194 = vld [vmem:[%s996 + $0xc40] sm:$0xff]
                  %1195 = vst [vmem:[%s997 + $0x310] sm:$0xff] %v1194
                  %v1196 = vld [vmem:[%s996 + $0xc60] sm:$0xff]
                  %1197 = vst [vmem:[%s997 + $0x318] sm:$0xff] %v1196
                  %v1198 = vld [vmem:[%s996 + $0xc80] sm:$0xff]
                  %1199 = vst [vmem:[%s997 + $0x320] sm:$0xff] %v1198
                  %v1200 = vld [vmem:[%s996 + $0xca0] sm:$0xff]
                  %1201 = vst [vmem:[%s997 + $0x328] sm:$0xff] %v1200
                  %v1202 = vld [vmem:[%s996 + $0xcc0] sm:$0xff]
                  %1203 = vst [vmem:[%s997 + $0x330] sm:$0xff] %v1202
                  %v1204 = vld [vmem:[%s996 + $0xce0] sm:$0xff]
                  %1205 = vst [vmem:[%s997 + $0x338] sm:$0xff] %v1204
                  %v1206 = vld [vmem:[%s996 + $0xd00] sm:$0xff]
                  %1207 = vst [vmem:[%s997 + $0x340] sm:$0xff] %v1206
                  %v1208 = vld [vmem:[%s996 + $0xd20] sm:$0xff]
                  %1209 = vst [vmem:[%s997 + $0x348] sm:$0xff] %v1208
                  %v1210 = vld [vmem:[%s996 + $0xd40] sm:$0xff]
                  %1211 = vst [vmem:[%s997 + $0x350] sm:$0xff] %v1210
                  %v1212 = vld [vmem:[%s996 + $0xd60] sm:$0xff]
                  %1213 = vst [vmem:[%s997 + $0x358] sm:$0xff] %v1212
                  %v1214 = vld [vmem:[%s996 + $0xd80] sm:$0xff]
                  %1215 = vst [vmem:[%s997 + $0x360] sm:$0xff] %v1214
                  %v1216 = vld [vmem:[%s996 + $0xda0] sm:$0xff]
                  %1217 = vst [vmem:[%s997 + $0x368] sm:$0xff] %v1216
                  %v1218 = vld [vmem:[%s996 + $0xdc0] sm:$0xff]
                  %1219 = vst [vmem:[%s997 + $0x370] sm:$0xff] %v1218
                  %v1220 = vld [vmem:[%s996 + $0xde0] sm:$0xff]
                  %1221 = vst [vmem:[%s997 + $0x378] sm:$0xff] %v1220
                  %v1222 = vld [vmem:[%s996 + $0xe00] sm:$0xff]
                  %1223 = vst [vmem:[%s997 + $0x380] sm:$0xff] %v1222
                  %v1224 = vld [vmem:[%s996 + $0xe20] sm:$0xff]
                  %1225 = vst [vmem:[%s997 + $0x388] sm:$0xff] %v1224
                  %v1226 = vld [vmem:[%s996 + $0xe40] sm:$0xff]
                  %1227 = vst [vmem:[%s997 + $0x390] sm:$0xff] %v1226
                  %v1228 = vld [vmem:[%s996 + $0xe60] sm:$0xff]
                  %1229 = vst [vmem:[%s997 + $0x398] sm:$0xff] %v1228
                  %v1230 = vld [vmem:[%s996 + $0xe80] sm:$0xff]
                  %1231 = vst [vmem:[%s997 + $0x3a0] sm:$0xff] %v1230
                  %v1232 = vld [vmem:[%s996 + $0xea0] sm:$0xff]
                  %1233 = vst [vmem:[%s997 + $0x3a8] sm:$0xff] %v1232
                  %v1234 = vld [vmem:[%s996 + $0xec0] sm:$0xff]
                  %1235 = vst [vmem:[%s997 + $0x3b0] sm:$0xff] %v1234
                  %v1236 = vld [vmem:[%s996 + $0xee0] sm:$0xff]
                  %1237 = vst [vmem:[%s997 + $0x3b8] sm:$0xff] %v1236
                  %v1238 = vld [vmem:[%s996 + $0xf00] sm:$0xff]
                  %1239 = vst [vmem:[%s997 + $0x3c0] sm:$0xff] %v1238
                  %v1240 = vld [vmem:[%s996 + $0xf20] sm:$0xff]
                  %1241 = vst [vmem:[%s997 + $0x3c8] sm:$0xff] %v1240
                  %v1242 = vld [vmem:[%s996 + $0xf40] sm:$0xff]
                  %1243 = vst [vmem:[%s997 + $0x3d0] sm:$0xff] %v1242
                  %v1244 = vld [vmem:[%s996 + $0xf60] sm:$0xff]
                  %1245 = vst [vmem:[%s997 + $0x3d8] sm:$0xff] %v1244
                  %v1246 = vld [vmem:[%s996 + $0xf80] sm:$0xff]
                  %1247 = vst [vmem:[%s997 + $0x3e0] sm:$0xff] %v1246
                  %v1248 = vld [vmem:[%s996 + $0xfa0] sm:$0xff]
                  %1249 = vst [vmem:[%s997 + $0x3e8] sm:$0xff] %v1248
                  %v1250 = vld [vmem:[%s996 + $0xfc0] sm:$0xff]
                  %1251 = vst [vmem:[%s997 + $0x3f0] sm:$0xff] %v1250
                  %v1252 = vld [vmem:[%s996 + $0xfe0] sm:$0xff]
                  %1253 = vst [vmem:[%s997 + $0x3f8] sm:$0xff] %v1252
                  %v1254 = vld [vmem:[%s996 + $0x1000] sm:$0xff]
                  %1255 = vst [vmem:[%s997 + $0x400] sm:$0xff] %v1254
                  %v1256 = vld [vmem:[%s996 + $0x1020] sm:$0xff]
                  %1257 = vst [vmem:[%s997 + $0x408] sm:$0xff] %v1256
                  %v1258 = vld [vmem:[%s996 + $0x1040] sm:$0xff]
                  %1259 = vst [vmem:[%s997 + $0x410] sm:$0xff] %v1258
                  %v1260 = vld [vmem:[%s996 + $0x1060] sm:$0xff]
                  %1261 = vst [vmem:[%s997 + $0x418] sm:$0xff] %v1260
                  %v1262 = vld [vmem:[%s996 + $0x1080] sm:$0xff]
                  %1263 = vst [vmem:[%s997 + $0x420] sm:$0xff] %v1262
                  %v1264 = vld [vmem:[%s996 + $0x10a0] sm:$0xff]
                  %1265 = vst [vmem:[%s997 + $0x428] sm:$0xff] %v1264
                  %v1266 = vld [vmem:[%s996 + $0x10c0] sm:$0xff]
                  %1267 = vst [vmem:[%s997 + $0x430] sm:$0xff] %v1266
                  %v1268 = vld [vmem:[%s996 + $0x10e0] sm:$0xff]
                  %1269 = vst [vmem:[%s997 + $0x438] sm:$0xff] %v1268
                  %v1270 = vld [vmem:[%s996 + $0x1100] sm:$0xff]
                  %1271 = vst [vmem:[%s997 + $0x440] sm:$0xff] %v1270
                  %v1272 = vld [vmem:[%s996 + $0x1120] sm:$0xff]
                  %1273 = vst [vmem:[%s997 + $0x448] sm:$0xff] %v1272
                  %v1274 = vld [vmem:[%s996 + $0x1140] sm:$0xff]
                  %1275 = vst [vmem:[%s997 + $0x450] sm:$0xff] %v1274
                  %v1276 = vld [vmem:[%s996 + $0x1160] sm:$0xff]
                  %1277 = vst [vmem:[%s997 + $0x458] sm:$0xff] %v1276
                  %v1278 = vld [vmem:[%s996 + $0x1180] sm:$0xff]
                  %1279 = vst [vmem:[%s997 + $0x460] sm:$0xff] %v1278
                  %v1280 = vld [vmem:[%s996 + $0x11a0] sm:$0xff]
                  %1281 = vst [vmem:[%s997 + $0x468] sm:$0xff] %v1280
                  %v1282 = vld [vmem:[%s996 + $0x11c0] sm:$0xff]
                  %1283 = vst [vmem:[%s997 + $0x470] sm:$0xff] %v1282
                  %v1284 = vld [vmem:[%s996 + $0x11e0] sm:$0xff]
                  %1285 = vst [vmem:[%s997 + $0x478] sm:$0xff] %v1284
                  %v1286 = vld [vmem:[%s996 + $0x1200] sm:$0xff]
                  %1287 = vst [vmem:[%s997 + $0x480] sm:$0xff] %v1286
                  %v1288 = vld [vmem:[%s996 + $0x1220] sm:$0xff]
                  %1289 = vst [vmem:[%s997 + $0x488] sm:$0xff] %v1288
                  %v1290 = vld [vmem:[%s996 + $0x1240] sm:$0xff]
                  %1291 = vst [vmem:[%s997 + $0x490] sm:$0xff] %v1290
                  %v1292 = vld [vmem:[%s996 + $0x1260] sm:$0xff]
                  %1293 = vst [vmem:[%s997 + $0x498] sm:$0xff] %v1292
                  %v1294 = vld [vmem:[%s996 + $0x1280] sm:$0xff]
                  %1295 = vst [vmem:[%s997 + $0x4a0] sm:$0xff] %v1294
                  %v1296 = vld [vmem:[%s996 + $0x12a0] sm:$0xff]
                  %1297 = vst [vmem:[%s997 + $0x4a8] sm:$0xff] %v1296
                  %v1298 = vld [vmem:[%s996 + $0x12c0] sm:$0xff]
                  %1299 = vst [vmem:[%s997 + $0x4b0] sm:$0xff] %v1298
                  %v1300 = vld [vmem:[%s996 + $0x12e0] sm:$0xff]
                  %1301 = vst [vmem:[%s997 + $0x4b8] sm:$0xff] %v1300
                  %v1302 = vld [vmem:[%s996 + $0x1300] sm:$0xff]
                  %1303 = vst [vmem:[%s997 + $0x4c0] sm:$0xff] %v1302
                  %v1304 = vld [vmem:[%s996 + $0x1320] sm:$0xff]
                  %1305 = vst [vmem:[%s997 + $0x4c8] sm:$0xff] %v1304
                  %v1306 = vld [vmem:[%s996 + $0x1340] sm:$0xff]
                  %1307 = vst [vmem:[%s997 + $0x4d0] sm:$0xff] %v1306
                  %v1308 = vld [vmem:[%s996 + $0x1360] sm:$0xff]
                  %1309 = vst [vmem:[%s997 + $0x4d8] sm:$0xff] %v1308
                  %v1310 = vld [vmem:[%s996 + $0x1380] sm:$0xff]
                  %1311 = vst [vmem:[%s997 + $0x4e0] sm:$0xff] %v1310
                  %v1312 = vld [vmem:[%s996 + $0x13a0] sm:$0xff]
                  %1313 = vst [vmem:[%s997 + $0x4e8] sm:$0xff] %v1312
                  %v1314 = vld [vmem:[%s996 + $0x13c0] sm:$0xff]
                  %1315 = vst [vmem:[%s997 + $0x4f0] sm:$0xff] %v1314
                  %v1316 = vld [vmem:[%s996 + $0x13e0] sm:$0xff]
                  %1317 = vst [vmem:[%s997 + $0x4f8] sm:$0xff] %v1316
                  %v1318 = vld [vmem:[%s996 + $0x1400] sm:$0xff]
                  %1319 = vst [vmem:[%s997 + $0x500] sm:$0xff] %v1318
                  %v1320 = vld [vmem:[%s996 + $0x1420] sm:$0xff]
                  %1321 = vst [vmem:[%s997 + $0x508] sm:$0xff] %v1320
                  %v1322 = vld [vmem:[%s996 + $0x1440] sm:$0xff]
                  %1323 = vst [vmem:[%s997 + $0x510] sm:$0xff] %v1322
                  %v1324 = vld [vmem:[%s996 + $0x1460] sm:$0xff]
                  %1325 = vst [vmem:[%s997 + $0x518] sm:$0xff] %v1324
                  %v1326 = vld [vmem:[%s996 + $0x1480] sm:$0xff]
                  %1327 = vst [vmem:[%s997 + $0x520] sm:$0xff] %v1326
                  %v1328 = vld [vmem:[%s996 + $0x14a0] sm:$0xff]
                  %1329 = vst [vmem:[%s997 + $0x528] sm:$0xff] %v1328
                  %v1330 = vld [vmem:[%s996 + $0x14c0] sm:$0xff]
                  %1331 = vst [vmem:[%s997 + $0x530] sm:$0xff] %v1330
                  %v1332 = vld [vmem:[%s996 + $0x14e0] sm:$0xff]
                  %1333 = vst [vmem:[%s997 + $0x538] sm:$0xff] %v1332
                  %v1334 = vld [vmem:[%s996 + $0x1500] sm:$0xff]
                  %1335 = vst [vmem:[%s997 + $0x540] sm:$0xff] %v1334
                  %v1336 = vld [vmem:[%s996 + $0x1520] sm:$0xff]
                  %1337 = vst [vmem:[%s997 + $0x548] sm:$0xff] %v1336
                  %v1338 = vld [vmem:[%s996 + $0x1540] sm:$0xff]
                  %1339 = vst [vmem:[%s997 + $0x550] sm:$0xff] %v1338
                  %v1340 = vld [vmem:[%s996 + $0x1560] sm:$0xff]
                  %1341 = vst [vmem:[%s997 + $0x558] sm:$0xff] %v1340
                  %v1342 = vld [vmem:[%s996 + $0x1580] sm:$0xff]
                  %1343 = vst [vmem:[%s997 + $0x560] sm:$0xff] %v1342
                  %v1344 = vld [vmem:[%s996 + $0x15a0] sm:$0xff]
                  %1345 = vst [vmem:[%s997 + $0x568] sm:$0xff] %v1344
                  %v1346 = vld [vmem:[%s996 + $0x15c0] sm:$0xff]
                  %1347 = vst [vmem:[%s997 + $0x570] sm:$0xff] %v1346
                  %v1348 = vld [vmem:[%s996 + $0x15e0] sm:$0xff]
                  %1349 = vst [vmem:[%s997 + $0x578] sm:$0xff] %v1348
                  %v1350 = vld [vmem:[%s996 + $0x1600] sm:$0xff]
                  %1351 = vst [vmem:[%s997 + $0x580] sm:$0xff] %v1350
                  %v1352 = vld [vmem:[%s996 + $0x1620] sm:$0xff]
                  %1353 = vst [vmem:[%s997 + $0x588] sm:$0xff] %v1352
                  %v1354 = vld [vmem:[%s996 + $0x1640] sm:$0xff]
                  %1355 = vst [vmem:[%s997 + $0x590] sm:$0xff] %v1354
                  %v1356 = vld [vmem:[%s996 + $0x1660] sm:$0xff]
                  %1357 = vst [vmem:[%s997 + $0x598] sm:$0xff] %v1356
                  %v1358 = vld [vmem:[%s996 + $0x1680] sm:$0xff]
                  %1359 = vst [vmem:[%s997 + $0x5a0] sm:$0xff] %v1358
                  %v1360 = vld [vmem:[%s996 + $0x16a0] sm:$0xff]
                  %1361 = vst [vmem:[%s997 + $0x5a8] sm:$0xff] %v1360
                  %v1362 = vld [vmem:[%s996 + $0x16c0] sm:$0xff]
                  %1363 = vst [vmem:[%s997 + $0x5b0] sm:$0xff] %v1362
                  %v1364 = vld [vmem:[%s996 + $0x16e0] sm:$0xff]
                  %1365 = vst [vmem:[%s997 + $0x5b8] sm:$0xff] %v1364
                  %v1366 = vld [vmem:[%s996 + $0x1700] sm:$0xff]
                  %1367 = vst [vmem:[%s997 + $0x5c0] sm:$0xff] %v1366
                  %v1368 = vld [vmem:[%s996 + $0x1720] sm:$0xff]
                  %1369 = vst [vmem:[%s997 + $0x5c8] sm:$0xff] %v1368
                  %v1370 = vld [vmem:[%s996 + $0x1740] sm:$0xff]
                  %1371 = vst [vmem:[%s997 + $0x5d0] sm:$0xff] %v1370
                  %v1372 = vld [vmem:[%s996 + $0x1760] sm:$0xff]
                  %1373 = vst [vmem:[%s997 + $0x5d8] sm:$0xff] %v1372
                  %v1374 = vld [vmem:[%s996 + $0x1780] sm:$0xff]
                  %1375 = vst [vmem:[%s997 + $0x5e0] sm:$0xff] %v1374
                  %v1376 = vld [vmem:[%s996 + $0x17a0] sm:$0xff]
                  %1377 = vst [vmem:[%s997 + $0x5e8] sm:$0xff] %v1376
                  %v1378 = vld [vmem:[%s996 + $0x17c0] sm:$0xff]
                  %1379 = vst [vmem:[%s997 + $0x5f0] sm:$0xff] %v1378
                  %v1380 = vld [vmem:[%s996 + $0x17e0] sm:$0xff]
                  %1381 = vst [vmem:[%s997 + $0x5f8] sm:$0xff] %v1380
                  %v1382 = vld [vmem:[%s996 + $0x1800] sm:$0xff]
                  %1383 = vst [vmem:[%s997 + $0x600] sm:$0xff] %v1382
                  %v1384 = vld [vmem:[%s996 + $0x1820] sm:$0xff]
                  %1385 = vst [vmem:[%s997 + $0x608] sm:$0xff] %v1384
                  %v1386 = vld [vmem:[%s996 + $0x1840] sm:$0xff]
                  %1387 = vst [vmem:[%s997 + $0x610] sm:$0xff] %v1386
                  %v1388 = vld [vmem:[%s996 + $0x1860] sm:$0xff]
                  %1389 = vst [vmem:[%s997 + $0x618] sm:$0xff] %v1388
                  %v1390 = vld [vmem:[%s996 + $0x1880] sm:$0xff]
                  %1391 = vst [vmem:[%s997 + $0x620] sm:$0xff] %v1390
                  %v1392 = vld [vmem:[%s996 + $0x18a0] sm:$0xff]
                  %1393 = vst [vmem:[%s997 + $0x628] sm:$0xff] %v1392
                  %v1394 = vld [vmem:[%s996 + $0x18c0] sm:$0xff]
                  %1395 = vst [vmem:[%s997 + $0x630] sm:$0xff] %v1394
                  %v1396 = vld [vmem:[%s996 + $0x18e0] sm:$0xff]
                  %1397 = vst [vmem:[%s997 + $0x638] sm:$0xff] %v1396
                  %v1398 = vld [vmem:[%s996 + $0x1900] sm:$0xff]
                  %1399 = vst [vmem:[%s997 + $0x640] sm:$0xff] %v1398
                  %v1400 = vld [vmem:[%s996 + $0x1920] sm:$0xff]
                  %1401 = vst [vmem:[%s997 + $0x648] sm:$0xff] %v1400
                  %v1402 = vld [vmem:[%s996 + $0x1940] sm:$0xff]
                  %1403 = vst [vmem:[%s997 + $0x650] sm:$0xff] %v1402
                  %v1404 = vld [vmem:[%s996 + $0x1960] sm:$0xff]
                  %1405 = vst [vmem:[%s997 + $0x658] sm:$0xff] %v1404
                  %v1406 = vld [vmem:[%s996 + $0x1980] sm:$0xff]
                  %1407 = vst [vmem:[%s997 + $0x660] sm:$0xff] %v1406
                  %v1408 = vld [vmem:[%s996 + $0x19a0] sm:$0xff]
                  %1409 = vst [vmem:[%s997 + $0x668] sm:$0xff] %v1408
                  %v1410 = vld [vmem:[%s996 + $0x19c0] sm:$0xff]
                  %1411 = vst [vmem:[%s997 + $0x670] sm:$0xff] %v1410
                  %v1412 = vld [vmem:[%s996 + $0x19e0] sm:$0xff]
                  %1413 = vst [vmem:[%s997 + $0x678] sm:$0xff] %v1412
                  %v1414 = vld [vmem:[%s996 + $0x1a00] sm:$0xff]
                  %1415 = vst [vmem:[%s997 + $0x680] sm:$0xff] %v1414
                  %v1416 = vld [vmem:[%s996 + $0x1a20] sm:$0xff]
                  %1417 = vst [vmem:[%s997 + $0x688] sm:$0xff] %v1416
                  %v1418 = vld [vmem:[%s996 + $0x1a40] sm:$0xff]
                  %1419 = vst [vmem:[%s997 + $0x690] sm:$0xff] %v1418
                  %v1420 = vld [vmem:[%s996 + $0x1a60] sm:$0xff]
                  %1421 = vst [vmem:[%s997 + $0x698] sm:$0xff] %v1420
                  %v1422 = vld [vmem:[%s996 + $0x1a80] sm:$0xff]
                  %1423 = vst [vmem:[%s997 + $0x6a0] sm:$0xff] %v1422
                  %v1424 = vld [vmem:[%s996 + $0x1aa0] sm:$0xff]
                  %1425 = vst [vmem:[%s997 + $0x6a8] sm:$0xff] %v1424
                  %v1426 = vld [vmem:[%s996 + $0x1ac0] sm:$0xff]
                  %1427 = vst [vmem:[%s997 + $0x6b0] sm:$0xff] %v1426
                  %v1428 = vld [vmem:[%s996 + $0x1ae0] sm:$0xff]
                  %1429 = vst [vmem:[%s997 + $0x6b8] sm:$0xff] %v1428
                  %v1430 = vld [vmem:[%s996 + $0x1b00] sm:$0xff]
                  %1431 = vst [vmem:[%s997 + $0x6c0] sm:$0xff] %v1430
                  %v1432 = vld [vmem:[%s996 + $0x1b20] sm:$0xff]
                  %1433 = vst [vmem:[%s997 + $0x6c8] sm:$0xff] %v1432
                  %v1434 = vld [vmem:[%s996 + $0x1b40] sm:$0xff]
                  %1435 = vst [vmem:[%s997 + $0x6d0] sm:$0xff] %v1434
                  %v1436 = vld [vmem:[%s996 + $0x1b60] sm:$0xff]
                  %1437 = vst [vmem:[%s997 + $0x6d8] sm:$0xff] %v1436
                  %v1438 = vld [vmem:[%s996 + $0x1b80] sm:$0xff]
                  %1439 = vst [vmem:[%s997 + $0x6e0] sm:$0xff] %v1438
                  %v1440 = vld [vmem:[%s996 + $0x1ba0] sm:$0xff]
                  %1441 = vst [vmem:[%s997 + $0x6e8] sm:$0xff] %v1440
                  %v1442 = vld [vmem:[%s996 + $0x1bc0] sm:$0xff]
                  %1443 = vst [vmem:[%s997 + $0x6f0] sm:$0xff] %v1442
                  %v1444 = vld [vmem:[%s996 + $0x1be0] sm:$0xff]
                  %1445 = vst [vmem:[%s997 + $0x6f8] sm:$0xff] %v1444
                  %v1446 = vld [vmem:[%s996 + $0x1c00] sm:$0xff]
                  %1447 = vst [vmem:[%s997 + $0x700] sm:$0xff] %v1446
                  %v1448 = vld [vmem:[%s996 + $0x1c20] sm:$0xff]
                  %1449 = vst [vmem:[%s997 + $0x708] sm:$0xff] %v1448
                  %v1450 = vld [vmem:[%s996 + $0x1c40] sm:$0xff]
                  %1451 = vst [vmem:[%s997 + $0x710] sm:$0xff] %v1450
                  %v1452 = vld [vmem:[%s996 + $0x1c60] sm:$0xff]
                  %1453 = vst [vmem:[%s997 + $0x718] sm:$0xff] %v1452
                  %v1454 = vld [vmem:[%s996 + $0x1c80] sm:$0xff]
                  %1455 = vst [vmem:[%s997 + $0x720] sm:$0xff] %v1454
                  %v1456 = vld [vmem:[%s996 + $0x1ca0] sm:$0xff]
                  %1457 = vst [vmem:[%s997 + $0x728] sm:$0xff] %v1456
                  %v1458 = vld [vmem:[%s996 + $0x1cc0] sm:$0xff]
                  %1459 = vst [vmem:[%s997 + $0x730] sm:$0xff] %v1458
                  %v1460 = vld [vmem:[%s996 + $0x1ce0] sm:$0xff]
                  %1461 = vst [vmem:[%s997 + $0x738] sm:$0xff] %v1460
                  %v1462 = vld [vmem:[%s996 + $0x1d00] sm:$0xff]
                  %1463 = vst [vmem:[%s997 + $0x740] sm:$0xff] %v1462
                  %v1464 = vld [vmem:[%s996 + $0x1d20] sm:$0xff]
                  %1465 = vst [vmem:[%s997 + $0x748] sm:$0xff] %v1464
                  %v1466 = vld [vmem:[%s996 + $0x1d40] sm:$0xff]
                  %1467 = vst [vmem:[%s997 + $0x750] sm:$0xff] %v1466
                  %v1468 = vld [vmem:[%s996 + $0x1d60] sm:$0xff]
                  %1469 = vst [vmem:[%s997 + $0x758] sm:$0xff] %v1468
                  %v1470 = vld [vmem:[%s996 + $0x1d80] sm:$0xff]
                  %1471 = vst [vmem:[%s997 + $0x760] sm:$0xff] %v1470
                  %v1472 = vld [vmem:[%s996 + $0x1da0] sm:$0xff]
                  %1473 = vst [vmem:[%s997 + $0x768] sm:$0xff] %v1472
                  %v1474 = vld [vmem:[%s996 + $0x1dc0] sm:$0xff]
                  %1475 = vst [vmem:[%s997 + $0x770] sm:$0xff] %v1474
                  %v1476 = vld [vmem:[%s996 + $0x1de0] sm:$0xff]
                  %1477 = vst [vmem:[%s997 + $0x778] sm:$0xff] %v1476
                  %v1478 = vld [vmem:[%s996 + $0x1e00] sm:$0xff]
                  %1479 = vst [vmem:[%s997 + $0x780] sm:$0xff] %v1478
                  %v1480 = vld [vmem:[%s996 + $0x1e20] sm:$0xff]
                  %1481 = vst [vmem:[%s997 + $0x788] sm:$0xff] %v1480
                  %v1482 = vld [vmem:[%s996 + $0x1e40] sm:$0xff]
                  %1483 = vst [vmem:[%s997 + $0x790] sm:$0xff] %v1482
                  %v1484 = vld [vmem:[%s996 + $0x1e60] sm:$0xff]
                  %1485 = vst [vmem:[%s997 + $0x798] sm:$0xff] %v1484
                  %v1486 = vld [vmem:[%s996 + $0x1e80] sm:$0xff]
                  %1487 = vst [vmem:[%s997 + $0x7a0] sm:$0xff] %v1486
                  %v1488 = vld [vmem:[%s996 + $0x1ea0] sm:$0xff]
                  %1489 = vst [vmem:[%s997 + $0x7a8] sm:$0xff] %v1488
                  %v1490 = vld [vmem:[%s996 + $0x1ec0] sm:$0xff]
                  %1491 = vst [vmem:[%s997 + $0x7b0] sm:$0xff] %v1490
                  %v1492 = vld [vmem:[%s996 + $0x1ee0] sm:$0xff]
                  %1493 = vst [vmem:[%s997 + $0x7b8] sm:$0xff] %v1492
                  %v1494 = vld [vmem:[%s996 + $0x1f00] sm:$0xff]
                  %1495 = vst [vmem:[%s997 + $0x7c0] sm:$0xff] %v1494
                  %v1496 = vld [vmem:[%s996 + $0x1f20] sm:$0xff]
                  %1497 = vst [vmem:[%s997 + $0x7c8] sm:$0xff] %v1496
                  %v1498 = vld [vmem:[%s996 + $0x1f40] sm:$0xff]
                  %1499 = vst [vmem:[%s997 + $0x7d0] sm:$0xff] %v1498
                  %v1500 = vld [vmem:[%s996 + $0x1f60] sm:$0xff]
                  %1501 = vst [vmem:[%s997 + $0x7d8] sm:$0xff] %v1500
                  %v1502 = vld [vmem:[%s996 + $0x1f80] sm:$0xff]
                  %1503 = vst [vmem:[%s997 + $0x7e0] sm:$0xff] %v1502
                  %v1504 = vld [vmem:[%s996 + $0x1fa0] sm:$0xff]
                  %1505 = vst [vmem:[%s997 + $0x7e8] sm:$0xff] %v1504
                  %v1506 = vld [vmem:[%s996 + $0x1fc0] sm:$0xff]
                  %1507 = vst [vmem:[%s997 + $0x7f0] sm:$0xff] %v1506
                  %v1508 = vld [vmem:[%s996 + $0x1fe0] sm:$0xff]
                  %1509 = vst [vmem:[%s997 + $0x7f8] sm:$0xff] %v1508
                  %v1510 = vld [vmem:[%s996 + $0x2000] sm:$0xff]
                  %1511 = vst [vmem:[%s997 + $0x800] sm:$0xff] %v1510
                  %v1512 = vld [vmem:[%s996 + $0x2020] sm:$0xff]
                  %1513 = vst [vmem:[%s997 + $0x808] sm:$0xff] %v1512
                  %v1514 = vld [vmem:[%s996 + $0x2040] sm:$0xff]
                  %1515 = vst [vmem:[%s997 + $0x810] sm:$0xff] %v1514
                  %v1516 = vld [vmem:[%s996 + $0x2060] sm:$0xff]
                  %1517 = vst [vmem:[%s997 + $0x818] sm:$0xff] %v1516
                  %v1518 = vld [vmem:[%s996 + $0x2080] sm:$0xff]
                  %1519 = vst [vmem:[%s997 + $0x820] sm:$0xff] %v1518
                  %v1520 = vld [vmem:[%s996 + $0x20a0] sm:$0xff]
                  %1521 = vst [vmem:[%s997 + $0x828] sm:$0xff] %v1520
                  %v1522 = vld [vmem:[%s996 + $0x20c0] sm:$0xff]
                  %1523 = vst [vmem:[%s997 + $0x830] sm:$0xff] %v1522
                  %v1524 = vld [vmem:[%s996 + $0x20e0] sm:$0xff]
                  %1525 = vst [vmem:[%s997 + $0x838] sm:$0xff] %v1524
                  %v1526 = vld [vmem:[%s996 + $0x2100] sm:$0xff]
                  %1527 = vst [vmem:[%s997 + $0x840] sm:$0xff] %v1526
                  %v1528 = vld [vmem:[%s996 + $0x2120] sm:$0xff]
                  %1529 = vst [vmem:[%s997 + $0x848] sm:$0xff] %v1528
                  %v1530 = vld [vmem:[%s996 + $0x2140] sm:$0xff]
                  %1531 = vst [vmem:[%s997 + $0x850] sm:$0xff] %v1530
                  %v1532 = vld [vmem:[%s996 + $0x2160] sm:$0xff]
                  %1533 = vst [vmem:[%s997 + $0x858] sm:$0xff] %v1532
                  %v1534 = vld [vmem:[%s996 + $0x2180] sm:$0xff]
                  %1535 = vst [vmem:[%s997 + $0x860] sm:$0xff] %v1534
                  %v1536 = vld [vmem:[%s996 + $0x21a0] sm:$0xff]
                  %1537 = vst [vmem:[%s997 + $0x868] sm:$0xff] %v1536
                  %v1538 = vld [vmem:[%s996 + $0x21c0] sm:$0xff]
                  %1539 = vst [vmem:[%s997 + $0x870] sm:$0xff] %v1538
                  %v1540 = vld [vmem:[%s996 + $0x21e0] sm:$0xff]
                  %1541 = vst [vmem:[%s997 + $0x878] sm:$0xff] %v1540
                  %v1542 = vld [vmem:[%s996 + $0x2200] sm:$0xff]
                  %1543 = vst [vmem:[%s997 + $0x880] sm:$0xff] %v1542
                  %v1544 = vld [vmem:[%s996 + $0x2220] sm:$0xff]
                  %1545 = vst [vmem:[%s997 + $0x888] sm:$0xff] %v1544
                  %v1546 = vld [vmem:[%s996 + $0x2240] sm:$0xff]
                  %1547 = vst [vmem:[%s997 + $0x890] sm:$0xff] %v1546
                  %v1548 = vld [vmem:[%s996 + $0x2260] sm:$0xff]
                  %1549 = vst [vmem:[%s997 + $0x898] sm:$0xff] %v1548
                  %v1550 = vld [vmem:[%s996 + $0x2280] sm:$0xff]
                  %1551 = vst [vmem:[%s997 + $0x8a0] sm:$0xff] %v1550
                  %v1552 = vld [vmem:[%s996 + $0x22a0] sm:$0xff]
                  %1553 = vst [vmem:[%s997 + $0x8a8] sm:$0xff] %v1552
                  %v1554 = vld [vmem:[%s996 + $0x22c0] sm:$0xff]
                  %1555 = vst [vmem:[%s997 + $0x8b0] sm:$0xff] %v1554
                  %v1556 = vld [vmem:[%s996 + $0x22e0] sm:$0xff]
                  %1557 = vst [vmem:[%s997 + $0x8b8] sm:$0xff] %v1556
                  %v1558 = vld [vmem:[%s996 + $0x2300] sm:$0xff]
                  %1559 = vst [vmem:[%s997 + $0x8c0] sm:$0xff] %v1558
                  %v1560 = vld [vmem:[%s996 + $0x2320] sm:$0xff]
                  %1561 = vst [vmem:[%s997 + $0x8c8] sm:$0xff] %v1560
                  %v1562 = vld [vmem:[%s996 + $0x2340] sm:$0xff]
                  %1563 = vst [vmem:[%s997 + $0x8d0] sm:$0xff] %v1562
                  %v1564 = vld [vmem:[%s996 + $0x2360] sm:$0xff]
                  %1565 = vst [vmem:[%s997 + $0x8d8] sm:$0xff] %v1564
                  %v1566 = vld [vmem:[%s996 + $0x2380] sm:$0xff]
                  %1567 = vst [vmem:[%s997 + $0x8e0] sm:$0xff] %v1566
                  %v1568 = vld [vmem:[%s996 + $0x23a0] sm:$0xff]
                  %1569 = vst [vmem:[%s997 + $0x8e8] sm:$0xff] %v1568
                  %v1570 = vld [vmem:[%s996 + $0x23c0] sm:$0xff]
                  %1571 = vst [vmem:[%s997 + $0x8f0] sm:$0xff] %v1570
                  %v1572 = vld [vmem:[%s996 + $0x23e0] sm:$0xff]
                  %1573 = vst [vmem:[%s997 + $0x8f8] sm:$0xff] %v1572
                  %v1574 = vld [vmem:[%s996 + $0x2400] sm:$0xff]
                  %1575 = vst [vmem:[%s997 + $0x900] sm:$0xff] %v1574
                  %v1576 = vld [vmem:[%s996 + $0x2420] sm:$0xff]
                  %1577 = vst [vmem:[%s997 + $0x908] sm:$0xff] %v1576
                  %v1578 = vld [vmem:[%s996 + $0x2440] sm:$0xff]
                  %1579 = vst [vmem:[%s997 + $0x910] sm:$0xff] %v1578
                  %v1580 = vld [vmem:[%s996 + $0x2460] sm:$0xff]
                  %1581 = vst [vmem:[%s997 + $0x918] sm:$0xff] %v1580
                  %v1582 = vld [vmem:[%s996 + $0x2480] sm:$0xff]
                  %1583 = vst [vmem:[%s997 + $0x920] sm:$0xff] %v1582
                  %v1584 = vld [vmem:[%s996 + $0x24a0] sm:$0xff]
                  %1585 = vst [vmem:[%s997 + $0x928] sm:$0xff] %v1584
                  %v1586 = vld [vmem:[%s996 + $0x24c0] sm:$0xff]
                  %1587 = vst [vmem:[%s997 + $0x930] sm:$0xff] %v1586
                  %v1588 = vld [vmem:[%s996 + $0x24e0] sm:$0xff]
                  %1589 = vst [vmem:[%s997 + $0x938] sm:$0xff] %v1588
                  %v1590 = vld [vmem:[%s996 + $0x2500] sm:$0xff]
                  %1591 = vst [vmem:[%s997 + $0x940] sm:$0xff] %v1590
                  %v1592 = vld [vmem:[%s996 + $0x2520] sm:$0xff]
                  %1593 = vst [vmem:[%s997 + $0x948] sm:$0xff] %v1592
                  %v1594 = vld [vmem:[%s996 + $0x2540] sm:$0xff]
                  %1595 = vst [vmem:[%s997 + $0x950] sm:$0xff] %v1594
                  %v1596 = vld [vmem:[%s996 + $0x2560] sm:$0xff]
                  %1597 = vst [vmem:[%s997 + $0x958] sm:$0xff] %v1596
                  %v1598 = vld [vmem:[%s996 + $0x2580] sm:$0xff]
                  %1599 = vst [vmem:[%s997 + $0x960] sm:$0xff] %v1598
                  %v1600 = vld [vmem:[%s996 + $0x25a0] sm:$0xff]
                  %1601 = vst [vmem:[%s997 + $0x968] sm:$0xff] %v1600
                  %v1602 = vld [vmem:[%s996 + $0x25c0] sm:$0xff]
                  %1603 = vst [vmem:[%s997 + $0x970] sm:$0xff] %v1602
                  %v1604 = vld [vmem:[%s996 + $0x25e0] sm:$0xff]
                  %1605 = vst [vmem:[%s997 + $0x978] sm:$0xff] %v1604
                  %v1606 = vld [vmem:[%s996 + $0x2600] sm:$0xff]
                  %1607 = vst [vmem:[%s997 + $0x980] sm:$0xff] %v1606
                  %v1608 = vld [vmem:[%s996 + $0x2620] sm:$0xff]
                  %1609 = vst [vmem:[%s997 + $0x988] sm:$0xff] %v1608
                  %v1610 = vld [vmem:[%s996 + $0x2640] sm:$0xff]
                  %1611 = vst [vmem:[%s997 + $0x990] sm:$0xff] %v1610
                  %v1612 = vld [vmem:[%s996 + $0x2660] sm:$0xff]
                  %1613 = vst [vmem:[%s997 + $0x998] sm:$0xff] %v1612
                  %v1614 = vld [vmem:[%s996 + $0x2680] sm:$0xff]
                  %1615 = vst [vmem:[%s997 + $0x9a0] sm:$0xff] %v1614
                  %v1616 = vld [vmem:[%s996 + $0x26a0] sm:$0xff]
                  %1617 = vst [vmem:[%s997 + $0x9a8] sm:$0xff] %v1616
                  %v1618 = vld [vmem:[%s996 + $0x26c0] sm:$0xff]
                  %1619 = vst [vmem:[%s997 + $0x9b0] sm:$0xff] %v1618
                  %v1620 = vld [vmem:[%s996 + $0x26e0] sm:$0xff]
                  %1621 = vst [vmem:[%s997 + $0x9b8] sm:$0xff] %v1620
                  %v1622 = vld [vmem:[%s996 + $0x2700] sm:$0xff]
                  %1623 = vst [vmem:[%s997 + $0x9c0] sm:$0xff] %v1622
                  %v1624 = vld [vmem:[%s996 + $0x2720] sm:$0xff]
                  %1625 = vst [vmem:[%s997 + $0x9c8] sm:$0xff] %v1624
                  %v1626 = vld [vmem:[%s996 + $0x2740] sm:$0xff]
                  %1627 = vst [vmem:[%s997 + $0x9d0] sm:$0xff] %v1626
                  %v1628 = vld [vmem:[%s996 + $0x2760] sm:$0xff]
                  %1629 = vst [vmem:[%s997 + $0x9d8] sm:$0xff] %v1628
                  %v1630 = vld [vmem:[%s996 + $0x2780] sm:$0xff]
                  %1631 = vst [vmem:[%s997 + $0x9e0] sm:$0xff] %v1630
                  %v1632 = vld [vmem:[%s996 + $0x27a0] sm:$0xff]
                  %1633 = vst [vmem:[%s997 + $0x9e8] sm:$0xff] %v1632
                  %v1634 = vld [vmem:[%s996 + $0x27c0] sm:$0xff]
                  %1635 = vst [vmem:[%s997 + $0x9f0] sm:$0xff] %v1634
                  %v1636 = vld [vmem:[%s996 + $0x27e0] sm:$0xff]
                  %1637 = vst [vmem:[%s997 + $0x9f8] sm:$0xff] %v1636
                  %v1638 = vld [vmem:[%s996 + $0x2800] sm:$0xff]
                  %1639 = vst [vmem:[%s997 + $0xa00] sm:$0xff] %v1638
                  %v1640 = vld [vmem:[%s996 + $0x2820] sm:$0xff]
                  %1641 = vst [vmem:[%s997 + $0xa08] sm:$0xff] %v1640
                  %v1642 = vld [vmem:[%s996 + $0x2840] sm:$0xff]
                  %1643 = vst [vmem:[%s997 + $0xa10] sm:$0xff] %v1642
                  %v1644 = vld [vmem:[%s996 + $0x2860] sm:$0xff]
                  %1645 = vst [vmem:[%s997 + $0xa18] sm:$0xff] %v1644
                  %v1646 = vld [vmem:[%s996 + $0x2880] sm:$0xff]
                  %1647 = vst [vmem:[%s997 + $0xa20] sm:$0xff] %v1646
                  %v1648 = vld [vmem:[%s996 + $0x28a0] sm:$0xff]
                  %1649 = vst [vmem:[%s997 + $0xa28] sm:$0xff] %v1648
                  %v1650 = vld [vmem:[%s996 + $0x28c0] sm:$0xff]
                  %1651 = vst [vmem:[%s997 + $0xa30] sm:$0xff] %v1650
                  %v1652 = vld [vmem:[%s996 + $0x28e0] sm:$0xff]
                  %1653 = vst [vmem:[%s997 + $0xa38] sm:$0xff] %v1652
                  %v1654 = vld [vmem:[%s996 + $0x2900] sm:$0xff]
                  %1655 = vst [vmem:[%s997 + $0xa40] sm:$0xff] %v1654
                  %v1656 = vld [vmem:[%s996 + $0x2920] sm:$0xff]
                  %1657 = vst [vmem:[%s997 + $0xa48] sm:$0xff] %v1656
                  %v1658 = vld [vmem:[%s996 + $0x2940] sm:$0xff]
                  %1659 = vst [vmem:[%s997 + $0xa50] sm:$0xff] %v1658
                  %v1660 = vld [vmem:[%s996 + $0x2960] sm:$0xff]
                  %1661 = vst [vmem:[%s997 + $0xa58] sm:$0xff] %v1660
                  %v1662 = vld [vmem:[%s996 + $0x2980] sm:$0xff]
                  %1663 = vst [vmem:[%s997 + $0xa60] sm:$0xff] %v1662
                  %v1664 = vld [vmem:[%s996 + $0x29a0] sm:$0xff]
                  %1665 = vst [vmem:[%s997 + $0xa68] sm:$0xff] %v1664
                  %v1666 = vld [vmem:[%s996 + $0x29c0] sm:$0xff]
                  %1667 = vst [vmem:[%s997 + $0xa70] sm:$0xff] %v1666
                  %v1668 = vld [vmem:[%s996 + $0x29e0] sm:$0xff]
                  %1669 = vst [vmem:[%s997 + $0xa78] sm:$0xff] %v1668
                  %v1670 = vld [vmem:[%s996 + $0x2a00] sm:$0xff]
                  %1671 = vst [vmem:[%s997 + $0xa80] sm:$0xff] %v1670
                  %v1672 = vld [vmem:[%s996 + $0x2a20] sm:$0xff]
                  %1673 = vst [vmem:[%s997 + $0xa88] sm:$0xff] %v1672
                  %v1674 = vld [vmem:[%s996 + $0x2a40] sm:$0xff]
                  %1675 = vst [vmem:[%s997 + $0xa90] sm:$0xff] %v1674
                  %v1676 = vld [vmem:[%s996 + $0x2a60] sm:$0xff]
                  %1677 = vst [vmem:[%s997 + $0xa98] sm:$0xff] %v1676
                  %v1678 = vld [vmem:[%s996 + $0x2a80] sm:$0xff]
                  %1679 = vst [vmem:[%s997 + $0xaa0] sm:$0xff] %v1678
                  %v1680 = vld [vmem:[%s996 + $0x2aa0] sm:$0xff]
                  %1681 = vst [vmem:[%s997 + $0xaa8] sm:$0xff] %v1680
                  %v1682 = vld [vmem:[%s996 + $0x2ac0] sm:$0xff]
                  %1683 = vst [vmem:[%s997 + $0xab0] sm:$0xff] %v1682
                  %v1684 = vld [vmem:[%s996 + $0x2ae0] sm:$0xff]
                  %1685 = vst [vmem:[%s997 + $0xab8] sm:$0xff] %v1684
                  %v1686 = vld [vmem:[%s996 + $0x2b00] sm:$0xff]
                  %1687 = vst [vmem:[%s997 + $0xac0] sm:$0xff] %v1686
                  %v1688 = vld [vmem:[%s996 + $0x2b20] sm:$0xff]
                  %1689 = vst [vmem:[%s997 + $0xac8] sm:$0xff] %v1688
                  %v1690 = vld [vmem:[%s996 + $0x2b40] sm:$0xff]
                  %1691 = vst [vmem:[%s997 + $0xad0] sm:$0xff] %v1690
                  %v1692 = vld [vmem:[%s996 + $0x2b60] sm:$0xff]
                  %1693 = vst [vmem:[%s997 + $0xad8] sm:$0xff] %v1692
                  %v1694 = vld [vmem:[%s996 + $0x2b80] sm:$0xff]
                  %1695 = vst [vmem:[%s997 + $0xae0] sm:$0xff] %v1694
                  %v1696 = vld [vmem:[%s996 + $0x2ba0] sm:$0xff]
                  %1697 = vst [vmem:[%s997 + $0xae8] sm:$0xff] %v1696
                  %v1698 = vld [vmem:[%s996 + $0x2bc0] sm:$0xff]
                  %1699 = vst [vmem:[%s997 + $0xaf0] sm:$0xff] %v1698
                  %v1700 = vld [vmem:[%s996 + $0x2be0] sm:$0xff]
                  %1701 = vst [vmem:[%s997 + $0xaf8] sm:$0xff] %v1700
                  %v1702 = vld [vmem:[%s996 + $0x2c00] sm:$0xff]
                  %1703 = vst [vmem:[%s997 + $0xb00] sm:$0xff] %v1702
                  %v1704 = vld [vmem:[%s996 + $0x2c20] sm:$0xff]
                  %1705 = vst [vmem:[%s997 + $0xb08] sm:$0xff] %v1704
                  %v1706 = vld [vmem:[%s996 + $0x2c40] sm:$0xff]
                  %1707 = vst [vmem:[%s997 + $0xb10] sm:$0xff] %v1706
                  %v1708 = vld [vmem:[%s996 + $0x2c60] sm:$0xff]
                  %1709 = vst [vmem:[%s997 + $0xb18] sm:$0xff] %v1708
                  %v1710 = vld [vmem:[%s996 + $0x2c80] sm:$0xff]
                  %1711 = vst [vmem:[%s997 + $0xb20] sm:$0xff] %v1710
                  %v1712 = vld [vmem:[%s996 + $0x2ca0] sm:$0xff]
                  %1713 = vst [vmem:[%s997 + $0xb28] sm:$0xff] %v1712
                  %v1714 = vld [vmem:[%s996 + $0x2cc0] sm:$0xff]
                  %1715 = vst [vmem:[%s997 + $0xb30] sm:$0xff] %v1714
                  %v1716 = vld [vmem:[%s996 + $0x2ce0] sm:$0xff]
                  %1717 = vst [vmem:[%s997 + $0xb38] sm:$0xff] %v1716
                  %v1718 = vld [vmem:[%s996 + $0x2d00] sm:$0xff]
                  %1719 = vst [vmem:[%s997 + $0xb40] sm:$0xff] %v1718
                  %v1720 = vld [vmem:[%s996 + $0x2d20] sm:$0xff]
                  %1721 = vst [vmem:[%s997 + $0xb48] sm:$0xff] %v1720
                  %v1722 = vld [vmem:[%s996 + $0x2d40] sm:$0xff]
                  %1723 = vst [vmem:[%s997 + $0xb50] sm:$0xff] %v1722
                  %v1724 = vld [vmem:[%s996 + $0x2d60] sm:$0xff]
                  %1725 = vst [vmem:[%s997 + $0xb58] sm:$0xff] %v1724
                  %v1726 = vld [vmem:[%s996 + $0x2d80] sm:$0xff]
                  %1727 = vst [vmem:[%s997 + $0xb60] sm:$0xff] %v1726
                  %v1728 = vld [vmem:[%s996 + $0x2da0] sm:$0xff]
                  %1729 = vst [vmem:[%s997 + $0xb68] sm:$0xff] %v1728
                  %v1730 = vld [vmem:[%s996 + $0x2dc0] sm:$0xff]
                  %1731 = vst [vmem:[%s997 + $0xb70] sm:$0xff] %v1730
                  %v1732 = vld [vmem:[%s996 + $0x2de0] sm:$0xff]
                  %1733 = vst [vmem:[%s997 + $0xb78] sm:$0xff] %v1732
                  %v1734 = vld [vmem:[%s996 + $0x2e00] sm:$0xff]
                  %1735 = vst [vmem:[%s997 + $0xb80] sm:$0xff] %v1734
                  %v1736 = vld [vmem:[%s996 + $0x2e20] sm:$0xff]
                  %1737 = vst [vmem:[%s997 + $0xb88] sm:$0xff] %v1736
                  %v1738 = vld [vmem:[%s996 + $0x2e40] sm:$0xff]
                  %1739 = vst [vmem:[%s997 + $0xb90] sm:$0xff] %v1738
                  %v1740 = vld [vmem:[%s996 + $0x2e60] sm:$0xff]
                  %1741 = vst [vmem:[%s997 + $0xb98] sm:$0xff] %v1740
                  %v1742 = vld [vmem:[%s996 + $0x2e80] sm:$0xff]
                  %1743 = vst [vmem:[%s997 + $0xba0] sm:$0xff] %v1742
                  %v1744 = vld [vmem:[%s996 + $0x2ea0] sm:$0xff]
                  %1745 = vst [vmem:[%s997 + $0xba8] sm:$0xff] %v1744
                  %v1746 = vld [vmem:[%s996 + $0x2ec0] sm:$0xff]
                  %1747 = vst [vmem:[%s997 + $0xbb0] sm:$0xff] %v1746
                  %v1748 = vld [vmem:[%s996 + $0x2ee0] sm:$0xff]
                  %1749 = vst [vmem:[%s997 + $0xbb8] sm:$0xff] %v1748
                  %v1750 = vld [vmem:[%s996 + $0x2f00] sm:$0xff]
                  %1751 = vst [vmem:[%s997 + $0xbc0] sm:$0xff] %v1750
                  %v1752 = vld [vmem:[%s996 + $0x2f20] sm:$0xff]
                  %1753 = vst [vmem:[%s997 + $0xbc8] sm:$0xff] %v1752
                  %v1754 = vld [vmem:[%s996 + $0x2f40] sm:$0xff]
                  %1755 = vst [vmem:[%s997 + $0xbd0] sm:$0xff] %v1754
                  %v1756 = vld [vmem:[%s996 + $0x2f60] sm:$0xff]
                  %1757 = vst [vmem:[%s997 + $0xbd8] sm:$0xff] %v1756
                  %v1758 = vld [vmem:[%s996 + $0x2f80] sm:$0xff]
                  %1759 = vst [vmem:[%s997 + $0xbe0] sm:$0xff] %v1758
                  %v1760 = vld [vmem:[%s996 + $0x2fa0] sm:$0xff]
                  %1761 = vst [vmem:[%s997 + $0xbe8] sm:$0xff] %v1760
                  %v1762 = vld [vmem:[%s996 + $0x2fc0] sm:$0xff]
                  %1763 = vst [vmem:[%s997 + $0xbf0] sm:$0xff] %v1762
                  %v1764 = vld [vmem:[%s996 + $0x2fe0] sm:$0xff]
                  %1765 = vst [vmem:[%s997 + $0xbf8] sm:$0xff] %v1764
                  %v1766 = vld [vmem:[%s996 + $0x3000] sm:$0xff]
                  %1767 = vst [vmem:[%s997 + $0xc00] sm:$0xff] %v1766
                  %v1768 = vld [vmem:[%s996 + $0x3020] sm:$0xff]
                  %1769 = vst [vmem:[%s997 + $0xc08] sm:$0xff] %v1768
                  %v1770 = vld [vmem:[%s996 + $0x3040] sm:$0xff]
                  %1771 = vst [vmem:[%s997 + $0xc10] sm:$0xff] %v1770
                  %v1772 = vld [vmem:[%s996 + $0x3060] sm:$0xff]
                  %1773 = vst [vmem:[%s997 + $0xc18] sm:$0xff] %v1772
                  %v1774 = vld [vmem:[%s996 + $0x3080] sm:$0xff]
                  %1775 = vst [vmem:[%s997 + $0xc20] sm:$0xff] %v1774
                  %v1776 = vld [vmem:[%s996 + $0x30a0] sm:$0xff]
                  %1777 = vst [vmem:[%s997 + $0xc28] sm:$0xff] %v1776
                  %v1778 = vld [vmem:[%s996 + $0x30c0] sm:$0xff]
                  %1779 = vst [vmem:[%s997 + $0xc30] sm:$0xff] %v1778
                  %v1780 = vld [vmem:[%s996 + $0x30e0] sm:$0xff]
                  %1781 = vst [vmem:[%s997 + $0xc38] sm:$0xff] %v1780
                $region56: #{cnn2l_forward.5} parent=50 // loop_footer
                  %s995 = sadd.s32 1, %s991
                $region57: #{cnn2l_forward.5} parent=50 // loop_footer_branch
                  %990 = sbr.rel target = $region53
                $region58: #{cnn2l_forward.5} parent=50 // loop_exit
                  _
              $region51: #{cnn2l_forward.5} parent=35 // pred_fallthru
                _
              // Predicated region
              $region59: #{cnn2l_forward.5} parent=35 // pred_check
                _
              $region60: #{cnn2l_forward.5} parent=35 // pred_check_branch
                %1783 = sbr.rel target = $region62
              $region61: #{cnn2l_forward.5} parent=35 // pred_region
                _
              $region62: #{cnn2l_forward.5} parent=35 // pred_fallthru
                _
            $region36: #{cnn2l_forward.5} parent=31 // pred_fallthru
              _
            // Predicated region
            $region37: #{cnn2l_forward.5} parent=31 // pred_check
              _
            $region38: #{cnn2l_forward.5} parent=31 // pred_check_branch
              %193 = sbr.rel target = $region40
            $region39: #{cnn2l_forward.5} parent=31 // pred_region
              %s195 = ssub.s32 256, 1
              loop: start=0, step=1, limit=1
              $region41: #{cnn2l_forward.5} parent=39 // loop_pre_header
                _
              $region42: #{cnn2l_forward.5} parent=39 // loop_header
                %s197 = sphi 0, %s201
                %p198 = scmp.ge.s32.totalorder %s197, 1
                %s202 = sphi %s187, %s187
                %s203 = sphi %s184, %s184
              $region43: #{cnn2l_forward.5} parent=39 // loop_header_branch
                %200 = sbr.rel (%p198) target = $region47
              $region44: #{cnn2l_forward.5} parent=39 // loop_body
                %v204 = vld [vmem:[%s202] sm:%s195]
                %205 = vst [vmem:[%s203] sm:%s195] %v204
                %v206 = vld [vmem:[%s202 + $0x20] sm:%s195]
                %207 = vst [vmem:[%s203 + $0x8] sm:%s195] %v206
                %v208 = vld [vmem:[%s202 + $0x40] sm:%s195]
                %209 = vst [vmem:[%s203 + $0x10] sm:%s195] %v208
                %v210 = vld [vmem:[%s202 + $0x60] sm:%s195]
                %211 = vst [vmem:[%s203 + $0x18] sm:%s195] %v210
                %v212 = vld [vmem:[%s202 + $0x80] sm:%s195]
                %213 = vst [vmem:[%s203 + $0x20] sm:%s195] %v212
                %v214 = vld [vmem:[%s202 + $0xa0] sm:%s195]
                %215 = vst [vmem:[%s203 + $0x28] sm:%s195] %v214
                %v216 = vld [vmem:[%s202 + $0xc0] sm:%s195]
                %217 = vst [vmem:[%s203 + $0x30] sm:%s195] %v216
                %v218 = vld [vmem:[%s202 + $0xe0] sm:%s195]
                %219 = vst [vmem:[%s203 + $0x38] sm:%s195] %v218
                %v220 = vld [vmem:[%s202 + $0x100] sm:%s195]
                %221 = vst [vmem:[%s203 + $0x40] sm:%s195] %v220
                %v222 = vld [vmem:[%s202 + $0x120] sm:%s195]
                %223 = vst [vmem:[%s203 + $0x48] sm:%s195] %v222
                %v224 = vld [vmem:[%s202 + $0x140] sm:%s195]
                %225 = vst [vmem:[%s203 + $0x50] sm:%s195] %v224
                %v226 = vld [vmem:[%s202 + $0x160] sm:%s195]
                %227 = vst [vmem:[%s203 + $0x58] sm:%s195] %v226
                %v228 = vld [vmem:[%s202 + $0x180] sm:%s195]
                %229 = vst [vmem:[%s203 + $0x60] sm:%s195] %v228
                %v230 = vld [vmem:[%s202 + $0x1a0] sm:%s195]
                %231 = vst [vmem:[%s203 + $0x68] sm:%s195] %v230
                %v232 = vld [vmem:[%s202 + $0x1c0] sm:%s195]
                %233 = vst [vmem:[%s203 + $0x70] sm:%s195] %v232
                %v234 = vld [vmem:[%s202 + $0x1e0] sm:%s195]
                %235 = vst [vmem:[%s203 + $0x78] sm:%s195] %v234
                %v236 = vld [vmem:[%s202 + $0x200] sm:%s195]
                %237 = vst [vmem:[%s203 + $0x80] sm:%s195] %v236
                %v238 = vld [vmem:[%s202 + $0x220] sm:%s195]
                %239 = vst [vmem:[%s203 + $0x88] sm:%s195] %v238
                %v240 = vld [vmem:[%s202 + $0x240] sm:%s195]
                %241 = vst [vmem:[%s203 + $0x90] sm:%s195] %v240
                %v242 = vld [vmem:[%s202 + $0x260] sm:%s195]
                %243 = vst [vmem:[%s203 + $0x98] sm:%s195] %v242
                %v244 = vld [vmem:[%s202 + $0x280] sm:%s195]
                %245 = vst [vmem:[%s203 + $0xa0] sm:%s195] %v244
                %v246 = vld [vmem:[%s202 + $0x2a0] sm:%s195]
                %247 = vst [vmem:[%s203 + $0xa8] sm:%s195] %v246
                %v248 = vld [vmem:[%s202 + $0x2c0] sm:%s195]
                %249 = vst [vmem:[%s203 + $0xb0] sm:%s195] %v248
                %v250 = vld [vmem:[%s202 + $0x2e0] sm:%s195]
                %251 = vst [vmem:[%s203 + $0xb8] sm:%s195] %v250
                %v252 = vld [vmem:[%s202 + $0x300] sm:%s195]
                %253 = vst [vmem:[%s203 + $0xc0] sm:%s195] %v252
                %v254 = vld [vmem:[%s202 + $0x320] sm:%s195]
                %255 = vst [vmem:[%s203 + $0xc8] sm:%s195] %v254
                %v256 = vld [vmem:[%s202 + $0x340] sm:%s195]
                %257 = vst [vmem:[%s203 + $0xd0] sm:%s195] %v256
                %v258 = vld [vmem:[%s202 + $0x360] sm:%s195]
                %259 = vst [vmem:[%s203 + $0xd8] sm:%s195] %v258
                %v260 = vld [vmem:[%s202 + $0x380] sm:%s195]
                %261 = vst [vmem:[%s203 + $0xe0] sm:%s195] %v260
                %v262 = vld [vmem:[%s202 + $0x3a0] sm:%s195]
                %263 = vst [vmem:[%s203 + $0xe8] sm:%s195] %v262
                %v264 = vld [vmem:[%s202 + $0x3c0] sm:%s195]
                %265 = vst [vmem:[%s203 + $0xf0] sm:%s195] %v264
                %v266 = vld [vmem:[%s202 + $0x3e0] sm:%s195]
                %267 = vst [vmem:[%s203 + $0xf8] sm:%s195] %v266
                %v268 = vld [vmem:[%s202 + $0x400] sm:%s195]
                %269 = vst [vmem:[%s203 + $0x100] sm:%s195] %v268
                %v270 = vld [vmem:[%s202 + $0x420] sm:%s195]
                %271 = vst [vmem:[%s203 + $0x108] sm:%s195] %v270
                %v272 = vld [vmem:[%s202 + $0x440] sm:%s195]
                %273 = vst [vmem:[%s203 + $0x110] sm:%s195] %v272
                %v274 = vld [vmem:[%s202 + $0x460] sm:%s195]
                %275 = vst [vmem:[%s203 + $0x118] sm:%s195] %v274
                %v276 = vld [vmem:[%s202 + $0x480] sm:%s195]
                %277 = vst [vmem:[%s203 + $0x120] sm:%s195] %v276
                %v278 = vld [vmem:[%s202 + $0x4a0] sm:%s195]
                %279 = vst [vmem:[%s203 + $0x128] sm:%s195] %v278
                %v280 = vld [vmem:[%s202 + $0x4c0] sm:%s195]
                %281 = vst [vmem:[%s203 + $0x130] sm:%s195] %v280
                %v282 = vld [vmem:[%s202 + $0x4e0] sm:%s195]
                %283 = vst [vmem:[%s203 + $0x138] sm:%s195] %v282
                %v284 = vld [vmem:[%s202 + $0x500] sm:%s195]
                %285 = vst [vmem:[%s203 + $0x140] sm:%s195] %v284
                %v286 = vld [vmem:[%s202 + $0x520] sm:%s195]
                %287 = vst [vmem:[%s203 + $0x148] sm:%s195] %v286
                %v288 = vld [vmem:[%s202 + $0x540] sm:%s195]
                %289 = vst [vmem:[%s203 + $0x150] sm:%s195] %v288
                %v290 = vld [vmem:[%s202 + $0x560] sm:%s195]
                %291 = vst [vmem:[%s203 + $0x158] sm:%s195] %v290
                %v292 = vld [vmem:[%s202 + $0x580] sm:%s195]
                %293 = vst [vmem:[%s203 + $0x160] sm:%s195] %v292
                %v294 = vld [vmem:[%s202 + $0x5a0] sm:%s195]
                %295 = vst [vmem:[%s203 + $0x168] sm:%s195] %v294
                %v296 = vld [vmem:[%s202 + $0x5c0] sm:%s195]
                %297 = vst [vmem:[%s203 + $0x170] sm:%s195] %v296
                %v298 = vld [vmem:[%s202 + $0x5e0] sm:%s195]
                %299 = vst [vmem:[%s203 + $0x178] sm:%s195] %v298
                %v300 = vld [vmem:[%s202 + $0x600] sm:%s195]
                %301 = vst [vmem:[%s203 + $0x180] sm:%s195] %v300
                %v302 = vld [vmem:[%s202 + $0x620] sm:%s195]
                %303 = vst [vmem:[%s203 + $0x188] sm:%s195] %v302
                %v304 = vld [vmem:[%s202 + $0x640] sm:%s195]
                %305 = vst [vmem:[%s203 + $0x190] sm:%s195] %v304
                %v306 = vld [vmem:[%s202 + $0x660] sm:%s195]
                %307 = vst [vmem:[%s203 + $0x198] sm:%s195] %v306
                %v308 = vld [vmem:[%s202 + $0x680] sm:%s195]
                %309 = vst [vmem:[%s203 + $0x1a0] sm:%s195] %v308
                %v310 = vld [vmem:[%s202 + $0x6a0] sm:%s195]
                %311 = vst [vmem:[%s203 + $0x1a8] sm:%s195] %v310
                %v312 = vld [vmem:[%s202 + $0x6c0] sm:%s195]
                %313 = vst [vmem:[%s203 + $0x1b0] sm:%s195] %v312
                %v314 = vld [vmem:[%s202 + $0x6e0] sm:%s195]
                %315 = vst [vmem:[%s203 + $0x1b8] sm:%s195] %v314
                %v316 = vld [vmem:[%s202 + $0x700] sm:%s195]
                %317 = vst [vmem:[%s203 + $0x1c0] sm:%s195] %v316
                %v318 = vld [vmem:[%s202 + $0x720] sm:%s195]
                %319 = vst [vmem:[%s203 + $0x1c8] sm:%s195] %v318
                %v320 = vld [vmem:[%s202 + $0x740] sm:%s195]
                %321 = vst [vmem:[%s203 + $0x1d0] sm:%s195] %v320
                %v322 = vld [vmem:[%s202 + $0x760] sm:%s195]
                %323 = vst [vmem:[%s203 + $0x1d8] sm:%s195] %v322
                %v324 = vld [vmem:[%s202 + $0x780] sm:%s195]
                %325 = vst [vmem:[%s203 + $0x1e0] sm:%s195] %v324
                %v326 = vld [vmem:[%s202 + $0x7a0] sm:%s195]
                %327 = vst [vmem:[%s203 + $0x1e8] sm:%s195] %v326
                %v328 = vld [vmem:[%s202 + $0x7c0] sm:%s195]
                %329 = vst [vmem:[%s203 + $0x1f0] sm:%s195] %v328
                %v330 = vld [vmem:[%s202 + $0x7e0] sm:%s195]
                %331 = vst [vmem:[%s203 + $0x1f8] sm:%s195] %v330
                %v332 = vld [vmem:[%s202 + $0x800] sm:%s195]
                %333 = vst [vmem:[%s203 + $0x200] sm:%s195] %v332
                %v334 = vld [vmem:[%s202 + $0x820] sm:%s195]
                %335 = vst [vmem:[%s203 + $0x208] sm:%s195] %v334
                %v336 = vld [vmem:[%s202 + $0x840] sm:%s195]
                %337 = vst [vmem:[%s203 + $0x210] sm:%s195] %v336
                %v338 = vld [vmem:[%s202 + $0x860] sm:%s195]
                %339 = vst [vmem:[%s203 + $0x218] sm:%s195] %v338
                %v340 = vld [vmem:[%s202 + $0x880] sm:%s195]
                %341 = vst [vmem:[%s203 + $0x220] sm:%s195] %v340
                %v342 = vld [vmem:[%s202 + $0x8a0] sm:%s195]
                %343 = vst [vmem:[%s203 + $0x228] sm:%s195] %v342
                %v344 = vld [vmem:[%s202 + $0x8c0] sm:%s195]
                %345 = vst [vmem:[%s203 + $0x230] sm:%s195] %v344
                %v346 = vld [vmem:[%s202 + $0x8e0] sm:%s195]
                %347 = vst [vmem:[%s203 + $0x238] sm:%s195] %v346
                %v348 = vld [vmem:[%s202 + $0x900] sm:%s195]
                %349 = vst [vmem:[%s203 + $0x240] sm:%s195] %v348
                %v350 = vld [vmem:[%s202 + $0x920] sm:%s195]
                %351 = vst [vmem:[%s203 + $0x248] sm:%s195] %v350
                %v352 = vld [vmem:[%s202 + $0x940] sm:%s195]
                %353 = vst [vmem:[%s203 + $0x250] sm:%s195] %v352
                %v354 = vld [vmem:[%s202 + $0x960] sm:%s195]
                %355 = vst [vmem:[%s203 + $0x258] sm:%s195] %v354
                %v356 = vld [vmem:[%s202 + $0x980] sm:%s195]
                %357 = vst [vmem:[%s203 + $0x260] sm:%s195] %v356
                %v358 = vld [vmem:[%s202 + $0x9a0] sm:%s195]
                %359 = vst [vmem:[%s203 + $0x268] sm:%s195] %v358
                %v360 = vld [vmem:[%s202 + $0x9c0] sm:%s195]
                %361 = vst [vmem:[%s203 + $0x270] sm:%s195] %v360
                %v362 = vld [vmem:[%s202 + $0x9e0] sm:%s195]
                %363 = vst [vmem:[%s203 + $0x278] sm:%s195] %v362
                %v364 = vld [vmem:[%s202 + $0xa00] sm:%s195]
                %365 = vst [vmem:[%s203 + $0x280] sm:%s195] %v364
                %v366 = vld [vmem:[%s202 + $0xa20] sm:%s195]
                %367 = vst [vmem:[%s203 + $0x288] sm:%s195] %v366
                %v368 = vld [vmem:[%s202 + $0xa40] sm:%s195]
                %369 = vst [vmem:[%s203 + $0x290] sm:%s195] %v368
                %v370 = vld [vmem:[%s202 + $0xa60] sm:%s195]
                %371 = vst [vmem:[%s203 + $0x298] sm:%s195] %v370
                %v372 = vld [vmem:[%s202 + $0xa80] sm:%s195]
                %373 = vst [vmem:[%s203 + $0x2a0] sm:%s195] %v372
                %v374 = vld [vmem:[%s202 + $0xaa0] sm:%s195]
                %375 = vst [vmem:[%s203 + $0x2a8] sm:%s195] %v374
                %v376 = vld [vmem:[%s202 + $0xac0] sm:%s195]
                %377 = vst [vmem:[%s203 + $0x2b0] sm:%s195] %v376
                %v378 = vld [vmem:[%s202 + $0xae0] sm:%s195]
                %379 = vst [vmem:[%s203 + $0x2b8] sm:%s195] %v378
                %v380 = vld [vmem:[%s202 + $0xb00] sm:%s195]
                %381 = vst [vmem:[%s203 + $0x2c0] sm:%s195] %v380
                %v382 = vld [vmem:[%s202 + $0xb20] sm:%s195]
                %383 = vst [vmem:[%s203 + $0x2c8] sm:%s195] %v382
                %v384 = vld [vmem:[%s202 + $0xb40] sm:%s195]
                %385 = vst [vmem:[%s203 + $0x2d0] sm:%s195] %v384
                %v386 = vld [vmem:[%s202 + $0xb60] sm:%s195]
                %387 = vst [vmem:[%s203 + $0x2d8] sm:%s195] %v386
                %v388 = vld [vmem:[%s202 + $0xb80] sm:%s195]
                %389 = vst [vmem:[%s203 + $0x2e0] sm:%s195] %v388
                %v390 = vld [vmem:[%s202 + $0xba0] sm:%s195]
                %391 = vst [vmem:[%s203 + $0x2e8] sm:%s195] %v390
                %v392 = vld [vmem:[%s202 + $0xbc0] sm:%s195]
                %393 = vst [vmem:[%s203 + $0x2f0] sm:%s195] %v392
                %v394 = vld [vmem:[%s202 + $0xbe0] sm:%s195]
                %395 = vst [vmem:[%s203 + $0x2f8] sm:%s195] %v394
                %v396 = vld [vmem:[%s202 + $0xc00] sm:%s195]
                %397 = vst [vmem:[%s203 + $0x300] sm:%s195] %v396
                %v398 = vld [vmem:[%s202 + $0xc20] sm:%s195]
                %399 = vst [vmem:[%s203 + $0x308] sm:%s195] %v398
                %v400 = vld [vmem:[%s202 + $0xc40] sm:%s195]
                %401 = vst [vmem:[%s203 + $0x310] sm:%s195] %v400
                %v402 = vld [vmem:[%s202 + $0xc60] sm:%s195]
                %403 = vst [vmem:[%s203 + $0x318] sm:%s195] %v402
                %v404 = vld [vmem:[%s202 + $0xc80] sm:%s195]
                %405 = vst [vmem:[%s203 + $0x320] sm:%s195] %v404
                %v406 = vld [vmem:[%s202 + $0xca0] sm:%s195]
                %407 = vst [vmem:[%s203 + $0x328] sm:%s195] %v406
                %v408 = vld [vmem:[%s202 + $0xcc0] sm:%s195]
                %409 = vst [vmem:[%s203 + $0x330] sm:%s195] %v408
                %v410 = vld [vmem:[%s202 + $0xce0] sm:%s195]
                %411 = vst [vmem:[%s203 + $0x338] sm:%s195] %v410
                %v412 = vld [vmem:[%s202 + $0xd00] sm:%s195]
                %413 = vst [vmem:[%s203 + $0x340] sm:%s195] %v412
                %v414 = vld [vmem:[%s202 + $0xd20] sm:%s195]
                %415 = vst [vmem:[%s203 + $0x348] sm:%s195] %v414
                %v416 = vld [vmem:[%s202 + $0xd40] sm:%s195]
                %417 = vst [vmem:[%s203 + $0x350] sm:%s195] %v416
                %v418 = vld [vmem:[%s202 + $0xd60] sm:%s195]
                %419 = vst [vmem:[%s203 + $0x358] sm:%s195] %v418
                %v420 = vld [vmem:[%s202 + $0xd80] sm:%s195]
                %421 = vst [vmem:[%s203 + $0x360] sm:%s195] %v420
                %v422 = vld [vmem:[%s202 + $0xda0] sm:%s195]
                %423 = vst [vmem:[%s203 + $0x368] sm:%s195] %v422
                %v424 = vld [vmem:[%s202 + $0xdc0] sm:%s195]
                %425 = vst [vmem:[%s203 + $0x370] sm:%s195] %v424
                %v426 = vld [vmem:[%s202 + $0xde0] sm:%s195]
                %427 = vst [vmem:[%s203 + $0x378] sm:%s195] %v426
                %v428 = vld [vmem:[%s202 + $0xe00] sm:%s195]
                %429 = vst [vmem:[%s203 + $0x380] sm:%s195] %v428
                %v430 = vld [vmem:[%s202 + $0xe20] sm:%s195]
                %431 = vst [vmem:[%s203 + $0x388] sm:%s195] %v430
                %v432 = vld [vmem:[%s202 + $0xe40] sm:%s195]
                %433 = vst [vmem:[%s203 + $0x390] sm:%s195] %v432
                %v434 = vld [vmem:[%s202 + $0xe60] sm:%s195]
                %435 = vst [vmem:[%s203 + $0x398] sm:%s195] %v434
                %v436 = vld [vmem:[%s202 + $0xe80] sm:%s195]
                %437 = vst [vmem:[%s203 + $0x3a0] sm:%s195] %v436
                %v438 = vld [vmem:[%s202 + $0xea0] sm:%s195]
                %439 = vst [vmem:[%s203 + $0x3a8] sm:%s195] %v438
                %v440 = vld [vmem:[%s202 + $0xec0] sm:%s195]
                %441 = vst [vmem:[%s203 + $0x3b0] sm:%s195] %v440
                %v442 = vld [vmem:[%s202 + $0xee0] sm:%s195]
                %443 = vst [vmem:[%s203 + $0x3b8] sm:%s195] %v442
                %v444 = vld [vmem:[%s202 + $0xf00] sm:%s195]
                %445 = vst [vmem:[%s203 + $0x3c0] sm:%s195] %v444
                %v446 = vld [vmem:[%s202 + $0xf20] sm:%s195]
                %447 = vst [vmem:[%s203 + $0x3c8] sm:%s195] %v446
                %v448 = vld [vmem:[%s202 + $0xf40] sm:%s195]
                %449 = vst [vmem:[%s203 + $0x3d0] sm:%s195] %v448
                %v450 = vld [vmem:[%s202 + $0xf60] sm:%s195]
                %451 = vst [vmem:[%s203 + $0x3d8] sm:%s195] %v450
                %v452 = vld [vmem:[%s202 + $0xf80] sm:%s195]
                %453 = vst [vmem:[%s203 + $0x3e0] sm:%s195] %v452
                %v454 = vld [vmem:[%s202 + $0xfa0] sm:%s195]
                %455 = vst [vmem:[%s203 + $0x3e8] sm:%s195] %v454
                %v456 = vld [vmem:[%s202 + $0xfc0] sm:%s195]
                %457 = vst [vmem:[%s203 + $0x3f0] sm:%s195] %v456
                %v458 = vld [vmem:[%s202 + $0xfe0] sm:%s195]
                %459 = vst [vmem:[%s203 + $0x3f8] sm:%s195] %v458
                %v460 = vld [vmem:[%s202 + $0x1000] sm:%s195]
                %461 = vst [vmem:[%s203 + $0x400] sm:%s195] %v460
                %v462 = vld [vmem:[%s202 + $0x1020] sm:%s195]
                %463 = vst [vmem:[%s203 + $0x408] sm:%s195] %v462
                %v464 = vld [vmem:[%s202 + $0x1040] sm:%s195]
                %465 = vst [vmem:[%s203 + $0x410] sm:%s195] %v464
                %v466 = vld [vmem:[%s202 + $0x1060] sm:%s195]
                %467 = vst [vmem:[%s203 + $0x418] sm:%s195] %v466
                %v468 = vld [vmem:[%s202 + $0x1080] sm:%s195]
                %469 = vst [vmem:[%s203 + $0x420] sm:%s195] %v468
                %v470 = vld [vmem:[%s202 + $0x10a0] sm:%s195]
                %471 = vst [vmem:[%s203 + $0x428] sm:%s195] %v470
                %v472 = vld [vmem:[%s202 + $0x10c0] sm:%s195]
                %473 = vst [vmem:[%s203 + $0x430] sm:%s195] %v472
                %v474 = vld [vmem:[%s202 + $0x10e0] sm:%s195]
                %475 = vst [vmem:[%s203 + $0x438] sm:%s195] %v474
                %v476 = vld [vmem:[%s202 + $0x1100] sm:%s195]
                %477 = vst [vmem:[%s203 + $0x440] sm:%s195] %v476
                %v478 = vld [vmem:[%s202 + $0x1120] sm:%s195]
                %479 = vst [vmem:[%s203 + $0x448] sm:%s195] %v478
                %v480 = vld [vmem:[%s202 + $0x1140] sm:%s195]
                %481 = vst [vmem:[%s203 + $0x450] sm:%s195] %v480
                %v482 = vld [vmem:[%s202 + $0x1160] sm:%s195]
                %483 = vst [vmem:[%s203 + $0x458] sm:%s195] %v482
                %v484 = vld [vmem:[%s202 + $0x1180] sm:%s195]
                %485 = vst [vmem:[%s203 + $0x460] sm:%s195] %v484
                %v486 = vld [vmem:[%s202 + $0x11a0] sm:%s195]
                %487 = vst [vmem:[%s203 + $0x468] sm:%s195] %v486
                %v488 = vld [vmem:[%s202 + $0x11c0] sm:%s195]
                %489 = vst [vmem:[%s203 + $0x470] sm:%s195] %v488
                %v490 = vld [vmem:[%s202 + $0x11e0] sm:%s195]
                %491 = vst [vmem:[%s203 + $0x478] sm:%s195] %v490
                %v492 = vld [vmem:[%s202 + $0x1200] sm:%s195]
                %493 = vst [vmem:[%s203 + $0x480] sm:%s195] %v492
                %v494 = vld [vmem:[%s202 + $0x1220] sm:%s195]
                %495 = vst [vmem:[%s203 + $0x488] sm:%s195] %v494
                %v496 = vld [vmem:[%s202 + $0x1240] sm:%s195]
                %497 = vst [vmem:[%s203 + $0x490] sm:%s195] %v496
                %v498 = vld [vmem:[%s202 + $0x1260] sm:%s195]
                %499 = vst [vmem:[%s203 + $0x498] sm:%s195] %v498
                %v500 = vld [vmem:[%s202 + $0x1280] sm:%s195]
                %501 = vst [vmem:[%s203 + $0x4a0] sm:%s195] %v500
                %v502 = vld [vmem:[%s202 + $0x12a0] sm:%s195]
                %503 = vst [vmem:[%s203 + $0x4a8] sm:%s195] %v502
                %v504 = vld [vmem:[%s202 + $0x12c0] sm:%s195]
                %505 = vst [vmem:[%s203 + $0x4b0] sm:%s195] %v504
                %v506 = vld [vmem:[%s202 + $0x12e0] sm:%s195]
                %507 = vst [vmem:[%s203 + $0x4b8] sm:%s195] %v506
                %v508 = vld [vmem:[%s202 + $0x1300] sm:%s195]
                %509 = vst [vmem:[%s203 + $0x4c0] sm:%s195] %v508
                %v510 = vld [vmem:[%s202 + $0x1320] sm:%s195]
                %511 = vst [vmem:[%s203 + $0x4c8] sm:%s195] %v510
                %v512 = vld [vmem:[%s202 + $0x1340] sm:%s195]
                %513 = vst [vmem:[%s203 + $0x4d0] sm:%s195] %v512
                %v514 = vld [vmem:[%s202 + $0x1360] sm:%s195]
                %515 = vst [vmem:[%s203 + $0x4d8] sm:%s195] %v514
                %v516 = vld [vmem:[%s202 + $0x1380] sm:%s195]
                %517 = vst [vmem:[%s203 + $0x4e0] sm:%s195] %v516
                %v518 = vld [vmem:[%s202 + $0x13a0] sm:%s195]
                %519 = vst [vmem:[%s203 + $0x4e8] sm:%s195] %v518
                %v520 = vld [vmem:[%s202 + $0x13c0] sm:%s195]
                %521 = vst [vmem:[%s203 + $0x4f0] sm:%s195] %v520
                %v522 = vld [vmem:[%s202 + $0x13e0] sm:%s195]
                %523 = vst [vmem:[%s203 + $0x4f8] sm:%s195] %v522
                %v524 = vld [vmem:[%s202 + $0x1400] sm:%s195]
                %525 = vst [vmem:[%s203 + $0x500] sm:%s195] %v524
                %v526 = vld [vmem:[%s202 + $0x1420] sm:%s195]
                %527 = vst [vmem:[%s203 + $0x508] sm:%s195] %v526
                %v528 = vld [vmem:[%s202 + $0x1440] sm:%s195]
                %529 = vst [vmem:[%s203 + $0x510] sm:%s195] %v528
                %v530 = vld [vmem:[%s202 + $0x1460] sm:%s195]
                %531 = vst [vmem:[%s203 + $0x518] sm:%s195] %v530
                %v532 = vld [vmem:[%s202 + $0x1480] sm:%s195]
                %533 = vst [vmem:[%s203 + $0x520] sm:%s195] %v532
                %v534 = vld [vmem:[%s202 + $0x14a0] sm:%s195]
                %535 = vst [vmem:[%s203 + $0x528] sm:%s195] %v534
                %v536 = vld [vmem:[%s202 + $0x14c0] sm:%s195]
                %537 = vst [vmem:[%s203 + $0x530] sm:%s195] %v536
                %v538 = vld [vmem:[%s202 + $0x14e0] sm:%s195]
                %539 = vst [vmem:[%s203 + $0x538] sm:%s195] %v538
                %v540 = vld [vmem:[%s202 + $0x1500] sm:%s195]
                %541 = vst [vmem:[%s203 + $0x540] sm:%s195] %v540
                %v542 = vld [vmem:[%s202 + $0x1520] sm:%s195]
                %543 = vst [vmem:[%s203 + $0x548] sm:%s195] %v542
                %v544 = vld [vmem:[%s202 + $0x1540] sm:%s195]
                %545 = vst [vmem:[%s203 + $0x550] sm:%s195] %v544
                %v546 = vld [vmem:[%s202 + $0x1560] sm:%s195]
                %547 = vst [vmem:[%s203 + $0x558] sm:%s195] %v546
                %v548 = vld [vmem:[%s202 + $0x1580] sm:%s195]
                %549 = vst [vmem:[%s203 + $0x560] sm:%s195] %v548
                %v550 = vld [vmem:[%s202 + $0x15a0] sm:%s195]
                %551 = vst [vmem:[%s203 + $0x568] sm:%s195] %v550
                %v552 = vld [vmem:[%s202 + $0x15c0] sm:%s195]
                %553 = vst [vmem:[%s203 + $0x570] sm:%s195] %v552
                %v554 = vld [vmem:[%s202 + $0x15e0] sm:%s195]
                %555 = vst [vmem:[%s203 + $0x578] sm:%s195] %v554
                %v556 = vld [vmem:[%s202 + $0x1600] sm:%s195]
                %557 = vst [vmem:[%s203 + $0x580] sm:%s195] %v556
                %v558 = vld [vmem:[%s202 + $0x1620] sm:%s195]
                %559 = vst [vmem:[%s203 + $0x588] sm:%s195] %v558
                %v560 = vld [vmem:[%s202 + $0x1640] sm:%s195]
                %561 = vst [vmem:[%s203 + $0x590] sm:%s195] %v560
                %v562 = vld [vmem:[%s202 + $0x1660] sm:%s195]
                %563 = vst [vmem:[%s203 + $0x598] sm:%s195] %v562
                %v564 = vld [vmem:[%s202 + $0x1680] sm:%s195]
                %565 = vst [vmem:[%s203 + $0x5a0] sm:%s195] %v564
                %v566 = vld [vmem:[%s202 + $0x16a0] sm:%s195]
                %567 = vst [vmem:[%s203 + $0x5a8] sm:%s195] %v566
                %v568 = vld [vmem:[%s202 + $0x16c0] sm:%s195]
                %569 = vst [vmem:[%s203 + $0x5b0] sm:%s195] %v568
                %v570 = vld [vmem:[%s202 + $0x16e0] sm:%s195]
                %571 = vst [vmem:[%s203 + $0x5b8] sm:%s195] %v570
                %v572 = vld [vmem:[%s202 + $0x1700] sm:%s195]
                %573 = vst [vmem:[%s203 + $0x5c0] sm:%s195] %v572
                %v574 = vld [vmem:[%s202 + $0x1720] sm:%s195]
                %575 = vst [vmem:[%s203 + $0x5c8] sm:%s195] %v574
                %v576 = vld [vmem:[%s202 + $0x1740] sm:%s195]
                %577 = vst [vmem:[%s203 + $0x5d0] sm:%s195] %v576
                %v578 = vld [vmem:[%s202 + $0x1760] sm:%s195]
                %579 = vst [vmem:[%s203 + $0x5d8] sm:%s195] %v578
                %v580 = vld [vmem:[%s202 + $0x1780] sm:%s195]
                %581 = vst [vmem:[%s203 + $0x5e0] sm:%s195] %v580
                %v582 = vld [vmem:[%s202 + $0x17a0] sm:%s195]
                %583 = vst [vmem:[%s203 + $0x5e8] sm:%s195] %v582
                %v584 = vld [vmem:[%s202 + $0x17c0] sm:%s195]
                %585 = vst [vmem:[%s203 + $0x5f0] sm:%s195] %v584
                %v586 = vld [vmem:[%s202 + $0x17e0] sm:%s195]
                %587 = vst [vmem:[%s203 + $0x5f8] sm:%s195] %v586
                %v588 = vld [vmem:[%s202 + $0x1800] sm:%s195]
                %589 = vst [vmem:[%s203 + $0x600] sm:%s195] %v588
                %v590 = vld [vmem:[%s202 + $0x1820] sm:%s195]
                %591 = vst [vmem:[%s203 + $0x608] sm:%s195] %v590
                %v592 = vld [vmem:[%s202 + $0x1840] sm:%s195]
                %593 = vst [vmem:[%s203 + $0x610] sm:%s195] %v592
                %v594 = vld [vmem:[%s202 + $0x1860] sm:%s195]
                %595 = vst [vmem:[%s203 + $0x618] sm:%s195] %v594
                %v596 = vld [vmem:[%s202 + $0x1880] sm:%s195]
                %597 = vst [vmem:[%s203 + $0x620] sm:%s195] %v596
                %v598 = vld [vmem:[%s202 + $0x18a0] sm:%s195]
                %599 = vst [vmem:[%s203 + $0x628] sm:%s195] %v598
                %v600 = vld [vmem:[%s202 + $0x18c0] sm:%s195]
                %601 = vst [vmem:[%s203 + $0x630] sm:%s195] %v600
                %v602 = vld [vmem:[%s202 + $0x18e0] sm:%s195]
                %603 = vst [vmem:[%s203 + $0x638] sm:%s195] %v602
                %v604 = vld [vmem:[%s202 + $0x1900] sm:%s195]
                %605 = vst [vmem:[%s203 + $0x640] sm:%s195] %v604
                %v606 = vld [vmem:[%s202 + $0x1920] sm:%s195]
                %607 = vst [vmem:[%s203 + $0x648] sm:%s195] %v606
                %v608 = vld [vmem:[%s202 + $0x1940] sm:%s195]
                %609 = vst [vmem:[%s203 + $0x650] sm:%s195] %v608
                %v610 = vld [vmem:[%s202 + $0x1960] sm:%s195]
                %611 = vst [vmem:[%s203 + $0x658] sm:%s195] %v610
                %v612 = vld [vmem:[%s202 + $0x1980] sm:%s195]
                %613 = vst [vmem:[%s203 + $0x660] sm:%s195] %v612
                %v614 = vld [vmem:[%s202 + $0x19a0] sm:%s195]
                %615 = vst [vmem:[%s203 + $0x668] sm:%s195] %v614
                %v616 = vld [vmem:[%s202 + $0x19c0] sm:%s195]
                %617 = vst [vmem:[%s203 + $0x670] sm:%s195] %v616
                %v618 = vld [vmem:[%s202 + $0x19e0] sm:%s195]
                %619 = vst [vmem:[%s203 + $0x678] sm:%s195] %v618
                %v620 = vld [vmem:[%s202 + $0x1a00] sm:%s195]
                %621 = vst [vmem:[%s203 + $0x680] sm:%s195] %v620
                %v622 = vld [vmem:[%s202 + $0x1a20] sm:%s195]
                %623 = vst [vmem:[%s203 + $0x688] sm:%s195] %v622
                %v624 = vld [vmem:[%s202 + $0x1a40] sm:%s195]
                %625 = vst [vmem:[%s203 + $0x690] sm:%s195] %v624
                %v626 = vld [vmem:[%s202 + $0x1a60] sm:%s195]
                %627 = vst [vmem:[%s203 + $0x698] sm:%s195] %v626
                %v628 = vld [vmem:[%s202 + $0x1a80] sm:%s195]
                %629 = vst [vmem:[%s203 + $0x6a0] sm:%s195] %v628
                %v630 = vld [vmem:[%s202 + $0x1aa0] sm:%s195]
                %631 = vst [vmem:[%s203 + $0x6a8] sm:%s195] %v630
                %v632 = vld [vmem:[%s202 + $0x1ac0] sm:%s195]
                %633 = vst [vmem:[%s203 + $0x6b0] sm:%s195] %v632
                %v634 = vld [vmem:[%s202 + $0x1ae0] sm:%s195]
                %635 = vst [vmem:[%s203 + $0x6b8] sm:%s195] %v634
                %v636 = vld [vmem:[%s202 + $0x1b00] sm:%s195]
                %637 = vst [vmem:[%s203 + $0x6c0] sm:%s195] %v636
                %v638 = vld [vmem:[%s202 + $0x1b20] sm:%s195]
                %639 = vst [vmem:[%s203 + $0x6c8] sm:%s195] %v638
                %v640 = vld [vmem:[%s202 + $0x1b40] sm:%s195]
                %641 = vst [vmem:[%s203 + $0x6d0] sm:%s195] %v640
                %v642 = vld [vmem:[%s202 + $0x1b60] sm:%s195]
                %643 = vst [vmem:[%s203 + $0x6d8] sm:%s195] %v642
                %v644 = vld [vmem:[%s202 + $0x1b80] sm:%s195]
                %645 = vst [vmem:[%s203 + $0x6e0] sm:%s195] %v644
                %v646 = vld [vmem:[%s202 + $0x1ba0] sm:%s195]
                %647 = vst [vmem:[%s203 + $0x6e8] sm:%s195] %v646
                %v648 = vld [vmem:[%s202 + $0x1bc0] sm:%s195]
                %649 = vst [vmem:[%s203 + $0x6f0] sm:%s195] %v648
                %v650 = vld [vmem:[%s202 + $0x1be0] sm:%s195]
                %651 = vst [vmem:[%s203 + $0x6f8] sm:%s195] %v650
                %v652 = vld [vmem:[%s202 + $0x1c00] sm:%s195]
                %653 = vst [vmem:[%s203 + $0x700] sm:%s195] %v652
                %v654 = vld [vmem:[%s202 + $0x1c20] sm:%s195]
                %655 = vst [vmem:[%s203 + $0x708] sm:%s195] %v654
                %v656 = vld [vmem:[%s202 + $0x1c40] sm:%s195]
                %657 = vst [vmem:[%s203 + $0x710] sm:%s195] %v656
                %v658 = vld [vmem:[%s202 + $0x1c60] sm:%s195]
                %659 = vst [vmem:[%s203 + $0x718] sm:%s195] %v658
                %v660 = vld [vmem:[%s202 + $0x1c80] sm:%s195]
                %661 = vst [vmem:[%s203 + $0x720] sm:%s195] %v660
                %v662 = vld [vmem:[%s202 + $0x1ca0] sm:%s195]
                %663 = vst [vmem:[%s203 + $0x728] sm:%s195] %v662
                %v664 = vld [vmem:[%s202 + $0x1cc0] sm:%s195]
                %665 = vst [vmem:[%s203 + $0x730] sm:%s195] %v664
                %v666 = vld [vmem:[%s202 + $0x1ce0] sm:%s195]
                %667 = vst [vmem:[%s203 + $0x738] sm:%s195] %v666
                %v668 = vld [vmem:[%s202 + $0x1d00] sm:%s195]
                %669 = vst [vmem:[%s203 + $0x740] sm:%s195] %v668
                %v670 = vld [vmem:[%s202 + $0x1d20] sm:%s195]
                %671 = vst [vmem:[%s203 + $0x748] sm:%s195] %v670
                %v672 = vld [vmem:[%s202 + $0x1d40] sm:%s195]
                %673 = vst [vmem:[%s203 + $0x750] sm:%s195] %v672
                %v674 = vld [vmem:[%s202 + $0x1d60] sm:%s195]
                %675 = vst [vmem:[%s203 + $0x758] sm:%s195] %v674
                %v676 = vld [vmem:[%s202 + $0x1d80] sm:%s195]
                %677 = vst [vmem:[%s203 + $0x760] sm:%s195] %v676
                %v678 = vld [vmem:[%s202 + $0x1da0] sm:%s195]
                %679 = vst [vmem:[%s203 + $0x768] sm:%s195] %v678
                %v680 = vld [vmem:[%s202 + $0x1dc0] sm:%s195]
                %681 = vst [vmem:[%s203 + $0x770] sm:%s195] %v680
                %v682 = vld [vmem:[%s202 + $0x1de0] sm:%s195]
                %683 = vst [vmem:[%s203 + $0x778] sm:%s195] %v682
                %v684 = vld [vmem:[%s202 + $0x1e00] sm:%s195]
                %685 = vst [vmem:[%s203 + $0x780] sm:%s195] %v684
                %v686 = vld [vmem:[%s202 + $0x1e20] sm:%s195]
                %687 = vst [vmem:[%s203 + $0x788] sm:%s195] %v686
                %v688 = vld [vmem:[%s202 + $0x1e40] sm:%s195]
                %689 = vst [vmem:[%s203 + $0x790] sm:%s195] %v688
                %v690 = vld [vmem:[%s202 + $0x1e60] sm:%s195]
                %691 = vst [vmem:[%s203 + $0x798] sm:%s195] %v690
                %v692 = vld [vmem:[%s202 + $0x1e80] sm:%s195]
                %693 = vst [vmem:[%s203 + $0x7a0] sm:%s195] %v692
                %v694 = vld [vmem:[%s202 + $0x1ea0] sm:%s195]
                %695 = vst [vmem:[%s203 + $0x7a8] sm:%s195] %v694
                %v696 = vld [vmem:[%s202 + $0x1ec0] sm:%s195]
                %697 = vst [vmem:[%s203 + $0x7b0] sm:%s195] %v696
                %v698 = vld [vmem:[%s202 + $0x1ee0] sm:%s195]
                %699 = vst [vmem:[%s203 + $0x7b8] sm:%s195] %v698
                %v700 = vld [vmem:[%s202 + $0x1f00] sm:%s195]
                %701 = vst [vmem:[%s203 + $0x7c0] sm:%s195] %v700
                %v702 = vld [vmem:[%s202 + $0x1f20] sm:%s195]
                %703 = vst [vmem:[%s203 + $0x7c8] sm:%s195] %v702
                %v704 = vld [vmem:[%s202 + $0x1f40] sm:%s195]
                %705 = vst [vmem:[%s203 + $0x7d0] sm:%s195] %v704
                %v706 = vld [vmem:[%s202 + $0x1f60] sm:%s195]
                %707 = vst [vmem:[%s203 + $0x7d8] sm:%s195] %v706
                %v708 = vld [vmem:[%s202 + $0x1f80] sm:%s195]
                %709 = vst [vmem:[%s203 + $0x7e0] sm:%s195] %v708
                %v710 = vld [vmem:[%s202 + $0x1fa0] sm:%s195]
                %711 = vst [vmem:[%s203 + $0x7e8] sm:%s195] %v710
                %v712 = vld [vmem:[%s202 + $0x1fc0] sm:%s195]
                %713 = vst [vmem:[%s203 + $0x7f0] sm:%s195] %v712
                %v714 = vld [vmem:[%s202 + $0x1fe0] sm:%s195]
                %715 = vst [vmem:[%s203 + $0x7f8] sm:%s195] %v714
                %v716 = vld [vmem:[%s202 + $0x2000] sm:%s195]
                %717 = vst [vmem:[%s203 + $0x800] sm:%s195] %v716
                %v718 = vld [vmem:[%s202 + $0x2020] sm:%s195]
                %719 = vst [vmem:[%s203 + $0x808] sm:%s195] %v718
                %v720 = vld [vmem:[%s202 + $0x2040] sm:%s195]
                %721 = vst [vmem:[%s203 + $0x810] sm:%s195] %v720
                %v722 = vld [vmem:[%s202 + $0x2060] sm:%s195]
                %723 = vst [vmem:[%s203 + $0x818] sm:%s195] %v722
                %v724 = vld [vmem:[%s202 + $0x2080] sm:%s195]
                %725 = vst [vmem:[%s203 + $0x820] sm:%s195] %v724
                %v726 = vld [vmem:[%s202 + $0x20a0] sm:%s195]
                %727 = vst [vmem:[%s203 + $0x828] sm:%s195] %v726
                %v728 = vld [vmem:[%s202 + $0x20c0] sm:%s195]
                %729 = vst [vmem:[%s203 + $0x830] sm:%s195] %v728
                %v730 = vld [vmem:[%s202 + $0x20e0] sm:%s195]
                %731 = vst [vmem:[%s203 + $0x838] sm:%s195] %v730
                %v732 = vld [vmem:[%s202 + $0x2100] sm:%s195]
                %733 = vst [vmem:[%s203 + $0x840] sm:%s195] %v732
                %v734 = vld [vmem:[%s202 + $0x2120] sm:%s195]
                %735 = vst [vmem:[%s203 + $0x848] sm:%s195] %v734
                %v736 = vld [vmem:[%s202 + $0x2140] sm:%s195]
                %737 = vst [vmem:[%s203 + $0x850] sm:%s195] %v736
                %v738 = vld [vmem:[%s202 + $0x2160] sm:%s195]
                %739 = vst [vmem:[%s203 + $0x858] sm:%s195] %v738
                %v740 = vld [vmem:[%s202 + $0x2180] sm:%s195]
                %741 = vst [vmem:[%s203 + $0x860] sm:%s195] %v740
                %v742 = vld [vmem:[%s202 + $0x21a0] sm:%s195]
                %743 = vst [vmem:[%s203 + $0x868] sm:%s195] %v742
                %v744 = vld [vmem:[%s202 + $0x21c0] sm:%s195]
                %745 = vst [vmem:[%s203 + $0x870] sm:%s195] %v744
                %v746 = vld [vmem:[%s202 + $0x21e0] sm:%s195]
                %747 = vst [vmem:[%s203 + $0x878] sm:%s195] %v746
                %v748 = vld [vmem:[%s202 + $0x2200] sm:%s195]
                %749 = vst [vmem:[%s203 + $0x880] sm:%s195] %v748
                %v750 = vld [vmem:[%s202 + $0x2220] sm:%s195]
                %751 = vst [vmem:[%s203 + $0x888] sm:%s195] %v750
                %v752 = vld [vmem:[%s202 + $0x2240] sm:%s195]
                %753 = vst [vmem:[%s203 + $0x890] sm:%s195] %v752
                %v754 = vld [vmem:[%s202 + $0x2260] sm:%s195]
                %755 = vst [vmem:[%s203 + $0x898] sm:%s195] %v754
                %v756 = vld [vmem:[%s202 + $0x2280] sm:%s195]
                %757 = vst [vmem:[%s203 + $0x8a0] sm:%s195] %v756
                %v758 = vld [vmem:[%s202 + $0x22a0] sm:%s195]
                %759 = vst [vmem:[%s203 + $0x8a8] sm:%s195] %v758
                %v760 = vld [vmem:[%s202 + $0x22c0] sm:%s195]
                %761 = vst [vmem:[%s203 + $0x8b0] sm:%s195] %v760
                %v762 = vld [vmem:[%s202 + $0x22e0] sm:%s195]
                %763 = vst [vmem:[%s203 + $0x8b8] sm:%s195] %v762
                %v764 = vld [vmem:[%s202 + $0x2300] sm:%s195]
                %765 = vst [vmem:[%s203 + $0x8c0] sm:%s195] %v764
                %v766 = vld [vmem:[%s202 + $0x2320] sm:%s195]
                %767 = vst [vmem:[%s203 + $0x8c8] sm:%s195] %v766
                %v768 = vld [vmem:[%s202 + $0x2340] sm:%s195]
                %769 = vst [vmem:[%s203 + $0x8d0] sm:%s195] %v768
                %v770 = vld [vmem:[%s202 + $0x2360] sm:%s195]
                %771 = vst [vmem:[%s203 + $0x8d8] sm:%s195] %v770
                %v772 = vld [vmem:[%s202 + $0x2380] sm:%s195]
                %773 = vst [vmem:[%s203 + $0x8e0] sm:%s195] %v772
                %v774 = vld [vmem:[%s202 + $0x23a0] sm:%s195]
                %775 = vst [vmem:[%s203 + $0x8e8] sm:%s195] %v774
                %v776 = vld [vmem:[%s202 + $0x23c0] sm:%s195]
                %777 = vst [vmem:[%s203 + $0x8f0] sm:%s195] %v776
                %v778 = vld [vmem:[%s202 + $0x23e0] sm:%s195]
                %779 = vst [vmem:[%s203 + $0x8f8] sm:%s195] %v778
                %v780 = vld [vmem:[%s202 + $0x2400] sm:%s195]
                %781 = vst [vmem:[%s203 + $0x900] sm:%s195] %v780
                %v782 = vld [vmem:[%s202 + $0x2420] sm:%s195]
                %783 = vst [vmem:[%s203 + $0x908] sm:%s195] %v782
                %v784 = vld [vmem:[%s202 + $0x2440] sm:%s195]
                %785 = vst [vmem:[%s203 + $0x910] sm:%s195] %v784
                %v786 = vld [vmem:[%s202 + $0x2460] sm:%s195]
                %787 = vst [vmem:[%s203 + $0x918] sm:%s195] %v786
                %v788 = vld [vmem:[%s202 + $0x2480] sm:%s195]
                %789 = vst [vmem:[%s203 + $0x920] sm:%s195] %v788
                %v790 = vld [vmem:[%s202 + $0x24a0] sm:%s195]
                %791 = vst [vmem:[%s203 + $0x928] sm:%s195] %v790
                %v792 = vld [vmem:[%s202 + $0x24c0] sm:%s195]
                %793 = vst [vmem:[%s203 + $0x930] sm:%s195] %v792
                %v794 = vld [vmem:[%s202 + $0x24e0] sm:%s195]
                %795 = vst [vmem:[%s203 + $0x938] sm:%s195] %v794
                %v796 = vld [vmem:[%s202 + $0x2500] sm:%s195]
                %797 = vst [vmem:[%s203 + $0x940] sm:%s195] %v796
                %v798 = vld [vmem:[%s202 + $0x2520] sm:%s195]
                %799 = vst [vmem:[%s203 + $0x948] sm:%s195] %v798
                %v800 = vld [vmem:[%s202 + $0x2540] sm:%s195]
                %801 = vst [vmem:[%s203 + $0x950] sm:%s195] %v800
                %v802 = vld [vmem:[%s202 + $0x2560] sm:%s195]
                %803 = vst [vmem:[%s203 + $0x958] sm:%s195] %v802
                %v804 = vld [vmem:[%s202 + $0x2580] sm:%s195]
                %805 = vst [vmem:[%s203 + $0x960] sm:%s195] %v804
                %v806 = vld [vmem:[%s202 + $0x25a0] sm:%s195]
                %807 = vst [vmem:[%s203 + $0x968] sm:%s195] %v806
                %v808 = vld [vmem:[%s202 + $0x25c0] sm:%s195]
                %809 = vst [vmem:[%s203 + $0x970] sm:%s195] %v808
                %v810 = vld [vmem:[%s202 + $0x25e0] sm:%s195]
                %811 = vst [vmem:[%s203 + $0x978] sm:%s195] %v810
                %v812 = vld [vmem:[%s202 + $0x2600] sm:%s195]
                %813 = vst [vmem:[%s203 + $0x980] sm:%s195] %v812
                %v814 = vld [vmem:[%s202 + $0x2620] sm:%s195]
                %815 = vst [vmem:[%s203 + $0x988] sm:%s195] %v814
                %v816 = vld [vmem:[%s202 + $0x2640] sm:%s195]
                %817 = vst [vmem:[%s203 + $0x990] sm:%s195] %v816
                %v818 = vld [vmem:[%s202 + $0x2660] sm:%s195]
                %819 = vst [vmem:[%s203 + $0x998] sm:%s195] %v818
                %v820 = vld [vmem:[%s202 + $0x2680] sm:%s195]
                %821 = vst [vmem:[%s203 + $0x9a0] sm:%s195] %v820
                %v822 = vld [vmem:[%s202 + $0x26a0] sm:%s195]
                %823 = vst [vmem:[%s203 + $0x9a8] sm:%s195] %v822
                %v824 = vld [vmem:[%s202 + $0x26c0] sm:%s195]
                %825 = vst [vmem:[%s203 + $0x9b0] sm:%s195] %v824
                %v826 = vld [vmem:[%s202 + $0x26e0] sm:%s195]
                %827 = vst [vmem:[%s203 + $0x9b8] sm:%s195] %v826
                %v828 = vld [vmem:[%s202 + $0x2700] sm:%s195]
                %829 = vst [vmem:[%s203 + $0x9c0] sm:%s195] %v828
                %v830 = vld [vmem:[%s202 + $0x2720] sm:%s195]
                %831 = vst [vmem:[%s203 + $0x9c8] sm:%s195] %v830
                %v832 = vld [vmem:[%s202 + $0x2740] sm:%s195]
                %833 = vst [vmem:[%s203 + $0x9d0] sm:%s195] %v832
                %v834 = vld [vmem:[%s202 + $0x2760] sm:%s195]
                %835 = vst [vmem:[%s203 + $0x9d8] sm:%s195] %v834
                %v836 = vld [vmem:[%s202 + $0x2780] sm:%s195]
                %837 = vst [vmem:[%s203 + $0x9e0] sm:%s195] %v836
                %v838 = vld [vmem:[%s202 + $0x27a0] sm:%s195]
                %839 = vst [vmem:[%s203 + $0x9e8] sm:%s195] %v838
                %v840 = vld [vmem:[%s202 + $0x27c0] sm:%s195]
                %841 = vst [vmem:[%s203 + $0x9f0] sm:%s195] %v840
                %v842 = vld [vmem:[%s202 + $0x27e0] sm:%s195]
                %843 = vst [vmem:[%s203 + $0x9f8] sm:%s195] %v842
                %v844 = vld [vmem:[%s202 + $0x2800] sm:%s195]
                %845 = vst [vmem:[%s203 + $0xa00] sm:%s195] %v844
                %v846 = vld [vmem:[%s202 + $0x2820] sm:%s195]
                %847 = vst [vmem:[%s203 + $0xa08] sm:%s195] %v846
                %v848 = vld [vmem:[%s202 + $0x2840] sm:%s195]
                %849 = vst [vmem:[%s203 + $0xa10] sm:%s195] %v848
                %v850 = vld [vmem:[%s202 + $0x2860] sm:%s195]
                %851 = vst [vmem:[%s203 + $0xa18] sm:%s195] %v850
                %v852 = vld [vmem:[%s202 + $0x2880] sm:%s195]
                %853 = vst [vmem:[%s203 + $0xa20] sm:%s195] %v852
                %v854 = vld [vmem:[%s202 + $0x28a0] sm:%s195]
                %855 = vst [vmem:[%s203 + $0xa28] sm:%s195] %v854
                %v856 = vld [vmem:[%s202 + $0x28c0] sm:%s195]
                %857 = vst [vmem:[%s203 + $0xa30] sm:%s195] %v856
                %v858 = vld [vmem:[%s202 + $0x28e0] sm:%s195]
                %859 = vst [vmem:[%s203 + $0xa38] sm:%s195] %v858
                %v860 = vld [vmem:[%s202 + $0x2900] sm:%s195]
                %861 = vst [vmem:[%s203 + $0xa40] sm:%s195] %v860
                %v862 = vld [vmem:[%s202 + $0x2920] sm:%s195]
                %863 = vst [vmem:[%s203 + $0xa48] sm:%s195] %v862
                %v864 = vld [vmem:[%s202 + $0x2940] sm:%s195]
                %865 = vst [vmem:[%s203 + $0xa50] sm:%s195] %v864
                %v866 = vld [vmem:[%s202 + $0x2960] sm:%s195]
                %867 = vst [vmem:[%s203 + $0xa58] sm:%s195] %v866
                %v868 = vld [vmem:[%s202 + $0x2980] sm:%s195]
                %869 = vst [vmem:[%s203 + $0xa60] sm:%s195] %v868
                %v870 = vld [vmem:[%s202 + $0x29a0] sm:%s195]
                %871 = vst [vmem:[%s203 + $0xa68] sm:%s195] %v870
                %v872 = vld [vmem:[%s202 + $0x29c0] sm:%s195]
                %873 = vst [vmem:[%s203 + $0xa70] sm:%s195] %v872
                %v874 = vld [vmem:[%s202 + $0x29e0] sm:%s195]
                %875 = vst [vmem:[%s203 + $0xa78] sm:%s195] %v874
                %v876 = vld [vmem:[%s202 + $0x2a00] sm:%s195]
                %877 = vst [vmem:[%s203 + $0xa80] sm:%s195] %v876
                %v878 = vld [vmem:[%s202 + $0x2a20] sm:%s195]
                %879 = vst [vmem:[%s203 + $0xa88] sm:%s195] %v878
                %v880 = vld [vmem:[%s202 + $0x2a40] sm:%s195]
                %881 = vst [vmem:[%s203 + $0xa90] sm:%s195] %v880
                %v882 = vld [vmem:[%s202 + $0x2a60] sm:%s195]
                %883 = vst [vmem:[%s203 + $0xa98] sm:%s195] %v882
                %v884 = vld [vmem:[%s202 + $0x2a80] sm:%s195]
                %885 = vst [vmem:[%s203 + $0xaa0] sm:%s195] %v884
                %v886 = vld [vmem:[%s202 + $0x2aa0] sm:%s195]
                %887 = vst [vmem:[%s203 + $0xaa8] sm:%s195] %v886
                %v888 = vld [vmem:[%s202 + $0x2ac0] sm:%s195]
                %889 = vst [vmem:[%s203 + $0xab0] sm:%s195] %v888
                %v890 = vld [vmem:[%s202 + $0x2ae0] sm:%s195]
                %891 = vst [vmem:[%s203 + $0xab8] sm:%s195] %v890
                %v892 = vld [vmem:[%s202 + $0x2b00] sm:%s195]
                %893 = vst [vmem:[%s203 + $0xac0] sm:%s195] %v892
                %v894 = vld [vmem:[%s202 + $0x2b20] sm:%s195]
                %895 = vst [vmem:[%s203 + $0xac8] sm:%s195] %v894
                %v896 = vld [vmem:[%s202 + $0x2b40] sm:%s195]
                %897 = vst [vmem:[%s203 + $0xad0] sm:%s195] %v896
                %v898 = vld [vmem:[%s202 + $0x2b60] sm:%s195]
                %899 = vst [vmem:[%s203 + $0xad8] sm:%s195] %v898
                %v900 = vld [vmem:[%s202 + $0x2b80] sm:%s195]
                %901 = vst [vmem:[%s203 + $0xae0] sm:%s195] %v900
                %v902 = vld [vmem:[%s202 + $0x2ba0] sm:%s195]
                %903 = vst [vmem:[%s203 + $0xae8] sm:%s195] %v902
                %v904 = vld [vmem:[%s202 + $0x2bc0] sm:%s195]
                %905 = vst [vmem:[%s203 + $0xaf0] sm:%s195] %v904
                %v906 = vld [vmem:[%s202 + $0x2be0] sm:%s195]
                %907 = vst [vmem:[%s203 + $0xaf8] sm:%s195] %v906
                %v908 = vld [vmem:[%s202 + $0x2c00] sm:%s195]
                %909 = vst [vmem:[%s203 + $0xb00] sm:%s195] %v908
                %v910 = vld [vmem:[%s202 + $0x2c20] sm:%s195]
                %911 = vst [vmem:[%s203 + $0xb08] sm:%s195] %v910
                %v912 = vld [vmem:[%s202 + $0x2c40] sm:%s195]
                %913 = vst [vmem:[%s203 + $0xb10] sm:%s195] %v912
                %v914 = vld [vmem:[%s202 + $0x2c60] sm:%s195]
                %915 = vst [vmem:[%s203 + $0xb18] sm:%s195] %v914
                %v916 = vld [vmem:[%s202 + $0x2c80] sm:%s195]
                %917 = vst [vmem:[%s203 + $0xb20] sm:%s195] %v916
                %v918 = vld [vmem:[%s202 + $0x2ca0] sm:%s195]
                %919 = vst [vmem:[%s203 + $0xb28] sm:%s195] %v918
                %v920 = vld [vmem:[%s202 + $0x2cc0] sm:%s195]
                %921 = vst [vmem:[%s203 + $0xb30] sm:%s195] %v920
                %v922 = vld [vmem:[%s202 + $0x2ce0] sm:%s195]
                %923 = vst [vmem:[%s203 + $0xb38] sm:%s195] %v922
                %v924 = vld [vmem:[%s202 + $0x2d00] sm:%s195]
                %925 = vst [vmem:[%s203 + $0xb40] sm:%s195] %v924
                %v926 = vld [vmem:[%s202 + $0x2d20] sm:%s195]
                %927 = vst [vmem:[%s203 + $0xb48] sm:%s195] %v926
                %v928 = vld [vmem:[%s202 + $0x2d40] sm:%s195]
                %929 = vst [vmem:[%s203 + $0xb50] sm:%s195] %v928
                %v930 = vld [vmem:[%s202 + $0x2d60] sm:%s195]
                %931 = vst [vmem:[%s203 + $0xb58] sm:%s195] %v930
                %v932 = vld [vmem:[%s202 + $0x2d80] sm:%s195]
                %933 = vst [vmem:[%s203 + $0xb60] sm:%s195] %v932
                %v934 = vld [vmem:[%s202 + $0x2da0] sm:%s195]
                %935 = vst [vmem:[%s203 + $0xb68] sm:%s195] %v934
                %v936 = vld [vmem:[%s202 + $0x2dc0] sm:%s195]
                %937 = vst [vmem:[%s203 + $0xb70] sm:%s195] %v936
                %v938 = vld [vmem:[%s202 + $0x2de0] sm:%s195]
                %939 = vst [vmem:[%s203 + $0xb78] sm:%s195] %v938
                %v940 = vld [vmem:[%s202 + $0x2e00] sm:%s195]
                %941 = vst [vmem:[%s203 + $0xb80] sm:%s195] %v940
                %v942 = vld [vmem:[%s202 + $0x2e20] sm:%s195]
                %943 = vst [vmem:[%s203 + $0xb88] sm:%s195] %v942
                %v944 = vld [vmem:[%s202 + $0x2e40] sm:%s195]
                %945 = vst [vmem:[%s203 + $0xb90] sm:%s195] %v944
                %v946 = vld [vmem:[%s202 + $0x2e60] sm:%s195]
                %947 = vst [vmem:[%s203 + $0xb98] sm:%s195] %v946
                %v948 = vld [vmem:[%s202 + $0x2e80] sm:%s195]
                %949 = vst [vmem:[%s203 + $0xba0] sm:%s195] %v948
                %v950 = vld [vmem:[%s202 + $0x2ea0] sm:%s195]
                %951 = vst [vmem:[%s203 + $0xba8] sm:%s195] %v950
                %v952 = vld [vmem:[%s202 + $0x2ec0] sm:%s195]
                %953 = vst [vmem:[%s203 + $0xbb0] sm:%s195] %v952
                %v954 = vld [vmem:[%s202 + $0x2ee0] sm:%s195]
                %955 = vst [vmem:[%s203 + $0xbb8] sm:%s195] %v954
                %v956 = vld [vmem:[%s202 + $0x2f00] sm:%s195]
                %957 = vst [vmem:[%s203 + $0xbc0] sm:%s195] %v956
                %v958 = vld [vmem:[%s202 + $0x2f20] sm:%s195]
                %959 = vst [vmem:[%s203 + $0xbc8] sm:%s195] %v958
                %v960 = vld [vmem:[%s202 + $0x2f40] sm:%s195]
                %961 = vst [vmem:[%s203 + $0xbd0] sm:%s195] %v960
                %v962 = vld [vmem:[%s202 + $0x2f60] sm:%s195]
                %963 = vst [vmem:[%s203 + $0xbd8] sm:%s195] %v962
                %v964 = vld [vmem:[%s202 + $0x2f80] sm:%s195]
                %965 = vst [vmem:[%s203 + $0xbe0] sm:%s195] %v964
                %v966 = vld [vmem:[%s202 + $0x2fa0] sm:%s195]
                %967 = vst [vmem:[%s203 + $0xbe8] sm:%s195] %v966
                %v968 = vld [vmem:[%s202 + $0x2fc0] sm:%s195]
                %969 = vst [vmem:[%s203 + $0xbf0] sm:%s195] %v968
                %v970 = vld [vmem:[%s202 + $0x2fe0] sm:%s195]
                %971 = vst [vmem:[%s203 + $0xbf8] sm:%s195] %v970
                %v972 = vld [vmem:[%s202 + $0x3000] sm:%s195]
                %973 = vst [vmem:[%s203 + $0xc00] sm:%s195] %v972
                %v974 = vld [vmem:[%s202 + $0x3020] sm:%s195]
                %975 = vst [vmem:[%s203 + $0xc08] sm:%s195] %v974
                %v976 = vld [vmem:[%s202 + $0x3040] sm:%s195]
                %977 = vst [vmem:[%s203 + $0xc10] sm:%s195] %v976
                %v978 = vld [vmem:[%s202 + $0x3060] sm:%s195]
                %979 = vst [vmem:[%s203 + $0xc18] sm:%s195] %v978
                %v980 = vld [vmem:[%s202 + $0x3080] sm:%s195]
                %981 = vst [vmem:[%s203 + $0xc20] sm:%s195] %v980
                %v982 = vld [vmem:[%s202 + $0x30a0] sm:%s195]
                %983 = vst [vmem:[%s203 + $0xc28] sm:%s195] %v982
                %v984 = vld [vmem:[%s202 + $0x30c0] sm:%s195]
                %985 = vst [vmem:[%s203 + $0xc30] sm:%s195] %v984
                %v986 = vld [vmem:[%s202 + $0x30e0] sm:%s195]
                %987 = vst [vmem:[%s203 + $0xc38] sm:%s195] %v986
              $region45: #{cnn2l_forward.5} parent=39 // loop_footer
                %s201 = sadd.s32 1, %s197
              $region46: #{cnn2l_forward.5} parent=39 // loop_footer_branch
                %196 = sbr.rel target = $region42
              $region47: #{cnn2l_forward.5} parent=39 // loop_exit
                _
            $region40: #{cnn2l_forward.5} parent=31 // pred_fallthru
              _
          $region32: #{cnn2l_forward.5} parent=27 // pred_fallthru
            _
          %1784 = vnop
        $region28: #{cnn2l_forward.5} parent=23 // pred_fallthru
          _
        // Predicated region
        $region63: #{cnn2l_forward.5} parent=23 // pred_check
          %p1785 = pneg %p79
        $region64: #{cnn2l_forward.5} parent=23 // pred_check_branch
          %1787 = sbr.rel (%p1785) target = $region66
        $region65: #{cnn2l_forward.5} parent=23 // pred_region
          %s1788 = smul.u32 2, %s12
          %p1789 = scmp.lt.s32.totalorder %s1788, 7
          %s1790 = scalar_select %p1789, %s1788, 7
          %s1791 = scalar_lea.vmem %s2, %s1790
          %s1792 = smul.u32 2, %s12
        $region66: #{cnn2l_forward.5} parent=23 // pred_fallthru
          _
        // Predicated region
        $region67: #{cnn2l_forward.5} parent=23 // pred_check
          %p1793 = pneg %p105
        $region68: #{cnn2l_forward.5} parent=23 // pred_check_branch
          %1795 = sbr.rel (%p1793) target = $region70
        $region69: #{cnn2l_forward.5} parent=23 // pred_region
          %s1796 = smul.u32 32, %s12
          %p1797 = scmp.lt.s32.totalorder %s1796, 127
          %s1798 = scalar_select %p1797, %s1796, 127
          %s1799 = smul.addr %s1798, 4
          %s1800 = scalar_lea.vmem %s3, %s1799
          %s1801 = smul.u32 32, %s12
        $region70: #{cnn2l_forward.5} parent=23 // pred_fallthru
          _
      $region24: #{cnn2l_forward.5} parent=5 // pred_fallthru
        _
      %p1802 = scmp.le.s32.totalorder 1, %s12
      %p1803 = scmp.lt.s32.totalorder %s12, 5
      %p1804 = pnand %p1802, %p1803
      %p1805 = pneg %p1804
      // Predicated region
      $region71: #{cnn2l_forward.5} parent=5 // pred_check
        _
      $region72: #{cnn2l_forward.5} parent=5 // pred_check_branch
        %1807 = sbr.rel (%p1804) target = $region74
      $region73: #{cnn2l_forward.5} parent=5 // pred_region
        %s1808 = ssub.s32 %s12, 1
        %s1809 = sand.u32 %s46, 1
        %s1810 = sand.u32 %s46, 1
        %s1811 = smul.addr %s1810, 3136
        %s1812 = scalar_lea.vmem [#allocation3], %s1811
        // Predicated region
        $region75: #{cnn2l_forward.5} parent=73 // pred_check
          %p1813 = pneg %p59
        $region76: #{cnn2l_forward.5} parent=73 // pred_check_branch
          %1815 = sbr.rel (%p1813) target = $region78
        $region77: #{cnn2l_forward.5} parent=73 // pred_region
          _
        $region78: #{cnn2l_forward.5} parent=73 // pred_fallthru
          _
        %p1816 = pneg %p33
        %p1817 = pneg %p30
        %s1818 = sand.u32 %s46, 1
        %s1819 = sand.u32 %s46, 1
        %s1820 = smul.addr %s1819, 3136
        %s1821 = scalar_lea.vmem [#allocation3], %s1820
        %p1822 = pneg %p59
        %p1823 = pneg %p56
        %s1824 = smul.u32 2, %s17
        %p1825 = scmp.lt.s32.totalorder %s1824, 7
        %s1826 = scalar_select %p1825, %s1824, 7
        %s1827 = scalar_lea.vmem %s2, %s1826
        %p1828 = pneg %p85
        %p1829 = pneg %p82
        %s1830 = smul.u32 32, %s17
        %p1831 = scmp.lt.s32.totalorder %s1830, 127
        %s1832 = scalar_select %p1831, %s1830, 127
        %s1833 = smul.addr %s1832, 4
        %s1834 = scalar_lea.vmem %s3, %s1833
        %p1835 = pneg %p111
        %p1836 = pneg %p108
        %p1837 = pneg %p132
        %p1838 = pneg %p129
        %p1839 = pneg %p153
        %p1840 = pneg %p150
        %s1841 = smul.u32 2, %s17
        %s1842 = smul.u32 2, %s17
        %p1843 = scmp.lt.s32.totalorder %s1842, 7
        %s1844 = scalar_select %p1843, %s1842, 7
        %s1845 = scalar_lea.vmem %s2, %s1844
        %s1846 = smul.u32 2, %s17
        %s1847 = smul.u32 32, %s17
        %p1848 = scmp.lt.s32.totalorder %s1847, 127
        %s1849 = scalar_select %p1848, %s1847, 127
        %s1850 = smul.addr %s1849, 4
        %s1851 = scalar_lea.vmem %s3, %s1850
        %s1852 = smul.u32 32, %s17
        %p1854 = scmp.eq.s32.totalorder %s17, 0
        // Predicated region
        $region79: #{cnn2l_forward.5} parent=73 // pred_check
          %p1855 = pneg %p1854
        $region80: #{cnn2l_forward.5} parent=73 // pred_check_branch
          %1857 = sbr.rel (%p1855) target = $region82
        $region81: #{cnn2l_forward.5} parent=73 // pred_region
          %vm1858 = vcmask 74752
          %1859 = vst.msk [vmem:[#allocation2] sm:$0x3] %vm1858, 0.0
        $region82: #{cnn2l_forward.5} parent=73 // pred_fallthru
          _
        %v1860 = vld [vmem:[%s0] sm:$0xff]
        %v1861 = vld [vmem:[%s0 + $0x8] sm:$0xff]
        %v1862 = vld [vmem:[%s0 + $0x10] sm:$0xff]
        %v1863 = vld [vmem:[%s0 + $0x18] sm:$0x1]
        %v1864 = vld [vmem:[%s1812] sm:$0xff]
        %v1865 = vld [vmem:[%s1812 + $0x8] sm:$0xff]
        %v1866 = vld [vmem:[%s1812 + $0x10] sm:$0xff]
        %v1867 = vld [vmem:[%s1812 + $0x18] sm:$0xff]
        %v1868 = vld [vmem:[%s1812 + $0x20] sm:$0xff]
        %v1869 = vld [vmem:[%s1812 + $0x28] sm:$0xff]
        %v1870 = vld [vmem:[%s1812 + $0x30] sm:$0xff]
        %v1871 = vld [vmem:[%s1812 + $0x38] sm:$0xff]
        %v1872 = vld [vmem:[%s1812 + $0x40] sm:$0xff]
        %v1873 = vld [vmem:[%s1812 + $0x48] sm:$0xff]
        %v1874 = vld [vmem:[%s1812 + $0x50] sm:$0xff]
        %v1875 = vld [vmem:[%s1812 + $0x58] sm:$0xff]
        %v1876 = vld [vmem:[%s1812 + $0x60] sm:$0xff]
        %v1877 = vld [vmem:[%s1812 + $0x68] sm:$0xff]
        %v1878 = vld [vmem:[%s1812 + $0x70] sm:$0xff]
        %v1879 = vld [vmem:[%s1812 + $0x78] sm:$0xff]
        %v1880 = vld [vmem:[%s1812 + $0x80] sm:$0xff]
        %v1881 = vld [vmem:[%s1812 + $0x88] sm:$0xff]
        %v1882 = vld [vmem:[%s1812 + $0x90] sm:$0xff]
        %v1883 = vld [vmem:[%s1812 + $0x98] sm:$0xff]
        %v1884 = vld [vmem:[%s1812 + $0xa0] sm:$0xff]
        %v1885 = vld [vmem:[%s1812 + $0xa8] sm:$0xff]
        %v1886 = vld [vmem:[%s1812 + $0xb0] sm:$0xff]
        %v1887 = vld [vmem:[%s1812 + $0xb8] sm:$0xff]
        %v1888 = vld [vmem:[%s1812 + $0xc0] sm:$0xff]
        %v1889 = vld [vmem:[%s1812 + $0xc8] sm:$0xff]
        %v1890 = vld [vmem:[%s1812 + $0xd0] sm:$0xff]
        %v1891 = vld [vmem:[%s1812 + $0xd8] sm:$0xff]
        %v1892 = vld [vmem:[%s1812 + $0xe0] sm:$0xff]
        %v1893 = vld [vmem:[%s1812 + $0xe8] sm:$0xff]
        %v1894 = vld [vmem:[%s1812 + $0xf0] sm:$0xff]
        %v1895 = vld [vmem:[%s1812 + $0xf8] sm:$0xff]
        %v1896 = vld [vmem:[%s1812 + $0x100] sm:$0xff]
        %v1897 = vld [vmem:[%s1812 + $0x108] sm:$0xff]
        %v1898 = vld [vmem:[%s1812 + $0x110] sm:$0xff]
        %v1899 = vld [vmem:[%s1812 + $0x118] sm:$0xff]
        %v1900 = vld [vmem:[%s1812 + $0x120] sm:$0xff]
        %v1901 = vld [vmem:[%s1812 + $0x128] sm:$0xff]
        %v1902 = vld [vmem:[%s1812 + $0x130] sm:$0xff]
        %v1903 = vld [vmem:[%s1812 + $0x138] sm:$0xff]
        %v1904 = vld [vmem:[%s1812 + $0x140] sm:$0xff]
        %v1905 = vld [vmem:[%s1812 + $0x148] sm:$0xff]
        %v1906 = vld [vmem:[%s1812 + $0x150] sm:$0xff]
        %v1907 = vld [vmem:[%s1812 + $0x158] sm:$0xff]
        %v1908 = vld [vmem:[%s1812 + $0x160] sm:$0xff]
        %v1909 = vld [vmem:[%s1812 + $0x168] sm:$0xff]
        %v1910 = vld [vmem:[%s1812 + $0x170] sm:$0xff]
        %v1911 = vld [vmem:[%s1812 + $0x178] sm:$0xff]
        %v1912 = vld [vmem:[%s1812 + $0x180] sm:$0xff]
        %v1913 = vld [vmem:[%s1812 + $0x188] sm:$0xff]
        %v1914 = vld [vmem:[%s1812 + $0x190] sm:$0xff]
        %v1915 = vld [vmem:[%s1812 + $0x198] sm:$0xff]
        %v1916 = vld [vmem:[%s1812 + $0x1a0] sm:$0xff]
        %v1917 = vld [vmem:[%s1812 + $0x1a8] sm:$0xff]
        %v1918 = vld [vmem:[%s1812 + $0x1b0] sm:$0xff]
        %v1919 = vld [vmem:[%s1812 + $0x1b8] sm:$0xff]
        %v1920 = vld [vmem:[%s1812 + $0x1c0] sm:$0xff]
        %v1921 = vld [vmem:[%s1812 + $0x1c8] sm:$0xff]
        %v1922 = vld [vmem:[%s1812 + $0x1d0] sm:$0xff]
        %v1923 = vld [vmem:[%s1812 + $0x1d8] sm:$0xff]
        %v1924 = vld [vmem:[%s1812 + $0x1e0] sm:$0xff]
        %v1925 = vld [vmem:[%s1812 + $0x1e8] sm:$0xff]
        %v1926 = vld [vmem:[%s1812 + $0x1f0] sm:$0xff]
        %v1927 = vld [vmem:[%s1812 + $0x1f8] sm:$0xff]
        %v1928 = vld [vmem:[%s1812 + $0x200] sm:$0xff]
        %v1929 = vld [vmem:[%s1812 + $0x208] sm:$0xff]
        %v1930 = vld [vmem:[%s1812 + $0x210] sm:$0xff]
        %v1931 = vld [vmem:[%s1812 + $0x218] sm:$0xff]
        %v1932 = vld [vmem:[%s1812 + $0x220] sm:$0xff]
        %v1933 = vld [vmem:[%s1812 + $0x228] sm:$0xff]
        %v1934 = vld [vmem:[%s1812 + $0x230] sm:$0xff]
        %v1935 = vld [vmem:[%s1812 + $0x238] sm:$0xff]
        %v1936 = vld [vmem:[%s1812 + $0x240] sm:$0xff]
        %v1937 = vld [vmem:[%s1812 + $0x248] sm:$0xff]
        %v1938 = vld [vmem:[%s1812 + $0x250] sm:$0xff]
        %v1939 = vld [vmem:[%s1812 + $0x258] sm:$0xff]
        %v1940 = vld [vmem:[%s1812 + $0x260] sm:$0xff]
        %v1941 = vld [vmem:[%s1812 + $0x268] sm:$0xff]
        %v1942 = vld [vmem:[%s1812 + $0x270] sm:$0xff]
        %v1943 = vld [vmem:[%s1812 + $0x278] sm:$0xff]
        %v1944 = vld [vmem:[%s1812 + $0x280] sm:$0xff]
        %v1945 = vld [vmem:[%s1812 + $0x288] sm:$0xff]
        %v1946 = vld [vmem:[%s1812 + $0x290] sm:$0xff]
        %v1947 = vld [vmem:[%s1812 + $0x298] sm:$0xff]
        %v1948 = vld [vmem:[%s1812 + $0x2a0] sm:$0xff]
        %v1949 = vld [vmem:[%s1812 + $0x2a8] sm:$0xff]
        %v1950 = vld [vmem:[%s1812 + $0x2b0] sm:$0xff]
        %v1951 = vld [vmem:[%s1812 + $0x2b8] sm:$0xff]
        %v1952 = vld [vmem:[%s1812 + $0x2c0] sm:$0xff]
        %v1953 = vld [vmem:[%s1812 + $0x2c8] sm:$0xff]
        %v1954 = vld [vmem:[%s1812 + $0x2d0] sm:$0xff]
        %v1955 = vld [vmem:[%s1812 + $0x2d8] sm:$0xff]
        %v1956 = vld [vmem:[%s1812 + $0x2e0] sm:$0xff]
        %v1957 = vld [vmem:[%s1812 + $0x2e8] sm:$0xff]
        %v1958 = vld [vmem:[%s1812 + $0x2f0] sm:$0xff]
        %v1959 = vld [vmem:[%s1812 + $0x2f8] sm:$0xff]
        %v1960 = vld [vmem:[%s1812 + $0x300] sm:$0xff]
        %v1961 = vld [vmem:[%s1812 + $0x308] sm:$0xff]
        %v1962 = vld [vmem:[%s1812 + $0x310] sm:$0xff]
        %v1963 = vld [vmem:[%s1812 + $0x318] sm:$0xff]
        %v1964 = vld [vmem:[%s1812 + $0x320] sm:$0xff]
        %v1965 = vld [vmem:[%s1812 + $0x328] sm:$0xff]
        %v1966 = vld [vmem:[%s1812 + $0x330] sm:$0xff]
        %v1967 = vld [vmem:[%s1812 + $0x338] sm:$0xff]
        %v1968 = vld [vmem:[%s1812 + $0x340] sm:$0xff]
        %v1969 = vld [vmem:[%s1812 + $0x348] sm:$0xff]
        %v1970 = vld [vmem:[%s1812 + $0x350] sm:$0xff]
        %v1971 = vld [vmem:[%s1812 + $0x358] sm:$0xff]
        %v1972 = vld [vmem:[%s1812 + $0x360] sm:$0xff]
        %v1973 = vld [vmem:[%s1812 + $0x368] sm:$0xff]
        %v1974 = vld [vmem:[%s1812 + $0x370] sm:$0xff]
        %v1975 = vld [vmem:[%s1812 + $0x378] sm:$0xff]
        %v1976 = vld [vmem:[%s1812 + $0x380] sm:$0xff]
        %v1977 = vld [vmem:[%s1812 + $0x388] sm:$0xff]
        %v1978 = vld [vmem:[%s1812 + $0x390] sm:$0xff]
        %v1979 = vld [vmem:[%s1812 + $0x398] sm:$0xff]
        %v1980 = vld [vmem:[%s1812 + $0x3a0] sm:$0xff]
        %v1981 = vld [vmem:[%s1812 + $0x3a8] sm:$0xff]
        %v1982 = vld [vmem:[%s1812 + $0x3b0] sm:$0xff]
        %v1983 = vld [vmem:[%s1812 + $0x3b8] sm:$0xff]
        %v1984 = vld [vmem:[%s1812 + $0x3c0] sm:$0xff]
        %v1985 = vld [vmem:[%s1812 + $0x3c8] sm:$0xff]
        %v1986 = vld [vmem:[%s1812 + $0x3d0] sm:$0xff]
        %v1987 = vld [vmem:[%s1812 + $0x3d8] sm:$0xff]
        %v1988 = vld [vmem:[%s1812 + $0x3e0] sm:$0xff]
        %v1989 = vld [vmem:[%s1812 + $0x3e8] sm:$0xff]
        %v1990 = vld [vmem:[%s1812 + $0x3f0] sm:$0xff]
        %v1991 = vld [vmem:[%s1812 + $0x3f8] sm:$0xff]
        %v1992 = vld [vmem:[%s1812 + $0x400] sm:$0xff]
        %v1993 = vld [vmem:[%s1812 + $0x408] sm:$0xff]
        %v1994 = vld [vmem:[%s1812 + $0x410] sm:$0xff]
        %v1995 = vld [vmem:[%s1812 + $0x418] sm:$0xff]
        %v1996 = vld [vmem:[%s1812 + $0x420] sm:$0xff]
        %v1997 = vld [vmem:[%s1812 + $0x428] sm:$0xff]
        %v1998 = vld [vmem:[%s1812 + $0x430] sm:$0xff]
        %v1999 = vld [vmem:[%s1812 + $0x438] sm:$0xff]
        %v2000 = vld [vmem:[%s1812 + $0x440] sm:$0xff]
        %v2001 = vld [vmem:[%s1812 + $0x448] sm:$0xff]
        %v2002 = vld [vmem:[%s1812 + $0x450] sm:$0xff]
        %v2003 = vld [vmem:[%s1812 + $0x458] sm:$0xff]
        %v2004 = vld [vmem:[%s1812 + $0x460] sm:$0xff]
        %v2005 = vld [vmem:[%s1812 + $0x468] sm:$0xff]
        %v2006 = vld [vmem:[%s1812 + $0x470] sm:$0xff]
        %v2007 = vld [vmem:[%s1812 + $0x478] sm:$0xff]
        %v2008 = vld [vmem:[%s1812 + $0x480] sm:$0xff]
        %v2009 = vld [vmem:[%s1812 + $0x488] sm:$0xff]
        %v2010 = vld [vmem:[%s1812 + $0x490] sm:$0xff]
        %v2011 = vld [vmem:[%s1812 + $0x498] sm:$0xff]
        %v2012 = vld [vmem:[%s1812 + $0x4a0] sm:$0xff]
        %v2013 = vld [vmem:[%s1812 + $0x4a8] sm:$0xff]
        %v2014 = vld [vmem:[%s1812 + $0x4b0] sm:$0xff]
        %v2015 = vld [vmem:[%s1812 + $0x4b8] sm:$0xff]
        %v2016 = vld [vmem:[%s1812 + $0x4c0] sm:$0xff]
        %v2017 = vld [vmem:[%s1812 + $0x4c8] sm:$0xff]
        %v2018 = vld [vmem:[%s1812 + $0x4d0] sm:$0xff]
        %v2019 = vld [vmem:[%s1812 + $0x4d8] sm:$0xff]
        %v2020 = vld [vmem:[%s1812 + $0x4e0] sm:$0xff]
        %v2021 = vld [vmem:[%s1812 + $0x4e8] sm:$0xff]
        %v2022 = vld [vmem:[%s1812 + $0x4f0] sm:$0xff]
        %v2023 = vld [vmem:[%s1812 + $0x4f8] sm:$0xff]
        %v2024 = vld [vmem:[%s1812 + $0x500] sm:$0xff]
        %v2025 = vld [vmem:[%s1812 + $0x508] sm:$0xff]
        %v2026 = vld [vmem:[%s1812 + $0x510] sm:$0xff]
        %v2027 = vld [vmem:[%s1812 + $0x518] sm:$0xff]
        %v2028 = vld [vmem:[%s1812 + $0x520] sm:$0xff]
        %v2029 = vld [vmem:[%s1812 + $0x528] sm:$0xff]
        %v2030 = vld [vmem:[%s1812 + $0x530] sm:$0xff]
        %v2031 = vld [vmem:[%s1812 + $0x538] sm:$0xff]
        %v2032 = vld [vmem:[%s1812 + $0x540] sm:$0xff]
        %v2033 = vld [vmem:[%s1812 + $0x548] sm:$0xff]
        %v2034 = vld [vmem:[%s1812 + $0x550] sm:$0xff]
        %v2035 = vld [vmem:[%s1812 + $0x558] sm:$0xff]
        %v2036 = vld [vmem:[%s1812 + $0x560] sm:$0xff]
        %v2037 = vld [vmem:[%s1812 + $0x568] sm:$0xff]
        %v2038 = vld [vmem:[%s1812 + $0x570] sm:$0xff]
        %v2039 = vld [vmem:[%s1812 + $0x578] sm:$0xff]
        %v2040 = vld [vmem:[%s1812 + $0x580] sm:$0xff]
        %v2041 = vld [vmem:[%s1812 + $0x588] sm:$0xff]
        %v2042 = vld [vmem:[%s1812 + $0x590] sm:$0xff]
        %v2043 = vld [vmem:[%s1812 + $0x598] sm:$0xff]
        %v2044 = vld [vmem:[%s1812 + $0x5a0] sm:$0xff]
        %v2045 = vld [vmem:[%s1812 + $0x5a8] sm:$0xff]
        %v2046 = vld [vmem:[%s1812 + $0x5b0] sm:$0xff]
        %v2047 = vld [vmem:[%s1812 + $0x5b8] sm:$0xff]
        %v2048 = vld [vmem:[%s1812 + $0x5c0] sm:$0xff]
        %v2049 = vld [vmem:[%s1812 + $0x5c8] sm:$0xff]
        %v2050 = vld [vmem:[%s1812 + $0x5d0] sm:$0xff]
        %v2051 = vld [vmem:[%s1812 + $0x5d8] sm:$0xff]
        %v2052 = vld [vmem:[%s1812 + $0x5e0] sm:$0xff]
        %v2053 = vld [vmem:[%s1812 + $0x5e8] sm:$0xff]
        %v2054 = vld [vmem:[%s1812 + $0x5f0] sm:$0xff]
        %v2055 = vld [vmem:[%s1812 + $0x5f8] sm:$0xff]
        %v2056 = vld [vmem:[%s1812 + $0x600] sm:$0xff]
        %v2057 = vld [vmem:[%s1812 + $0x608] sm:$0xff]
        %v2058 = vld [vmem:[%s1812 + $0x610] sm:$0xff]
        %v2059 = vld [vmem:[%s1812 + $0x618] sm:$0xff]
        %v2060 = vld [vmem:[%s1812 + $0x620] sm:$0xff]
        %v2061 = vld [vmem:[%s1812 + $0x628] sm:$0xff]
        %v2062 = vld [vmem:[%s1812 + $0x630] sm:$0xff]
        %v2063 = vld [vmem:[%s1812 + $0x638] sm:$0xff]
        %v2064 = vld [vmem:[%s1812 + $0x640] sm:$0xff]
        %v2065 = vld [vmem:[%s1812 + $0x648] sm:$0xff]
        %v2066 = vld [vmem:[%s1812 + $0x650] sm:$0xff]
        %v2067 = vld [vmem:[%s1812 + $0x658] sm:$0xff]
        %v2068 = vld [vmem:[%s1812 + $0x660] sm:$0xff]
        %v2069 = vld [vmem:[%s1812 + $0x668] sm:$0xff]
        %v2070 = vld [vmem:[%s1812 + $0x670] sm:$0xff]
        %v2071 = vld [vmem:[%s1812 + $0x678] sm:$0xff]
        %v2072 = vld [vmem:[%s1812 + $0x680] sm:$0xff]
        %v2073 = vld [vmem:[%s1812 + $0x688] sm:$0xff]
        %v2074 = vld [vmem:[%s1812 + $0x690] sm:$0xff]
        %v2075 = vld [vmem:[%s1812 + $0x698] sm:$0xff]
        %v2076 = vld [vmem:[%s1812 + $0x6a0] sm:$0xff]
        %v2077 = vld [vmem:[%s1812 + $0x6a8] sm:$0xff]
        %v2078 = vld [vmem:[%s1812 + $0x6b0] sm:$0xff]
        %v2079 = vld [vmem:[%s1812 + $0x6b8] sm:$0xff]
        %v2080 = vld [vmem:[%s1812 + $0x6c0] sm:$0xff]
        %v2081 = vld [vmem:[%s1812 + $0x6c8] sm:$0xff]
        %v2082 = vld [vmem:[%s1812 + $0x6d0] sm:$0xff]
        %v2083 = vld [vmem:[%s1812 + $0x6d8] sm:$0xff]
        %v2084 = vld [vmem:[%s1812 + $0x6e0] sm:$0xff]
        %v2085 = vld [vmem:[%s1812 + $0x6e8] sm:$0xff]
        %v2086 = vld [vmem:[%s1812 + $0x6f0] sm:$0xff]
        %v2087 = vld [vmem:[%s1812 + $0x6f8] sm:$0xff]
        %v2088 = vld [vmem:[%s1812 + $0x700] sm:$0xff]
        %v2089 = vld [vmem:[%s1812 + $0x708] sm:$0xff]
        %v2090 = vld [vmem:[%s1812 + $0x710] sm:$0xff]
        %v2091 = vld [vmem:[%s1812 + $0x718] sm:$0xff]
        %v2092 = vld [vmem:[%s1812 + $0x720] sm:$0xff]
        %v2093 = vld [vmem:[%s1812 + $0x728] sm:$0xff]
        %v2094 = vld [vmem:[%s1812 + $0x730] sm:$0xff]
        %v2095 = vld [vmem:[%s1812 + $0x738] sm:$0xff]
        %v2096 = vld [vmem:[%s1812 + $0x740] sm:$0xff]
        %v2097 = vld [vmem:[%s1812 + $0x748] sm:$0xff]
        %v2098 = vld [vmem:[%s1812 + $0x750] sm:$0xff]
        %v2099 = vld [vmem:[%s1812 + $0x758] sm:$0xff]
        %v2100 = vld [vmem:[%s1812 + $0x760] sm:$0xff]
        %v2101 = vld [vmem:[%s1812 + $0x768] sm:$0xff]
        %v2102 = vld [vmem:[%s1812 + $0x770] sm:$0xff]
        %v2103 = vld [vmem:[%s1812 + $0x778] sm:$0xff]
        %v2104 = vld [vmem:[%s1812 + $0x780] sm:$0xff]
        %v2105 = vld [vmem:[%s1812 + $0x788] sm:$0xff]
        %v2106 = vld [vmem:[%s1812 + $0x790] sm:$0xff]
        %v2107 = vld [vmem:[%s1812 + $0x798] sm:$0xff]
        %v2108 = vld [vmem:[%s1812 + $0x7a0] sm:$0xff]
        %v2109 = vld [vmem:[%s1812 + $0x7a8] sm:$0xff]
        %v2110 = vld [vmem:[%s1812 + $0x7b0] sm:$0xff]
        %v2111 = vld [vmem:[%s1812 + $0x7b8] sm:$0xff]
        %v2112 = vld [vmem:[%s1812 + $0x7c0] sm:$0xff]
        %v2113 = vld [vmem:[%s1812 + $0x7c8] sm:$0xff]
        %v2114 = vld [vmem:[%s1812 + $0x7d0] sm:$0xff]
        %v2115 = vld [vmem:[%s1812 + $0x7d8] sm:$0xff]
        %v2116 = vld [vmem:[%s1812 + $0x7e0] sm:$0xff]
        %v2117 = vld [vmem:[%s1812 + $0x7e8] sm:$0xff]
        %v2118 = vld [vmem:[%s1812 + $0x7f0] sm:$0xff]
        %v2119 = vld [vmem:[%s1812 + $0x7f8] sm:$0xff]
        %v2120 = vld [vmem:[%s1812 + $0x800] sm:$0xff]
        %v2121 = vld [vmem:[%s1812 + $0x808] sm:$0xff]
        %v2122 = vld [vmem:[%s1812 + $0x810] sm:$0xff]
        %v2123 = vld [vmem:[%s1812 + $0x818] sm:$0xff]
        %v2124 = vld [vmem:[%s1812 + $0x820] sm:$0xff]
        %v2125 = vld [vmem:[%s1812 + $0x828] sm:$0xff]
        %v2126 = vld [vmem:[%s1812 + $0x830] sm:$0xff]
        %v2127 = vld [vmem:[%s1812 + $0x838] sm:$0xff]
        %v2128 = vld [vmem:[%s1812 + $0x840] sm:$0xff]
        %v2129 = vld [vmem:[%s1812 + $0x848] sm:$0xff]
        %v2130 = vld [vmem:[%s1812 + $0x850] sm:$0xff]
        %v2131 = vld [vmem:[%s1812 + $0x858] sm:$0xff]
        %v2132 = vld [vmem:[%s1812 + $0x860] sm:$0xff]
        %v2133 = vld [vmem:[%s1812 + $0x868] sm:$0xff]
        %v2134 = vld [vmem:[%s1812 + $0x870] sm:$0xff]
        %v2135 = vld [vmem:[%s1812 + $0x878] sm:$0xff]
        %v2136 = vld [vmem:[%s1812 + $0x880] sm:$0xff]
        %v2137 = vld [vmem:[%s1812 + $0x888] sm:$0xff]
        %v2138 = vld [vmem:[%s1812 + $0x890] sm:$0xff]
        %v2139 = vld [vmem:[%s1812 + $0x898] sm:$0xff]
        %v2140 = vld [vmem:[%s1812 + $0x8a0] sm:$0xff]
        %v2141 = vld [vmem:[%s1812 + $0x8a8] sm:$0xff]
        %v2142 = vld [vmem:[%s1812 + $0x8b0] sm:$0xff]
        %v2143 = vld [vmem:[%s1812 + $0x8b8] sm:$0xff]
        %v2144 = vld [vmem:[%s1812 + $0x8c0] sm:$0xff]
        %v2145 = vld [vmem:[%s1812 + $0x8c8] sm:$0xff]
        %v2146 = vld [vmem:[%s1812 + $0x8d0] sm:$0xff]
        %v2147 = vld [vmem:[%s1812 + $0x8d8] sm:$0xff]
        %v2148 = vld [vmem:[%s1812 + $0x8e0] sm:$0xff]
        %v2149 = vld [vmem:[%s1812 + $0x8e8] sm:$0xff]
        %v2150 = vld [vmem:[%s1812 + $0x8f0] sm:$0xff]
        %v2151 = vld [vmem:[%s1812 + $0x8f8] sm:$0xff]
        %v2152 = vld [vmem:[%s1812 + $0x900] sm:$0xff]
        %v2153 = vld [vmem:[%s1812 + $0x908] sm:$0xff]
        %v2154 = vld [vmem:[%s1812 + $0x910] sm:$0xff]
        %v2155 = vld [vmem:[%s1812 + $0x918] sm:$0xff]
        %v2156 = vld [vmem:[%s1812 + $0x920] sm:$0xff]
        %v2157 = vld [vmem:[%s1812 + $0x928] sm:$0xff]
        %v2158 = vld [vmem:[%s1812 + $0x930] sm:$0xff]
        %v2159 = vld [vmem:[%s1812 + $0x938] sm:$0xff]
        %v2160 = vld [vmem:[%s1812 + $0x940] sm:$0xff]
        %v2161 = vld [vmem:[%s1812 + $0x948] sm:$0xff]
        %v2162 = vld [vmem:[%s1812 + $0x950] sm:$0xff]
        %v2163 = vld [vmem:[%s1812 + $0x958] sm:$0xff]
        %v2164 = vld [vmem:[%s1812 + $0x960] sm:$0xff]
        %v2165 = vld [vmem:[%s1812 + $0x968] sm:$0xff]
        %v2166 = vld [vmem:[%s1812 + $0x970] sm:$0xff]
        %v2167 = vld [vmem:[%s1812 + $0x978] sm:$0xff]
        %v2168 = vld [vmem:[%s1812 + $0x980] sm:$0xff]
        %v2169 = vld [vmem:[%s1812 + $0x988] sm:$0xff]
        %v2170 = vld [vmem:[%s1812 + $0x990] sm:$0xff]
        %v2171 = vld [vmem:[%s1812 + $0x998] sm:$0xff]
        %v2172 = vld [vmem:[%s1812 + $0x9a0] sm:$0xff]
        %v2173 = vld [vmem:[%s1812 + $0x9a8] sm:$0xff]
        %v2174 = vld [vmem:[%s1812 + $0x9b0] sm:$0xff]
        %v2175 = vld [vmem:[%s1812 + $0x9b8] sm:$0xff]
        %v2176 = vld [vmem:[%s1812 + $0x9c0] sm:$0xff]
        %v2177 = vld [vmem:[%s1812 + $0x9c8] sm:$0xff]
        %v2178 = vld [vmem:[%s1812 + $0x9d0] sm:$0xff]
        %v2179 = vld [vmem:[%s1812 + $0x9d8] sm:$0xff]
        %v2180 = vld [vmem:[%s1812 + $0x9e0] sm:$0xff]
        %v2181 = vld [vmem:[%s1812 + $0x9e8] sm:$0xff]
        %v2182 = vld [vmem:[%s1812 + $0x9f0] sm:$0xff]
        %v2183 = vld [vmem:[%s1812 + $0x9f8] sm:$0xff]
        %v2184 = vld [vmem:[%s1812 + $0xa00] sm:$0xff]
        %v2185 = vld [vmem:[%s1812 + $0xa08] sm:$0xff]
        %v2186 = vld [vmem:[%s1812 + $0xa10] sm:$0xff]
        %v2187 = vld [vmem:[%s1812 + $0xa18] sm:$0xff]
        %v2188 = vld [vmem:[%s1812 + $0xa20] sm:$0xff]
        %v2189 = vld [vmem:[%s1812 + $0xa28] sm:$0xff]
        %v2190 = vld [vmem:[%s1812 + $0xa30] sm:$0xff]
        %v2191 = vld [vmem:[%s1812 + $0xa38] sm:$0xff]
        %v2192 = vld [vmem:[%s1812 + $0xa40] sm:$0xff]
        %v2193 = vld [vmem:[%s1812 + $0xa48] sm:$0xff]
        %v2194 = vld [vmem:[%s1812 + $0xa50] sm:$0xff]
        %v2195 = vld [vmem:[%s1812 + $0xa58] sm:$0xff]
        %v2196 = vld [vmem:[%s1812 + $0xa60] sm:$0xff]
        %v2197 = vld [vmem:[%s1812 + $0xa68] sm:$0xff]
        %v2198 = vld [vmem:[%s1812 + $0xa70] sm:$0xff]
        %v2199 = vld [vmem:[%s1812 + $0xa78] sm:$0xff]
        %v2200 = vld [vmem:[%s1812 + $0xa80] sm:$0xff]
        %v2201 = vld [vmem:[%s1812 + $0xa88] sm:$0xff]
        %v2202 = vld [vmem:[%s1812 + $0xa90] sm:$0xff]
        %v2203 = vld [vmem:[%s1812 + $0xa98] sm:$0xff]
        %v2204 = vld [vmem:[%s1812 + $0xaa0] sm:$0xff]
        %v2205 = vld [vmem:[%s1812 + $0xaa8] sm:$0xff]
        %v2206 = vld [vmem:[%s1812 + $0xab0] sm:$0xff]
        %v2207 = vld [vmem:[%s1812 + $0xab8] sm:$0xff]
        %v2208 = vld [vmem:[%s1812 + $0xac0] sm:$0xff]
        %v2209 = vld [vmem:[%s1812 + $0xac8] sm:$0xff]
        %v2210 = vld [vmem:[%s1812 + $0xad0] sm:$0xff]
        %v2211 = vld [vmem:[%s1812 + $0xad8] sm:$0xff]
        %v2212 = vld [vmem:[%s1812 + $0xae0] sm:$0xff]
        %v2213 = vld [vmem:[%s1812 + $0xae8] sm:$0xff]
        %v2214 = vld [vmem:[%s1812 + $0xaf0] sm:$0xff]
        %v2215 = vld [vmem:[%s1812 + $0xaf8] sm:$0xff]
        %v2216 = vld [vmem:[%s1812 + $0xb00] sm:$0xff]
        %v2217 = vld [vmem:[%s1812 + $0xb08] sm:$0xff]
        %v2218 = vld [vmem:[%s1812 + $0xb10] sm:$0xff]
        %v2219 = vld [vmem:[%s1812 + $0xb18] sm:$0xff]
        %v2220 = vld [vmem:[%s1812 + $0xb20] sm:$0xff]
        %v2221 = vld [vmem:[%s1812 + $0xb28] sm:$0xff]
        %v2222 = vld [vmem:[%s1812 + $0xb30] sm:$0xff]
        %v2223 = vld [vmem:[%s1812 + $0xb38] sm:$0xff]
        %v2224 = vld [vmem:[%s1812 + $0xb40] sm:$0xff]
        %v2225 = vld [vmem:[%s1812 + $0xb48] sm:$0xff]
        %v2226 = vld [vmem:[%s1812 + $0xb50] sm:$0xff]
        %v2227 = vld [vmem:[%s1812 + $0xb58] sm:$0xff]
        %v2228 = vld [vmem:[%s1812 + $0xb60] sm:$0xff]
        %v2229 = vld [vmem:[%s1812 + $0xb68] sm:$0xff]
        %v2230 = vld [vmem:[%s1812 + $0xb70] sm:$0xff]
        %v2231 = vld [vmem:[%s1812 + $0xb78] sm:$0xff]
        %v2232 = vld [vmem:[%s1812 + $0xb80] sm:$0xff]
        %v2233 = vld [vmem:[%s1812 + $0xb88] sm:$0xff]
        %v2234 = vld [vmem:[%s1812 + $0xb90] sm:$0xff]
        %v2235 = vld [vmem:[%s1812 + $0xb98] sm:$0xff]
        %v2236 = vld [vmem:[%s1812 + $0xba0] sm:$0xff]
        %v2237 = vld [vmem:[%s1812 + $0xba8] sm:$0xff]
        %v2238 = vld [vmem:[%s1812 + $0xbb0] sm:$0xff]
        %v2239 = vld [vmem:[%s1812 + $0xbb8] sm:$0xff]
        %v2240 = vld [vmem:[%s1812 + $0xbc0] sm:$0xff]
        %v2241 = vld [vmem:[%s1812 + $0xbc8] sm:$0xff]
        %v2242 = vld [vmem:[%s1812 + $0xbd0] sm:$0xff]
        %v2243 = vld [vmem:[%s1812 + $0xbd8] sm:$0xff]
        %v2244 = vld [vmem:[%s1812 + $0xbe0] sm:$0xff]
        %v2245 = vld [vmem:[%s1812 + $0xbe8] sm:$0xff]
        %v2246 = vld [vmem:[%s1812 + $0xbf0] sm:$0xff]
        %v2247 = vld [vmem:[%s1812 + $0xbf8] sm:$0xff]
        %v2248 = vld [vmem:[%s1812 + $0xc00] sm:$0xff]
        %v2249 = vld [vmem:[%s1812 + $0xc08] sm:$0xff]
        %v2250 = vld [vmem:[%s1812 + $0xc10] sm:$0xff]
        %v2251 = vld [vmem:[%s1812 + $0xc18] sm:$0xff]
        %v2252 = vld [vmem:[%s1812 + $0xc20] sm:$0xff]
        %v2253 = vld [vmem:[%s1812 + $0xc28] sm:$0xff]
        %v2254 = vld [vmem:[%s1812 + $0xc30] sm:$0xff]
        %v2255 = vld [vmem:[%s1812 + $0xc38] sm:$0xff]
        %v2256 = vld [vmem:[%s1845] sm:$0x3]
        %v2258 = vlaneseq
        %v2259 = vshrl.u32 %v2258, 7
        %v2260 = vsub.s32 0, %v2259
        %v2261 = vrot.slane %v2256, %v2260
        %v2262 = vlaneseq
        %v2263 = vshrl.u32 %v2262, 7
        %v2264 = vsub.s32 1, %v2263
        %v2265 = vrot.slane %v2256, %v2264
        %v2272 = vcombine.high %v1860, %v1860
        %v2274 = vunpack.c.l.s4 1966171168
        %v2275 = vunpack.c.0.s8 %v2274
        %v2276 = vlaneseq
        %v2277 = vshrl.u32 %v2276, 7
        %v2278 = vsub.s32 %v2275, %v2277
        %v2279 = vrot.slane %v1860, %v2278
        %v2281 = vunpack.c.l.s4 1966171168
        %v2282 = vunpack.c.0.s8 %v2281
        %v2283 = vlaneseq
        %v2284 = vshrl.u32 %v2283, 7
        %v2285 = vsub.s32 %v2282, %v2284
        %v2286 = vrot.slane %v2272, %v2285
        %v2287 = vcombine.high %v2279, %v2279
        %v2288 = vcombine.high %v2286, %v2286
        %v2290 = vunpack.c.l.s4 1966171168
        %v2291 = vunpack.c.0.s8 %v2290
        %v2292 = vlaneseq
        %v2293 = vshrl.u32 %v2292, 7
        %v2294 = vsub.s32 %v2291, %v2293
        %v2295 = vrot.slane %v2279, %v2294
        %v2297 = vunpack.c.l.s4 1966171168
        %v2298 = vunpack.c.0.s8 %v2297
        %v2299 = vlaneseq
        %v2300 = vshrl.u32 %v2299, 7
        %v2301 = vsub.s32 %v2298, %v2300
        %v2302 = vrot.slane %v2286, %v2301
        %v2304 = vunpack.c.l.s4 1966171168
        %v2305 = vunpack.c.0.s8 %v2304
        %v2306 = vlaneseq
        %v2307 = vshrl.u32 %v2306, 7
        %v2308 = vsub.s32 %v2305, %v2307
        %v2309 = vrot.slane %v2287, %v2308
        %v2311 = vunpack.c.l.s4 1966171168
        %v2312 = vunpack.c.0.s8 %v2311
        %v2313 = vlaneseq
        %v2314 = vshrl.u32 %v2313, 7
        %v2315 = vsub.s32 %v2312, %v2314
        %v2316 = vrot.slane %v2288, %v2315
        %v2317 = vcombine.high %v2295, %v2295
        %v2318 = vcombine.high %v2302, %v2302
        %v2319 = vcombine.high %v2309, %v2309
        %v2320 = vcombine.high %v2316, %v2316
        %v2321 = vcombine.high %v1861, %v1861
        %v2323 = vunpack.c.l.s4 1966171168
        %v2324 = vunpack.c.0.s8 %v2323
        %v2325 = vlaneseq
        %v2326 = vshrl.u32 %v2325, 7
        %v2327 = vsub.s32 %v2324, %v2326
        %v2328 = vrot.slane %v1861, %v2327
        %v2330 = vunpack.c.l.s4 1966171168
        %v2331 = vunpack.c.0.s8 %v2330
        %v2332 = vlaneseq
        %v2333 = vshrl.u32 %v2332, 7
        %v2334 = vsub.s32 %v2331, %v2333
        %v2335 = vrot.slane %v2321, %v2334
        %v2336 = vcombine.high %v2328, %v2328
        %v2337 = vcombine.high %v2335, %v2335
        %v2339 = vunpack.c.l.s4 1966171168
        %v2340 = vunpack.c.0.s8 %v2339
        %v2341 = vlaneseq
        %v2342 = vshrl.u32 %v2341, 7
        %v2343 = vsub.s32 %v2340, %v2342
        %v2344 = vrot.slane %v2328, %v2343
        %v2346 = vunpack.c.l.s4 1966171168
        %v2347 = vunpack.c.0.s8 %v2346
        %v2348 = vlaneseq
        %v2349 = vshrl.u32 %v2348, 7
        %v2350 = vsub.s32 %v2347, %v2349
        %v2351 = vrot.slane %v2335, %v2350
        %v2353 = vunpack.c.l.s4 1966171168
        %v2354 = vunpack.c.0.s8 %v2353
        %v2355 = vlaneseq
        %v2356 = vshrl.u32 %v2355, 7
        %v2357 = vsub.s32 %v2354, %v2356
        %v2358 = vrot.slane %v2336, %v2357
        %v2360 = vunpack.c.l.s4 1966171168
        %v2361 = vunpack.c.0.s8 %v2360
        %v2362 = vlaneseq
        %v2363 = vshrl.u32 %v2362, 7
        %v2364 = vsub.s32 %v2361, %v2363
        %v2365 = vrot.slane %v2337, %v2364
        %v2366 = vcombine.high %v2344, %v2344
        %v2367 = vcombine.high %v2351, %v2351
        %v2368 = vcombine.high %v2358, %v2358
        %v2369 = vcombine.high %v2365, %v2365
        %v2370 = vcombine.high %v1862, %v1862
        %v2372 = vunpack.c.l.s4 1966171168
        %v2373 = vunpack.c.0.s8 %v2372
        %v2374 = vlaneseq
        %v2375 = vshrl.u32 %v2374, 7
        %v2376 = vsub.s32 %v2373, %v2375
        %v2377 = vrot.slane %v1862, %v2376
        %v2379 = vunpack.c.l.s4 1966171168
        %v2380 = vunpack.c.0.s8 %v2379
        %v2381 = vlaneseq
        %v2382 = vshrl.u32 %v2381, 7
        %v2383 = vsub.s32 %v2380, %v2382
        %v2384 = vrot.slane %v2370, %v2383
        %v2385 = vcombine.high %v2377, %v2377
        %v2386 = vcombine.high %v2384, %v2384
        %v2388 = vunpack.c.l.s4 1966171168
        %v2389 = vunpack.c.0.s8 %v2388
        %v2390 = vlaneseq
        %v2391 = vshrl.u32 %v2390, 7
        %v2392 = vsub.s32 %v2389, %v2391
        %v2393 = vrot.slane %v2377, %v2392
        %v2395 = vunpack.c.l.s4 1966171168
        %v2396 = vunpack.c.0.s8 %v2395
        %v2397 = vlaneseq
        %v2398 = vshrl.u32 %v2397, 7
        %v2399 = vsub.s32 %v2396, %v2398
        %v2400 = vrot.slane %v2384, %v2399
        %v2402 = vunpack.c.l.s4 1966171168
        %v2403 = vunpack.c.0.s8 %v2402
        %v2404 = vlaneseq
        %v2405 = vshrl.u32 %v2404, 7
        %v2406 = vsub.s32 %v2403, %v2405
        %v2407 = vrot.slane %v2385, %v2406
        %v2409 = vunpack.c.l.s4 1966171168
        %v2410 = vunpack.c.0.s8 %v2409
        %v2411 = vlaneseq
        %v2412 = vshrl.u32 %v2411, 7
        %v2413 = vsub.s32 %v2410, %v2412
        %v2414 = vrot.slane %v2386, %v2413
        %v2415 = vcombine.high %v2393, %v2393
        %v2416 = vcombine.high %v2400, %v2400
        %v2417 = vcombine.high %v2407, %v2407
        %v2418 = vcombine.high %v2414, %v2414
        %v2420 = vunpack.c.l.s4 1966171168
        %v2421 = vunpack.c.0.s8 %v2420
        %v2422 = vlaneseq
        %v2423 = vshrl.u32 %v2422, 7
        %v2424 = vsub.s32 %v2421, %v2423
        %v2425 = vrot.slane %v1863, %v2424
        %v2427 = vunpack.c.l.s4 1966171168
        %v2428 = vunpack.c.0.s8 %v2427
        %v2429 = vlaneseq
        %v2430 = vshrl.u32 %v2429, 7
        %v2431 = vsub.s32 %v2428, %v2430
        %v2432 = vrot.slane %v2425, %v2431
        %v2849 = vunpack.c.l.b16 %v1864
        %v2850 = vunpack.c.h.b16 %v1864
        %v2851 = vunpack.c.l.b16 %v1865
        %v2852 = vunpack.c.h.b16 %v1865
        %v2853 = vunpack.c.l.b16 %v1866
        %v2854 = vunpack.c.h.b16 %v1866
        %v2855 = vunpack.c.l.b16 %v1867
        %v2856 = vunpack.c.h.b16 %v1867
        %v2857 = vunpack.c.l.b16 %v1868
        %v2858 = vunpack.c.h.b16 %v1868
        %v2859 = vunpack.c.l.b16 %v1869
        %v2860 = vunpack.c.h.b16 %v1869
        %v2861 = vunpack.c.l.b16 %v1870
        %v2862 = vunpack.c.h.b16 %v1870
        %v2863 = vunpack.c.l.b16 %v1871
        %v2864 = vunpack.c.h.b16 %v1871
        %v2865 = vunpack.c.l.b16 %v1872
        %v2866 = vunpack.c.h.b16 %v1872
        %v2867 = vunpack.c.l.b16 %v1873
        %v2868 = vunpack.c.h.b16 %v1873
        %v2869 = vunpack.c.l.b16 %v1874
        %v2870 = vunpack.c.h.b16 %v1874
        %v2871 = vunpack.c.l.b16 %v1875
        %v2872 = vunpack.c.h.b16 %v1875
        %v2873 = vunpack.c.l.b16 %v1876
        %v2874 = vunpack.c.h.b16 %v1876
        %v2875 = vunpack.c.l.b16 %v1877
        %v2876 = vunpack.c.h.b16 %v1877
        %v2877 = vunpack.c.l.b16 %v1878
        %v2878 = vunpack.c.h.b16 %v1878
        %v2879 = vunpack.c.l.b16 %v1879
        %v2880 = vunpack.c.h.b16 %v1879
        %v2881 = vunpack.c.l.b16 %v1880
        %v2882 = vunpack.c.h.b16 %v1880
        %v2883 = vunpack.c.l.b16 %v1881
        %v2884 = vunpack.c.h.b16 %v1881
        %v2885 = vunpack.c.l.b16 %v1882
        %v2886 = vunpack.c.h.b16 %v1882
        %v2887 = vunpack.c.l.b16 %v1883
        %v2888 = vunpack.c.h.b16 %v1883
        %v2889 = vunpack.c.l.b16 %v1884
        %v2890 = vunpack.c.h.b16 %v1884
        %v2891 = vunpack.c.l.b16 %v1885
        %v2892 = vunpack.c.h.b16 %v1885
        %v2893 = vunpack.c.l.b16 %v1886
        %v2894 = vunpack.c.h.b16 %v1886
        %v2895 = vunpack.c.l.b16 %v1887
        %v2896 = vunpack.c.h.b16 %v1887
        %v2897 = vunpack.c.l.b16 %v1888
        %v2898 = vunpack.c.h.b16 %v1888
        %v2899 = vunpack.c.l.b16 %v1889
        %v2900 = vunpack.c.h.b16 %v1889
        %v2901 = vunpack.c.l.b16 %v1890
        %v2902 = vunpack.c.h.b16 %v1890
        %v2903 = vunpack.c.l.b16 %v1891
        %v2904 = vunpack.c.h.b16 %v1891
        %v2905 = vunpack.c.l.b16 %v1892
        %v2906 = vunpack.c.h.b16 %v1892
        %v2907 = vunpack.c.l.b16 %v1893
        %v2908 = vunpack.c.h.b16 %v1893
        %v2909 = vunpack.c.l.b16 %v1894
        %v2910 = vunpack.c.h.b16 %v1894
        %v2911 = vunpack.c.l.b16 %v1895
        %v2912 = vunpack.c.h.b16 %v1895
        %v2913 = vunpack.c.l.b16 %v1896
        %v2914 = vunpack.c.h.b16 %v1896
        %v2915 = vunpack.c.l.b16 %v1897
        %v2916 = vunpack.c.h.b16 %v1897
        %v2917 = vunpack.c.l.b16 %v1898
        %v2918 = vunpack.c.h.b16 %v1898
        %v2919 = vunpack.c.l.b16 %v1899
        %v2920 = vunpack.c.h.b16 %v1899
        %v2921 = vunpack.c.l.b16 %v1900
        %v2922 = vunpack.c.h.b16 %v1900
        %v2923 = vunpack.c.l.b16 %v1901
        %v2924 = vunpack.c.h.b16 %v1901
        %v2925 = vunpack.c.l.b16 %v1902
        %v2926 = vunpack.c.h.b16 %v1902
        %v2927 = vunpack.c.l.b16 %v1903
        %v2928 = vunpack.c.h.b16 %v1903
        %v2929 = vunpack.c.l.b16 %v1904
        %v2930 = vunpack.c.h.b16 %v1904
        %v2931 = vunpack.c.l.b16 %v1905
        %v2932 = vunpack.c.h.b16 %v1905
        %v2933 = vunpack.c.l.b16 %v1906
        %v2934 = vunpack.c.h.b16 %v1906
        %v2935 = vunpack.c.l.b16 %v1907
        %v2936 = vunpack.c.h.b16 %v1907
        %v2937 = vunpack.c.l.b16 %v1908
        %v2938 = vunpack.c.h.b16 %v1908
        %v2939 = vunpack.c.l.b16 %v1909
        %v2940 = vunpack.c.h.b16 %v1909
        %v2941 = vunpack.c.l.b16 %v1910
        %v2942 = vunpack.c.h.b16 %v1910
        %v2943 = vunpack.c.l.b16 %v1911
        %v2944 = vunpack.c.h.b16 %v1911
        %v2945 = vunpack.c.l.b16 %v1912
        %v2946 = vunpack.c.h.b16 %v1912
        %v2947 = vunpack.c.l.b16 %v1913
        %v2948 = vunpack.c.h.b16 %v1913
        %v2949 = vunpack.c.l.b16 %v1914
        %v2950 = vunpack.c.h.b16 %v1914
        %v2951 = vunpack.c.l.b16 %v1915
        %v2952 = vunpack.c.h.b16 %v1915
        %v2953 = vunpack.c.l.b16 %v1916
        %v2954 = vunpack.c.h.b16 %v1916
        %v2955 = vunpack.c.l.b16 %v1917
        %v2956 = vunpack.c.h.b16 %v1917
        %v2957 = vunpack.c.l.b16 %v1918
        %v2958 = vunpack.c.h.b16 %v1918
        %v2959 = vunpack.c.l.b16 %v1919
        %v2960 = vunpack.c.h.b16 %v1919
        %v2961 = vunpack.c.l.b16 %v1920
        %v2962 = vunpack.c.h.b16 %v1920
        %v2963 = vunpack.c.l.b16 %v1921
        %v2964 = vunpack.c.h.b16 %v1921
        %v2965 = vunpack.c.l.b16 %v1922
        %v2966 = vunpack.c.h.b16 %v1922
        %v2967 = vunpack.c.l.b16 %v1923
        %v2968 = vunpack.c.h.b16 %v1923
        %v2969 = vunpack.c.l.b16 %v1924
        %v2970 = vunpack.c.h.b16 %v1924
        %v2971 = vunpack.c.l.b16 %v1925
        %v2972 = vunpack.c.h.b16 %v1925
        %v2973 = vunpack.c.l.b16 %v1926
        %v2974 = vunpack.c.h.b16 %v1926
        %v2975 = vunpack.c.l.b16 %v1927
        %v2976 = vunpack.c.h.b16 %v1927
        %v2977 = vunpack.c.l.b16 %v1928
        %v2978 = vunpack.c.h.b16 %v1928
        %v2979 = vunpack.c.l.b16 %v1929
        %v2980 = vunpack.c.h.b16 %v1929
        %v2981 = vunpack.c.l.b16 %v1930
        %v2982 = vunpack.c.h.b16 %v1930
        %v2983 = vunpack.c.l.b16 %v1931
        %v2984 = vunpack.c.h.b16 %v1931
        %v2985 = vunpack.c.l.b16 %v1932
        %v2986 = vunpack.c.h.b16 %v1932
        %v2987 = vunpack.c.l.b16 %v1933
        %v2988 = vunpack.c.h.b16 %v1933
        %v2989 = vunpack.c.l.b16 %v1934
        %v2990 = vunpack.c.h.b16 %v1934
        %v2991 = vunpack.c.l.b16 %v1935
        %v2992 = vunpack.c.h.b16 %v1935
        %v2993 = vunpack.c.l.b16 %v1936
        %v2994 = vunpack.c.h.b16 %v1936
        %v2995 = vunpack.c.l.b16 %v1937
        %v2996 = vunpack.c.h.b16 %v1937
        %v2997 = vunpack.c.l.b16 %v1938
        %v2998 = vunpack.c.h.b16 %v1938
        %v2999 = vunpack.c.l.b16 %v1939
        %v3000 = vunpack.c.h.b16 %v1939
        %v3001 = vunpack.c.l.b16 %v1940
        %v3002 = vunpack.c.h.b16 %v1940
        %v3003 = vunpack.c.l.b16 %v1941
        %v3004 = vunpack.c.h.b16 %v1941
        %v3005 = vunpack.c.l.b16 %v1942
        %v3006 = vunpack.c.h.b16 %v1942
        %v3007 = vunpack.c.l.b16 %v1943
        %v3008 = vunpack.c.h.b16 %v1943
        %v3009 = vunpack.c.l.b16 %v1944
        %v3010 = vunpack.c.h.b16 %v1944
        %v3011 = vunpack.c.l.b16 %v1945
        %v3012 = vunpack.c.h.b16 %v1945
        %v3013 = vunpack.c.l.b16 %v1946
        %v3014 = vunpack.c.h.b16 %v1946
        %v3015 = vunpack.c.l.b16 %v1947
        %v3016 = vunpack.c.h.b16 %v1947
        %v3017 = vunpack.c.l.b16 %v1948
        %v3018 = vunpack.c.h.b16 %v1948
        %v3019 = vunpack.c.l.b16 %v1949
        %v3020 = vunpack.c.h.b16 %v1949
        %v3021 = vunpack.c.l.b16 %v1950
        %v3022 = vunpack.c.h.b16 %v1950
        %v3023 = vunpack.c.l.b16 %v1951
        %v3024 = vunpack.c.h.b16 %v1951
        %v3025 = vunpack.c.l.b16 %v1952
        %v3026 = vunpack.c.h.b16 %v1952
        %v3027 = vunpack.c.l.b16 %v1953
        %v3028 = vunpack.c.h.b16 %v1953
        %v3029 = vunpack.c.l.b16 %v1954
        %v3030 = vunpack.c.h.b16 %v1954
        %v3031 = vunpack.c.l.b16 %v1955
        %v3032 = vunpack.c.h.b16 %v1955
        %v3033 = vunpack.c.l.b16 %v1956
        %v3034 = vunpack.c.h.b16 %v1956
        %v3035 = vunpack.c.l.b16 %v1957
        %v3036 = vunpack.c.h.b16 %v1957
        %v3037 = vunpack.c.l.b16 %v1958
        %v3038 = vunpack.c.h.b16 %v1958
        %v3039 = vunpack.c.l.b16 %v1959
        %v3040 = vunpack.c.h.b16 %v1959
        %v3041 = vunpack.c.l.b16 %v1960
        %v3042 = vunpack.c.h.b16 %v1960
        %v3043 = vunpack.c.l.b16 %v1961
        %v3044 = vunpack.c.h.b16 %v1961
        %v3045 = vunpack.c.l.b16 %v1962
        %v3046 = vunpack.c.h.b16 %v1962
        %v3047 = vunpack.c.l.b16 %v1963
        %v3048 = vunpack.c.h.b16 %v1963
        %v3049 = vunpack.c.l.b16 %v1964
        %v3050 = vunpack.c.h.b16 %v1964
        %v3051 = vunpack.c.l.b16 %v1965
        %v3052 = vunpack.c.h.b16 %v1965
        %v3053 = vunpack.c.l.b16 %v1966
        %v3054 = vunpack.c.h.b16 %v1966
        %v3055 = vunpack.c.l.b16 %v1967
        %v3056 = vunpack.c.h.b16 %v1967
        %v3057 = vunpack.c.l.b16 %v1968
        %v3058 = vunpack.c.h.b16 %v1968
        %v3059 = vunpack.c.l.b16 %v1969
        %v3060 = vunpack.c.h.b16 %v1969
        %v3061 = vunpack.c.l.b16 %v1970
        %v3062 = vunpack.c.h.b16 %v1970
        %v3063 = vunpack.c.l.b16 %v1971
        %v3064 = vunpack.c.h.b16 %v1971
        %v3065 = vunpack.c.l.b16 %v1972
        %v3066 = vunpack.c.h.b16 %v1972
        %v3067 = vunpack.c.l.b16 %v1973
        %v3068 = vunpack.c.h.b16 %v1973
        %v3069 = vunpack.c.l.b16 %v1974
        %v3070 = vunpack.c.h.b16 %v1974
        %v3071 = vunpack.c.l.b16 %v1975
        %v3072 = vunpack.c.h.b16 %v1975
        %v3073 = vunpack.c.l.b16 %v1976
        %v3074 = vunpack.c.h.b16 %v1976
        %v3075 = vunpack.c.l.b16 %v1977
        %v3076 = vunpack.c.h.b16 %v1977
        %v3077 = vunpack.c.l.b16 %v1978
        %v3078 = vunpack.c.h.b16 %v1978
        %v3079 = vunpack.c.l.b16 %v1979
        %v3080 = vunpack.c.h.b16 %v1979
        %v3081 = vunpack.c.l.b16 %v1980
        %v3082 = vunpack.c.h.b16 %v1980
        %v3083 = vunpack.c.l.b16 %v1981
        %v3084 = vunpack.c.h.b16 %v1981
        %v3085 = vunpack.c.l.b16 %v1982
        %v3086 = vunpack.c.h.b16 %v1982
        %v3087 = vunpack.c.l.b16 %v1983
        %v3088 = vunpack.c.h.b16 %v1983
        %v3089 = vunpack.c.l.b16 %v1984
        %v3090 = vunpack.c.h.b16 %v1984
        %v3091 = vunpack.c.l.b16 %v1985
        %v3092 = vunpack.c.h.b16 %v1985
        %v3093 = vunpack.c.l.b16 %v1986
        %v3094 = vunpack.c.h.b16 %v1986
        %v3095 = vunpack.c.l.b16 %v1987
        %v3096 = vunpack.c.h.b16 %v1987
        %v3097 = vunpack.c.l.b16 %v1988
        %v3098 = vunpack.c.h.b16 %v1988
        %v3099 = vunpack.c.l.b16 %v1989
        %v3100 = vunpack.c.h.b16 %v1989
        %v3101 = vunpack.c.l.b16 %v1990
        %v3102 = vunpack.c.h.b16 %v1990
        %v3103 = vunpack.c.l.b16 %v1991
        %v3104 = vunpack.c.h.b16 %v1991
        %v3105 = vunpack.c.l.b16 %v1992
        %v3106 = vunpack.c.h.b16 %v1992
        %v3107 = vunpack.c.l.b16 %v1993
        %v3108 = vunpack.c.h.b16 %v1993
        %v3109 = vunpack.c.l.b16 %v1994
        %v3110 = vunpack.c.h.b16 %v1994
        %v3111 = vunpack.c.l.b16 %v1995
        %v3112 = vunpack.c.h.b16 %v1995
        %v3113 = vunpack.c.l.b16 %v1996
        %v3114 = vunpack.c.h.b16 %v1996
        %v3115 = vunpack.c.l.b16 %v1997
        %v3116 = vunpack.c.h.b16 %v1997
        %v3117 = vunpack.c.l.b16 %v1998
        %v3118 = vunpack.c.h.b16 %v1998
        %v3119 = vunpack.c.l.b16 %v1999
        %v3120 = vunpack.c.h.b16 %v1999
        %v3121 = vunpack.c.l.b16 %v2000
        %v3122 = vunpack.c.h.b16 %v2000
        %v3123 = vunpack.c.l.b16 %v2001
        %v3124 = vunpack.c.h.b16 %v2001
        %v3125 = vunpack.c.l.b16 %v2002
        %v3126 = vunpack.c.h.b16 %v2002
        %v3127 = vunpack.c.l.b16 %v2003
        %v3128 = vunpack.c.h.b16 %v2003
        %v3129 = vunpack.c.l.b16 %v2004
        %v3130 = vunpack.c.h.b16 %v2004
        %v3131 = vunpack.c.l.b16 %v2005
        %v3132 = vunpack.c.h.b16 %v2005
        %v3133 = vunpack.c.l.b16 %v2006
        %v3134 = vunpack.c.h.b16 %v2006
        %v3135 = vunpack.c.l.b16 %v2007
        %v3136 = vunpack.c.h.b16 %v2007
        %v3137 = vunpack.c.l.b16 %v2008
        %v3138 = vunpack.c.h.b16 %v2008
        %v3139 = vunpack.c.l.b16 %v2009
        %v3140 = vunpack.c.h.b16 %v2009
        %v3141 = vunpack.c.l.b16 %v2010
        %v3142 = vunpack.c.h.b16 %v2010
        %v3143 = vunpack.c.l.b16 %v2011
        %v3144 = vunpack.c.h.b16 %v2011
        %v3145 = vunpack.c.l.b16 %v2012
        %v3146 = vunpack.c.h.b16 %v2012
        %v3147 = vunpack.c.l.b16 %v2013
        %v3148 = vunpack.c.h.b16 %v2013
        %v3149 = vunpack.c.l.b16 %v2014
        %v3150 = vunpack.c.h.b16 %v2014
        %v3151 = vunpack.c.l.b16 %v2015
        %v3152 = vunpack.c.h.b16 %v2015
        %v3153 = vunpack.c.l.b16 %v2016
        %v3154 = vunpack.c.h.b16 %v2016
        %v3155 = vunpack.c.l.b16 %v2017
        %v3156 = vunpack.c.h.b16 %v2017
        %v3157 = vunpack.c.l.b16 %v2018
        %v3158 = vunpack.c.h.b16 %v2018
        %v3159 = vunpack.c.l.b16 %v2019
        %v3160 = vunpack.c.h.b16 %v2019
        %v3161 = vunpack.c.l.b16 %v2020
        %v3162 = vunpack.c.h.b16 %v2020
        %v3163 = vunpack.c.l.b16 %v2021
        %v3164 = vunpack.c.h.b16 %v2021
        %v3165 = vunpack.c.l.b16 %v2022
        %v3166 = vunpack.c.h.b16 %v2022
        %v3167 = vunpack.c.l.b16 %v2023
        %v3168 = vunpack.c.h.b16 %v2023
        %v3169 = vunpack.c.l.b16 %v2024
        %v3170 = vunpack.c.h.b16 %v2024
        %v3171 = vunpack.c.l.b16 %v2025
        %v3172 = vunpack.c.h.b16 %v2025
        %v3173 = vunpack.c.l.b16 %v2026
        %v3174 = vunpack.c.h.b16 %v2026
        %v3175 = vunpack.c.l.b16 %v2027
        %v3176 = vunpack.c.h.b16 %v2027
        %v3177 = vunpack.c.l.b16 %v2028
        %v3178 = vunpack.c.h.b16 %v2028
        %v3179 = vunpack.c.l.b16 %v2029
        %v3180 = vunpack.c.h.b16 %v2029
        %v3181 = vunpack.c.l.b16 %v2030
        %v3182 = vunpack.c.h.b16 %v2030
        %v3183 = vunpack.c.l.b16 %v2031
        %v3184 = vunpack.c.h.b16 %v2031
        %v3185 = vunpack.c.l.b16 %v2032
        %v3186 = vunpack.c.h.b16 %v2032
        %v3187 = vunpack.c.l.b16 %v2033
        %v3188 = vunpack.c.h.b16 %v2033
        %v3189 = vunpack.c.l.b16 %v2034
        %v3190 = vunpack.c.h.b16 %v2034
        %v3191 = vunpack.c.l.b16 %v2035
        %v3192 = vunpack.c.h.b16 %v2035
        %v3193 = vunpack.c.l.b16 %v2036
        %v3194 = vunpack.c.h.b16 %v2036
        %v3195 = vunpack.c.l.b16 %v2037
        %v3196 = vunpack.c.h.b16 %v2037
        %v3197 = vunpack.c.l.b16 %v2038
        %v3198 = vunpack.c.h.b16 %v2038
        %v3199 = vunpack.c.l.b16 %v2039
        %v3200 = vunpack.c.h.b16 %v2039
        %v3201 = vunpack.c.l.b16 %v2040
        %v3202 = vunpack.c.h.b16 %v2040
        %v3203 = vunpack.c.l.b16 %v2041
        %v3204 = vunpack.c.h.b16 %v2041
        %v3205 = vunpack.c.l.b16 %v2042
        %v3206 = vunpack.c.h.b16 %v2042
        %v3207 = vunpack.c.l.b16 %v2043
        %v3208 = vunpack.c.h.b16 %v2043
        %v3209 = vunpack.c.l.b16 %v2044
        %v3210 = vunpack.c.h.b16 %v2044
        %v3211 = vunpack.c.l.b16 %v2045
        %v3212 = vunpack.c.h.b16 %v2045
        %v3213 = vunpack.c.l.b16 %v2046
        %v3214 = vunpack.c.h.b16 %v2046
        %v3215 = vunpack.c.l.b16 %v2047
        %v3216 = vunpack.c.h.b16 %v2047
        %v3217 = vunpack.c.l.b16 %v2048
        %v3218 = vunpack.c.h.b16 %v2048
        %v3219 = vunpack.c.l.b16 %v2049
        %v3220 = vunpack.c.h.b16 %v2049
        %v3221 = vunpack.c.l.b16 %v2050
        %v3222 = vunpack.c.h.b16 %v2050
        %v3223 = vunpack.c.l.b16 %v2051
        %v3224 = vunpack.c.h.b16 %v2051
        %v3225 = vunpack.c.l.b16 %v2052
        %v3226 = vunpack.c.h.b16 %v2052
        %v3227 = vunpack.c.l.b16 %v2053
        %v3228 = vunpack.c.h.b16 %v2053
        %v3229 = vunpack.c.l.b16 %v2054
        %v3230 = vunpack.c.h.b16 %v2054
        %v3231 = vunpack.c.l.b16 %v2055
        %v3232 = vunpack.c.h.b16 %v2055
        %v3233 = vunpack.c.l.b16 %v2056
        %v3234 = vunpack.c.h.b16 %v2056
        %v3235 = vunpack.c.l.b16 %v2057
        %v3236 = vunpack.c.h.b16 %v2057
        %v3237 = vunpack.c.l.b16 %v2058
        %v3238 = vunpack.c.h.b16 %v2058
        %v3239 = vunpack.c.l.b16 %v2059
        %v3240 = vunpack.c.h.b16 %v2059
        %v3241 = vunpack.c.l.b16 %v2060
        %v3242 = vunpack.c.h.b16 %v2060
        %v3243 = vunpack.c.l.b16 %v2061
        %v3244 = vunpack.c.h.b16 %v2061
        %v3245 = vunpack.c.l.b16 %v2062
        %v3246 = vunpack.c.h.b16 %v2062
        %v3247 = vunpack.c.l.b16 %v2063
        %v3248 = vunpack.c.h.b16 %v2063
        %v3249 = vunpack.c.l.b16 %v2064
        %v3250 = vunpack.c.h.b16 %v2064
        %v3251 = vunpack.c.l.b16 %v2065
        %v3252 = vunpack.c.h.b16 %v2065
        %v3253 = vunpack.c.l.b16 %v2066
        %v3254 = vunpack.c.h.b16 %v2066
        %v3255 = vunpack.c.l.b16 %v2067
        %v3256 = vunpack.c.h.b16 %v2067
        %v3257 = vunpack.c.l.b16 %v2068
        %v3258 = vunpack.c.h.b16 %v2068
        %v3259 = vunpack.c.l.b16 %v2069
        %v3260 = vunpack.c.h.b16 %v2069
        %v3261 = vunpack.c.l.b16 %v2070
        %v3262 = vunpack.c.h.b16 %v2070
        %v3263 = vunpack.c.l.b16 %v2071
        %v3264 = vunpack.c.h.b16 %v2071
        %v3265 = vunpack.c.l.b16 %v2072
        %v3266 = vunpack.c.h.b16 %v2072
        %v3267 = vunpack.c.l.b16 %v2073
        %v3268 = vunpack.c.h.b16 %v2073
        %v3269 = vunpack.c.l.b16 %v2074
        %v3270 = vunpack.c.h.b16 %v2074
        %v3271 = vunpack.c.l.b16 %v2075
        %v3272 = vunpack.c.h.b16 %v2075
        %v3273 = vunpack.c.l.b16 %v2076
        %v3274 = vunpack.c.h.b16 %v2076
        %v3275 = vunpack.c.l.b16 %v2077
        %v3276 = vunpack.c.h.b16 %v2077
        %v3277 = vunpack.c.l.b16 %v2078
        %v3278 = vunpack.c.h.b16 %v2078
        %v3279 = vunpack.c.l.b16 %v2079
        %v3280 = vunpack.c.h.b16 %v2079
        %v3281 = vunpack.c.l.b16 %v2080
        %v3282 = vunpack.c.h.b16 %v2080
        %v3283 = vunpack.c.l.b16 %v2081
        %v3284 = vunpack.c.h.b16 %v2081
        %v3285 = vunpack.c.l.b16 %v2082
        %v3286 = vunpack.c.h.b16 %v2082
        %v3287 = vunpack.c.l.b16 %v2083
        %v3288 = vunpack.c.h.b16 %v2083
        %v3289 = vunpack.c.l.b16 %v2084
        %v3290 = vunpack.c.h.b16 %v2084
        %v3291 = vunpack.c.l.b16 %v2085
        %v3292 = vunpack.c.h.b16 %v2085
        %v3293 = vunpack.c.l.b16 %v2086
        %v3294 = vunpack.c.h.b16 %v2086
        %v3295 = vunpack.c.l.b16 %v2087
        %v3296 = vunpack.c.h.b16 %v2087
        %v3297 = vunpack.c.l.b16 %v2088
        %v3298 = vunpack.c.h.b16 %v2088
        %v3299 = vunpack.c.l.b16 %v2089
        %v3300 = vunpack.c.h.b16 %v2089
        %v3301 = vunpack.c.l.b16 %v2090
        %v3302 = vunpack.c.h.b16 %v2090
        %v3303 = vunpack.c.l.b16 %v2091
        %v3304 = vunpack.c.h.b16 %v2091
        %v3305 = vunpack.c.l.b16 %v2092
        %v3306 = vunpack.c.h.b16 %v2092
        %v3307 = vunpack.c.l.b16 %v2093
        %v3308 = vunpack.c.h.b16 %v2093
        %v3309 = vunpack.c.l.b16 %v2094
        %v3310 = vunpack.c.h.b16 %v2094
        %v3311 = vunpack.c.l.b16 %v2095
        %v3312 = vunpack.c.h.b16 %v2095
        %v3313 = vunpack.c.l.b16 %v2096
        %v3314 = vunpack.c.h.b16 %v2096
        %v3315 = vunpack.c.l.b16 %v2097
        %v3316 = vunpack.c.h.b16 %v2097
        %v3317 = vunpack.c.l.b16 %v2098
        %v3318 = vunpack.c.h.b16 %v2098
        %v3319 = vunpack.c.l.b16 %v2099
        %v3320 = vunpack.c.h.b16 %v2099
        %v3321 = vunpack.c.l.b16 %v2100
        %v3322 = vunpack.c.h.b16 %v2100
        %v3323 = vunpack.c.l.b16 %v2101
        %v3324 = vunpack.c.h.b16 %v2101
        %v3325 = vunpack.c.l.b16 %v2102
        %v3326 = vunpack.c.h.b16 %v2102
        %v3327 = vunpack.c.l.b16 %v2103
        %v3328 = vunpack.c.h.b16 %v2103
        %v3329 = vunpack.c.l.b16 %v2104
        %v3330 = vunpack.c.h.b16 %v2104
        %v3331 = vunpack.c.l.b16 %v2105
        %v3332 = vunpack.c.h.b16 %v2105
        %v3333 = vunpack.c.l.b16 %v2106
        %v3334 = vunpack.c.h.b16 %v2106
        %v3335 = vunpack.c.l.b16 %v2107
        %v3336 = vunpack.c.h.b16 %v2107
        %v3337 = vunpack.c.l.b16 %v2108
        %v3338 = vunpack.c.h.b16 %v2108
        %v3339 = vunpack.c.l.b16 %v2109
        %v3340 = vunpack.c.h.b16 %v2109
        %v3341 = vunpack.c.l.b16 %v2110
        %v3342 = vunpack.c.h.b16 %v2110
        %v3343 = vunpack.c.l.b16 %v2111
        %v3344 = vunpack.c.h.b16 %v2111
        %v3345 = vunpack.c.l.b16 %v2112
        %v3346 = vunpack.c.h.b16 %v2112
        %v3347 = vunpack.c.l.b16 %v2113
        %v3348 = vunpack.c.h.b16 %v2113
        %v3349 = vunpack.c.l.b16 %v2114
        %v3350 = vunpack.c.h.b16 %v2114
        %v3351 = vunpack.c.l.b16 %v2115
        %v3352 = vunpack.c.h.b16 %v2115
        %v3353 = vunpack.c.l.b16 %v2116
        %v3354 = vunpack.c.h.b16 %v2116
        %v3355 = vunpack.c.l.b16 %v2117
        %v3356 = vunpack.c.h.b16 %v2117
        %v3357 = vunpack.c.l.b16 %v2118
        %v3358 = vunpack.c.h.b16 %v2118
        %v3359 = vunpack.c.l.b16 %v2119
        %v3360 = vunpack.c.h.b16 %v2119
        %v3361 = vunpack.c.l.b16 %v2120
        %v3362 = vunpack.c.h.b16 %v2120
        %v3363 = vunpack.c.l.b16 %v2121
        %v3364 = vunpack.c.h.b16 %v2121
        %v3365 = vunpack.c.l.b16 %v2122
        %v3366 = vunpack.c.h.b16 %v2122
        %v3367 = vunpack.c.l.b16 %v2123
        %v3368 = vunpack.c.h.b16 %v2123
        %v3369 = vunpack.c.l.b16 %v2124
        %v3370 = vunpack.c.h.b16 %v2124
        %v3371 = vunpack.c.l.b16 %v2125
        %v3372 = vunpack.c.h.b16 %v2125
        %v3373 = vunpack.c.l.b16 %v2126
        %v3374 = vunpack.c.h.b16 %v2126
        %v3375 = vunpack.c.l.b16 %v2127
        %v3376 = vunpack.c.h.b16 %v2127
        %v3377 = vunpack.c.l.b16 %v2128
        %v3378 = vunpack.c.h.b16 %v2128
        %v3379 = vunpack.c.l.b16 %v2129
        %v3380 = vunpack.c.h.b16 %v2129
        %v3381 = vunpack.c.l.b16 %v2130
        %v3382 = vunpack.c.h.b16 %v2130
        %v3383 = vunpack.c.l.b16 %v2131
        %v3384 = vunpack.c.h.b16 %v2131
        %v3385 = vunpack.c.l.b16 %v2132
        %v3386 = vunpack.c.h.b16 %v2132
        %v3387 = vunpack.c.l.b16 %v2133
        %v3388 = vunpack.c.h.b16 %v2133
        %v3389 = vunpack.c.l.b16 %v2134
        %v3390 = vunpack.c.h.b16 %v2134
        %v3391 = vunpack.c.l.b16 %v2135
        %v3392 = vunpack.c.h.b16 %v2135
        %v3393 = vunpack.c.l.b16 %v2136
        %v3394 = vunpack.c.h.b16 %v2136
        %v3395 = vunpack.c.l.b16 %v2137
        %v3396 = vunpack.c.h.b16 %v2137
        %v3397 = vunpack.c.l.b16 %v2138
        %v3398 = vunpack.c.h.b16 %v2138
        %v3399 = vunpack.c.l.b16 %v2139
        %v3400 = vunpack.c.h.b16 %v2139
        %v3401 = vunpack.c.l.b16 %v2140
        %v3402 = vunpack.c.h.b16 %v2140
        %v3403 = vunpack.c.l.b16 %v2141
        %v3404 = vunpack.c.h.b16 %v2141
        %v3405 = vunpack.c.l.b16 %v2142
        %v3406 = vunpack.c.h.b16 %v2142
        %v3407 = vunpack.c.l.b16 %v2143
        %v3408 = vunpack.c.h.b16 %v2143
        %v3409 = vunpack.c.l.b16 %v2144
        %v3410 = vunpack.c.h.b16 %v2144
        %v3411 = vunpack.c.l.b16 %v2145
        %v3412 = vunpack.c.h.b16 %v2145
        %v3413 = vunpack.c.l.b16 %v2146
        %v3414 = vunpack.c.h.b16 %v2146
        %v3415 = vunpack.c.l.b16 %v2147
        %v3416 = vunpack.c.h.b16 %v2147
        %v3417 = vunpack.c.l.b16 %v2148
        %v3418 = vunpack.c.h.b16 %v2148
        %v3419 = vunpack.c.l.b16 %v2149
        %v3420 = vunpack.c.h.b16 %v2149
        %v3421 = vunpack.c.l.b16 %v2150
        %v3422 = vunpack.c.h.b16 %v2150
        %v3423 = vunpack.c.l.b16 %v2151
        %v3424 = vunpack.c.h.b16 %v2151
        %v3425 = vunpack.c.l.b16 %v2152
        %v3426 = vunpack.c.h.b16 %v2152
        %v3427 = vunpack.c.l.b16 %v2153
        %v3428 = vunpack.c.h.b16 %v2153
        %v3429 = vunpack.c.l.b16 %v2154
        %v3430 = vunpack.c.h.b16 %v2154
        %v3431 = vunpack.c.l.b16 %v2155
        %v3432 = vunpack.c.h.b16 %v2155
        %v3433 = vunpack.c.l.b16 %v2156
        %v3434 = vunpack.c.h.b16 %v2156
        %v3435 = vunpack.c.l.b16 %v2157
        %v3436 = vunpack.c.h.b16 %v2157
        %v3437 = vunpack.c.l.b16 %v2158
        %v3438 = vunpack.c.h.b16 %v2158
        %v3439 = vunpack.c.l.b16 %v2159
        %v3440 = vunpack.c.h.b16 %v2159
        %v3441 = vunpack.c.l.b16 %v2160
        %v3442 = vunpack.c.h.b16 %v2160
        %v3443 = vunpack.c.l.b16 %v2161
        %v3444 = vunpack.c.h.b16 %v2161
        %v3445 = vunpack.c.l.b16 %v2162
        %v3446 = vunpack.c.h.b16 %v2162
        %v3447 = vunpack.c.l.b16 %v2163
        %v3448 = vunpack.c.h.b16 %v2163
        %v3449 = vunpack.c.l.b16 %v2164
        %v3450 = vunpack.c.h.b16 %v2164
        %v3451 = vunpack.c.l.b16 %v2165
        %v3452 = vunpack.c.h.b16 %v2165
        %v3453 = vunpack.c.l.b16 %v2166
        %v3454 = vunpack.c.h.b16 %v2166
        %v3455 = vunpack.c.l.b16 %v2167
        %v3456 = vunpack.c.h.b16 %v2167
        %v3457 = vunpack.c.l.b16 %v2168
        %v3458 = vunpack.c.h.b16 %v2168
        %v3459 = vunpack.c.l.b16 %v2169
        %v3460 = vunpack.c.h.b16 %v2169
        %v3461 = vunpack.c.l.b16 %v2170
        %v3462 = vunpack.c.h.b16 %v2170
        %v3463 = vunpack.c.l.b16 %v2171
        %v3464 = vunpack.c.h.b16 %v2171
        %v3465 = vunpack.c.l.b16 %v2172
        %v3466 = vunpack.c.h.b16 %v2172
        %v3467 = vunpack.c.l.b16 %v2173
        %v3468 = vunpack.c.h.b16 %v2173
        %v3469 = vunpack.c.l.b16 %v2174
        %v3470 = vunpack.c.h.b16 %v2174
        %v3471 = vunpack.c.l.b16 %v2175
        %v3472 = vunpack.c.h.b16 %v2175
        %v3473 = vunpack.c.l.b16 %v2176
        %v3474 = vunpack.c.h.b16 %v2176
        %v3475 = vunpack.c.l.b16 %v2177
        %v3476 = vunpack.c.h.b16 %v2177
        %v3477 = vunpack.c.l.b16 %v2178
        %v3478 = vunpack.c.h.b16 %v2178
        %v3479 = vunpack.c.l.b16 %v2179
        %v3480 = vunpack.c.h.b16 %v2179
        %v3481 = vunpack.c.l.b16 %v2180
        %v3482 = vunpack.c.h.b16 %v2180
        %v3483 = vunpack.c.l.b16 %v2181
        %v3484 = vunpack.c.h.b16 %v2181
        %v3485 = vunpack.c.l.b16 %v2182
        %v3486 = vunpack.c.h.b16 %v2182
        %v3487 = vunpack.c.l.b16 %v2183
        %v3488 = vunpack.c.h.b16 %v2183
        %v3489 = vunpack.c.l.b16 %v2184
        %v3490 = vunpack.c.h.b16 %v2184
        %v3491 = vunpack.c.l.b16 %v2185
        %v3492 = vunpack.c.h.b16 %v2185
        %v3493 = vunpack.c.l.b16 %v2186
        %v3494 = vunpack.c.h.b16 %v2186
        %v3495 = vunpack.c.l.b16 %v2187
        %v3496 = vunpack.c.h.b16 %v2187
        %v3497 = vunpack.c.l.b16 %v2188
        %v3498 = vunpack.c.h.b16 %v2188
        %v3499 = vunpack.c.l.b16 %v2189
        %v3500 = vunpack.c.h.b16 %v2189
        %v3501 = vunpack.c.l.b16 %v2190
        %v3502 = vunpack.c.h.b16 %v2190
        %v3503 = vunpack.c.l.b16 %v2191
        %v3504 = vunpack.c.h.b16 %v2191
        %v3505 = vunpack.c.l.b16 %v2192
        %v3506 = vunpack.c.h.b16 %v2192
        %v3507 = vunpack.c.l.b16 %v2193
        %v3508 = vunpack.c.h.b16 %v2193
        %v3509 = vunpack.c.l.b16 %v2194
        %v3510 = vunpack.c.h.b16 %v2194
        %v3511 = vunpack.c.l.b16 %v2195
        %v3512 = vunpack.c.h.b16 %v2195
        %v3513 = vunpack.c.l.b16 %v2196
        %v3514 = vunpack.c.h.b16 %v2196
        %v3515 = vunpack.c.l.b16 %v2197
        %v3516 = vunpack.c.h.b16 %v2197
        %v3517 = vunpack.c.l.b16 %v2198
        %v3518 = vunpack.c.h.b16 %v2198
        %v3519 = vunpack.c.l.b16 %v2199
        %v3520 = vunpack.c.h.b16 %v2199
        %v3521 = vunpack.c.l.b16 %v2200
        %v3522 = vunpack.c.h.b16 %v2200
        %v3523 = vunpack.c.l.b16 %v2201
        %v3524 = vunpack.c.h.b16 %v2201
        %v3525 = vunpack.c.l.b16 %v2202
        %v3526 = vunpack.c.h.b16 %v2202
        %v3527 = vunpack.c.l.b16 %v2203
        %v3528 = vunpack.c.h.b16 %v2203
        %v3529 = vunpack.c.l.b16 %v2204
        %v3530 = vunpack.c.h.b16 %v2204
        %v3531 = vunpack.c.l.b16 %v2205
        %v3532 = vunpack.c.h.b16 %v2205
        %v3533 = vunpack.c.l.b16 %v2206
        %v3534 = vunpack.c.h.b16 %v2206
        %v3535 = vunpack.c.l.b16 %v2207
        %v3536 = vunpack.c.h.b16 %v2207
        %v3537 = vunpack.c.l.b16 %v2208
        %v3538 = vunpack.c.h.b16 %v2208
        %v3539 = vunpack.c.l.b16 %v2209
        %v3540 = vunpack.c.h.b16 %v2209
        %v3541 = vunpack.c.l.b16 %v2210
        %v3542 = vunpack.c.h.b16 %v2210
        %v3543 = vunpack.c.l.b16 %v2211
        %v3544 = vunpack.c.h.b16 %v2211
        %v3545 = vunpack.c.l.b16 %v2212
        %v3546 = vunpack.c.h.b16 %v2212
        %v3547 = vunpack.c.l.b16 %v2213
        %v3548 = vunpack.c.h.b16 %v2213
        %v3549 = vunpack.c.l.b16 %v2214
        %v3550 = vunpack.c.h.b16 %v2214
        %v3551 = vunpack.c.l.b16 %v2215
        %v3552 = vunpack.c.h.b16 %v2215
        %v3553 = vunpack.c.l.b16 %v2216
        %v3554 = vunpack.c.h.b16 %v2216
        %v3555 = vunpack.c.l.b16 %v2217
        %v3556 = vunpack.c.h.b16 %v2217
        %v3557 = vunpack.c.l.b16 %v2218
        %v3558 = vunpack.c.h.b16 %v2218
        %v3559 = vunpack.c.l.b16 %v2219
        %v3560 = vunpack.c.h.b16 %v2219
        %v3561 = vunpack.c.l.b16 %v2220
        %v3562 = vunpack.c.h.b16 %v2220
        %v3563 = vunpack.c.l.b16 %v2221
        %v3564 = vunpack.c.h.b16 %v2221
        %v3565 = vunpack.c.l.b16 %v2222
        %v3566 = vunpack.c.h.b16 %v2222
        %v3567 = vunpack.c.l.b16 %v2223
        %v3568 = vunpack.c.h.b16 %v2223
        %v3569 = vunpack.c.l.b16 %v2224
        %v3570 = vunpack.c.h.b16 %v2224
        %v3571 = vunpack.c.l.b16 %v2225
        %v3572 = vunpack.c.h.b16 %v2225
        %v3573 = vunpack.c.l.b16 %v2226
        %v3574 = vunpack.c.h.b16 %v2226
        %v3575 = vunpack.c.l.b16 %v2227
        %v3576 = vunpack.c.h.b16 %v2227
        %v3577 = vunpack.c.l.b16 %v2228
        %v3578 = vunpack.c.h.b16 %v2228
        %v3579 = vunpack.c.l.b16 %v2229
        %v3580 = vunpack.c.h.b16 %v2229
        %v3581 = vunpack.c.l.b16 %v2230
        %v3582 = vunpack.c.h.b16 %v2230
        %v3583 = vunpack.c.l.b16 %v2231
        %v3584 = vunpack.c.h.b16 %v2231
        %v3585 = vunpack.c.l.b16 %v2232
        %v3586 = vunpack.c.h.b16 %v2232
        %v3587 = vunpack.c.l.b16 %v2233
        %v3588 = vunpack.c.h.b16 %v2233
        %v3589 = vunpack.c.l.b16 %v2234
        %v3590 = vunpack.c.h.b16 %v2234
        %v3591 = vunpack.c.l.b16 %v2235
        %v3592 = vunpack.c.h.b16 %v2235
        %v3593 = vunpack.c.l.b16 %v2236
        %v3594 = vunpack.c.h.b16 %v2236
        %v3595 = vunpack.c.l.b16 %v2237
        %v3596 = vunpack.c.h.b16 %v2237
        %v3597 = vunpack.c.l.b16 %v2238
        %v3598 = vunpack.c.h.b16 %v2238
        %v3599 = vunpack.c.l.b16 %v2239
        %v3600 = vunpack.c.h.b16 %v2239
        %v3601 = vunpack.c.l.b16 %v2240
        %v3602 = vunpack.c.h.b16 %v2240
        %v3603 = vunpack.c.l.b16 %v2241
        %v3604 = vunpack.c.h.b16 %v2241
        %v3605 = vunpack.c.l.b16 %v2242
        %v3606 = vunpack.c.h.b16 %v2242
        %v3607 = vunpack.c.l.b16 %v2243
        %v3608 = vunpack.c.h.b16 %v2243
        %v3609 = vunpack.c.l.b16 %v2244
        %v3610 = vunpack.c.h.b16 %v2244
        %v3611 = vunpack.c.l.b16 %v2245
        %v3612 = vunpack.c.h.b16 %v2245
        %v3613 = vunpack.c.l.b16 %v2246
        %v3614 = vunpack.c.h.b16 %v2246
        %v3615 = vunpack.c.l.b16 %v2247
        %v3616 = vunpack.c.h.b16 %v2247
        %v3617 = vunpack.c.l.b16 %v2248
        %v3618 = vunpack.c.h.b16 %v2248
        %v3619 = vunpack.c.l.b16 %v2249
        %v3620 = vunpack.c.h.b16 %v2249
        %v3621 = vunpack.c.l.b16 %v2250
        %v3622 = vunpack.c.h.b16 %v2250
        %v3623 = vunpack.c.l.b16 %v2251
        %v3624 = vunpack.c.h.b16 %v2251
        %v3625 = vunpack.c.l.b16 %v2252
        %v3626 = vunpack.c.h.b16 %v2252
        %v3627 = vunpack.c.l.b16 %v2253
        %v3628 = vunpack.c.h.b16 %v2253
        %v3629 = vunpack.c.l.b16 %v2254
        %v3630 = vunpack.c.h.b16 %v2254
        %v3631 = vunpack.c.l.b16 %v2255
        %v3632 = vunpack.c.h.b16 %v2255
        %v3633 = vpack.c.b16 %v2851, %v2849
        %v3634 = vpack.c.b16 %v2852, %v2850
        %v3635 = vpack.c.b16 %v2855, %v2853
        %v3636 = vpack.c.b16 %v2856, %v2854
        %v3637 = vpack.c.b16 %v2859, %v2857
        %v3638 = vpack.c.b16 %v2860, %v2858
        %v3639 = vpack.c.b16 %v2863, %v2861
        %v3640 = vpack.c.b16 %v2864, %v2862
        %v3641 = vpack.c.b16 %v2867, %v2865
        %v3642 = vpack.c.b16 %v2868, %v2866
        %v3643 = vpack.c.b16 %v2871, %v2869
        %v3644 = vpack.c.b16 %v2872, %v2870
        %v3645 = vpack.c.b16 %v2875, %v2873
        %v3646 = vpack.c.b16 %v2876, %v2874
        %v3647 = vpack.c.b16 %v2879, %v2877
        %v3648 = vpack.c.b16 %v2880, %v2878
        %v3649 = vpack.c.b16 %v2883, %v2881
        %v3650 = vpack.c.b16 %v2884, %v2882
        %v3651 = vpack.c.b16 %v2887, %v2885
        %v3652 = vpack.c.b16 %v2888, %v2886
        %v3653 = vpack.c.b16 %v2891, %v2889
        %v3654 = vpack.c.b16 %v2892, %v2890
        %v3655 = vpack.c.b16 %v2895, %v2893
        %v3656 = vpack.c.b16 %v2896, %v2894
        %v3657 = vpack.c.b16 %v2899, %v2897
        %v3658 = vpack.c.b16 %v2900, %v2898
        %v3659 = vpack.c.b16 %v2903, %v2901
        %v3660 = vpack.c.b16 %v2904, %v2902
        %v3661 = vpack.c.b16 %v2907, %v2905
        %v3662 = vpack.c.b16 %v2908, %v2906
        %v3663 = vpack.c.b16 %v2911, %v2909
        %v3664 = vpack.c.b16 %v2912, %v2910
        %v3665 = vpack.c.b16 %v2915, %v2913
        %v3666 = vpack.c.b16 %v2916, %v2914
        %v3667 = vpack.c.b16 %v2919, %v2917
        %v3668 = vpack.c.b16 %v2920, %v2918
        %v3669 = vpack.c.b16 %v2923, %v2921
        %v3670 = vpack.c.b16 %v2924, %v2922
        %v3671 = vpack.c.b16 %v2927, %v2925
        %v3672 = vpack.c.b16 %v2928, %v2926
        %v3673 = vpack.c.b16 %v2931, %v2929
        %v3674 = vpack.c.b16 %v2932, %v2930
        %v3675 = vpack.c.b16 %v2935, %v2933
        %v3676 = vpack.c.b16 %v2936, %v2934
        %v3677 = vpack.c.b16 %v2939, %v2937
        %v3678 = vpack.c.b16 %v2940, %v2938
        %v3679 = vpack.c.b16 %v2943, %v2941
        %v3680 = vpack.c.b16 %v2944, %v2942
        %v3681 = vpack.c.b16 %v2947, %v2945
        %v3682 = vpack.c.b16 %v2948, %v2946
        %v3683 = vpack.c.b16 %v2951, %v2949
        %v3684 = vpack.c.b16 %v2952, %v2950
        %v3685 = vpack.c.b16 %v2955, %v2953
        %v3686 = vpack.c.b16 %v2956, %v2954
        %v3687 = vpack.c.b16 %v2959, %v2957
        %v3688 = vpack.c.b16 %v2960, %v2958
        %v3689 = vpack.c.b16 %v2963, %v2961
        %v3690 = vpack.c.b16 %v2964, %v2962
        %v3691 = vpack.c.b16 %v2967, %v2965
        %v3692 = vpack.c.b16 %v2968, %v2966
        %v3693 = vpack.c.b16 %v2971, %v2969
        %v3694 = vpack.c.b16 %v2972, %v2970
        %v3695 = vpack.c.b16 %v2975, %v2973
        %v3696 = vpack.c.b16 %v2976, %v2974
        %v3697 = vpack.c.b16 %v2979, %v2977
        %v3698 = vpack.c.b16 %v2980, %v2978
        %v3699 = vpack.c.b16 %v2983, %v2981
        %v3700 = vpack.c.b16 %v2984, %v2982
        %v3701 = vpack.c.b16 %v2987, %v2985
        %v3702 = vpack.c.b16 %v2988, %v2986
        %v3703 = vpack.c.b16 %v2991, %v2989
        %v3704 = vpack.c.b16 %v2992, %v2990
        %v3705 = vpack.c.b16 %v2995, %v2993
        %v3706 = vpack.c.b16 %v2996, %v2994
        %v3707 = vpack.c.b16 %v2999, %v2997
        %v3708 = vpack.c.b16 %v3000, %v2998
        %v3709 = vpack.c.b16 %v3003, %v3001
        %v3710 = vpack.c.b16 %v3004, %v3002
        %v3711 = vpack.c.b16 %v3007, %v3005
        %v3712 = vpack.c.b16 %v3008, %v3006
        %v3713 = vpack.c.b16 %v3011, %v3009
        %v3714 = vpack.c.b16 %v3012, %v3010
        %v3715 = vpack.c.b16 %v3015, %v3013
        %v3716 = vpack.c.b16 %v3016, %v3014
        %v3717 = vpack.c.b16 %v3019, %v3017
        %v3718 = vpack.c.b16 %v3020, %v3018
        %v3719 = vpack.c.b16 %v3023, %v3021
        %v3720 = vpack.c.b16 %v3024, %v3022
        %v3721 = vpack.c.b16 %v3027, %v3025
        %v3722 = vpack.c.b16 %v3028, %v3026
        %v3723 = vpack.c.b16 %v3031, %v3029
        %v3724 = vpack.c.b16 %v3032, %v3030
        %v3725 = vpack.c.b16 %v3035, %v3033
        %v3726 = vpack.c.b16 %v3036, %v3034
        %v3727 = vpack.c.b16 %v3039, %v3037
        %v3728 = vpack.c.b16 %v3040, %v3038
        %v3729 = vpack.c.b16 %v3043, %v3041
        %v3730 = vpack.c.b16 %v3044, %v3042
        %v3731 = vpack.c.b16 %v3047, %v3045
        %v3732 = vpack.c.b16 %v3048, %v3046
        %v3733 = vpack.c.b16 %v3051, %v3049
        %v3734 = vpack.c.b16 %v3052, %v3050
        %v3735 = vpack.c.b16 %v3055, %v3053
        %v3736 = vpack.c.b16 %v3056, %v3054
        %v3737 = vpack.c.b16 %v3059, %v3057
        %v3738 = vpack.c.b16 %v3060, %v3058
        %v3739 = vpack.c.b16 %v3063, %v3061
        %v3740 = vpack.c.b16 %v3064, %v3062
        %v3741 = vpack.c.b16 %v3067, %v3065
        %v3742 = vpack.c.b16 %v3068, %v3066
        %v3743 = vpack.c.b16 %v3071, %v3069
        %v3744 = vpack.c.b16 %v3072, %v3070
        %v3745 = vpack.c.b16 %v3075, %v3073
        %v3746 = vpack.c.b16 %v3076, %v3074
        %v3747 = vpack.c.b16 %v3079, %v3077
        %v3748 = vpack.c.b16 %v3080, %v3078
        %v3749 = vpack.c.b16 %v3083, %v3081
        %v3750 = vpack.c.b16 %v3084, %v3082
        %v3751 = vpack.c.b16 %v3087, %v3085
        %v3752 = vpack.c.b16 %v3088, %v3086
        %v3753 = vpack.c.b16 %v3091, %v3089
        %v3754 = vpack.c.b16 %v3092, %v3090
        %v3755 = vpack.c.b16 %v3095, %v3093
        %v3756 = vpack.c.b16 %v3096, %v3094
        %v3757 = vpack.c.b16 %v3099, %v3097
        %v3758 = vpack.c.b16 %v3100, %v3098
        %v3759 = vpack.c.b16 %v3103, %v3101
        %v3760 = vpack.c.b16 %v3104, %v3102
        %v3761 = vpack.c.b16 %v3107, %v3105
        %v3762 = vpack.c.b16 %v3108, %v3106
        %v3763 = vpack.c.b16 %v3111, %v3109
        %v3764 = vpack.c.b16 %v3112, %v3110
        %v3765 = vpack.c.b16 %v3115, %v3113
        %v3766 = vpack.c.b16 %v3116, %v3114
        %v3767 = vpack.c.b16 %v3119, %v3117
        %v3768 = vpack.c.b16 %v3120, %v3118
        %v3769 = vpack.c.b16 %v3123, %v3121
        %v3770 = vpack.c.b16 %v3124, %v3122
        %v3771 = vpack.c.b16 %v3127, %v3125
        %v3772 = vpack.c.b16 %v3128, %v3126
        %v3773 = vpack.c.b16 %v3131, %v3129
        %v3774 = vpack.c.b16 %v3132, %v3130
        %v3775 = vpack.c.b16 %v3135, %v3133
        %v3776 = vpack.c.b16 %v3136, %v3134
        %v3777 = vpack.c.b16 %v3139, %v3137
        %v3778 = vpack.c.b16 %v3140, %v3138
        %v3779 = vpack.c.b16 %v3143, %v3141
        %v3780 = vpack.c.b16 %v3144, %v3142
        %v3781 = vpack.c.b16 %v3147, %v3145
        %v3782 = vpack.c.b16 %v3148, %v3146
        %v3783 = vpack.c.b16 %v3151, %v3149
        %v3784 = vpack.c.b16 %v3152, %v3150
        %v3785 = vpack.c.b16 %v3155, %v3153
        %v3786 = vpack.c.b16 %v3156, %v3154
        %v3787 = vpack.c.b16 %v3159, %v3157
        %v3788 = vpack.c.b16 %v3160, %v3158
        %v3789 = vpack.c.b16 %v3163, %v3161
        %v3790 = vpack.c.b16 %v3164, %v3162
        %v3791 = vpack.c.b16 %v3167, %v3165
        %v3792 = vpack.c.b16 %v3168, %v3166
        %v3793 = vpack.c.b16 %v3171, %v3169
        %v3794 = vpack.c.b16 %v3172, %v3170
        %v3795 = vpack.c.b16 %v3175, %v3173
        %v3796 = vpack.c.b16 %v3176, %v3174
        %v3797 = vpack.c.b16 %v3179, %v3177
        %v3798 = vpack.c.b16 %v3180, %v3178
        %v3799 = vpack.c.b16 %v3183, %v3181
        %v3800 = vpack.c.b16 %v3184, %v3182
        %v3801 = vpack.c.b16 %v3187, %v3185
        %v3802 = vpack.c.b16 %v3188, %v3186
        %v3803 = vpack.c.b16 %v3191, %v3189
        %v3804 = vpack.c.b16 %v3192, %v3190
        %v3805 = vpack.c.b16 %v3195, %v3193
        %v3806 = vpack.c.b16 %v3196, %v3194
        %v3807 = vpack.c.b16 %v3199, %v3197
        %v3808 = vpack.c.b16 %v3200, %v3198
        %v3809 = vpack.c.b16 %v3203, %v3201
        %v3810 = vpack.c.b16 %v3204, %v3202
        %v3811 = vpack.c.b16 %v3207, %v3205
        %v3812 = vpack.c.b16 %v3208, %v3206
        %v3813 = vpack.c.b16 %v3211, %v3209
        %v3814 = vpack.c.b16 %v3212, %v3210
        %v3815 = vpack.c.b16 %v3215, %v3213
        %v3816 = vpack.c.b16 %v3216, %v3214
        %v3817 = vpack.c.b16 %v3219, %v3217
        %v3818 = vpack.c.b16 %v3220, %v3218
        %v3819 = vpack.c.b16 %v3223, %v3221
        %v3820 = vpack.c.b16 %v3224, %v3222
        %v3821 = vpack.c.b16 %v3227, %v3225
        %v3822 = vpack.c.b16 %v3228, %v3226
        %v3823 = vpack.c.b16 %v3231, %v3229
        %v3824 = vpack.c.b16 %v3232, %v3230
        %v3825 = vpack.c.b16 %v3235, %v3233
        %v3826 = vpack.c.b16 %v3236, %v3234
        %v3827 = vpack.c.b16 %v3239, %v3237
        %v3828 = vpack.c.b16 %v3240, %v3238
        %v3829 = vpack.c.b16 %v3243, %v3241
        %v3830 = vpack.c.b16 %v3244, %v3242
        %v3831 = vpack.c.b16 %v3247, %v3245
        %v3832 = vpack.c.b16 %v3248, %v3246
        %v3833 = vpack.c.b16 %v3251, %v3249
        %v3834 = vpack.c.b16 %v3252, %v3250
        %v3835 = vpack.c.b16 %v3255, %v3253
        %v3836 = vpack.c.b16 %v3256, %v3254
        %v3837 = vpack.c.b16 %v3259, %v3257
        %v3838 = vpack.c.b16 %v3260, %v3258
        %v3839 = vpack.c.b16 %v3263, %v3261
        %v3840 = vpack.c.b16 %v3264, %v3262
        %v3841 = vpack.c.b16 %v3267, %v3265
        %v3842 = vpack.c.b16 %v3268, %v3266
        %v3843 = vpack.c.b16 %v3271, %v3269
        %v3844 = vpack.c.b16 %v3272, %v3270
        %v3845 = vpack.c.b16 %v3275, %v3273
        %v3846 = vpack.c.b16 %v3276, %v3274
        %v3847 = vpack.c.b16 %v3279, %v3277
        %v3848 = vpack.c.b16 %v3280, %v3278
        %v3849 = vpack.c.b16 %v3283, %v3281
        %v3850 = vpack.c.b16 %v3284, %v3282
        %v3851 = vpack.c.b16 %v3287, %v3285
        %v3852 = vpack.c.b16 %v3288, %v3286
        %v3853 = vpack.c.b16 %v3291, %v3289
        %v3854 = vpack.c.b16 %v3292, %v3290
        %v3855 = vpack.c.b16 %v3295, %v3293
        %v3856 = vpack.c.b16 %v3296, %v3294
        %v3857 = vpack.c.b16 %v3299, %v3297
        %v3858 = vpack.c.b16 %v3300, %v3298
        %v3859 = vpack.c.b16 %v3303, %v3301
        %v3860 = vpack.c.b16 %v3304, %v3302
        %v3861 = vpack.c.b16 %v3307, %v3305
        %v3862 = vpack.c.b16 %v3308, %v3306
        %v3863 = vpack.c.b16 %v3311, %v3309
        %v3864 = vpack.c.b16 %v3312, %v3310
        %v3865 = vpack.c.b16 %v3315, %v3313
        %v3866 = vpack.c.b16 %v3316, %v3314
        %v3867 = vpack.c.b16 %v3319, %v3317
        %v3868 = vpack.c.b16 %v3320, %v3318
        %v3869 = vpack.c.b16 %v3323, %v3321
        %v3870 = vpack.c.b16 %v3324, %v3322
        %v3871 = vpack.c.b16 %v3327, %v3325
        %v3872 = vpack.c.b16 %v3328, %v3326
        %v3873 = vpack.c.b16 %v3331, %v3329
        %v3874 = vpack.c.b16 %v3332, %v3330
        %v3875 = vpack.c.b16 %v3335, %v3333
        %v3876 = vpack.c.b16 %v3336, %v3334
        %v3877 = vpack.c.b16 %v3339, %v3337
        %v3878 = vpack.c.b16 %v3340, %v3338
        %v3879 = vpack.c.b16 %v3343, %v3341
        %v3880 = vpack.c.b16 %v3344, %v3342
        %v3881 = vpack.c.b16 %v3347, %v3345
        %v3882 = vpack.c.b16 %v3348, %v3346
        %v3883 = vpack.c.b16 %v3351, %v3349
        %v3884 = vpack.c.b16 %v3352, %v3350
        %v3885 = vpack.c.b16 %v3355, %v3353
        %v3886 = vpack.c.b16 %v3356, %v3354
        %v3887 = vpack.c.b16 %v3359, %v3357
        %v3888 = vpack.c.b16 %v3360, %v3358
        %v3889 = vpack.c.b16 %v3363, %v3361
        %v3890 = vpack.c.b16 %v3364, %v3362
        %v3891 = vpack.c.b16 %v3367, %v3365
        %v3892 = vpack.c.b16 %v3368, %v3366
        %v3893 = vpack.c.b16 %v3371, %v3369
        %v3894 = vpack.c.b16 %v3372, %v3370
        %v3895 = vpack.c.b16 %v3375, %v3373
        %v3896 = vpack.c.b16 %v3376, %v3374
        %v3897 = vpack.c.b16 %v3379, %v3377
        %v3898 = vpack.c.b16 %v3380, %v3378
        %v3899 = vpack.c.b16 %v3383, %v3381
        %v3900 = vpack.c.b16 %v3384, %v3382
        %v3901 = vpack.c.b16 %v3387, %v3385
        %v3902 = vpack.c.b16 %v3388, %v3386
        %v3903 = vpack.c.b16 %v3391, %v3389
        %v3904 = vpack.c.b16 %v3392, %v3390
        %v3905 = vpack.c.b16 %v3395, %v3393
        %v3906 = vpack.c.b16 %v3396, %v3394
        %v3907 = vpack.c.b16 %v3399, %v3397
        %v3908 = vpack.c.b16 %v3400, %v3398
        %v3909 = vpack.c.b16 %v3403, %v3401
        %v3910 = vpack.c.b16 %v3404, %v3402
        %v3911 = vpack.c.b16 %v3407, %v3405
        %v3912 = vpack.c.b16 %v3408, %v3406
        %v3913 = vpack.c.b16 %v3411, %v3409
        %v3914 = vpack.c.b16 %v3412, %v3410
        %v3915 = vpack.c.b16 %v3415, %v3413
        %v3916 = vpack.c.b16 %v3416, %v3414
        %v3917 = vpack.c.b16 %v3419, %v3417
        %v3918 = vpack.c.b16 %v3420, %v3418
        %v3919 = vpack.c.b16 %v3423, %v3421
        %v3920 = vpack.c.b16 %v3424, %v3422
        %v3921 = vpack.c.b16 %v3427, %v3425
        %v3922 = vpack.c.b16 %v3428, %v3426
        %v3923 = vpack.c.b16 %v3431, %v3429
        %v3924 = vpack.c.b16 %v3432, %v3430
        %v3925 = vpack.c.b16 %v3435, %v3433
        %v3926 = vpack.c.b16 %v3436, %v3434
        %v3927 = vpack.c.b16 %v3439, %v3437
        %v3928 = vpack.c.b16 %v3440, %v3438
        %v3929 = vpack.c.b16 %v3443, %v3441
        %v3930 = vpack.c.b16 %v3444, %v3442
        %v3931 = vpack.c.b16 %v3447, %v3445
        %v3932 = vpack.c.b16 %v3448, %v3446
        %v3933 = vpack.c.b16 %v3451, %v3449
        %v3934 = vpack.c.b16 %v3452, %v3450
        %v3935 = vpack.c.b16 %v3455, %v3453
        %v3936 = vpack.c.b16 %v3456, %v3454
        %v3937 = vpack.c.b16 %v3459, %v3457
        %v3938 = vpack.c.b16 %v3460, %v3458
        %v3939 = vpack.c.b16 %v3463, %v3461
        %v3940 = vpack.c.b16 %v3464, %v3462
        %v3941 = vpack.c.b16 %v3467, %v3465
        %v3942 = vpack.c.b16 %v3468, %v3466
        %v3943 = vpack.c.b16 %v3471, %v3469
        %v3944 = vpack.c.b16 %v3472, %v3470
        %v3945 = vpack.c.b16 %v3475, %v3473
        %v3946 = vpack.c.b16 %v3476, %v3474
        %v3947 = vpack.c.b16 %v3479, %v3477
        %v3948 = vpack.c.b16 %v3480, %v3478
        %v3949 = vpack.c.b16 %v3483, %v3481
        %v3950 = vpack.c.b16 %v3484, %v3482
        %v3951 = vpack.c.b16 %v3487, %v3485
        %v3952 = vpack.c.b16 %v3488, %v3486
        %v3953 = vpack.c.b16 %v3491, %v3489
        %v3954 = vpack.c.b16 %v3492, %v3490
        %v3955 = vpack.c.b16 %v3495, %v3493
        %v3956 = vpack.c.b16 %v3496, %v3494
        %v3957 = vpack.c.b16 %v3499, %v3497
        %v3958 = vpack.c.b16 %v3500, %v3498
        %v3959 = vpack.c.b16 %v3503, %v3501
        %v3960 = vpack.c.b16 %v3504, %v3502
        %v3961 = vpack.c.b16 %v3507, %v3505
        %v3962 = vpack.c.b16 %v3508, %v3506
        %v3963 = vpack.c.b16 %v3511, %v3509
        %v3964 = vpack.c.b16 %v3512, %v3510
        %v3965 = vpack.c.b16 %v3515, %v3513
        %v3966 = vpack.c.b16 %v3516, %v3514
        %v3967 = vpack.c.b16 %v3519, %v3517
        %v3968 = vpack.c.b16 %v3520, %v3518
        %v3969 = vpack.c.b16 %v3523, %v3521
        %v3970 = vpack.c.b16 %v3524, %v3522
        %v3971 = vpack.c.b16 %v3527, %v3525
        %v3972 = vpack.c.b16 %v3528, %v3526
        %v3973 = vpack.c.b16 %v3531, %v3529
        %v3974 = vpack.c.b16 %v3532, %v3530
        %v3975 = vpack.c.b16 %v3535, %v3533
        %v3976 = vpack.c.b16 %v3536, %v3534
        %v3977 = vpack.c.b16 %v3539, %v3537
        %v3978 = vpack.c.b16 %v3540, %v3538
        %v3979 = vpack.c.b16 %v3543, %v3541
        %v3980 = vpack.c.b16 %v3544, %v3542
        %v3981 = vpack.c.b16 %v3547, %v3545
        %v3982 = vpack.c.b16 %v3548, %v3546
        %v3983 = vpack.c.b16 %v3551, %v3549
        %v3984 = vpack.c.b16 %v3552, %v3550
        %v3985 = vpack.c.b16 %v3555, %v3553
        %v3986 = vpack.c.b16 %v3556, %v3554
        %v3987 = vpack.c.b16 %v3559, %v3557
        %v3988 = vpack.c.b16 %v3560, %v3558
        %v3989 = vpack.c.b16 %v3563, %v3561
        %v3990 = vpack.c.b16 %v3564, %v3562
        %v3991 = vpack.c.b16 %v3567, %v3565
        %v3992 = vpack.c.b16 %v3568, %v3566
        %v3993 = vpack.c.b16 %v3571, %v3569
        %v3994 = vpack.c.b16 %v3572, %v3570
        %v3995 = vpack.c.b16 %v3575, %v3573
        %v3996 = vpack.c.b16 %v3576, %v3574
        %v3997 = vpack.c.b16 %v3579, %v3577
        %v3998 = vpack.c.b16 %v3580, %v3578
        %v3999 = vpack.c.b16 %v3583, %v3581
        %v4000 = vpack.c.b16 %v3584, %v3582
        %v4001 = vpack.c.b16 %v3587, %v3585
        %v4002 = vpack.c.b16 %v3588, %v3586
        %v4003 = vpack.c.b16 %v3591, %v3589
        %v4004 = vpack.c.b16 %v3592, %v3590
        %v4005 = vpack.c.b16 %v3595, %v3593
        %v4006 = vpack.c.b16 %v3596, %v3594
        %v4007 = vpack.c.b16 %v3599, %v3597
        %v4008 = vpack.c.b16 %v3600, %v3598
        %v4009 = vpack.c.b16 %v3603, %v3601
        %v4010 = vpack.c.b16 %v3604, %v3602
        %v4011 = vpack.c.b16 %v3607, %v3605
        %v4012 = vpack.c.b16 %v3608, %v3606
        %v4013 = vpack.c.b16 %v3611, %v3609
        %v4014 = vpack.c.b16 %v3612, %v3610
        %v4015 = vpack.c.b16 %v3615, %v3613
        %v4016 = vpack.c.b16 %v3616, %v3614
        %v4017 = vpack.c.b16 %v3619, %v3617
        %v4018 = vpack.c.b16 %v3620, %v3618
        %v4019 = vpack.c.b16 %v3623, %v3621
        %v4020 = vpack.c.b16 %v3624, %v3622
        %v4021 = vpack.c.b16 %v3627, %v3625
        %v4022 = vpack.c.b16 %v3628, %v3626
        %v4023 = vpack.c.b16 %v3631, %v3629
        %v4024 = vpack.c.b16 %v3632, %v3630
        %vm4417 = vcmask 523264
        %v4419 = vsel %vm4417, %v2432, 0
        %4421 = vmatprep.subr.bf16.mxu0 %v3648
        %4422 = vmatpush1.bf16.msra.mxu0 %v3647
        %4423 = vmatprep.subr.bf16.mxu0 %v3646
        %4424 = vmatpush1.bf16.msra.mxu0 %v3645
        %4425 = vmatprep.subr.bf16.mxu0 %v3644
        %4426 = vmatpush1.bf16.msra.mxu0 %v3643
        %4427 = vmatprep.subr.bf16.mxu0 %v3642
        %4428 = vmatpush1.bf16.msra.mxu0 %v3641
        %4429 = vmatprep.subr.bf16.mxu0 %v3640
        %4430 = vmatpush1.bf16.msra.mxu0 %v3639
        %4431 = vmatprep.subr.bf16.mxu0 %v3638
        %4432 = vmatpush1.bf16.msra.mxu0 %v3637
        %4433 = vmatprep.subr.bf16.mxu0 %v3636
        %4434 = vmatpush1.bf16.msra.mxu0 %v3635
        %4435 = vmatprep.subr.bf16.mxu0 %v3634
        %4436 = vmatpush1.bf16.msra.mxu0 %v3633
        %4437 = vmatprep.subr.bf16.mxu0 %v3664
        %4438 = vmatpush2.bf16.msra.mxu0 %v3663
        %4439 = vmatprep.subr.bf16.mxu0 %v3662
        %4440 = vmatpush2.bf16.msra.mxu0 %v3661
        %4441 = vmatprep.subr.bf16.mxu0 %v3660
        %4442 = vmatpush2.bf16.msra.mxu0 %v3659
        %4443 = vmatprep.subr.bf16.mxu0 %v3658
        %4444 = vmatpush2.bf16.msra.mxu0 %v3657
        %4445 = vmatprep.subr.bf16.mxu0 %v3656
        %4446 = vmatpush2.bf16.msra.mxu0 %v3655
        %4447 = vmatprep.subr.bf16.mxu0 %v3654
        %4448 = vmatpush2.bf16.msra.mxu0 %v3653
        %4449 = vmatprep.subr.bf16.mxu0 %v3652
        %4450 = vmatpush2.bf16.msra.mxu0 %v3651
        %4451 = vmatprep.subr.bf16.mxu0 %v3650
        %4452 = vmatpush2.bf16.msra.mxu0 %v3649
        %4453 = vmatprep.mubr.bf16.mxu0 %v2309
        %4454 = vmatmul.mubr.bf16.gmra.mxu0 %v2295
        %v4455 = vpop.f32.mrf.mxu0
        %v4456 = vadd.f32 %v2261, %v4455
        %v4457 = vpop.f32.mrf.mxu0
        %v4458 = vadd.f32 %v2265, %v4457
        %v4459 = vpop.f32.mrf.mxu0
        %v4460 = vpop.f32.mrf.mxu0
        %4461 = vdwg.mxu0
        %4462 = vmatprep.subr.bf16.mxu0 %v3680
        %4463 = vmatpush1.bf16.msra.mxu0 %v3679
        %4464 = vmatprep.subr.bf16.mxu0 %v3678
        %4465 = vmatpush1.bf16.msra.mxu0 %v3677
        %4466 = vmatprep.subr.bf16.mxu0 %v3676
        %4467 = vmatpush1.bf16.msra.mxu0 %v3675
        %4468 = vmatprep.subr.bf16.mxu0 %v3674
        %4469 = vmatpush1.bf16.msra.mxu0 %v3673
        %4470 = vmatprep.subr.bf16.mxu0 %v3672
        %4471 = vmatpush1.bf16.msra.mxu0 %v3671
        %4472 = vmatprep.subr.bf16.mxu0 %v3670
        %4473 = vmatpush1.bf16.msra.mxu0 %v3669
        %4474 = vmatprep.subr.bf16.mxu0 %v3668
        %4475 = vmatpush1.bf16.msra.mxu0 %v3667
        %4476 = vmatprep.subr.bf16.mxu0 %v3666
        %4477 = vmatpush1.bf16.msra.mxu0 %v3665
        %4478 = vmatprep.subr.bf16.mxu0 %v3696
        %4479 = vmatpush2.bf16.msra.mxu0 %v3695
        %4480 = vmatprep.subr.bf16.mxu0 %v3694
        %4481 = vmatpush2.bf16.msra.mxu0 %v3693
        %4482 = vmatprep.subr.bf16.mxu0 %v3692
        %4483 = vmatpush2.bf16.msra.mxu0 %v3691
        %4484 = vmatprep.subr.bf16.mxu0 %v3690
        %4485 = vmatpush2.bf16.msra.mxu0 %v3689
        %4486 = vmatprep.subr.bf16.mxu0 %v3688
        %4487 = vmatpush2.bf16.msra.mxu0 %v3687
        %4488 = vmatprep.subr.bf16.mxu0 %v3686
        %4489 = vmatpush2.bf16.msra.mxu0 %v3685
        %4490 = vmatprep.subr.bf16.mxu0 %v3684
        %4491 = vmatpush2.bf16.msra.mxu0 %v3683
        %4492 = vmatprep.subr.bf16.mxu0 %v3682
        %4493 = vmatpush2.bf16.msra.mxu0 %v3681
        %4494 = vmatprep.mubr.bf16.mxu0 %v2319
        %4495 = vmatmul.mubr.bf16.gmra.mxu0 %v2317
        %v4496 = vpop.f32.mrf.mxu0
        %v4497 = vadd.f32 %v4456, %v4496
        %v4498 = vpop.f32.mrf.mxu0
        %v4499 = vadd.f32 %v4458, %v4498
        %v4500 = vpop.f32.mrf.mxu0
        %v4501 = vpop.f32.mrf.mxu0
        %4502 = vdwg.mxu0
        %4503 = vmatprep.subr.bf16.mxu0 %v3712
        %4504 = vmatpush1.bf16.msra.mxu0 %v3711
        %4505 = vmatprep.subr.bf16.mxu0 %v3710
        %4506 = vmatpush1.bf16.msra.mxu0 %v3709
        %4507 = vmatprep.subr.bf16.mxu0 %v3708
        %4508 = vmatpush1.bf16.msra.mxu0 %v3707
        %4509 = vmatprep.subr.bf16.mxu0 %v3706
        %4510 = vmatpush1.bf16.msra.mxu0 %v3705
        %4511 = vmatprep.subr.bf16.mxu0 %v3704
        %4512 = vmatpush1.bf16.msra.mxu0 %v3703
        %4513 = vmatprep.subr.bf16.mxu0 %v3702
        %4514 = vmatpush1.bf16.msra.mxu0 %v3701
        %4515 = vmatprep.subr.bf16.mxu0 %v3700
        %4516 = vmatpush1.bf16.msra.mxu0 %v3699
        %4517 = vmatprep.subr.bf16.mxu0 %v3698
        %4518 = vmatpush1.bf16.msra.mxu0 %v3697
        %4519 = vmatprep.subr.bf16.mxu0 %v3728
        %4520 = vmatpush2.bf16.msra.mxu0 %v3727
        %4521 = vmatprep.subr.bf16.mxu0 %v3726
        %4522 = vmatpush2.bf16.msra.mxu0 %v3725
        %4523 = vmatprep.subr.bf16.mxu0 %v3724
        %4524 = vmatpush2.bf16.msra.mxu0 %v3723
        %4525 = vmatprep.subr.bf16.mxu0 %v3722
        %4526 = vmatpush2.bf16.msra.mxu0 %v3721
        %4527 = vmatprep.subr.bf16.mxu0 %v3720
        %4528 = vmatpush2.bf16.msra.mxu0 %v3719
        %4529 = vmatprep.subr.bf16.mxu0 %v3718
        %4530 = vmatpush2.bf16.msra.mxu0 %v3717
        %4531 = vmatprep.subr.bf16.mxu0 %v3716
        %4532 = vmatpush2.bf16.msra.mxu0 %v3715
        %4533 = vmatprep.subr.bf16.mxu0 %v3714
        %4534 = vmatpush2.bf16.msra.mxu0 %v3713
        %4535 = vmatprep.mubr.bf16.mxu0 %v2316
        %4536 = vmatmul.mubr.bf16.gmra.mxu0 %v2302
        %v4537 = vpop.f32.mrf.mxu0
        %v4538 = vadd.f32 %v4497, %v4537
        %v4539 = vpop.f32.mrf.mxu0
        %v4540 = vadd.f32 %v4499, %v4539
        %v4541 = vpop.f32.mrf.mxu0
        %v4542 = vpop.f32.mrf.mxu0
        %4543 = vdwg.mxu0
        %4544 = vmatprep.subr.bf16.mxu0 %v3744
        %4545 = vmatpush1.bf16.msra.mxu0 %v3743
        %4546 = vmatprep.subr.bf16.mxu0 %v3742
        %4547 = vmatpush1.bf16.msra.mxu0 %v3741
        %4548 = vmatprep.subr.bf16.mxu0 %v3740
        %4549 = vmatpush1.bf16.msra.mxu0 %v3739
        %4550 = vmatprep.subr.bf16.mxu0 %v3738
        %4551 = vmatpush1.bf16.msra.mxu0 %v3737
        %4552 = vmatprep.subr.bf16.mxu0 %v3736
        %4553 = vmatpush1.bf16.msra.mxu0 %v3735
        %4554 = vmatprep.subr.bf16.mxu0 %v3734
        %4555 = vmatpush1.bf16.msra.mxu0 %v3733
        %4556 = vmatprep.subr.bf16.mxu0 %v3732
        %4557 = vmatpush1.bf16.msra.mxu0 %v3731
        %4558 = vmatprep.subr.bf16.mxu0 %v3730
        %4559 = vmatpush1.bf16.msra.mxu0 %v3729
        %4560 = vmatprep.subr.bf16.mxu0 %v3760
        %4561 = vmatpush2.bf16.msra.mxu0 %v3759
        %4562 = vmatprep.subr.bf16.mxu0 %v3758
        %4563 = vmatpush2.bf16.msra.mxu0 %v3757
        %4564 = vmatprep.subr.bf16.mxu0 %v3756
        %4565 = vmatpush2.bf16.msra.mxu0 %v3755
        %4566 = vmatprep.subr.bf16.mxu0 %v3754
        %4567 = vmatpush2.bf16.msra.mxu0 %v3753
        %4568 = vmatprep.subr.bf16.mxu0 %v3752
        %4569 = vmatpush2.bf16.msra.mxu0 %v3751
        %4570 = vmatprep.subr.bf16.mxu0 %v3750
        %4571 = vmatpush2.bf16.msra.mxu0 %v3749
        %4572 = vmatprep.subr.bf16.mxu0 %v3748
        %4573 = vmatpush2.bf16.msra.mxu0 %v3747
        %4574 = vmatprep.subr.bf16.mxu0 %v3746
        %4575 = vmatpush2.bf16.msra.mxu0 %v3745
        %4576 = vmatprep.mubr.bf16.mxu0 %v2320
        %4577 = vmatmul.mubr.bf16.gmra.mxu0 %v2318
        %v4578 = vpop.f32.mrf.mxu0
        %v4579 = vadd.f32 %v4538, %v4578
        %v4580 = vpop.f32.mrf.mxu0
        %v4581 = vadd.f32 %v4540, %v4580
        %v4582 = vpop.f32.mrf.mxu0
        %v4583 = vpop.f32.mrf.mxu0
        %4584 = vdwg.mxu0
        %4585 = vmatprep.subr.bf16.mxu0 %v3776
        %4586 = vmatpush1.bf16.msra.mxu0 %v3775
        %4587 = vmatprep.subr.bf16.mxu0 %v3774
        %4588 = vmatpush1.bf16.msra.mxu0 %v3773
        %4589 = vmatprep.subr.bf16.mxu0 %v3772
        %4590 = vmatpush1.bf16.msra.mxu0 %v3771
        %4591 = vmatprep.subr.bf16.mxu0 %v3770
        %4592 = vmatpush1.bf16.msra.mxu0 %v3769
        %4593 = vmatprep.subr.bf16.mxu0 %v3768
        %4594 = vmatpush1.bf16.msra.mxu0 %v3767
        %4595 = vmatprep.subr.bf16.mxu0 %v3766
        %4596 = vmatpush1.bf16.msra.mxu0 %v3765
        %4597 = vmatprep.subr.bf16.mxu0 %v3764
        %4598 = vmatpush1.bf16.msra.mxu0 %v3763
        %4599 = vmatprep.subr.bf16.mxu0 %v3762
        %4600 = vmatpush1.bf16.msra.mxu0 %v3761
        %4601 = vmatprep.subr.bf16.mxu0 %v3792
        %4602 = vmatpush2.bf16.msra.mxu0 %v3791
        %4603 = vmatprep.subr.bf16.mxu0 %v3790
        %4604 = vmatpush2.bf16.msra.mxu0 %v3789
        %4605 = vmatprep.subr.bf16.mxu0 %v3788
        %4606 = vmatpush2.bf16.msra.mxu0 %v3787
        %4607 = vmatprep.subr.bf16.mxu0 %v3786
        %4608 = vmatpush2.bf16.msra.mxu0 %v3785
        %4609 = vmatprep.subr.bf16.mxu0 %v3784
        %4610 = vmatpush2.bf16.msra.mxu0 %v3783
        %4611 = vmatprep.subr.bf16.mxu0 %v3782
        %4612 = vmatpush2.bf16.msra.mxu0 %v3781
        %4613 = vmatprep.subr.bf16.mxu0 %v3780
        %4614 = vmatpush2.bf16.msra.mxu0 %v3779
        %4615 = vmatprep.subr.bf16.mxu0 %v3778
        %4616 = vmatpush2.bf16.msra.mxu0 %v3777
        %4617 = vmatprep.mubr.bf16.mxu0 %v2358
        %4618 = vmatmul.mubr.bf16.gmra.mxu0 %v2344
        %v4619 = vpop.f32.mrf.mxu0
        %v4620 = vadd.f32 %v4579, %v4619
        %v4621 = vpop.f32.mrf.mxu0
        %v4622 = vadd.f32 %v4581, %v4621
        %v4623 = vpop.f32.mrf.mxu0
        %v4624 = vpop.f32.mrf.mxu0
        %4625 = vdwg.mxu0
        %4626 = vmatprep.subr.bf16.mxu0 %v3808
        %4627 = vmatpush1.bf16.msra.mxu0 %v3807
        %4628 = vmatprep.subr.bf16.mxu0 %v3806
        %4629 = vmatpush1.bf16.msra.mxu0 %v3805
        %4630 = vmatprep.subr.bf16.mxu0 %v3804
        %4631 = vmatpush1.bf16.msra.mxu0 %v3803
        %4632 = vmatprep.subr.bf16.mxu0 %v3802
        %4633 = vmatpush1.bf16.msra.mxu0 %v3801
        %4634 = vmatprep.subr.bf16.mxu0 %v3800
        %4635 = vmatpush1.bf16.msra.mxu0 %v3799
        %4636 = vmatprep.subr.bf16.mxu0 %v3798
        %4637 = vmatpush1.bf16.msra.mxu0 %v3797
        %4638 = vmatprep.subr.bf16.mxu0 %v3796
        %4639 = vmatpush1.bf16.msra.mxu0 %v3795
        %4640 = vmatprep.subr.bf16.mxu0 %v3794
        %4641 = vmatpush1.bf16.msra.mxu0 %v3793
        %4642 = vmatprep.subr.bf16.mxu0 %v3824
        %4643 = vmatpush2.bf16.msra.mxu0 %v3823
        %4644 = vmatprep.subr.bf16.mxu0 %v3822
        %4645 = vmatpush2.bf16.msra.mxu0 %v3821
        %4646 = vmatprep.subr.bf16.mxu0 %v3820
        %4647 = vmatpush2.bf16.msra.mxu0 %v3819
        %4648 = vmatprep.subr.bf16.mxu0 %v3818
        %4649 = vmatpush2.bf16.msra.mxu0 %v3817
        %4650 = vmatprep.subr.bf16.mxu0 %v3816
        %4651 = vmatpush2.bf16.msra.mxu0 %v3815
        %4652 = vmatprep.subr.bf16.mxu0 %v3814
        %4653 = vmatpush2.bf16.msra.mxu0 %v3813
        %4654 = vmatprep.subr.bf16.mxu0 %v3812
        %4655 = vmatpush2.bf16.msra.mxu0 %v3811
        %4656 = vmatprep.subr.bf16.mxu0 %v3810
        %4657 = vmatpush2.bf16.msra.mxu0 %v3809
        %4658 = vmatprep.mubr.bf16.mxu0 %v2368
        %4659 = vmatmul.mubr.bf16.gmra.mxu0 %v2366
        %v4660 = vpop.f32.mrf.mxu0
        %v4661 = vadd.f32 %v4620, %v4660
        %v4662 = vpop.f32.mrf.mxu0
        %v4663 = vadd.f32 %v4622, %v4662
        %v4664 = vpop.f32.mrf.mxu0
        %v4665 = vpop.f32.mrf.mxu0
        %4666 = vdwg.mxu0
        %4667 = vmatprep.subr.bf16.mxu0 %v3840
        %4668 = vmatpush1.bf16.msra.mxu0 %v3839
        %4669 = vmatprep.subr.bf16.mxu0 %v3838
        %4670 = vmatpush1.bf16.msra.mxu0 %v3837
        %4671 = vmatprep.subr.bf16.mxu0 %v3836
        %4672 = vmatpush1.bf16.msra.mxu0 %v3835
        %4673 = vmatprep.subr.bf16.mxu0 %v3834
        %4674 = vmatpush1.bf16.msra.mxu0 %v3833
        %4675 = vmatprep.subr.bf16.mxu0 %v3832
        %4676 = vmatpush1.bf16.msra.mxu0 %v3831
        %4677 = vmatprep.subr.bf16.mxu0 %v3830
        %4678 = vmatpush1.bf16.msra.mxu0 %v3829
        %4679 = vmatprep.subr.bf16.mxu0 %v3828
        %4680 = vmatpush1.bf16.msra.mxu0 %v3827
        %4681 = vmatprep.subr.bf16.mxu0 %v3826
        %4682 = vmatpush1.bf16.msra.mxu0 %v3825
        %4683 = vmatprep.subr.bf16.mxu0 %v3856
        %4684 = vmatpush2.bf16.msra.mxu0 %v3855
        %4685 = vmatprep.subr.bf16.mxu0 %v3854
        %4686 = vmatpush2.bf16.msra.mxu0 %v3853
        %4687 = vmatprep.subr.bf16.mxu0 %v3852
        %4688 = vmatpush2.bf16.msra.mxu0 %v3851
        %4689 = vmatprep.subr.bf16.mxu0 %v3850
        %4690 = vmatpush2.bf16.msra.mxu0 %v3849
        %4691 = vmatprep.subr.bf16.mxu0 %v3848
        %4692 = vmatpush2.bf16.msra.mxu0 %v3847
        %4693 = vmatprep.subr.bf16.mxu0 %v3846
        %4694 = vmatpush2.bf16.msra.mxu0 %v3845
        %4695 = vmatprep.subr.bf16.mxu0 %v3844
        %4696 = vmatpush2.bf16.msra.mxu0 %v3843
        %4697 = vmatprep.subr.bf16.mxu0 %v3842
        %4698 = vmatpush2.bf16.msra.mxu0 %v3841
        %4699 = vmatprep.mubr.bf16.mxu0 %v2365
        %4700 = vmatmul.mubr.bf16.gmra.mxu0 %v2351
        %v4701 = vpop.f32.mrf.mxu0
        %v4702 = vadd.f32 %v4661, %v4701
        %v4703 = vpop.f32.mrf.mxu0
        %v4704 = vadd.f32 %v4663, %v4703
        %v4705 = vpop.f32.mrf.mxu0
        %v4706 = vpop.f32.mrf.mxu0
        %4707 = vdwg.mxu0
        %4708 = vmatprep.subr.bf16.mxu0 %v3872
        %4709 = vmatpush1.bf16.msra.mxu0 %v3871
        %4710 = vmatprep.subr.bf16.mxu0 %v3870
        %4711 = vmatpush1.bf16.msra.mxu0 %v3869
        %4712 = vmatprep.subr.bf16.mxu0 %v3868
        %4713 = vmatpush1.bf16.msra.mxu0 %v3867
        %4714 = vmatprep.subr.bf16.mxu0 %v3866
        %4715 = vmatpush1.bf16.msra.mxu0 %v3865
        %4716 = vmatprep.subr.bf16.mxu0 %v3864
        %4717 = vmatpush1.bf16.msra.mxu0 %v3863
        %4718 = vmatprep.subr.bf16.mxu0 %v3862
        %4719 = vmatpush1.bf16.msra.mxu0 %v3861
        %4720 = vmatprep.subr.bf16.mxu0 %v3860
        %4721 = vmatpush1.bf16.msra.mxu0 %v3859
        %4722 = vmatprep.subr.bf16.mxu0 %v3858
        %4723 = vmatpush1.bf16.msra.mxu0 %v3857
        %4724 = vmatprep.subr.bf16.mxu0 %v3888
        %4725 = vmatpush2.bf16.msra.mxu0 %v3887
        %4726 = vmatprep.subr.bf16.mxu0 %v3886
        %4727 = vmatpush2.bf16.msra.mxu0 %v3885
        %4728 = vmatprep.subr.bf16.mxu0 %v3884
        %4729 = vmatpush2.bf16.msra.mxu0 %v3883
        %4730 = vmatprep.subr.bf16.mxu0 %v3882
        %4731 = vmatpush2.bf16.msra.mxu0 %v3881
        %4732 = vmatprep.subr.bf16.mxu0 %v3880
        %4733 = vmatpush2.bf16.msra.mxu0 %v3879
        %4734 = vmatprep.subr.bf16.mxu0 %v3878
        %4735 = vmatpush2.bf16.msra.mxu0 %v3877
        %4736 = vmatprep.subr.bf16.mxu0 %v3876
        %4737 = vmatpush2.bf16.msra.mxu0 %v3875
        %4738 = vmatprep.subr.bf16.mxu0 %v3874
        %4739 = vmatpush2.bf16.msra.mxu0 %v3873
        %4740 = vmatprep.mubr.bf16.mxu0 %v2369
        %4741 = vmatmul.mubr.bf16.gmra.mxu0 %v2367
        %v4742 = vpop.f32.mrf.mxu0
        %v4743 = vadd.f32 %v4702, %v4742
        %v4744 = vpop.f32.mrf.mxu0
        %v4745 = vadd.f32 %v4704, %v4744
        %v4746 = vpop.f32.mrf.mxu0
        %v4747 = vpop.f32.mrf.mxu0
        %4748 = vdwg.mxu0
        %4749 = vmatprep.subr.bf16.mxu0 %v3904
        %4750 = vmatpush1.bf16.msra.mxu0 %v3903
        %4751 = vmatprep.subr.bf16.mxu0 %v3902
        %4752 = vmatpush1.bf16.msra.mxu0 %v3901
        %4753 = vmatprep.subr.bf16.mxu0 %v3900
        %4754 = vmatpush1.bf16.msra.mxu0 %v3899
        %4755 = vmatprep.subr.bf16.mxu0 %v3898
        %4756 = vmatpush1.bf16.msra.mxu0 %v3897
        %4757 = vmatprep.subr.bf16.mxu0 %v3896
        %4758 = vmatpush1.bf16.msra.mxu0 %v3895
        %4759 = vmatprep.subr.bf16.mxu0 %v3894
        %4760 = vmatpush1.bf16.msra.mxu0 %v3893
        %4761 = vmatprep.subr.bf16.mxu0 %v3892
        %4762 = vmatpush1.bf16.msra.mxu0 %v3891
        %4763 = vmatprep.subr.bf16.mxu0 %v3890
        %4764 = vmatpush1.bf16.msra.mxu0 %v3889
        %4765 = vmatprep.subr.bf16.mxu0 %v3920
        %4766 = vmatpush2.bf16.msra.mxu0 %v3919
        %4767 = vmatprep.subr.bf16.mxu0 %v3918
        %4768 = vmatpush2.bf16.msra.mxu0 %v3917
        %4769 = vmatprep.subr.bf16.mxu0 %v3916
        %4770 = vmatpush2.bf16.msra.mxu0 %v3915
        %4771 = vmatprep.subr.bf16.mxu0 %v3914
        %4772 = vmatpush2.bf16.msra.mxu0 %v3913
        %4773 = vmatprep.subr.bf16.mxu0 %v3912
        %4774 = vmatpush2.bf16.msra.mxu0 %v3911
        %4775 = vmatprep.subr.bf16.mxu0 %v3910
        %4776 = vmatpush2.bf16.msra.mxu0 %v3909
        %4777 = vmatprep.subr.bf16.mxu0 %v3908
        %4778 = vmatpush2.bf16.msra.mxu0 %v3907
        %4779 = vmatprep.subr.bf16.mxu0 %v3906
        %4780 = vmatpush2.bf16.msra.mxu0 %v3905
        %4781 = vmatprep.mubr.bf16.mxu0 %v2407
        %4782 = vmatmul.mubr.bf16.gmra.mxu0 %v2393
        %v4783 = vpop.f32.mrf.mxu0
        %v4784 = vadd.f32 %v4743, %v4783
        %v4785 = vpop.f32.mrf.mxu0
        %v4786 = vadd.f32 %v4745, %v4785
        %v4787 = vpop.f32.mrf.mxu0
        %v4788 = vpop.f32.mrf.mxu0
        %4789 = vdwg.mxu0
        %4790 = vmatprep.subr.bf16.mxu0 %v3936
        %4791 = vmatpush1.bf16.msra.mxu0 %v3935
        %4792 = vmatprep.subr.bf16.mxu0 %v3934
        %4793 = vmatpush1.bf16.msra.mxu0 %v3933
        %4794 = vmatprep.subr.bf16.mxu0 %v3932
        %4795 = vmatpush1.bf16.msra.mxu0 %v3931
        %4796 = vmatprep.subr.bf16.mxu0 %v3930
        %4797 = vmatpush1.bf16.msra.mxu0 %v3929
        %4798 = vmatprep.subr.bf16.mxu0 %v3928
        %4799 = vmatpush1.bf16.msra.mxu0 %v3927
        %4800 = vmatprep.subr.bf16.mxu0 %v3926
        %4801 = vmatpush1.bf16.msra.mxu0 %v3925
        %4802 = vmatprep.subr.bf16.mxu0 %v3924
        %4803 = vmatpush1.bf16.msra.mxu0 %v3923
        %4804 = vmatprep.subr.bf16.mxu0 %v3922
        %4805 = vmatpush1.bf16.msra.mxu0 %v3921
        %4806 = vmatprep.subr.bf16.mxu0 %v3952
        %4807 = vmatpush2.bf16.msra.mxu0 %v3951
        %4808 = vmatprep.subr.bf16.mxu0 %v3950
        %4809 = vmatpush2.bf16.msra.mxu0 %v3949
        %4810 = vmatprep.subr.bf16.mxu0 %v3948
        %4811 = vmatpush2.bf16.msra.mxu0 %v3947
        %4812 = vmatprep.subr.bf16.mxu0 %v3946
        %4813 = vmatpush2.bf16.msra.mxu0 %v3945
        %4814 = vmatprep.subr.bf16.mxu0 %v3944
        %4815 = vmatpush2.bf16.msra.mxu0 %v3943
        %4816 = vmatprep.subr.bf16.mxu0 %v3942
        %4817 = vmatpush2.bf16.msra.mxu0 %v3941
        %4818 = vmatprep.subr.bf16.mxu0 %v3940
        %4819 = vmatpush2.bf16.msra.mxu0 %v3939
        %4820 = vmatprep.subr.bf16.mxu0 %v3938
        %4821 = vmatpush2.bf16.msra.mxu0 %v3937
        %4822 = vmatprep.mubr.bf16.mxu0 %v2417
        %4823 = vmatmul.mubr.bf16.gmra.mxu0 %v2415
        %v4824 = vpop.f32.mrf.mxu0
        %v4825 = vadd.f32 %v4784, %v4824
        %v4826 = vpop.f32.mrf.mxu0
        %v4827 = vadd.f32 %v4786, %v4826
        %v4828 = vpop.f32.mrf.mxu0
        %v4829 = vpop.f32.mrf.mxu0
        %4830 = vdwg.mxu0
        %4831 = vmatprep.subr.bf16.mxu0 %v3968
        %4832 = vmatpush1.bf16.msra.mxu0 %v3967
        %4833 = vmatprep.subr.bf16.mxu0 %v3966
        %4834 = vmatpush1.bf16.msra.mxu0 %v3965
        %4835 = vmatprep.subr.bf16.mxu0 %v3964
        %4836 = vmatpush1.bf16.msra.mxu0 %v3963
        %4837 = vmatprep.subr.bf16.mxu0 %v3962
        %4838 = vmatpush1.bf16.msra.mxu0 %v3961
        %4839 = vmatprep.subr.bf16.mxu0 %v3960
        %4840 = vmatpush1.bf16.msra.mxu0 %v3959
        %4841 = vmatprep.subr.bf16.mxu0 %v3958
        %4842 = vmatpush1.bf16.msra.mxu0 %v3957
        %4843 = vmatprep.subr.bf16.mxu0 %v3956
        %4844 = vmatpush1.bf16.msra.mxu0 %v3955
        %4845 = vmatprep.subr.bf16.mxu0 %v3954
        %4846 = vmatpush1.bf16.msra.mxu0 %v3953
        %4847 = vmatprep.subr.bf16.mxu0 %v3984
        %4848 = vmatpush2.bf16.msra.mxu0 %v3983
        %4849 = vmatprep.subr.bf16.mxu0 %v3982
        %4850 = vmatpush2.bf16.msra.mxu0 %v3981
        %4851 = vmatprep.subr.bf16.mxu0 %v3980
        %4852 = vmatpush2.bf16.msra.mxu0 %v3979
        %4853 = vmatprep.subr.bf16.mxu0 %v3978
        %4854 = vmatpush2.bf16.msra.mxu0 %v3977
        %4855 = vmatprep.subr.bf16.mxu0 %v3976
        %4856 = vmatpush2.bf16.msra.mxu0 %v3975
        %4857 = vmatprep.subr.bf16.mxu0 %v3974
        %4858 = vmatpush2.bf16.msra.mxu0 %v3973
        %4859 = vmatprep.subr.bf16.mxu0 %v3972
        %4860 = vmatpush2.bf16.msra.mxu0 %v3971
        %4861 = vmatprep.subr.bf16.mxu0 %v3970
        %4862 = vmatpush2.bf16.msra.mxu0 %v3969
        %4863 = vmatprep.mubr.bf16.mxu0 %v2414
        %4864 = vmatmul.mubr.bf16.gmra.mxu0 %v2400
        %v4865 = vpop.f32.mrf.mxu0
        %v4866 = vadd.f32 %v4825, %v4865
        %v4867 = vpop.f32.mrf.mxu0
        %v4868 = vadd.f32 %v4827, %v4867
        %v4869 = vpop.f32.mrf.mxu0
        %v4870 = vpop.f32.mrf.mxu0
        %4871 = vdwg.mxu0
        %4872 = vmatprep.subr.bf16.mxu0 %v4000
        %4873 = vmatpush1.bf16.msra.mxu0 %v3999
        %4874 = vmatprep.subr.bf16.mxu0 %v3998
        %4875 = vmatpush1.bf16.msra.mxu0 %v3997
        %4876 = vmatprep.subr.bf16.mxu0 %v3996
        %4877 = vmatpush1.bf16.msra.mxu0 %v3995
        %4878 = vmatprep.subr.bf16.mxu0 %v3994
        %4879 = vmatpush1.bf16.msra.mxu0 %v3993
        %4880 = vmatprep.subr.bf16.mxu0 %v3992
        %4881 = vmatpush1.bf16.msra.mxu0 %v3991
        %4882 = vmatprep.subr.bf16.mxu0 %v3990
        %4883 = vmatpush1.bf16.msra.mxu0 %v3989
        %4884 = vmatprep.subr.bf16.mxu0 %v3988
        %4885 = vmatpush1.bf16.msra.mxu0 %v3987
        %4886 = vmatprep.subr.bf16.mxu0 %v3986
        %4887 = vmatpush1.bf16.msra.mxu0 %v3985
        %4888 = vmatprep.subr.bf16.mxu0 %v4016
        %4889 = vmatpush2.bf16.msra.mxu0 %v4015
        %4890 = vmatprep.subr.bf16.mxu0 %v4014
        %4891 = vmatpush2.bf16.msra.mxu0 %v4013
        %4892 = vmatprep.subr.bf16.mxu0 %v4012
        %4893 = vmatpush2.bf16.msra.mxu0 %v4011
        %4894 = vmatprep.subr.bf16.mxu0 %v4010
        %4895 = vmatpush2.bf16.msra.mxu0 %v4009
        %4896 = vmatprep.subr.bf16.mxu0 %v4008
        %4897 = vmatpush2.bf16.msra.mxu0 %v4007
        %4898 = vmatprep.subr.bf16.mxu0 %v4006
        %4899 = vmatpush2.bf16.msra.mxu0 %v4005
        %4900 = vmatprep.subr.bf16.mxu0 %v4004
        %4901 = vmatpush2.bf16.msra.mxu0 %v4003
        %4902 = vmatprep.subr.bf16.mxu0 %v4002
        %4903 = vmatpush2.bf16.msra.mxu0 %v4001
        %4904 = vmatprep.mubr.bf16.mxu0 %v2418
        %4905 = vmatmul.mubr.bf16.gmra.mxu0 %v2416
        %v4906 = vpop.f32.mrf.mxu0
        %v4907 = vadd.f32 %v4866, %v4906
        %v4908 = vpop.f32.mrf.mxu0
        %v4909 = vadd.f32 %v4868, %v4908
        %v4910 = vpop.f32.mrf.mxu0
        %v4911 = vpop.f32.mrf.mxu0
        %4912 = vdwg.mxu0
        %4913 = vmatprep.subr.bf16.mxu0 0
        %4914 = vmatpush1.bf16.msra.mxu0 0
        %4915 = vmatprep.subr.bf16.mxu0 0
        %4916 = vmatpush1.bf16.msra.mxu0 0
        %4917 = vmatprep.subr.bf16.mxu0 0
        %4918 = vmatpush1.bf16.msra.mxu0 0
        %4919 = vmatprep.subr.bf16.mxu0 0
        %4920 = vmatpush1.bf16.msra.mxu0 0
        %4921 = vmatprep.subr.bf16.mxu0 %v4024
        %4922 = vmatpush1.bf16.msra.mxu0 %v4023
        %4923 = vmatprep.subr.bf16.mxu0 %v4022
        %4924 = vmatpush1.bf16.msra.mxu0 %v4021
        %4925 = vmatprep.subr.bf16.mxu0 %v4020
        %4926 = vmatpush1.bf16.msra.mxu0 %v4019
        %4927 = vmatprep.subr.bf16.mxu0 %v4018
        %4928 = vmatpush1.bf16.msra.mxu0 %v4017
        %4929 = vmatprep.subr.bf16.mxu0 0
        %4930 = vmatpush2.bf16.msra.mxu0 0
        %4931 = vmatprep.subr.bf16.mxu0 0
        %4932 = vmatpush2.bf16.msra.mxu0 0
        %4933 = vmatprep.subr.bf16.mxu0 0
        %4934 = vmatpush2.bf16.msra.mxu0 0
        %4935 = vmatprep.subr.bf16.mxu0 0
        %4936 = vmatpush2.bf16.msra.mxu0 0
        %4937 = vmatprep.subr.bf16.mxu0 0
        %4938 = vmatpush2.bf16.msra.mxu0 0
        %4939 = vmatprep.subr.bf16.mxu0 0
        %4940 = vmatpush2.bf16.msra.mxu0 0
        %4941 = vmatprep.subr.bf16.mxu0 0
        %4942 = vmatpush2.bf16.msra.mxu0 0
        %4943 = vmatprep.subr.bf16.mxu0 0
        %4944 = vmatpush2.bf16.msra.mxu0 0
        %4945 = vmatprep.mubr.bf16.mxu0 0
        %4946 = vmatmul.mubr.bf16.gmra.mxu0 %v4419
        %v4947 = vpop.f32.mrf.mxu0
        %v4948 = vadd.f32 %v4907, %v4947
        %v4949 = vpop.f32.mrf.mxu0
        %v4950 = vadd.f32 %v4909, %v4949
        %v4951 = vpop.f32.mrf.mxu0
        %v4952 = vpop.f32.mrf.mxu0
        %4953 = vdwg.mxu0
        %v4954 = vld [vmem:[#allocation2] sm:$0x3]
        %v4955 = vpack.c.bf16 %v4948, %v4948
        %v4956 = vpack.c.bf16 %v4950, %v4950
        %v4957 = vld [vmem:[%s1851] sm:$0xf]
        %v4958 = vld [vmem:[%s1851 + $0x4] sm:$0xf]
        %v4959 = vld [vmem:[%s1851 + $0x8] sm:$0xf]
        %v4960 = vld [vmem:[%s1851 + $0xc] sm:$0xf]
        %v4961 = vld [vmem:[%s1851 + $0x10] sm:$0xf]
        %v4962 = vld [vmem:[%s1851 + $0x14] sm:$0xf]
        %v4963 = vld [vmem:[%s1851 + $0x18] sm:$0xf]
        %v4964 = vld [vmem:[%s1851 + $0x1c] sm:$0xf]
        %v4965 = vld [vmem:[%s1851 + $0x20] sm:$0xf]
        %v4966 = vld [vmem:[%s1851 + $0x24] sm:$0xf]
        %v4967 = vld [vmem:[%s1851 + $0x28] sm:$0xf]
        %v4968 = vld [vmem:[%s1851 + $0x2c] sm:$0xf]
        %v4969 = vld [vmem:[%s1851 + $0x30] sm:$0xf]
        %v4970 = vld [vmem:[%s1851 + $0x34] sm:$0xf]
        %v4971 = vld [vmem:[%s1851 + $0x38] sm:$0xf]
        %v4972 = vld [vmem:[%s1851 + $0x3c] sm:$0xf]
        %v4973 = vld [vmem:[%s1851 + $0x40] sm:$0xf]
        %v4974 = vld [vmem:[%s1851 + $0x44] sm:$0xf]
        %v4975 = vld [vmem:[%s1851 + $0x48] sm:$0xf]
        %v4976 = vld [vmem:[%s1851 + $0x4c] sm:$0xf]
        %v4977 = vld [vmem:[%s1851 + $0x50] sm:$0xf]
        %v4978 = vld [vmem:[%s1851 + $0x54] sm:$0xf]
        %v4979 = vld [vmem:[%s1851 + $0x58] sm:$0xf]
        %v4980 = vld [vmem:[%s1851 + $0x5c] sm:$0xf]
        %v4981 = vld [vmem:[%s1851 + $0x60] sm:$0xf]
        %v4982 = vld [vmem:[%s1851 + $0x64] sm:$0xf]
        %v4983 = vld [vmem:[%s1851 + $0x68] sm:$0xf]
        %v4984 = vld [vmem:[%s1851 + $0x6c] sm:$0xf]
        %v4985 = vld [vmem:[%s1851 + $0x70] sm:$0xf]
        %v4986 = vld [vmem:[%s1851 + $0x74] sm:$0xf]
        %v4987 = vld [vmem:[%s1851 + $0x78] sm:$0xf]
        %v4988 = vld [vmem:[%s1851 + $0x7c] sm:$0xf]
        %v5021 = vunpack.c.l.b16 %v4957
        %v5022 = vunpack.c.l.b16 %v4958
        %v5023 = vunpack.c.l.b16 %v4959
        %v5024 = vunpack.c.l.b16 %v4960
        %v5025 = vunpack.c.l.b16 %v4961
        %v5026 = vunpack.c.l.b16 %v4962
        %v5027 = vunpack.c.l.b16 %v4963
        %v5028 = vunpack.c.l.b16 %v4964
        %v5029 = vunpack.c.l.b16 %v4965
        %v5030 = vunpack.c.l.b16 %v4966
        %v5031 = vunpack.c.l.b16 %v4967
        %v5032 = vunpack.c.l.b16 %v4968
        %v5033 = vunpack.c.l.b16 %v4969
        %v5034 = vunpack.c.l.b16 %v4970
        %v5035 = vunpack.c.l.b16 %v4971
        %v5036 = vunpack.c.l.b16 %v4972
        %v5037 = vunpack.c.l.b16 %v4973
        %v5038 = vunpack.c.l.b16 %v4974
        %v5039 = vunpack.c.l.b16 %v4975
        %v5040 = vunpack.c.l.b16 %v4976
        %v5041 = vunpack.c.l.b16 %v4977
        %v5042 = vunpack.c.l.b16 %v4978
        %v5043 = vunpack.c.l.b16 %v4979
        %v5044 = vunpack.c.l.b16 %v4980
        %v5045 = vunpack.c.l.b16 %v4981
        %v5046 = vunpack.c.l.b16 %v4982
        %v5047 = vunpack.c.l.b16 %v4983
        %v5048 = vunpack.c.l.b16 %v4984
        %v5049 = vunpack.c.l.b16 %v4985
        %v5050 = vunpack.c.l.b16 %v4986
        %v5051 = vunpack.c.l.b16 %v4987
        %v5052 = vunpack.c.l.b16 %v4988
        %v5053 = vpack.c.b16 %v5022, %v5021
        %v5054 = vpack.c.b16 %v5024, %v5023
        %v5055 = vpack.c.b16 %v5026, %v5025
        %v5056 = vpack.c.b16 %v5028, %v5027
        %v5057 = vpack.c.b16 %v5030, %v5029
        %v5058 = vpack.c.b16 %v5032, %v5031
        %v5059 = vpack.c.b16 %v5034, %v5033
        %v5060 = vpack.c.b16 %v5036, %v5035
        %v5061 = vpack.c.b16 %v5038, %v5037
        %v5062 = vpack.c.b16 %v5040, %v5039
        %v5063 = vpack.c.b16 %v5042, %v5041
        %v5064 = vpack.c.b16 %v5044, %v5043
        %v5065 = vpack.c.b16 %v5046, %v5045
        %v5066 = vpack.c.b16 %v5048, %v5047
        %v5067 = vpack.c.b16 %v5050, %v5049
        %v5068 = vpack.c.b16 %v5052, %v5051
        %5085 = vmatprep.subr.bf16.mxu0 0
        %5086 = vmatpush1.bf16.msra.mxu0 %v5060
        %5087 = vmatprep.subr.bf16.mxu0 0
        %5088 = vmatpush1.bf16.msra.mxu0 %v5059
        %5089 = vmatprep.subr.bf16.mxu0 0
        %5090 = vmatpush1.bf16.msra.mxu0 %v5058
        %5091 = vmatprep.subr.bf16.mxu0 0
        %5092 = vmatpush1.bf16.msra.mxu0 %v5057
        %5093 = vmatprep.subr.bf16.mxu0 0
        %5094 = vmatpush1.bf16.msra.mxu0 %v5056
        %5095 = vmatprep.subr.bf16.mxu0 0
        %5096 = vmatpush1.bf16.msra.mxu0 %v5055
        %5097 = vmatprep.subr.bf16.mxu0 0
        %5098 = vmatpush1.bf16.msra.mxu0 %v5054
        %5099 = vmatprep.subr.bf16.mxu0 0
        %5100 = vmatpush1.bf16.msra.mxu0 %v5053
        %5101 = vmatprep.subr.bf16.mxu0 0
        %5102 = vmatpush2.bf16.msra.mxu0 %v5068
        %5103 = vmatprep.subr.bf16.mxu0 0
        %5104 = vmatpush2.bf16.msra.mxu0 %v5067
        %5105 = vmatprep.subr.bf16.mxu0 0
        %5106 = vmatpush2.bf16.msra.mxu0 %v5066
        %5107 = vmatprep.subr.bf16.mxu0 0
        %5108 = vmatpush2.bf16.msra.mxu0 %v5065
        %5109 = vmatprep.subr.bf16.mxu0 0
        %5110 = vmatpush2.bf16.msra.mxu0 %v5064
        %5111 = vmatprep.subr.bf16.mxu0 0
        %5112 = vmatpush2.bf16.msra.mxu0 %v5063
        %5113 = vmatprep.subr.bf16.mxu0 0
        %5114 = vmatpush2.bf16.msra.mxu0 %v5062
        %5115 = vmatprep.subr.bf16.mxu0 0
        %5116 = vmatpush2.bf16.msra.mxu0 %v5061
        %5117 = vmatprep.mubr.bf16.mxu0 %v4956
        %5118 = vmatmul.mubr.bf16.gmra.mxu0 %v4955
        %v5119 = vpop.f32.mrf.mxu0
        %v5120 = vadd.f32 0.0, %v5119
        %v5121 = vpop.f32.mrf.mxu0
        %v5122 = vpop.f32.mrf.mxu0
        %v5123 = vpop.f32.mrf.mxu0
        %5124 = vdwg.mxu0
        %v5125 = vadd.f32 %v4954, %v5120
        %vm5126 = vcmask 74752
        %5127 = vst.msk [vmem:[#allocation2] sm:$0x3] %vm5126, %v5125
        %p5128 = scmp.eq.s32.totalorder %s17, 3
        // Predicated region
        $region83: #{cnn2l_forward.5} parent=73 // pred_check
          %p5129 = pneg %p5128
        $region84: #{cnn2l_forward.5} parent=73 // pred_check_branch
          %5131 = sbr.rel (%p5129) target = $region86
        $region85: #{cnn2l_forward.5} parent=73 // pred_region
          %v5132 = vld [vmem:[#allocation2] sm:$0x3]
          %v5133 = vld [vmem:[%s4] sm:$0x1]
          %v5135 = vlaneseq
          %v5136 = vshrl.u32 %v5135, 7
          %v5137 = vsub.s32 0, %v5136
          %v5138 = vrot.slane %v5133, %v5137
          %v5140 = vadd.f32 %v5132, %v5138
          %5141 = vst.msk [vmem:[#allocation4] sm:$0x3] %vm5126, %v5140
        $region86: #{cnn2l_forward.5} parent=73 // pred_fallthru
          _
        // Predicated region
        $region87: #{cnn2l_forward.5} parent=73 // pred_check
          %p5142 = pneg %p150
        $region88: #{cnn2l_forward.5} parent=73 // pred_check_branch
          %5144 = sbr.rel (%p5142) target = $region90
        $region89: #{cnn2l_forward.5} parent=73 // pred_region
          %s5146 = ssub.s32 32, 32
          %5147 = vsyncadd [#allocation5], %s5146
          %s5149 = sshll.u32 [#allocation4], 4
          %s5150 = int_to_ptr.vmem [resolvable:$true] %s5149
          %5152 = dma.vmem_to_hbm [thread:$0]  %s5150, 32, %s5, [#allocation5]
        $region90: #{cnn2l_forward.5} parent=73 // pred_fallthru
          _
        // Predicated region
        $region91: #{cnn2l_forward.5} parent=73 // pred_check
          %p5153 = pneg %p150
        $region92: #{cnn2l_forward.5} parent=73 // pred_check_branch
          %5155 = sbr.rel (%p5153) target = $region94
        $region93: #{cnn2l_forward.5} parent=73 // pred_region
          %5156 = dma.done [#allocation5], 32
        $region94: #{cnn2l_forward.5} parent=73 // pred_fallthru
          _
      $region74: #{cnn2l_forward.5} parent=5 // pred_fallthru
        _
      %p5157 = scmp.le.s32.totalorder 2, %s12
      // Predicated region
      $region95: #{cnn2l_forward.5} parent=5 // pred_check
        %p5158 = pneg %p5157
      $region96: #{cnn2l_forward.5} parent=5 // pred_check_branch
        %5160 = sbr.rel (%p5158) target = $region98
      $region97: #{cnn2l_forward.5} parent=5 // pred_region
        %s5161 = ssub.s32 %s12, 2
      $region98: #{cnn2l_forward.5} parent=5 // pred_fallthru
        _
    $region6: #{cnn2l_forward.5} parent=1 // loop_footer
      %s16 = sadd.s32 1, %s12
    $region7: #{cnn2l_forward.5} parent=1 // loop_footer_branch
      %11 = sbr.rel target = $region3
    $region8: #{cnn2l_forward.5} parent=1 // loop_exit
      _
    %5162 = vsyncpa [#allocation5], 1
    %s5163 = scalar_lea.sflag [#allocation5], 1
    %5164 = vsyncpa %s5163, 1

</llo_original>
